<compile_context>
chip_gen: v7x
topology: tpu7x:2x2x1
jax: 0.10.0
libtpu: 0.0.40
codegen_flags: <defaults>
</compile_context>

<pallas_src>
import jax
import jax.numpy as jnp
from jax import lax
from jax.experimental import pallas as pl
from jax.experimental.pallas import tpu as pltpu


VEC_PAD = 128  # vector features padded to one 128-lane tile, folded into the linear


# ----------------------------------------------------------------------------
# helpers
# ----------------------------------------------------------------------------
def _elu_f32(z):
    """ELU(alpha=1) in f32.  expm1 is computed cancellation-free: a 2-term Taylor
    series for |z| < 1e-3 (abs err < 2e-10) and exp(z)-1 otherwise (rel err < 6e-5),
    i.e. numerically equivalent to jnp.expm1 while using only ops that are
    guaranteed in the Mosaic elementwise lowering set (exp + VPU arithmetic)."""
    em1_big = jnp.exp(z) - 1.0
    em1_small = z + 0.5 * z * z
    em1 = jnp.where(z > -1e-3, em1_small, em1_big)
    return jnp.where(z > 0.0, z, em1)


def _pick_bb(batch, max_bb):
    """Batch block: small batches run as one block; otherwise a multiple of 8 with
    >= 2 grid steps so the 'parallel' axis can use both TensorCores on v7x."""
    if batch <= 8:
        return batch
    bb = min(-(-batch // 2), max_bb)
    return ((bb + 7) // 8) * 8


# ----------------------------------------------------------------------------
# fused encoder kernel
# ----------------------------------------------------------------------------
def _make_fused_kernel(wlayers, img_hwc, flat, vec_out):
    """wlayers: per-conv static dims in the kernel's transposed-spatial working
    frame: dicts {k, cin, cout, d1, d2} (d1 = original w-extent, d2 = original
    h-extent of that layer's output).  img_hwc = (H, W, C) of the observation."""
    n = len(wlayers)
    H, W, C = img_hwc

    def kernel(*refs):
        img_ref = refs[0]                          # (bb, H, W*C)            bf16
        vec_ref = refs[1]                          # (bb, VEC_PAD)           bf16
        wb = refs[2:2 + 2 * n]                     # (K, cout) bf16 / (1, cout) f32
        wl_ref = refs[2 + 2 * n]                   # (flat + VEC_PAD, vec_out) bf16
        bl_ref = refs[3 + 2 * n]                   # (1, vec_out)            f32
        out_ref = refs[4 + 2 * n]                  # (bb, vec_out)           f32
        pr_refs = refs[5 + 2 * n: 5 + 3 * n]       # patch-matrix scratch    bf16
        act_refs = refs[5 + 3 * n: 4 + 4 * n]      # conv activations (4D)   bf16

        bb = img_ref.shape[0]

        # ---- conv 0 im2col straight from the (H, W*C) image ref --------------
        # For each original output column y, the K-wide patch row is the concat
        # over kernel rows i of the contiguous lane window img[:, i+p, yC:yC+kC].
        l0 = wlayers[0]
        k0, d1_0, d2_0 = l0["k"], l0["d1"], l0["d2"]
        win = k0 * C
        for y in range(d1_0):
            cols = [img_ref[:, i:i + d2_0, y * C: y * C + win] for i in range(k0)]
            pr_refs[0][:, y * d2_0:(y + 1) * d2_0, :] = jnp.concatenate(cols, axis=-1)

        zl = None
        for li, l in enumerate(wlayers):
            k, cin, cout, d1, d2 = l["k"], l["cin"], l["cout"], l["d1"], l["d2"]
            kk = k * k * cin
            m = bb * d1 * d2

            if li > 0:
                # im2col from the previous activation: taps are static REF
                # slices (no value-relayout per tap) grouped into 128-lane stores.
                src = act_refs[li - 1]
                taps = [(ta, tb) for ta in range(k) for tb in range(k)]
                gsz = max(1, 128 // cin)
                for s in range(0, len(taps), gsz):
                    grp = taps[s:s + gsz]
                    pieces = [src[:, ta:ta + d1, tb:tb + d2, :] for (ta, tb) in grp]
                    val = pieces[0] if len(grp) == 1 else jnp.concatenate(pieces, axis=-1)
                    pr_refs[li][:, s * cin:(s + len(grp)) * cin] = (
                        val.reshape(m, len(grp) * cin))

            # one full-depth MXU matmul per conv (bf16 operands, f32 accumulate)
            xp = pr_refs[li][...].reshape(m, kk)
            w_ref, b_ref = wb[2 * li], wb[2 * li + 1]
            z = jnp.dot(xp, w_ref[...], preferred_element_type=jnp.float32) + b_ref[...]

            if li < n - 1:
                act_val = _elu_f32(z).astype(jnp.bfloat16)     # cast once, pre-scatter
                act_refs[li][...] = act_val.reshape(bb, d1, d2, cout)
            else:
                # cnn_encoder ends with nn.ReLU after the ELU: ReLU(ELU(z)) == ReLU(z)
                zl = jnp.maximum(z, 0.0).astype(jnp.bfloat16)

        # ---- SquashDims + concat(vector): build one lane-dense (bb, flat+128)
        #      operand (the flatten order / transpose / concat were folded into
        #      the post-linear weight rows at init). -----------------------------
        last = wlayers[-1]
        s_tot, c_last = last["d1"] * last["d2"], last["cout"]
        x3 = zl.reshape(bb, s_tot, c_last)
        pieces = [x3[:, s, :] for s in range(s_tot)] + [vec_ref[...]]
        e = jnp.concatenate(pieces, axis=-1)                   # (bb, flat + VEC_PAD)

        # ---- post_encoder: Linear + ReLU as a single MXU dot -----------------
        y = jnp.dot(e, wl_ref[...], preferred_element_type=jnp.float32) + bl_ref[...]
        out_ref[...] = jnp.maximum(y, 0.0).astype(out_ref.dtype)

    return kernel


# ----------------------------------------------------------------------------
# builder: deterministic params + fused forward + pure-JAX references
# ----------------------------------------------------------------------------
def build_conv_encoder(key, *, raster_shape=(4, 16, 16), cnn_channels=(16, 32, 64),
                       kernel_sizes=(8, 4, 3), strides=(1, 1, 1),
                       vec_dim=14, vec_out=256, max_batch_block=64):
    assert len(cnn_channels) == len(kernel_sizes) == len(strides)
    # TODO(synk): general strides not implemented in-kernel; module default is stride=1.
    assert all(s == 1 for s in strides), "only stride=1 supported"
    assert vec_dim <= VEC_PAD
    # TODO(synk): _ConvNetBlock internals are not in the spec; assumed Conv2d(valid)+ELU.

    n = len(cnn_channels)
    c0, h0, w0 = raster_shape

    # Per-layer dims.  The kernel works in a spatially-transposed frame (the
    # layer-0 im2col naturally emits (w, h)-ordered rows); the transpose is
    # folded into constant weight-row permutations, so it is free at run time.
    wlayers = []
    cin, hh, ww = c0, h0, w0
    for i in range(n):
        k, cout = int(kernel_sizes[i]), int(cnn_channels[i])
        oh, ow = hh - k + 1, ww - k + 1
        assert oh > 0 and ow > 0
        wlayers.append(dict(k=k, cin=cin, cout=cout, d1=ow, d2=oh))
        cin, hh, ww = cout, oh, ow
    flat = cin * hh * ww                       # cnn_output.size(1) in the module
    last = wlayers[-1]

    # ---- parameters (simple scaled-normal init; forward semantics only) -------
    keys = jax.random.split(key, 2 * n + 2)
    params = {}
    pt_convs = []
    for i, l in enumerate(wlayers):
        k, ci, co = l["k"], l["cin"], l["cout"]
        fan_in = ci * k * k
        w_pt = jax.random.normal(keys[2 * i], (co, ci, k, k), jnp.float32) / jnp.sqrt(fan_in)
        b_pt = 0.01 * jax.random.normal(keys[2 * i + 1], (co,), jnp.float32)
        pt_convs.append((w_pt, b_pt))
        if i == 0:
            # layer-0 patches use original (kh, kw, cin) tap order
            w_mat = jnp.transpose(w_pt, (2, 3, 1, 0)).reshape(fan_in, co)
        else:
            # deeper layers see the transposed frame -> (kw, kh, cin) tap order
            w_mat = jnp.transpose(w_pt, (3, 2, 1, 0)).reshape(fan_in, co)
        params[f"w{i}"] = w_mat.astype(jnp.bfloat16)
        params[f"b{i}"] = b_pt.reshape(1, co)

    lin_in = vec_dim + flat
    w_post_pt = jax.random.normal(keys[-2], (vec_out, lin_in), jnp.float32) / jnp.sqrt(lin_in)
    b_post_pt = 0.01 * jax.random.normal(keys[-1], (vec_out,), jnp.float32)

    # Fold SquashDims' (C,H,W) flatten, the transposed working frame and the
    # concat-with-vector into one (flat + VEC_PAD, vec_out) weight.
    w_t = w_post_pt.T                                          # (lin_in, vec_out)
    c_l, h_l, w_l = last["cout"], last["d2"], last["d1"]
    w_cnn = (w_t[:flat].reshape(c_l, h_l, w_l, vec_out)
             .transpose(2, 1, 0, 3).reshape(flat, vec_out))    # rows in (w, h, c) order
    w_vec = jnp.zeros((VEC_PAD, vec_out), jnp.float32).at[:vec_dim].set(w_t[flat:])
    params["wl"] = jnp.concatenate([w_cnn, w_vec], axis=0).astype(jnp.bfloat16)
    params["bl"] = b_post_pt.reshape(1, vec_out)

    kernel = _make_fused_kernel(wlayers, (h0, w0, c0), flat, vec_out)

    # static per-sample cost (scheduling hint for XLA around the fused call)
    flops_ps = (2 * sum(l["d1"] * l["d2"] * l["k"] * l["k"] * l["cin"] * l["cout"]
                        for l in wlayers)
                + 2 * (flat + VEC_PAD) * vec_out)
    trans_ps = sum(l["d1"] * l["d2"] * l["cout"] for l in wlayers[:-1])
    weight_bytes = sum(int(v.size) * v.dtype.itemsize for v in params.values())

    # ------------------------------- forward ---------------------------------
    def forward(params, observation, vector=None, action=None):
        B = observation.shape[0]
        extras = [e for e in (vector, action) if e is not None]
        if extras:
            vec = jnp.concatenate(extras, axis=-1).astype(jnp.float32)
        else:
            vec = jnp.zeros((B, vec_dim), jnp.float32)
        assert vec.shape == (B, vec_dim), f"expected {vec_dim} extra features, got {vec.shape}"

        # Wrapper glue is only NCHW -> (B, H, W*C) + bf16: ~2 KB/sample of HBM
        # traffic for the kernel input (vs ~83 KB/sample of f32 im2col patches).
        img = jnp.transpose(observation.astype(jnp.float32), (0, 2, 3, 1))
        img = img.reshape(B, h0, w0 * c0).astype(jnp.bfloat16)
        vecp = (jnp.zeros((B, VEC_PAD), jnp.bfloat16)
                .at[:, :vec_dim].set(vec.astype(jnp.bfloat16)))

        bb = _pick_bb(B, max_batch_block)
        steps = -(-B // bb)
        b_pad = steps * bb
        if b_pad != B:                                  # zero-pad the tail block
            img = jnp.pad(img, ((0, b_pad - B), (0, 0), (0, 0)))
            vecp = jnp.pad(vecp, ((0, b_pad - B), (0, 0)))

        in_specs = [
            pl.BlockSpec((bb, h0, w0 * c0), lambda i: (i, 0, 0)),
            pl.BlockSpec((bb, VEC_PAD), lambda i: (i, 0)),
        ]
        ops = [img, vecp]
        for li, l in enumerate(wlayers):
            kk = l["k"] * l["k"] * l["cin"]
            in_specs += [pl.BlockSpec((kk, l["cout"]), lambda i: (0, 0)),
                         pl.BlockSpec((1, l["cout"]), lambda i: (0, 0))]
            ops += [params[f"w{li}"], params[f"b{li}"]]
        in_specs += [pl.BlockSpec((flat + VEC_PAD, vec_out), lambda i: (0, 0)),
                     pl.BlockSpec((1, vec_out), lambda i: (0, 0))]
        ops += [params["wl"], params["bl"]]

        scratch = []
        for li, l in enumerate(wlayers):                # bf16 patch matrices
            kk = l["k"] * l["k"] * l["cin"]
            if li == 0:
                scratch.append(pltpu.VMEM((bb, l["d1"] * l["d2"], kk), jnp.bfloat16))
            else:
                scratch.append(pltpu.VMEM((bb * l["d1"] * l["d2"], kk), jnp.bfloat16))
        for l in wlayers[:-1]:                          # bf16 activations (4D)
            scratch.append(pltpu.VMEM((bb, l["d1"], l["d2"], l["cout"]), jnp.bfloat16))

        cost = pl.CostEstimate(
            flops=b_pad * flops_ps,
            transcendentals=b_pad * trans_ps,
            bytes_accessed=b_pad * (h0 * w0 * c0 * 2 + VEC_PAD * 2 + vec_out * 4)
                           + weight_bytes,
        )

        out = pl.pallas_call(
            kernel,
            out_shape=jax.ShapeDtypeStruct((b_pad, vec_out), jnp.float32),
            grid=(steps,),
            in_specs=in_specs,
            out_specs=pl.BlockSpec((bb, vec_out), lambda i: (i, 0)),
            scratch_shapes=scratch,
            compiler_params=pltpu.CompilerParams(
                dimension_semantics=("parallel",),      # batch blocks -> v7x 2nd TC
                vmem_limit_bytes=32 * 1024 * 1024,
            ),
            cost_estimate=cost,
        )(*ops)
        return out[:B]

    # ------------------------ pure-JAX references -----------------------------
    def reference_forward(observation, vector=None, action=None):
        # full-f32 reference with the true module semantics
        x = observation.astype(jnp.float32)
        for (wp, bp) in pt_convs:
            x = lax.conv_general_dilated(x, wp, (1, 1), "VALID",
                                         dimension_numbers=("NCHW", "OIHW", "NCHW"))
            x = x + bp.reshape(1, -1, 1, 1)
            x = jnp.where(x > 0, x, jnp.expm1(x))                # ELU
        x = jnp.maximum(x, 0.0)                                  # trailing ReLU
        x = x.reshape(x.shape[0], -1)                            # SquashDims (C,H,W)
        parts = [x] + [e for e in (vector, action) if e is not None]
        e = jnp.concatenate(parts, axis=-1)
        return jnp.maximum(e @ w_post_pt.T + b_post_pt, 0.0)

    def reference_forward_bf16(observation, vector=None, action=None):
        # precision-matched reference (bf16 MXU operands / activations, f32 math)
        x = observation.astype(jnp.float32)
        for li, (wp, bp) in enumerate(pt_convs):
            z = lax.conv_general_dilated(x.astype(jnp.bfloat16), wp.astype(jnp.bfloat16),
                                         (1, 1), "VALID",
                                         dimension_numbers=("NCHW", "OIHW", "NCHW"),
                                         preferred_element_type=jnp.float32)
            z = z + bp.reshape(1, -1, 1, 1)
            if li < len(pt_convs) - 1:
                x = jnp.where(z > 0, z, jnp.expm1(z)).astype(jnp.bfloat16).astype(jnp.float32)
            else:
                x = jnp.maximum(z, 0.0)
        x = x.astype(jnp.bfloat16).astype(jnp.float32).reshape(x.shape[0], -1)
        parts = [x] + [e for e in (vector, action) if e is not None]
        e = jnp.concatenate(parts, axis=-1).astype(jnp.bfloat16)
        y = jnp.dot(e, w_post_pt.T.astype(jnp.bfloat16),
                    preferred_element_type=jnp.float32) + b_post_pt
        return jnp.maximum(y, 0.0)

    return params, forward, reference_forward, reference_forward_bf16


# ----------------------------------------------------------------------------
# demo
# ----------------------------------------------------------------------------
if __name__ == "__main__":
    key = jax.random.PRNGKey(0)
    k_param, k_obs, k_vec = jax.random.split(key, 3)

    raster_shape = (4, 16, 16)          # (C, H, W)
    batch, vec_dim = 2, 14

    params, forward, reference_forward, reference_forward_bf16 = build_conv_encoder(
        k_param, raster_shape=raster_shape, vec_dim=vec_dim)
    fwd = jax.jit(forward)

    observation = jax.random.normal(k_obs, (batch, *raster_shape), jnp.float32)  # NCHW
    vector = jax.random.normal(k_vec, (batch, vec_dim), jnp.float32)

    out = jax.block_until_ready(fwd(params, observation, vector=vector))

    assert out.shape == (batch, 256) and out.dtype == jnp.float32
    assert bool(jnp.all(jnp.isfinite(out)))

    # tight check vs the precision-matched (bf16-operand) reference ...
    ref_bf16 = reference_forward_bf16(observation, vector=vector)
    err_bf16 = float(jnp.max(jnp.abs(out - ref_bf16)))
    assert bool(jnp.allclose(out, ref_bf16, rtol=1e-2, atol=1e-2)), err_bf16

    # ... and a sanity check vs the full-f32 module semantics
    ref_f32 = reference_forward(observation, vector=vector)
    err_f32 = float(jnp.max(jnp.abs(out - ref_f32)))
    assert bool(jnp.allclose(out, ref_f32, rtol=1e-1, atol=1e-1)), err_f32

    print("KERNEL_OK")
</pallas_src>

<mosaic_0001>
module attributes {stable_mosaic.version = 11 : i64} {
  func.func @kernel(%arg0: i32, %arg1: memref<2x16x64xbf16, #tpu.memory_space<vmem>>, %arg2: memref<2x128xbf16, #tpu.memory_space<vmem>>, %arg3: memref<256x16xbf16, #tpu.memory_space<vmem>>, %arg4: memref<1x16xf32, #tpu.memory_space<vmem>>, %arg5: memref<256x32xbf16, #tpu.memory_space<vmem>>, %arg6: memref<1x32xf32, #tpu.memory_space<vmem>>, %arg7: memref<288x64xbf16, #tpu.memory_space<vmem>>, %arg8: memref<1x64xf32, #tpu.memory_space<vmem>>, %arg9: memref<1152x256xbf16, #tpu.memory_space<vmem>>, %arg10: memref<1x256xf32, #tpu.memory_space<vmem>>, %arg11: memref<2x256xf32, #tpu.memory_space<vmem>>, %arg12: memref<2x81x256xbf16, #tpu.memory_space<vmem>>, %arg13: memref<72x256xbf16, #tpu.memory_space<vmem>>, %arg14: memref<32x288xbf16, #tpu.memory_space<vmem>>, %arg15: memref<2x9x9x16xbf16, #tpu.memory_space<vmem>>, %arg16: memref<2x6x6x32xbf16, #tpu.memory_space<vmem>>) attributes {dimension_semantics = [#tpu.dimension_semantics<parallel>], iteration_bounds = array<i64: 1>, scalar_prefetch = 0 : i64, scratch_operands = 5 : i64, tpu.core_type = #tpu.core_type<tc>, window_params = [{transform_indices = @transform_0, window_bounds = array<i64: 2, 16, 64>}, {transform_indices = @transform_1, window_bounds = array<i64: 2, 128>}, {pipeline_mode = #tpu.pipeline_mode<synchronous>, transform_indices = @transform_2, window_bounds = array<i64: 256, 16>}, {pipeline_mode = #tpu.pipeline_mode<synchronous>, transform_indices = @transform_3, window_bounds = array<i64: 1, 16>}, {pipeline_mode = #tpu.pipeline_mode<synchronous>, transform_indices = @transform_4, window_bounds = array<i64: 256, 32>}, {pipeline_mode = #tpu.pipeline_mode<synchronous>, transform_indices = @transform_5, window_bounds = array<i64: 1, 32>}, {pipeline_mode = #tpu.pipeline_mode<synchronous>, transform_indices = @transform_6, window_bounds = array<i64: 288, 64>}, {pipeline_mode = #tpu.pipeline_mode<synchronous>, transform_indices = @transform_7, window_bounds = array<i64: 1, 64>}, {pipeline_mode = #tpu.pipeline_mode<synchronous>, transform_indices = @transform_8, window_bounds = array<i64: 1152, 256>}, {pipeline_mode = #tpu.pipeline_mode<synchronous>, transform_indices = @transform_9, window_bounds = array<i64: 1, 256>}, {transform_indices = @transform_10, window_bounds = array<i64: 2, 256>}]} {
    %c0 = arith.constant 0 : index
    %c0_0 = arith.constant 0 : index
    %c0_1 = arith.constant 0 : index
    %0 = vector.load %arg1[%c0, %c0_0, %c0_1] : memref<2x16x64xbf16, #tpu.memory_space<vmem>>, vector<2x9x32xbf16>
    %c0_2 = arith.constant 0 : index
    %c1 = arith.constant 1 : index
    %c0_3 = arith.constant 0 : index
    %1 = vector.load %arg1[%c0_2, %c1, %c0_3] : memref<2x16x64xbf16, #tpu.memory_space<vmem>>, vector<2x9x32xbf16>
    %c0_4 = arith.constant 0 : index
    %c2 = arith.constant 2 : index
    %c0_5 = arith.constant 0 : index
    %2 = vector.load %arg1[%c0_4, %c2, %c0_5] : memref<2x16x64xbf16, #tpu.memory_space<vmem>>, vector<2x9x32xbf16>
    %c0_6 = arith.constant 0 : index
    %c3 = arith.constant 3 : index
    %c0_7 = arith.constant 0 : index
    %3 = vector.load %arg1[%c0_6, %c3, %c0_7] : memref<2x16x64xbf16, #tpu.memory_space<vmem>>, vector<2x9x32xbf16>
    %c0_8 = arith.constant 0 : index
    %c4 = arith.constant 4 : index
    %c0_9 = arith.constant 0 : index
    %4 = vector.load %arg1[%c0_8, %c4, %c0_9] : memref<2x16x64xbf16, #tpu.memory_space<vmem>>, vector<2x9x32xbf16>
    %c0_10 = arith.constant 0 : index
    %c5 = arith.constant 5 : index
    %c0_11 = arith.constant 0 : index
    %5 = vector.load %arg1[%c0_10, %c5, %c0_11] : memref<2x16x64xbf16, #tpu.memory_space<vmem>>, vector<2x9x32xbf16>
    %c0_12 = arith.constant 0 : index
    %c6 = arith.constant 6 : index
    %c0_13 = arith.constant 0 : index
    %6 = vector.load %arg1[%c0_12, %c6, %c0_13] : memref<2x16x64xbf16, #tpu.memory_space<vmem>>, vector<2x9x32xbf16>
    %c0_14 = arith.constant 0 : index
    %c7 = arith.constant 7 : index
    %c0_15 = arith.constant 0 : index
    %7 = vector.load %arg1[%c0_14, %c7, %c0_15] : memref<2x16x64xbf16, #tpu.memory_space<vmem>>, vector<2x9x32xbf16>
    %8 = tpu.concatenate %0, %1, %2, %3, %4, %5, %6, %7 in 2 : vector<2x9x32xbf16>, vector<2x9x32xbf16>, vector<2x9x32xbf16>, vector<2x9x32xbf16>, vector<2x9x32xbf16>, vector<2x9x32xbf16>, vector<2x9x32xbf16>, vector<2x9x32xbf16> -> vector<2x9x256xbf16>
    %c0_16 = arith.constant 0 : index
    %c0_17 = arith.constant 0 : index
    %c0_18 = arith.constant 0 : index
    %9 = vector.load %arg12[%c0_16, %c0_17, %c0_18] : memref<2x81x256xbf16, #tpu.memory_space<vmem>>, vector<2x9x256xbf16>
    tpu.vector_store %arg12[%c0_16, %c0_17, %c0_18], %8 {strides = array<i32>} : memref<2x81x256xbf16, #tpu.memory_space<vmem>>, vector<2x9x256xbf16>,
    %c0_19 = arith.constant 0 : index
    %c0_20 = arith.constant 0 : index
    %c4_21 = arith.constant 4 : index
    %10 = vector.load %arg1[%c0_19, %c0_20, %c4_21] : memref<2x16x64xbf16, #tpu.memory_space<vmem>>, vector<2x9x32xbf16>
    %c0_22 = arith.constant 0 : index
    %c1_23 = arith.constant 1 : index
    %c4_24 = arith.constant 4 : index
    %11 = vector.load %arg1[%c0_22, %c1_23, %c4_24] : memref<2x16x64xbf16, #tpu.memory_space<vmem>>, vector<2x9x32xbf16>
    %c0_25 = arith.constant 0 : index
    %c2_26 = arith.constant 2 : index
    %c4_27 = arith.constant 4 : index
    %12 = vector.load %arg1[%c0_25, %c2_26, %c4_27] : memref<2x16x64xbf16, #tpu.memory_space<vmem>>, vector<2x9x32xbf16>
    %c0_28 = arith.constant 0 : index
    %c3_29 = arith.constant 3 : index
    %c4_30 = arith.constant 4 : index
    %13 = vector.load %arg1[%c0_28, %c3_29, %c4_30] : memref<2x16x64xbf16, #tpu.memory_space<vmem>>, vector<2x9x32xbf16>
    %c0_31 = arith.constant 0 : index
    %c4_32 = arith.constant 4 : index
    %c4_33 = arith.constant 4 : index
    %14 = vector.load %arg1[%c0_31, %c4_32, %c4_33] : memref<2x16x64xbf16, #tpu.memory_space<vmem>>, vector<2x9x32xbf16>
    %c0_34 = arith.constant 0 : index
    %c5_35 = arith.constant 5 : index
    %c4_36 = arith.constant 4 : index
    %15 = vector.load %arg1[%c0_34, %c5_35, %c4_36] : memref<2x16x64xbf16, #tpu.memory_space<vmem>>, vector<2x9x32xbf16>
    %c0_37 = arith.constant 0 : index
    %c6_38 = arith.constant 6 : index
    %c4_39 = arith.constant 4 : index
    %16 = vector.load %arg1[%c0_37, %c6_38, %c4_39] : memref<2x16x64xbf16, #tpu.memory_space<vmem>>, vector<2x9x32xbf16>
    %c0_40 = arith.constant 0 : index
    %c7_41 = arith.constant 7 : index
    %c4_42 = arith.constant 4 : index
    %17 = vector.load %arg1[%c0_40, %c7_41, %c4_42] : memref<2x16x64xbf16, #tpu.memory_space<vmem>>, vector<2x9x32xbf16>
    %18 = tpu.concatenate %10, %11, %12, %13, %14, %15, %16, %17 in 2 : vector<2x9x32xbf16>, vector<2x9x32xbf16>, vector<2x9x32xbf16>, vector<2x9x32xbf16>, vector<2x9x32xbf16>, vector<2x9x32xbf16>, vector<2x9x32xbf16>, vector<2x9x32xbf16> -> vector<2x9x256xbf16>
    %c0_43 = arith.constant 0 : index
    %c9 = arith.constant 9 : index
    %c0_44 = arith.constant 0 : index
    %19 = vector.load %arg12[%c0_43, %c9, %c0_44] : memref<2x81x256xbf16, #tpu.memory_space<vmem>>, vector<2x9x256xbf16>
    tpu.vector_store %arg12[%c0_43, %c9, %c0_44], %18 {strides = array<i32>} : memref<2x81x256xbf16, #tpu.memory_space<vmem>>, vector<2x9x256xbf16>,
    %c0_45 = arith.constant 0 : index
    %c0_46 = arith.constant 0 : index
    %c8 = arith.constant 8 : index
    %20 = vector.load %arg1[%c0_45, %c0_46, %c8] : memref<2x16x64xbf16, #tpu.memory_space<vmem>>, vector<2x9x32xbf16>
    %c0_47 = arith.constant 0 : index
    %c1_48 = arith.constant 1 : index
    %c8_49 = arith.constant 8 : index
    %21 = vector.load %arg1[%c0_47, %c1_48, %c8_49] : memref<2x16x64xbf16, #tpu.memory_space<vmem>>, vector<2x9x32xbf16>
    %c0_50 = arith.constant 0 : index
    %c2_51 = arith.constant 2 : index
    %c8_52 = arith.constant 8 : index
    %22 = vector.load %arg1[%c0_50, %c2_51, %c8_52] : memref<2x16x64xbf16, #tpu.memory_space<vmem>>, vector<2x9x32xbf16>
    %c0_53 = arith.constant 0 : index
    %c3_54 = arith.constant 3 : index
    %c8_55 = arith.constant 8 : index
    %23 = vector.load %arg1[%c0_53, %c3_54, %c8_55] : memref<2x16x64xbf16, #tpu.memory_space<vmem>>, vector<2x9x32xbf16>
    %c0_56 = arith.constant 0 : index
    %c4_57 = arith.constant 4 : index
    %c8_58 = arith.constant 8 : index
    %24 = vector.load %arg1[%c0_56, %c4_57, %c8_58] : memref<2x16x64xbf16, #tpu.memory_space<vmem>>, vector<2x9x32xbf16>
    %c0_59 = arith.constant 0 : index
    %c5_60 = arith.constant 5 : index
    %c8_61 = arith.constant 8 : index
    %25 = vector.load %arg1[%c0_59, %c5_60, %c8_61] : memref<2x16x64xbf16, #tpu.memory_space<vmem>>, vector<2x9x32xbf16>
    %c0_62 = arith.constant 0 : index
    %c6_63 = arith.constant 6 : index
    %c8_64 = arith.constant 8 : index
    %26 = vector.load %arg1[%c0_62, %c6_63, %c8_64] : memref<2x16x64xbf16, #tpu.memory_space<vmem>>, vector<2x9x32xbf16>
    %c0_65 = arith.constant 0 : index
    %c7_66 = arith.constant 7 : index
    %c8_67 = arith.constant 8 : index
    %27 = vector.load %arg1[%c0_65, %c7_66, %c8_67] : memref<2x16x64xbf16, #tpu.memory_space<vmem>>, vector<2x9x32xbf16>
    %28 = tpu.concatenate %20, %21, %22, %23, %24, %25, %26, %27 in 2 : vector<2x9x32xbf16>, vector<2x9x32xbf16>, vector<2x9x32xbf16>, vector<2x9x32xbf16>, vector<2x9x32xbf16>, vector<2x9x32xbf16>, vector<2x9x32xbf16>, vector<2x9x32xbf16> -> vector<2x9x256xbf16>
    %c0_68 = arith.constant 0 : index
    %c18 = arith.constant 18 : index
    %c0_69 = arith.constant 0 : index
    %29 = vector.load %arg12[%c0_68, %c18, %c0_69] : memref<2x81x256xbf16, #tpu.memory_space<vmem>>, vector<2x9x256xbf16>
    tpu.vector_store %arg12[%c0_68, %c18, %c0_69], %28 {strides = array<i32>} : memref<2x81x256xbf16, #tpu.memory_space<vmem>>, vector<2x9x256xbf16>,
    %c0_70 = arith.constant 0 : index
    %c0_71 = arith.constant 0 : index
    %c12 = arith.constant 12 : index
    %30 = vector.load %arg1[%c0_70, %c0_71, %c12] : memref<2x16x64xbf16, #tpu.memory_space<vmem>>, vector<2x9x32xbf16>
    %c0_72 = arith.constant 0 : index
    %c1_73 = arith.constant 1 : index
    %c12_74 = arith.constant 12 : index
    %31 = vector.load %arg1[%c0_72, %c1_73, %c12_74] : memref<2x16x64xbf16, #tpu.memory_space<vmem>>, vector<2x9x32xbf16>
    %c0_75 = arith.constant 0 : index
    %c2_76 = arith.constant 2 : index
    %c12_77 = arith.constant 12 : index
    %32 = vector.load %arg1[%c0_75, %c2_76, %c12_77] : memref<2x16x64xbf16, #tpu.memory_space<vmem>>, vector<2x9x32xbf16>
    %c0_78 = arith.constant 0 : index
    %c3_79 = arith.constant 3 : index
    %c12_80 = arith.constant 12 : index
    %33 = vector.load %arg1[%c0_78, %c3_79, %c12_80] : memref<2x16x64xbf16, #tpu.memory_space<vmem>>, vector<2x9x32xbf16>
    %c0_81 = arith.constant 0 : index
    %c4_82 = arith.constant 4 : index
    %c12_83 = arith.constant 12 : index
    %34 = vector.load %arg1[%c0_81, %c4_82, %c12_83] : memref<2x16x64xbf16, #tpu.memory_space<vmem>>, vector<2x9x32xbf16>
    %c0_84 = arith.constant 0 : index
    %c5_85 = arith.constant 5 : index
    %c12_86 = arith.constant 12 : index
    %35 = vector.load %arg1[%c0_84, %c5_85, %c12_86] : memref<2x16x64xbf16, #tpu.memory_space<vmem>>, vector<2x9x32xbf16>
    %c0_87 = arith.constant 0 : index
    %c6_88 = arith.constant 6 : index
    %c12_89 = arith.constant 12 : index
    %36 = vector.load %arg1[%c0_87, %c6_88, %c12_89] : memref<2x16x64xbf16, #tpu.memory_space<vmem>>, vector<2x9x32xbf16>
    %c0_90 = arith.constant 0 : index
    %c7_91 = arith.constant 7 : index
    %c12_92 = arith.constant 12 : index
    %37 = vector.load %arg1[%c0_90, %c7_91, %c12_92] : memref<2x16x64xbf16, #tpu.memory_space<vmem>>, vector<2x9x32xbf16>
    %38 = tpu.concatenate %30, %31, %32, %33, %34, %35, %36, %37 in 2 : vector<2x9x32xbf16>, vector<2x9x32xbf16>, vector<2x9x32xbf16>, vector<2x9x32xbf16>, vector<2x9x32xbf16>, vector<2x9x32xbf16>, vector<2x9x32xbf16>, vector<2x9x32xbf16> -> vector<2x9x256xbf16>
    %c0_93 = arith.constant 0 : index
    %c27 = arith.constant 27 : index
    %c0_94 = arith.constant 0 : index
    %39 = vector.load %arg12[%c0_93, %c27, %c0_94] : memref<2x81x256xbf16, #tpu.memory_space<vmem>>, vector<2x9x256xbf16>
    tpu.vector_store %arg12[%c0_93, %c27, %c0_94], %38 {strides = array<i32>} : memref<2x81x256xbf16, #tpu.memory_space<vmem>>, vector<2x9x256xbf16>,
    %c0_95 = arith.constant 0 : index
    %c0_96 = arith.constant 0 : index
    %c16 = arith.constant 16 : index
    %40 = vector.load %arg1[%c0_95, %c0_96, %c16] : memref<2x16x64xbf16, #tpu.memory_space<vmem>>, vector<2x9x32xbf16>
    %c0_97 = arith.constant 0 : index
    %c1_98 = arith.constant 1 : index
    %c16_99 = arith.constant 16 : index
    %41 = vector.load %arg1[%c0_97, %c1_98, %c16_99] : memref<2x16x64xbf16, #tpu.memory_space<vmem>>, vector<2x9x32xbf16>
    %c0_100 = arith.constant 0 : index
    %c2_101 = arith.constant 2 : index
    %c16_102 = arith.constant 16 : index
    %42 = vector.load %arg1[%c0_100, %c2_101, %c16_102] : memref<2x16x64xbf16, #tpu.memory_space<vmem>>, vector<2x9x32xbf16>
    %c0_103 = arith.constant 0 : index
    %c3_104 = arith.constant 3 : index
    %c16_105 = arith.constant 16 : index
    %43 = vector.load %arg1[%c0_103, %c3_104, %c16_105] : memref<2x16x64xbf16, #tpu.memory_space<vmem>>, vector<2x9x32xbf16>
    %c0_106 = arith.constant 0 : index
    %c4_107 = arith.constant 4 : index
    %c16_108 = arith.constant 16 : index
    %44 = vector.load %arg1[%c0_106, %c4_107, %c16_108] : memref<2x16x64xbf16, #tpu.memory_space<vmem>>, vector<2x9x32xbf16>
    %c0_109 = arith.constant 0 : index
    %c5_110 = arith.constant 5 : index
    %c16_111 = arith.constant 16 : index
    %45 = vector.load %arg1[%c0_109, %c5_110, %c16_111] : memref<2x16x64xbf16, #tpu.memory_space<vmem>>, vector<2x9x32xbf16>
    %c0_112 = arith.constant 0 : index
    %c6_113 = arith.constant 6 : index
    %c16_114 = arith.constant 16 : index
    %46 = vector.load %arg1[%c0_112, %c6_113, %c16_114] : memref<2x16x64xbf16, #tpu.memory_space<vmem>>, vector<2x9x32xbf16>
    %c0_115 = arith.constant 0 : index
    %c7_116 = arith.constant 7 : index
    %c16_117 = arith.constant 16 : index
    %47 = vector.load %arg1[%c0_115, %c7_116, %c16_117] : memref<2x16x64xbf16, #tpu.memory_space<vmem>>, vector<2x9x32xbf16>
    %48 = tpu.concatenate %40, %41, %42, %43, %44, %45, %46, %47 in 2 : vector<2x9x32xbf16>, vector<2x9x32xbf16>, vector<2x9x32xbf16>, vector<2x9x32xbf16>, vector<2x9x32xbf16>, vector<2x9x32xbf16>, vector<2x9x32xbf16>, vector<2x9x32xbf16> -> vector<2x9x256xbf16>
    %c0_118 = arith.constant 0 : index
    %c36 = arith.constant 36 : index
    %c0_119 = arith.constant 0 : index
    %49 = vector.load %arg12[%c0_118, %c36, %c0_119] : memref<2x81x256xbf16, #tpu.memory_space<vmem>>, vector<2x9x256xbf16>
    tpu.vector_store %arg12[%c0_118, %c36, %c0_119], %48 {strides = array<i32>} : memref<2x81x256xbf16, #tpu.memory_space<vmem>>, vector<2x9x256xbf16>,
    %c0_120 = arith.constant 0 : index
    %c0_121 = arith.constant 0 : index
    %c20 = arith.constant 20 : index
    %50 = vector.load %arg1[%c0_120, %c0_121, %c20] : memref<2x16x64xbf16, #tpu.memory_space<vmem>>, vector<2x9x32xbf16>
    %c0_122 = arith.constant 0 : index
    %c1_123 = arith.constant 1 : index
    %c20_124 = arith.constant 20 : index
    %51 = vector.load %arg1[%c0_122, %c1_123, %c20_124] : memref<2x16x64xbf16, #tpu.memory_space<vmem>>, vector<2x9x32xbf16>
    %c0_125 = arith.constant 0 : index
    %c2_126 = arith.constant 2 : index
    %c20_127 = arith.constant 20 : index
    %52 = vector.load %arg1[%c0_125, %c2_126, %c20_127] : memref<2x16x64xbf16, #tpu.memory_space<vmem>>, vector<2x9x32xbf16>
    %c0_128 = arith.constant 0 : index
    %c3_129 = arith.constant 3 : index
    %c20_130 = arith.constant 20 : index
    %53 = vector.load %arg1[%c0_128, %c3_129, %c20_130] : memref<2x16x64xbf16, #tpu.memory_space<vmem>>, vector<2x9x32xbf16>
    %c0_131 = arith.constant 0 : index
    %c4_132 = arith.constant 4 : index
    %c20_133 = arith.constant 20 : index
    %54 = vector.load %arg1[%c0_131, %c4_132, %c20_133] : memref<2x16x64xbf16, #tpu.memory_space<vmem>>, vector<2x9x32xbf16>
    %c0_134 = arith.constant 0 : index
    %c5_135 = arith.constant 5 : index
    %c20_136 = arith.constant 20 : index
    %55 = vector.load %arg1[%c0_134, %c5_135, %c20_136] : memref<2x16x64xbf16, #tpu.memory_space<vmem>>, vector<2x9x32xbf16>
    %c0_137 = arith.constant 0 : index
    %c6_138 = arith.constant 6 : index
    %c20_139 = arith.constant 20 : index
    %56 = vector.load %arg1[%c0_137, %c6_138, %c20_139] : memref<2x16x64xbf16, #tpu.memory_space<vmem>>, vector<2x9x32xbf16>
    %c0_140 = arith.constant 0 : index
    %c7_141 = arith.constant 7 : index
    %c20_142 = arith.constant 20 : index
    %57 = vector.load %arg1[%c0_140, %c7_141, %c20_142] : memref<2x16x64xbf16, #tpu.memory_space<vmem>>, vector<2x9x32xbf16>
    %58 = tpu.concatenate %50, %51, %52, %53, %54, %55, %56, %57 in 2 : vector<2x9x32xbf16>, vector<2x9x32xbf16>, vector<2x9x32xbf16>, vector<2x9x32xbf16>, vector<2x9x32xbf16>, vector<2x9x32xbf16>, vector<2x9x32xbf16>, vector<2x9x32xbf16> -> vector<2x9x256xbf16>
    %c0_143 = arith.constant 0 : index
    %c45 = arith.constant 45 : index
    %c0_144 = arith.constant 0 : index
    %59 = vector.load %arg12[%c0_143, %c45, %c0_144] : memref<2x81x256xbf16, #tpu.memory_space<vmem>>, vector<2x9x256xbf16>
    tpu.vector_store %arg12[%c0_143, %c45, %c0_144], %58 {strides = array<i32>} : memref<2x81x256xbf16, #tpu.memory_space<vmem>>, vector<2x9x256xbf16>,
    %c0_145 = arith.constant 0 : index
    %c0_146 = arith.constant 0 : index
    %c24 = arith.constant 24 : index
    %60 = vector.load %arg1[%c0_145, %c0_146, %c24] : memref<2x16x64xbf16, #tpu.memory_space<vmem>>, vector<2x9x32xbf16>
    %c0_147 = arith.constant 0 : index
    %c1_148 = arith.constant 1 : index
    %c24_149 = arith.constant 24 : index
    %61 = vector.load %arg1[%c0_147, %c1_148, %c24_149] : memref<2x16x64xbf16, #tpu.memory_space<vmem>>, vector<2x9x32xbf16>
    %c0_150 = arith.constant 0 : index
    %c2_151 = arith.constant 2 : index
    %c24_152 = arith.constant 24 : index
    %62 = vector.load %arg1[%c0_150, %c2_151, %c24_152] : memref<2x16x64xbf16, #tpu.memory_space<vmem>>, vector<2x9x32xbf16>
    %c0_153 = arith.constant 0 : index
    %c3_154 = arith.constant 3 : index
    %c24_155 = arith.constant 24 : index
    %63 = vector.load %arg1[%c0_153, %c3_154, %c24_155] : memref<2x16x64xbf16, #tpu.memory_space<vmem>>, vector<2x9x32xbf16>
    %c0_156 = arith.constant 0 : index
    %c4_157 = arith.constant 4 : index
    %c24_158 = arith.constant 24 : index
    %64 = vector.load %arg1[%c0_156, %c4_157, %c24_158] : memref<2x16x64xbf16, #tpu.memory_space<vmem>>, vector<2x9x32xbf16>
    %c0_159 = arith.constant 0 : index
    %c5_160 = arith.constant 5 : index
    %c24_161 = arith.constant 24 : index
    %65 = vector.load %arg1[%c0_159, %c5_160, %c24_161] : memref<2x16x64xbf16, #tpu.memory_space<vmem>>, vector<2x9x32xbf16>
    %c0_162 = arith.constant 0 : index
    %c6_163 = arith.constant 6 : index
    %c24_164 = arith.constant 24 : index
    %66 = vector.load %arg1[%c0_162, %c6_163, %c24_164] : memref<2x16x64xbf16, #tpu.memory_space<vmem>>, vector<2x9x32xbf16>
    %c0_165 = arith.constant 0 : index
    %c7_166 = arith.constant 7 : index
    %c24_167 = arith.constant 24 : index
    %67 = vector.load %arg1[%c0_165, %c7_166, %c24_167] : memref<2x16x64xbf16, #tpu.memory_space<vmem>>, vector<2x9x32xbf16>
    %68 = tpu.concatenate %60, %61, %62, %63, %64, %65, %66, %67 in 2 : vector<2x9x32xbf16>, vector<2x9x32xbf16>, vector<2x9x32xbf16>, vector<2x9x32xbf16>, vector<2x9x32xbf16>, vector<2x9x32xbf16>, vector<2x9x32xbf16>, vector<2x9x32xbf16> -> vector<2x9x256xbf16>
    %c0_168 = arith.constant 0 : index
    %c54 = arith.constant 54 : index
    %c0_169 = arith.constant 0 : index
    %69 = vector.load %arg12[%c0_168, %c54, %c0_169] : memref<2x81x256xbf16, #tpu.memory_space<vmem>>, vector<2x9x256xbf16>
    tpu.vector_store %arg12[%c0_168, %c54, %c0_169], %68 {strides = array<i32>} : memref<2x81x256xbf16, #tpu.memory_space<vmem>>, vector<2x9x256xbf16>,
    %c0_170 = arith.constant 0 : index
    %c0_171 = arith.constant 0 : index
    %c28 = arith.constant 28 : index
    %70 = vector.load %arg1[%c0_170, %c0_171, %c28] : memref<2x16x64xbf16, #tpu.memory_space<vmem>>, vector<2x9x32xbf16>
    %c0_172 = arith.constant 0 : index
    %c1_173 = arith.constant 1 : index
    %c28_174 = arith.constant 28 : index
    %71 = vector.load %arg1[%c0_172, %c1_173, %c28_174] : memref<2x16x64xbf16, #tpu.memory_space<vmem>>, vector<2x9x32xbf16>
    %c0_175 = arith.constant 0 : index
    %c2_176 = arith.constant 2 : index
    %c28_177 = arith.constant 28 : index
    %72 = vector.load %arg1[%c0_175, %c2_176, %c28_177] : memref<2x16x64xbf16, #tpu.memory_space<vmem>>, vector<2x9x32xbf16>
    %c0_178 = arith.constant 0 : index
    %c3_179 = arith.constant 3 : index
    %c28_180 = arith.constant 28 : index
    %73 = vector.load %arg1[%c0_178, %c3_179, %c28_180] : memref<2x16x64xbf16, #tpu.memory_space<vmem>>, vector<2x9x32xbf16>
    %c0_181 = arith.constant 0 : index
    %c4_182 = arith.constant 4 : index
    %c28_183 = arith.constant 28 : index
    %74 = vector.load %arg1[%c0_181, %c4_182, %c28_183] : memref<2x16x64xbf16, #tpu.memory_space<vmem>>, vector<2x9x32xbf16>
    %c0_184 = arith.constant 0 : index
    %c5_185 = arith.constant 5 : index
    %c28_186 = arith.constant 28 : index
    %75 = vector.load %arg1[%c0_184, %c5_185, %c28_186] : memref<2x16x64xbf16, #tpu.memory_space<vmem>>, vector<2x9x32xbf16>
    %c0_187 = arith.constant 0 : index
    %c6_188 = arith.constant 6 : index
    %c28_189 = arith.constant 28 : index
    %76 = vector.load %arg1[%c0_187, %c6_188, %c28_189] : memref<2x16x64xbf16, #tpu.memory_space<vmem>>, vector<2x9x32xbf16>
    %c0_190 = arith.constant 0 : index
    %c7_191 = arith.constant 7 : index
    %c28_192 = arith.constant 28 : index
    %77 = vector.load %arg1[%c0_190, %c7_191, %c28_192] : memref<2x16x64xbf16, #tpu.memory_space<vmem>>, vector<2x9x32xbf16>
    %78 = tpu.concatenate %70, %71, %72, %73, %74, %75, %76, %77 in 2 : vector<2x9x32xbf16>, vector<2x9x32xbf16>, vector<2x9x32xbf16>, vector<2x9x32xbf16>, vector<2x9x32xbf16>, vector<2x9x32xbf16>, vector<2x9x32xbf16>, vector<2x9x32xbf16> -> vector<2x9x256xbf16>
    %c0_193 = arith.constant 0 : index
    %c63 = arith.constant 63 : index
    %c0_194 = arith.constant 0 : index
    %79 = vector.load %arg12[%c0_193, %c63, %c0_194] : memref<2x81x256xbf16, #tpu.memory_space<vmem>>, vector<2x9x256xbf16>
    tpu.vector_store %arg12[%c0_193, %c63, %c0_194], %78 {strides = array<i32>} : memref<2x81x256xbf16, #tpu.memory_space<vmem>>, vector<2x9x256xbf16>,
    %c0_195 = arith.constant 0 : index
    %c0_196 = arith.constant 0 : index
    %c32 = arith.constant 32 : index
    %80 = vector.load %arg1[%c0_195, %c0_196, %c32] : memref<2x16x64xbf16, #tpu.memory_space<vmem>>, vector<2x9x32xbf16>
    %c0_197 = arith.constant 0 : index
    %c1_198 = arith.constant 1 : index
    %c32_199 = arith.constant 32 : index
    %81 = vector.load %arg1[%c0_197, %c1_198, %c32_199] : memref<2x16x64xbf16, #tpu.memory_space<vmem>>, vector<2x9x32xbf16>
    %c0_200 = arith.constant 0 : index
    %c2_201 = arith.constant 2 : index
    %c32_202 = arith.constant 32 : index
    %82 = vector.load %arg1[%c0_200, %c2_201, %c32_202] : memref<2x16x64xbf16, #tpu.memory_space<vmem>>, vector<2x9x32xbf16>
    %c0_203 = arith.constant 0 : index
    %c3_204 = arith.constant 3 : index
    %c32_205 = arith.constant 32 : index
    %83 = vector.load %arg1[%c0_203, %c3_204, %c32_205] : memref<2x16x64xbf16, #tpu.memory_space<vmem>>, vector<2x9x32xbf16>
    %c0_206 = arith.constant 0 : index
    %c4_207 = arith.constant 4 : index
    %c32_208 = arith.constant 32 : index
    %84 = vector.load %arg1[%c0_206, %c4_207, %c32_208] : memref<2x16x64xbf16, #tpu.memory_space<vmem>>, vector<2x9x32xbf16>
    %c0_209 = arith.constant 0 : index
    %c5_210 = arith.constant 5 : index
    %c32_211 = arith.constant 32 : index
    %85 = vector.load %arg1[%c0_209, %c5_210, %c32_211] : memref<2x16x64xbf16, #tpu.memory_space<vmem>>, vector<2x9x32xbf16>
    %c0_212 = arith.constant 0 : index
    %c6_213 = arith.constant 6 : index
    %c32_214 = arith.constant 32 : index
    %86 = vector.load %arg1[%c0_212, %c6_213, %c32_214] : memref<2x16x64xbf16, #tpu.memory_space<vmem>>, vector<2x9x32xbf16>
    %c0_215 = arith.constant 0 : index
    %c7_216 = arith.constant 7 : index
    %c32_217 = arith.constant 32 : index
    %87 = vector.load %arg1[%c0_215, %c7_216, %c32_217] : memref<2x16x64xbf16, #tpu.memory_space<vmem>>, vector<2x9x32xbf16>
    %88 = tpu.concatenate %80, %81, %82, %83, %84, %85, %86, %87 in 2 : vector<2x9x32xbf16>, vector<2x9x32xbf16>, vector<2x9x32xbf16>, vector<2x9x32xbf16>, vector<2x9x32xbf16>, vector<2x9x32xbf16>, vector<2x9x32xbf16>, vector<2x9x32xbf16> -> vector<2x9x256xbf16>
    %c0_218 = arith.constant 0 : index
    %c72 = arith.constant 72 : index
    %c0_219 = arith.constant 0 : index
    %89 = vector.load %arg12[%c0_218, %c72, %c0_219] : memref<2x81x256xbf16, #tpu.memory_space<vmem>>, vector<2x9x256xbf16>
    tpu.vector_store %arg12[%c0_218, %c72, %c0_219], %88 {strides = array<i32>} : memref<2x81x256xbf16, #tpu.memory_space<vmem>>, vector<2x9x256xbf16>,
    %c0_220 = arith.constant 0 : index
    %c0_221 = arith.constant 0 : index
    %c0_222 = arith.constant 0 : index
    %90 = vector.load %arg12[%c0_220, %c0_221, %c0_222] : memref<2x81x256xbf16, #tpu.memory_space<vmem>>, vector<2x81x256xbf16>
    %91 = vector.shape_cast %90 : vector<2x81x256xbf16> to vector<162x256xbf16>
    %c0_223 = arith.constant 0 : index
    %c0_224 = arith.constant 0 : index
    %92 = vector.load %arg3[%c0_223, %c0_224] : memref<256x16xbf16, #tpu.memory_space<vmem>>, vector<256x16xbf16>
    %cst = arith.constant dense<0.000000e+00> : vector<162x16xf32>
    %93 = tpu.matmul %91, %92, %cst {dimension_numbers = #tpu.dot_dimension_numbers<[1], [0], [0], [1], [0, 0, 1, 1], [], []>} : vector<162x256xbf16>, vector<256x16xbf16>, vector<162x16xf32> -> vector<162x16xf32>
    %c0_225 = arith.constant 0 : index
    %c0_226 = arith.constant 0 : index
    %94 = vector.load %arg4[%c0_225, %c0_226] : memref<1x16xf32, #tpu.memory_space<vmem>>, vector<1x16xf32>
    %95 = vector.broadcast %94 : vector<1x16xf32> to vector<162x16xf32>
    %96 = arith.addf %93, %95 : vector<162x16xf32>
    %97 = math.exp %96 : vector<162x16xf32>
    %cst_227 = arith.constant 1.000000e+00 : f32
    %98 = vector.broadcast %cst_227 : f32 to vector<162x16xf32>
    %99 = arith.subf %97, %98 : vector<162x16xf32>
    %cst_228 = arith.constant 5.000000e-01 : f32
    %100 = vector.broadcast %cst_228 : f32 to vector<162x16xf32>
    %101 = arith.mulf %100, %96 : vector<162x16xf32>
    %102 = arith.mulf %101, %96 : vector<162x16xf32>
    %103 = arith.addf %96, %102 : vector<162x16xf32>
    %cst_229 = arith.constant -1.000000e-03 : f32
    %104 = vector.broadcast %cst_229 : f32 to vector<162x16xf32>
    %105 = arith.cmpf ogt, %96, %104 : vector<162x16xf32>
    %106 = arith.select %105, %103, %99 : vector<162x16xi1>, vector<162x16xf32>
    %cst_230 = arith.constant 0.000000e+00 : f32
    %107 = vector.broadcast %cst_230 : f32 to vector<162x16xf32>
    %108 = arith.cmpf ogt, %96, %107 : vector<162x16xf32>
    %109 = arith.select %108, %96, %106 : vector<162x16xi1>, vector<162x16xf32>
    %110 = arith.truncf %109 : vector<162x16xf32> to vector<162x16xbf16>
    %111 = vector.shape_cast %110 : vector<162x16xbf16> to vector<2x9x9x16xbf16>
    %c0_231 = arith.constant 0 : index
    %c0_232 = arith.constant 0 : index
    %c0_233 = arith.constant 0 : index
    %c0_234 = arith.constant 0 : index
    %112 = vector.load %arg15[%c0_231, %c0_232, %c0_233, %c0_234] : memref<2x9x9x16xbf16, #tpu.memory_space<vmem>>, vector<2x9x9x16xbf16>
    tpu.vector_store %arg15[%c0_231, %c0_232, %c0_233, %c0_234], %111 {strides = array<i32>} : memref<2x9x9x16xbf16, #tpu.memory_space<vmem>>, vector<2x9x9x16xbf16>,
    %c0_235 = arith.constant 0 : index
    %c0_236 = arith.constant 0 : index
    %c0_237 = arith.constant 0 : index
    %c0_238 = arith.constant 0 : index
    %113 = vector.load %arg15[%c0_235, %c0_236, %c0_237, %c0_238] : memref<2x9x9x16xbf16, #tpu.memory_space<vmem>>, vector<2x6x6x16xbf16>
    %c0_239 = arith.constant 0 : index
    %c0_240 = arith.constant 0 : index
    %c1_241 = arith.constant 1 : index
    %c0_242 = arith.constant 0 : index
    %114 = vector.load %arg15[%c0_239, %c0_240, %c1_241, %c0_242] : memref<2x9x9x16xbf16, #tpu.memory_space<vmem>>, vector<2x6x6x16xbf16>
    %c0_243 = arith.constant 0 : index
    %c0_244 = arith.constant 0 : index
    %c2_245 = arith.constant 2 : index
    %c0_246 = arith.constant 0 : index
    %115 = vector.load %arg15[%c0_243, %c0_244, %c2_245, %c0_246] : memref<2x9x9x16xbf16, #tpu.memory_space<vmem>>, vector<2x6x6x16xbf16>
    %c0_247 = arith.constant 0 : index
    %c0_248 = arith.constant 0 : index
    %c3_249 = arith.constant 3 : index
    %c0_250 = arith.constant 0 : index
    %116 = vector.load %arg15[%c0_247, %c0_248, %c3_249, %c0_250] : memref<2x9x9x16xbf16, #tpu.memory_space<vmem>>, vector<2x6x6x16xbf16>
    %c0_251 = arith.constant 0 : index
    %c1_252 = arith.constant 1 : index
    %c0_253 = arith.constant 0 : index
    %c0_254 = arith.constant 0 : index
    %117 = vector.load %arg15[%c0_251, %c1_252, %c0_253, %c0_254] : memref<2x9x9x16xbf16, #tpu.memory_space<vmem>>, vector<2x6x6x16xbf16>
    %c0_255 = arith.constant 0 : index
    %c1_256 = arith.constant 1 : index
    %c1_257 = arith.constant 1 : index
    %c0_258 = arith.constant 0 : index
    %118 = vector.load %arg15[%c0_255, %c1_256, %c1_257, %c0_258] : memref<2x9x9x16xbf16, #tpu.memory_space<vmem>>, vector<2x6x6x16xbf16>
    %c0_259 = arith.constant 0 : index
    %c1_260 = arith.constant 1 : index
    %c2_261 = arith.constant 2 : index
    %c0_262 = arith.constant 0 : index
    %119 = vector.load %arg15[%c0_259, %c1_260, %c2_261, %c0_262] : memref<2x9x9x16xbf16, #tpu.memory_space<vmem>>, vector<2x6x6x16xbf16>
    %c0_263 = arith.constant 0 : index
    %c1_264 = arith.constant 1 : index
    %c3_265 = arith.constant 3 : index
    %c0_266 = arith.constant 0 : index
    %120 = vector.load %arg15[%c0_263, %c1_264, %c3_265, %c0_266] : memref<2x9x9x16xbf16, #tpu.memory_space<vmem>>, vector<2x6x6x16xbf16>
    %121 = tpu.concatenate %113, %114, %115, %116, %117, %118, %119, %120 in 3 : vector<2x6x6x16xbf16>, vector<2x6x6x16xbf16>, vector<2x6x6x16xbf16>, vector<2x6x6x16xbf16>, vector<2x6x6x16xbf16>, vector<2x6x6x16xbf16>, vector<2x6x6x16xbf16>, vector<2x6x6x16xbf16> -> vector<2x6x6x128xbf16>
    %122 = vector.shape_cast %121 : vector<2x6x6x128xbf16> to vector<72x128xbf16>
    %c0_267 = arith.constant 0 : index
    %c0_268 = arith.constant 0 : index
    %123 = vector.load %arg13[%c0_267, %c0_268] : memref<72x256xbf16, #tpu.memory_space<vmem>>, vector<72x128xbf16>
    tpu.vector_store %arg13[%c0_267, %c0_268], %122 {strides = array<i32>} : memref<72x256xbf16, #tpu.memory_space<vmem>>, vector<72x128xbf16>,
    %c0_269 = arith.constant 0 : index
    %c2_270 = arith.constant 2 : index
    %c0_271 = arith.constant 0 : index
    %c0_272 = arith.constant 0 : index
    %124 = vector.load %arg15[%c0_269, %c2_270, %c0_271, %c0_272] : memref<2x9x9x16xbf16, #tpu.memory_space<vmem>>, vector<2x6x6x16xbf16>
    %c0_273 = arith.constant 0 : index
    %c2_274 = arith.constant 2 : index
    %c1_275 = arith.constant 1 : index
    %c0_276 = arith.constant 0 : index
    %125 = vector.load %arg15[%c0_273, %c2_274, %c1_275, %c0_276] : memref<2x9x9x16xbf16, #tpu.memory_space<vmem>>, vector<2x6x6x16xbf16>
    %c0_277 = arith.constant 0 : index
    %c2_278 = arith.constant 2 : index
    %c2_279 = arith.constant 2 : index
    %c0_280 = arith.constant 0 : index
    %126 = vector.load %arg15[%c0_277, %c2_278, %c2_279, %c0_280] : memref<2x9x9x16xbf16, #tpu.memory_space<vmem>>, vector<2x6x6x16xbf16>
    %c0_281 = arith.constant 0 : index
    %c2_282 = arith.constant 2 : index
    %c3_283 = arith.constant 3 : index
    %c0_284 = arith.constant 0 : index
    %127 = vector.load %arg15[%c0_281, %c2_282, %c3_283, %c0_284] : memref<2x9x9x16xbf16, #tpu.memory_space<vmem>>, vector<2x6x6x16xbf16>
    %c0_285 = arith.constant 0 : index
    %c3_286 = arith.constant 3 : index
    %c0_287 = arith.constant 0 : index
    %c0_288 = arith.constant 0 : index
    %128 = vector.load %arg15[%c0_285, %c3_286, %c0_287, %c0_288] : memref<2x9x9x16xbf16, #tpu.memory_space<vmem>>, vector<2x6x6x16xbf16>
    %c0_289 = arith.constant 0 : index
    %c3_290 = arith.constant 3 : index
    %c1_291 = arith.constant 1 : index
    %c0_292 = arith.constant 0 : index
    %129 = vector.load %arg15[%c0_289, %c3_290, %c1_291, %c0_292] : memref<2x9x9x16xbf16, #tpu.memory_space<vmem>>, vector<2x6x6x16xbf16>
    %c0_293 = arith.constant 0 : index
    %c3_294 = arith.constant 3 : index
    %c2_295 = arith.constant 2 : index
    %c0_296 = arith.constant 0 : index
    %130 = vector.load %arg15[%c0_293, %c3_294, %c2_295, %c0_296] : memref<2x9x9x16xbf16, #tpu.memory_space<vmem>>, vector<2x6x6x16xbf16>
    %c0_297 = arith.constant 0 : index
    %c3_298 = arith.constant 3 : index
    %c3_299 = arith.constant 3 : index
    %c0_300 = arith.constant 0 : index
    %131 = vector.load %arg15[%c0_297, %c3_298, %c3_299, %c0_300] : memref<2x9x9x16xbf16, #tpu.memory_space<vmem>>, vector<2x6x6x16xbf16>
    %132 = tpu.concatenate %124, %125, %126, %127, %128, %129, %130, %131 in 3 : vector<2x6x6x16xbf16>, vector<2x6x6x16xbf16>, vector<2x6x6x16xbf16>, vector<2x6x6x16xbf16>, vector<2x6x6x16xbf16>, vector<2x6x6x16xbf16>, vector<2x6x6x16xbf16>, vector<2x6x6x16xbf16> -> vector<2x6x6x128xbf16>
    %133 = vector.shape_cast %132 : vector<2x6x6x128xbf16> to vector<72x128xbf16>
    %c0_301 = arith.constant 0 : index
    %c128 = arith.constant 128 : index
    %134 = vector.load %arg13[%c0_301, %c128] : memref<72x256xbf16, #tpu.memory_space<vmem>>, vector<72x128xbf16>
    tpu.vector_store %arg13[%c0_301, %c128], %133 {strides = array<i32>} : memref<72x256xbf16, #tpu.memory_space<vmem>>, vector<72x128xbf16>,
    %c0_302 = arith.constant 0 : index
    %c0_303 = arith.constant 0 : index
    %135 = vector.load %arg13[%c0_302, %c0_303] : memref<72x256xbf16, #tpu.memory_space<vmem>>, vector<72x256xbf16>
    %c0_304 = arith.constant 0 : index
    %c0_305 = arith.constant 0 : index
    %136 = vector.load %arg5[%c0_304, %c0_305] : memref<256x32xbf16, #tpu.memory_space<vmem>>, vector<256x32xbf16>
    %cst_306 = arith.constant dense<0.000000e+00> : vector<72x32xf32>
    %137 = tpu.matmul %135, %136, %cst_306 {dimension_numbers = #tpu.dot_dimension_numbers<[1], [0], [0], [1], [0, 0, 1, 1], [], []>} : vector<72x256xbf16>, vector<256x32xbf16>, vector<72x32xf32> -> vector<72x32xf32>
    %c0_307 = arith.constant 0 : index
    %c0_308 = arith.constant 0 : index
    %138 = vector.load %arg6[%c0_307, %c0_308] : memref<1x32xf32, #tpu.memory_space<vmem>>, vector<1x32xf32>
    %139 = vector.broadcast %138 : vector<1x32xf32> to vector<72x32xf32>
    %140 = arith.addf %137, %139 : vector<72x32xf32>
    %141 = math.exp %140 : vector<72x32xf32>
    %cst_309 = arith.constant 1.000000e+00 : f32
    %142 = vector.broadcast %cst_309 : f32 to vector<72x32xf32>
    %143 = arith.subf %141, %142 : vector<72x32xf32>
    %cst_310 = arith.constant 5.000000e-01 : f32
    %144 = vector.broadcast %cst_310 : f32 to vector<72x32xf32>
    %145 = arith.mulf %144, %140 : vector<72x32xf32>
    %146 = arith.mulf %145, %140 : vector<72x32xf32>
    %147 = arith.addf %140, %146 : vector<72x32xf32>
    %cst_311 = arith.constant -1.000000e-03 : f32
    %148 = vector.broadcast %cst_311 : f32 to vector<72x32xf32>
    %149 = arith.cmpf ogt, %140, %148 : vector<72x32xf32>
    %150 = arith.select %149, %147, %143 : vector<72x32xi1>, vector<72x32xf32>
    %cst_312 = arith.constant 0.000000e+00 : f32
    %151 = vector.broadcast %cst_312 : f32 to vector<72x32xf32>
    %152 = arith.cmpf ogt, %140, %151 : vector<72x32xf32>
    %153 = arith.select %152, %140, %150 : vector<72x32xi1>, vector<72x32xf32>
    %154 = arith.truncf %153 : vector<72x32xf32> to vector<72x32xbf16>
    %155 = vector.shape_cast %154 : vector<72x32xbf16> to vector<2x6x6x32xbf16>
    %c0_313 = arith.constant 0 : index
    %c0_314 = arith.constant 0 : index
    %c0_315 = arith.constant 0 : index
    %c0_316 = arith.constant 0 : index
    %156 = vector.load %arg16[%c0_313, %c0_314, %c0_315, %c0_316] : memref<2x6x6x32xbf16, #tpu.memory_space<vmem>>, vector<2x6x6x32xbf16>
    tpu.vector_store %arg16[%c0_313, %c0_314, %c0_315, %c0_316], %155 {strides = array<i32>} : memref<2x6x6x32xbf16, #tpu.memory_space<vmem>>, vector<2x6x6x32xbf16>,
    %c0_317 = arith.constant 0 : index
    %c0_318 = arith.constant 0 : index
    %c0_319 = arith.constant 0 : index
    %c0_320 = arith.constant 0 : index
    %157 = vector.load %arg16[%c0_317, %c0_318, %c0_319, %c0_320] : memref<2x6x6x32xbf16, #tpu.memory_space<vmem>>, vector<2x4x4x32xbf16>
    %c0_321 = arith.constant 0 : index
    %c0_322 = arith.constant 0 : index
    %c1_323 = arith.constant 1 : index
    %c0_324 = arith.constant 0 : index
    %158 = vector.load %arg16[%c0_321, %c0_322, %c1_323, %c0_324] : memref<2x6x6x32xbf16, #tpu.memory_space<vmem>>, vector<2x4x4x32xbf16>
    %c0_325 = arith.constant 0 : index
    %c0_326 = arith.constant 0 : index
    %c2_327 = arith.constant 2 : index
    %c0_328 = arith.constant 0 : index
    %159 = vector.load %arg16[%c0_325, %c0_326, %c2_327, %c0_328] : memref<2x6x6x32xbf16, #tpu.memory_space<vmem>>, vector<2x4x4x32xbf16>
    %c0_329 = arith.constant 0 : index
    %c1_330 = arith.constant 1 : index
    %c0_331 = arith.constant 0 : index
    %c0_332 = arith.constant 0 : index
    %160 = vector.load %arg16[%c0_329, %c1_330, %c0_331, %c0_332] : memref<2x6x6x32xbf16, #tpu.memory_space<vmem>>, vector<2x4x4x32xbf16>
    %161 = tpu.concatenate %157, %158, %159, %160 in 3 : vector<2x4x4x32xbf16>, vector<2x4x4x32xbf16>, vector<2x4x4x32xbf16>, vector<2x4x4x32xbf16> -> vector<2x4x4x128xbf16>
    %162 = vector.shape_cast %161 : vector<2x4x4x128xbf16> to vector<32x128xbf16>
    %c0_333 = arith.constant 0 : index
    %c0_334 = arith.constant 0 : index
    %163 = vector.load %arg14[%c0_333, %c0_334] : memref<32x288xbf16, #tpu.memory_space<vmem>>, vector<32x128xbf16>
    tpu.vector_store %arg14[%c0_333, %c0_334], %162 {strides = array<i32>} : memref<32x288xbf16, #tpu.memory_space<vmem>>, vector<32x128xbf16>,
    %c0_335 = arith.constant 0 : index
    %c1_336 = arith.constant 1 : index
    %c1_337 = arith.constant 1 : index
    %c0_338 = arith.constant 0 : index
    %164 = vector.load %arg16[%c0_335, %c1_336, %c1_337, %c0_338] : memref<2x6x6x32xbf16, #tpu.memory_space<vmem>>, vector<2x4x4x32xbf16>
    %c0_339 = arith.constant 0 : index
    %c1_340 = arith.constant 1 : index
    %c2_341 = arith.constant 2 : index
    %c0_342 = arith.constant 0 : index
    %165 = vector.load %arg16[%c0_339, %c1_340, %c2_341, %c0_342] : memref<2x6x6x32xbf16, #tpu.memory_space<vmem>>, vector<2x4x4x32xbf16>
    %c0_343 = arith.constant 0 : index
    %c2_344 = arith.constant 2 : index
    %c0_345 = arith.constant 0 : index
    %c0_346 = arith.constant 0 : index
    %166 = vector.load %arg16[%c0_343, %c2_344, %c0_345, %c0_346] : memref<2x6x6x32xbf16, #tpu.memory_space<vmem>>, vector<2x4x4x32xbf16>
    %c0_347 = arith.constant 0 : index
    %c2_348 = arith.constant 2 : index
    %c1_349 = arith.constant 1 : index
    %c0_350 = arith.constant 0 : index
    %167 = vector.load %arg16[%c0_347, %c2_348, %c1_349, %c0_350] : memref<2x6x6x32xbf16, #tpu.memory_space<vmem>>, vector<2x4x4x32xbf16>
    %168 = tpu.concatenate %164, %165, %166, %167 in 3 : vector<2x4x4x32xbf16>, vector<2x4x4x32xbf16>, vector<2x4x4x32xbf16>, vector<2x4x4x32xbf16> -> vector<2x4x4x128xbf16>
    %169 = vector.shape_cast %168 : vector<2x4x4x128xbf16> to vector<32x128xbf16>
    %c0_351 = arith.constant 0 : index
    %c128_352 = arith.constant 128 : index
    %170 = vector.load %arg14[%c0_351, %c128_352] : memref<32x288xbf16, #tpu.memory_space<vmem>>, vector<32x128xbf16>
    tpu.vector_store %arg14[%c0_351, %c128_352], %169 {strides = array<i32>} : memref<32x288xbf16, #tpu.memory_space<vmem>>, vector<32x128xbf16>,
    %c0_353 = arith.constant 0 : index
    %c2_354 = arith.constant 2 : index
    %c2_355 = arith.constant 2 : index
    %c0_356 = arith.constant 0 : index
    %171 = vector.load %arg16[%c0_353, %c2_354, %c2_355, %c0_356] : memref<2x6x6x32xbf16, #tpu.memory_space<vmem>>, vector<2x4x4x32xbf16>
    %172 = vector.shape_cast %171 : vector<2x4x4x32xbf16> to vector<32x32xbf16>
    %c0_357 = arith.constant 0 : index
    %c256 = arith.constant 256 : index
    %173 = vector.load %arg14[%c0_357, %c256] : memref<32x288xbf16, #tpu.memory_space<vmem>>, vector<32x32xbf16>
    tpu.vector_store %arg14[%c0_357, %c256], %172 {strides = array<i32>} : memref<32x288xbf16, #tpu.memory_space<vmem>>, vector<32x32xbf16>,
    %c0_358 = arith.constant 0 : index
    %c0_359 = arith.constant 0 : index
    %174 = vector.load %arg14[%c0_358, %c0_359] : memref<32x288xbf16, #tpu.memory_space<vmem>>, vector<32x288xbf16>
    %c0_360 = arith.constant 0 : index
    %c0_361 = arith.constant 0 : index
    %175 = vector.load %arg7[%c0_360, %c0_361] : memref<288x64xbf16, #tpu.memory_space<vmem>>, vector<288x64xbf16>
    %cst_362 = arith.constant dense<0.000000e+00> : vector<32x64xf32>
    %176 = tpu.matmul %174, %175, %cst_362 {dimension_numbers = #tpu.dot_dimension_numbers<[1], [0], [0], [1], [0, 0, 1, 1], [], []>} : vector<32x288xbf16>, vector<288x64xbf16>, vector<32x64xf32> -> vector<32x64xf32>
    %c0_363 = arith.constant 0 : index
    %c0_364 = arith.constant 0 : index
    %177 = vector.load %arg8[%c0_363, %c0_364] : memref<1x64xf32, #tpu.memory_space<vmem>>, vector<1x64xf32>
    %178 = vector.broadcast %177 : vector<1x64xf32> to vector<32x64xf32>
    %179 = arith.addf %176, %178 : vector<32x64xf32>
    %cst_365 = arith.constant 0.000000e+00 : f32
    %180 = vector.broadcast %cst_365 : f32 to vector<32x64xf32>
    %181 = arith.maximumf %179, %180 : vector<32x64xf32>
    %182 = arith.truncf %181 : vector<32x64xf32> to vector<32x64xbf16>
    %183 = vector.shape_cast %182 : vector<32x64xbf16> to vector<2x16x64xbf16>
    %184 = vector.extract_strided_slice %183 {offsets = [0, 0, 0], sizes = [2, 1, 64], strides = [1, 1, 1]} : vector<2x16x64xbf16> to vector<2x1x64xbf16>
    %185 = vector.shape_cast %184 : vector<2x1x64xbf16> to vector<2x64xbf16>
    %186 = vector.extract_strided_slice %183 {offsets = [0, 1, 0], sizes = [2, 1, 64], strides = [1, 1, 1]} : vector<2x16x64xbf16> to vector<2x1x64xbf16>
    %187 = vector.shape_cast %186 : vector<2x1x64xbf16> to vector<2x64xbf16>
    %188 = vector.extract_strided_slice %183 {offsets = [0, 2, 0], sizes = [2, 1, 64], strides = [1, 1, 1]} : vector<2x16x64xbf16> to vector<2x1x64xbf16>
    %189 = vector.shape_cast %188 : vector<2x1x64xbf16> to vector<2x64xbf16>
    %190 = vector.extract_strided_slice %183 {offsets = [0, 3, 0], sizes = [2, 1, 64], strides = [1, 1, 1]} : vector<2x16x64xbf16> to vector<2x1x64xbf16>
    %191 = vector.shape_cast %190 : vector<2x1x64xbf16> to vector<2x64xbf16>
    %192 = vector.extract_strided_slice %183 {offsets = [0, 4, 0], sizes = [2, 1, 64], strides = [1, 1, 1]} : vector<2x16x64xbf16> to vector<2x1x64xbf16>
    %193 = vector.shape_cast %192 : vector<2x1x64xbf16> to vector<2x64xbf16>
    %194 = vector.extract_strided_slice %183 {offsets = [0, 5, 0], sizes = [2, 1, 64], strides = [1, 1, 1]} : vector<2x16x64xbf16> to vector<2x1x64xbf16>
    %195 = vector.shape_cast %194 : vector<2x1x64xbf16> to vector<2x64xbf16>
    %196 = vector.extract_strided_slice %183 {offsets = [0, 6, 0], sizes = [2, 1, 64], strides = [1, 1, 1]} : vector<2x16x64xbf16> to vector<2x1x64xbf16>
    %197 = vector.shape_cast %196 : vector<2x1x64xbf16> to vector<2x64xbf16>
    %198 = vector.extract_strided_slice %183 {offsets = [0, 7, 0], sizes = [2, 1, 64], strides = [1, 1, 1]} : vector<2x16x64xbf16> to vector<2x1x64xbf16>
    %199 = vector.shape_cast %198 : vector<2x1x64xbf16> to vector<2x64xbf16>
    %200 = vector.extract_strided_slice %183 {offsets = [0, 8, 0], sizes = [2, 1, 64], strides = [1, 1, 1]} : vector<2x16x64xbf16> to vector<2x1x64xbf16>
    %201 = vector.shape_cast %200 : vector<2x1x64xbf16> to vector<2x64xbf16>
    %202 = vector.extract_strided_slice %183 {offsets = [0, 9, 0], sizes = [2, 1, 64], strides = [1, 1, 1]} : vector<2x16x64xbf16> to vector<2x1x64xbf16>
    %203 = vector.shape_cast %202 : vector<2x1x64xbf16> to vector<2x64xbf16>
    %204 = vector.extract_strided_slice %183 {offsets = [0, 10, 0], sizes = [2, 1, 64], strides = [1, 1, 1]} : vector<2x16x64xbf16> to vector<2x1x64xbf16>
    %205 = vector.shape_cast %204 : vector<2x1x64xbf16> to vector<2x64xbf16>
    %206 = vector.extract_strided_slice %183 {offsets = [0, 11, 0], sizes = [2, 1, 64], strides = [1, 1, 1]} : vector<2x16x64xbf16> to vector<2x1x64xbf16>
    %207 = vector.shape_cast %206 : vector<2x1x64xbf16> to vector<2x64xbf16>
    %208 = vector.extract_strided_slice %183 {offsets = [0, 12, 0], sizes = [2, 1, 64], strides = [1, 1, 1]} : vector<2x16x64xbf16> to vector<2x1x64xbf16>
    %209 = vector.shape_cast %208 : vector<2x1x64xbf16> to vector<2x64xbf16>
    %210 = vector.extract_strided_slice %183 {offsets = [0, 13, 0], sizes = [2, 1, 64], strides = [1, 1, 1]} : vector<2x16x64xbf16> to vector<2x1x64xbf16>
    %211 = vector.shape_cast %210 : vector<2x1x64xbf16> to vector<2x64xbf16>
    %212 = vector.extract_strided_slice %183 {offsets = [0, 14, 0], sizes = [2, 1, 64], strides = [1, 1, 1]} : vector<2x16x64xbf16> to vector<2x1x64xbf16>
    %213 = vector.shape_cast %212 : vector<2x1x64xbf16> to vector<2x64xbf16>
    %214 = vector.extract_strided_slice %183 {offsets = [0, 15, 0], sizes = [2, 1, 64], strides = [1, 1, 1]} : vector<2x16x64xbf16> to vector<2x1x64xbf16>
    %215 = vector.shape_cast %214 : vector<2x1x64xbf16> to vector<2x64xbf16>
    %c0_366 = arith.constant 0 : index
    %c0_367 = arith.constant 0 : index
    %216 = vector.load %arg2[%c0_366, %c0_367] : memref<2x128xbf16, #tpu.memory_space<vmem>>, vector<2x128xbf16>
    %217 = tpu.concatenate %185, %187, %189, %191, %193, %195, %197, %199, %201, %203, %205, %207, %209, %211, %213, %215 in 1 : vector<2x64xbf16>, vector<2x64xbf16>, vector<2x64xbf16>, vector<2x64xbf16>, vector<2x64xbf16>, vector<2x64xbf16>, vector<2x64xbf16>, vector<2x64xbf16>, vector<2x64xbf16>, vector<2x64xbf16>, vector<2x64xbf16>, vector<2x64xbf16>, vector<2x64xbf16>, vector<2x64xbf16>, vector<2x64xbf16>, vector<2x64xbf16> -> vector<2x1024xbf16>
    %218 = tpu.concatenate %217, %216 in 1 : vector<2x1024xbf16>, vector<2x128xbf16> -> vector<2x1152xbf16>
    %c0_368 = arith.constant 0 : index
    %c0_369 = arith.constant 0 : index
    %219 = vector.load %arg9[%c0_368, %c0_369] : memref<1152x256xbf16, #tpu.memory_space<vmem>>, vector<1152x256xbf16>
    %cst_370 = arith.constant dense<0.000000e+00> : vector<2x256xf32>
    %220 = tpu.matmul %218, %219, %cst_370 {dimension_numbers = #tpu.dot_dimension_numbers<[1], [0], [0], [1], [0, 0, 1, 1], [], []>} : vector<2x1152xbf16>, vector<1152x256xbf16>, vector<2x256xf32> -> vector<2x256xf32>
    %c0_371 = arith.constant 0 : index
    %c0_372 = arith.constant 0 : index
    %221 = vector.load %arg10[%c0_371, %c0_372] : memref<1x256xf32, #tpu.memory_space<vmem>>, vector<1x256xf32>
    %222 = vector.broadcast %221 : vector<1x256xf32> to vector<2x256xf32>
    %223 = arith.addf %220, %222 : vector<2x256xf32>
    %cst_373 = arith.constant 0.000000e+00 : f32
    %224 = vector.broadcast %cst_373 : f32 to vector<2x256xf32>
    %225 = arith.maximumf %223, %224 : vector<2x256xf32>
    %c0_374 = arith.constant 0 : index
    %c0_375 = arith.constant 0 : index
    %226 = vector.load %arg11[%c0_374, %c0_375] : memref<2x256xf32, #tpu.memory_space<vmem>>, vector<2x256xf32>
    tpu.vector_store %arg11[%c0_374, %c0_375], %225 {strides = array<i32>} : memref<2x256xf32, #tpu.memory_space<vmem>>, vector<2x256xf32>,
    return
  }
  func.func @transform_0(%arg0: i32) -> (i32, i32, i32) {
    %c0_i32 = arith.constant 0 : i32
    %c0_i32_0 = arith.constant 0 : i32
    %c0_i32_1 = arith.constant 0 : i32
    return %arg0, %c0_i32, %c0_i32_0 : i32, i32, i32
  }
  func.func @transform_1(%arg0: i32) -> (i32, i32) {
    %c0_i32 = arith.constant 0 : i32
    %c0_i32_0 = arith.constant 0 : i32
    return %arg0, %c0_i32 : i32, i32
  }
  func.func @transform_2(%arg0: i32) -> (i32, i32) {
    %c0_i32 = arith.constant 0 : i32
    %c0_i32_0 = arith.constant 0 : i32
    %c0_i32_1 = arith.constant 0 : i32
    return %c0_i32, %c0_i32_0 : i32, i32
  }
  func.func @transform_3(%arg0: i32) -> (i32, i32) {
    %c0_i32 = arith.constant 0 : i32
    %c0_i32_0 = arith.constant 0 : i32
    %c0_i32_1 = arith.constant 0 : i32
    return %c0_i32, %c0_i32_0 : i32, i32
  }
  func.func @transform_4(%arg0: i32) -> (i32, i32) {
    %c0_i32 = arith.constant 0 : i32
    %c0_i32_0 = arith.constant 0 : i32
    %c0_i32_1 = arith.constant 0 : i32
    return %c0_i32, %c0_i32_0 : i32, i32
  }
  func.func @transform_5(%arg0: i32) -> (i32, i32) {
    %c0_i32 = arith.constant 0 : i32
    %c0_i32_0 = arith.constant 0 : i32
    %c0_i32_1 = arith.constant 0 : i32
    return %c0_i32, %c0_i32_0 : i32, i32
  }
  func.func @transform_6(%arg0: i32) -> (i32, i32) {
    %c0_i32 = arith.constant 0 : i32
    %c0_i32_0 = arith.constant 0 : i32
    %c0_i32_1 = arith.constant 0 : i32
    return %c0_i32, %c0_i32_0 : i32, i32
  }
  func.func @transform_7(%arg0: i32) -> (i32, i32) {
    %c0_i32 = arith.constant 0 : i32
    %c0_i32_0 = arith.constant 0 : i32
    %c0_i32_1 = arith.constant 0 : i32
    return %c0_i32, %c0_i32_0 : i32, i32
  }
  func.func @transform_8(%arg0: i32) -> (i32, i32) {
    %c0_i32 = arith.constant 0 : i32
    %c0_i32_0 = arith.constant 0 : i32
    %c0_i32_1 = arith.constant 0 : i32
    return %c0_i32, %c0_i32_0 : i32, i32
  }
  func.func @transform_9(%arg0: i32) -> (i32, i32) {
    %c0_i32 = arith.constant 0 : i32
    %c0_i32_0 = arith.constant 0 : i32
    %c0_i32_1 = arith.constant 0 : i32
    return %c0_i32, %c0_i32_0 : i32, i32
  }
  func.func @transform_10(%arg0: i32) -> (i32, i32) {
    %c0_i32 = arith.constant 0 : i32
    %c0_i32_0 = arith.constant 0 : i32
    return %arg0, %c0_i32 : i32, i32
  }
}

</mosaic_0001>

<llo_original>
// kernel: forward.1
$region0: #{forward.1}
  #allocation0 [shape = 'u32[]', space=smem, size = 0x4, offset = 0x4, fixed_abs, tag = 'smem constant byte address 0x4 - core index']
  #allocation1 [shape = 'u32[144,128]{1,0:T(1,128)}', space=vmem, size = 0x12000, scoped, tag = 'internal scratch']
  #allocation2 [shape = 'bf16[2,81,256]{2,1,0:T(8,128)(2,1)}', space=vmem, size = 0x16000, scoped, tag = 'scratch operand']
  #allocation3 [shape = 'bf16[72,256]{1,0:T(8,128)(2,1)}', space=vmem, size = 0x9000, scoped, tag = 'scratch operand']
  #allocation4 [shape = 'bf16[32,288]{1,0:T(16,128)(2,1)}', space=vmem, size = 0x6000, scoped, tag = 'scratch operand']
  #allocation5 [shape = 'bf16[2,9,9,16]{3,2,1,0:T(8,128)(2,1)}', space=vmem, size = 0x12000, scoped, tag = 'scratch operand']
  #allocation6 [shape = 'bf16[2,6,6,32]{3,2,1,0:T(8,128)(2,1)}', space=vmem, size = 0x6000, scoped, tag = 'scratch operand']
  %s0 = inlined_call_operand.vmem [shape: bf16[2,16,64], index: 0, kind: input, shape index: {}]
  %s1 = inlined_call_operand.vmem [shape: bf16[2,128], index: 1, kind: input, shape index: {}]
  %s2 = inlined_call_operand.vmem [shape: bf16[256,16], index: 2, kind: input, shape index: {}]
  %s3 = inlined_call_operand.vmem [shape: f32[1,16], index: 3, kind: input, shape index: {}]
  %s4 = inlined_call_operand.vmem [shape: bf16[256,32], index: 4, kind: input, shape index: {}]
  %s5 = inlined_call_operand.vmem [shape: f32[1,32], index: 5, kind: input, shape index: {}]
  %s6 = inlined_call_operand.vmem [shape: bf16[288,64], index: 6, kind: input, shape index: {}]
  %s7 = inlined_call_operand.vmem [shape: f32[1,64], index: 7, kind: input, shape index: {}]
  %s8 = inlined_call_operand.hbm [shape: bf16[1152,256], index: 8, kind: input, shape index: {}]
  %s9 = inlined_call_operand.vmem [shape: f32[1,256], index: 9, kind: input, shape index: {}]
  %s10 = inlined_call_operand.hbm [shape: f32[2,256], index: 10, kind: output, shape index: {}]
  %s11 = sld [smem:[#allocation0]]
  $region54: #{forward.1} parent=0
    _
  %s13 = ssub.s32 1, %s11
  %s14 = scalar_select 0, %s13, %s11
  $region1: #{forward.1} parent=0
    #allocation7 [shape = 'u8[589824]{0}', space=vmem, size = 0x90000, scoped, tag = 'input window, operand 8, single buffered']
    #allocation8 [shape = 's32[1]{0}', space=sflag, size = 0x4, scoped, tag = 'scoped memory for forward.1']
    #allocation9 [shape = 's32[1]{0}', space=sflag, size = 0x4, scoped, tag = 'scoped memory for forward.1']
    #allocation10 [shape = 'u8[2048]{0}', space=vmem, size = 0x800, scoped, tag = 'output window, operand 0, single buffered']
    %15 = vsyncpa [#allocation8], 0
    %16 = vsyncpa [#allocation9], 0
    // Predicated region
    $region2: #{forward.1} parent=1 // pred_check
      _
    $region3: #{forward.1} parent=1 // pred_check_branch
      %18 = sbr.rel (0) target = $region5
    $region4: #{forward.1} parent=1 // pred_region
      _
    $region5: #{forward.1} parent=1 // pred_fallthru
      _
    // Predicated region
    $region6: #{forward.1} parent=1 // pred_check
      _
    $region7: #{forward.1} parent=1 // pred_check_branch
      %20 = sbr.rel (0) target = $region9
    $region8: #{forward.1} parent=1 // pred_region
      _
    $region9: #{forward.1} parent=1 // pred_fallthru
      _
    // Predicated region
    $region10: #{forward.1} parent=1 // pred_check
      _
    $region11: #{forward.1} parent=1 // pred_check_branch
      %22 = sbr.rel (0) target = $region13
    $region12: #{forward.1} parent=1 // pred_region
      _
    $region13: #{forward.1} parent=1 // pred_fallthru
      _
    // Predicated region
    $region14: #{forward.1} parent=1 // pred_check
      _
    $region15: #{forward.1} parent=1 // pred_check_branch
      %24 = sbr.rel (0) target = $region17
    $region16: #{forward.1} parent=1 // pred_region
      _
    $region17: #{forward.1} parent=1 // pred_fallthru
      _
    // Predicated region
    $region18: #{forward.1} parent=1 // pred_check
      _
    $region19: #{forward.1} parent=1 // pred_check_branch
      %26 = sbr.rel (0) target = $region21
    $region20: #{forward.1} parent=1 // pred_region
      _
    $region21: #{forward.1} parent=1 // pred_fallthru
      _
    // Predicated region
    $region22: #{forward.1} parent=1 // pred_check
      _
    $region23: #{forward.1} parent=1 // pred_check_branch
      %28 = sbr.rel (0) target = $region25
    $region24: #{forward.1} parent=1 // pred_region
      _
    $region25: #{forward.1} parent=1 // pred_fallthru
      _
    // Predicated region
    $region26: #{forward.1} parent=1 // pred_check
      _
    $region27: #{forward.1} parent=1 // pred_check_branch
      %30 = sbr.rel (0) target = $region29
    $region28: #{forward.1} parent=1 // pred_region
      _
    $region29: #{forward.1} parent=1 // pred_fallthru
      _
    // Predicated region
    $region30: #{forward.1} parent=1 // pred_check
      _
    $region31: #{forward.1} parent=1 // pred_check_branch
      %32 = sbr.rel (0) target = $region33
    $region32: #{forward.1} parent=1 // pred_region
      _
    $region33: #{forward.1} parent=1 // pred_fallthru
      _
    // Predicated region
    $region34: #{forward.1} parent=1 // pred_check
      _
    $region35: #{forward.1} parent=1 // pred_check_branch
      %34 = sbr.rel (0) target = $region37
    $region36: #{forward.1} parent=1 // pred_region
      %s36 = ssub.s32 18432, 18432
      %37 = vsyncadd [#allocation8], %s36
      %s38 = sshll.u32 [#allocation7], 4
      %s39 = int_to_ptr.vmem [resolvable:$true] %s38
      %44 = dma.hbm_to_vmem [thread:$0]  %s8, 18432, %s39, [#allocation8], 128, 128, 8
    $region37: #{forward.1} parent=1 // pred_fallthru
      _
    // Predicated region
    $region38: #{forward.1} parent=1 // pred_check
      _
    $region39: #{forward.1} parent=1 // pred_check_branch
      %46 = sbr.rel (0) target = $region41
    $region40: #{forward.1} parent=1 // pred_region
      _
    $region41: #{forward.1} parent=1 // pred_fallthru
      _
    // Predicated region
    $region42: #{forward.1} parent=1 // pred_check
      _
    $region43: #{forward.1} parent=1 // pred_check_branch
      %48 = sbr.rel (0) target = $region45
    $region44: #{forward.1} parent=1 // pred_region
      %49 = dma.done [#allocation8], 18432
    $region45: #{forward.1} parent=1 // pred_fallthru
      _
    %v51 = vld [vmem:[%s0] sm:$0xf]
    %v52 = vld [vmem:[%s0 + $0x4] sm:$0x1]
    %v53 = vld [vmem:[%s0 + $0x8] sm:$0xf]
    %v54 = vld [vmem:[%s0 + $0xc] sm:$0x1]
    %v55 = vld [vmem:[%s0] sm:$0xe]
    %v56 = vld [vmem:[%s0 + $0x4] sm:$0x3]
    %v57 = vld [vmem:[%s0 + $0x8] sm:$0xe]
    %v58 = vld [vmem:[%s0 + $0xc] sm:$0x3]
    %v59 = vld [vmem:[%s0] sm:$0xc]
    %v60 = vld [vmem:[%s0 + $0x4] sm:$0x7]
    %v61 = vld [vmem:[%s0 + $0x8] sm:$0xc]
    %v62 = vld [vmem:[%s0 + $0xc] sm:$0x7]
    %v63 = vld [vmem:[%s0] sm:$0x8]
    %v64 = vld [vmem:[%s0 + $0x4] sm:$0xf]
    %v65 = vld [vmem:[%s0 + $0x8] sm:$0x8]
    %v66 = vld [vmem:[%s0 + $0xc] sm:$0xf]
    %v71 = vunpack.c.l.b16 %v51
    %v72 = vunpack.c.l.b16 %v52
    %v73 = vunpack.c.l.b16 %v53
    %v74 = vunpack.c.l.b16 %v54
    %v75 = vpack.c.b16 %v72, %v71
    %v76 = vpack.c.b16 %v74, %v73
    %v78 = vshrl.u32 %v75, 16
    %v80 = vshll.u32 %v75, 16
    %v82 = vrot.slane %v80, 1
    %v83 = vor.u32 %v78, %v82
    %v85 = vshrl.u32 %v76, 16
    %v87 = vshll.u32 %v76, 16
    %v89 = vrot.slane %v87, 1
    %v90 = vor.u32 %v85, %v89
    %91 = vrot.lane.b32.xlu0 %v83, 32
    %v92 = vpop.permute.xlu0 %91
    %93 = vrot.lane.b32.xlu0 %v90, 32
    %v94 = vpop.permute.xlu0 %93
    %v99 = vunpack.c.l.b16 %v55
    %v100 = vunpack.c.l.b16 %v56
    %v101 = vunpack.c.l.b16 %v57
    %v102 = vunpack.c.l.b16 %v58
    %v103 = vpack.c.b16 %v100, %v99
    %v104 = vpack.c.b16 %v102, %v101
    %v105 = vrot.slane %v103, 1
    %v106 = vrot.slane %v104, 1
    %107 = vrot.lane.b32.xlu0 %v105, 64
    %v108 = vpop.permute.xlu0 %107
    %109 = vrot.lane.b32.xlu0 %v106, 64
    %v110 = vpop.permute.xlu0 %109
    %v112 = vshrl.u32 %v103, 16
    %v114 = vrot.slane %v112, 1
    %v115 = vshll.u32 %v103, 16
    %v117 = vrot.slane %v115, 2
    %v118 = vor.u32 %v114, %v117
    %v120 = vshrl.u32 %v104, 16
    %v122 = vrot.slane %v120, 1
    %v123 = vshll.u32 %v104, 16
    %v125 = vrot.slane %v123, 2
    %v126 = vor.u32 %v122, %v125
    %127 = vrot.lane.b32.xlu0 %v118, 96
    %v128 = vpop.permute.xlu0 %127
    %129 = vrot.lane.b32.xlu0 %v126, 96
    %v130 = vpop.permute.xlu0 %129
    %v135 = vunpack.c.l.b16 %v59
    %v136 = vunpack.c.l.b16 %v60
    %v137 = vunpack.c.l.b16 %v61
    %v138 = vunpack.c.l.b16 %v62
    %v139 = vpack.c.b16 %v136, %v135
    %v140 = vpack.c.b16 %v138, %v137
    %v141 = vrot.slane %v139, 2
    %v142 = vrot.slane %v140, 2
    %v144 = vshrl.u32 %v139, 16
    %v146 = vrot.slane %v144, 2
    %v147 = vshll.u32 %v139, 16
    %v149 = vrot.slane %v147, 3
    %v150 = vor.u32 %v146, %v149
    %v152 = vshrl.u32 %v140, 16
    %v154 = vrot.slane %v152, 2
    %v155 = vshll.u32 %v140, 16
    %v157 = vrot.slane %v155, 3
    %v158 = vor.u32 %v154, %v157
    %159 = vrot.lane.b32.xlu0 %v150, 32
    %v160 = vpop.permute.xlu0 %159
    %161 = vrot.lane.b32.xlu0 %v158, 32
    %v162 = vpop.permute.xlu0 %161
    %v167 = vunpack.c.l.b16 %v63
    %v168 = vunpack.c.l.b16 %v64
    %v169 = vunpack.c.l.b16 %v65
    %v170 = vunpack.c.l.b16 %v66
    %v171 = vpack.c.b16 %v168, %v167
    %v172 = vpack.c.b16 %v170, %v169
    %v173 = vrot.slane %v171, 3
    %v174 = vrot.slane %v172, 3
    %175 = vrot.lane.b32.xlu0 %v173, 64
    %v176 = vpop.permute.xlu0 %175
    %177 = vrot.lane.b32.xlu0 %v174, 64
    %v178 = vpop.permute.xlu0 %177
    %v180 = vshrl.u32 %v171, 16
    %v182 = vrot.slane %v180, 3
    %v183 = vshll.u32 %v171, 16
    %v185 = vrot.slane %v183, 4
    %v186 = vor.u32 %v182, %v185
    %v188 = vshrl.u32 %v172, 16
    %v190 = vrot.slane %v188, 3
    %v191 = vshll.u32 %v172, 16
    %v193 = vrot.slane %v191, 4
    %v194 = vor.u32 %v190, %v193
    %195 = vrot.lane.b32.xlu0 %v186, 96
    %v196 = vpop.permute.xlu0 %195
    %197 = vrot.lane.b32.xlu0 %v194, 96
    %v198 = vpop.permute.xlu0 %197
    %vm199 = vcmask 261120
    %v201 = vsel %vm199, %v75, %v92
    %v203 = vsel %vm199, %v76, %v94
    %vm204 = vcmask 523264
    %v206 = vsel %vm204, %v201, %v108
    %v208 = vsel %vm204, %v203, %v110
    %vm209 = vcmask 785408
    %v211 = vsel %vm209, %v206, %v128
    %v213 = vsel %vm209, %v208, %v130
    %v216 = vsel %vm199, %v141, %v160
    %v219 = vsel %vm199, %v142, %v162
    %v221 = vsel %vm204, %v216, %v176
    %v223 = vsel %vm204, %v219, %v178
    %v225 = vsel %vm209, %v221, %v196
    %v227 = vsel %vm209, %v223, %v198
    %v232 = vunpack.c.l.b16 %v211
    %v233 = vunpack.c.l.b16 %v225
    %v234 = vunpack.c.h.b16 %v211
    %v235 = vunpack.c.h.b16 %v225
    %v236 = vunpack.c.l.b16 %v213
    %v237 = vunpack.c.l.b16 %v227
    %v238 = vunpack.c.h.b16 %v213
    %v239 = vunpack.c.h.b16 %v227
    %v240 = vpack.c.b16 %v233, %v232
    %v241 = vpack.c.b16 %v235, %v234
    %v242 = vpack.c.b16 %v237, %v236
    %v243 = vpack.c.b16 %v239, %v238
    %248 = vst [vmem:[#allocation2] sm:$0xff] %v240
    %vm249 = vcmask 1040384
    %vm250 = vsmask.f32 256
    %vm251 = vmand %vm249, %vm250
    %vm252 = vcmask 1044484
    %vm253 = vsmask.f32 4352
    %vm254 = vmand %vm252, %vm253
    %vm255 = vmor %vm254, %vm251
    %v256 = vld [vmem:[#allocation2 + $0x8] sm:$0x11]
    %v257 = vsel %vm255, %v241, %v256
    %258 = vst [vmem:[#allocation2 + $0x8] sm:$0x11] %v257
    %259 = vst [vmem:[#allocation2 + $0x58] sm:$0xff] %v242
    %v260 = vld [vmem:[#allocation2 + $0x60] sm:$0x11]
    %v261 = vsel %vm255, %v243, %v260
    %262 = vst [vmem:[#allocation2 + $0x60] sm:$0x11] %v261
    %v263 = vld [vmem:[%s0] sm:$0xf]
    %v264 = vld [vmem:[%s0 + $0x4] sm:$0x1]
    %v265 = vld [vmem:[%s0 + $0x8] sm:$0xf]
    %v266 = vld [vmem:[%s0 + $0xc] sm:$0x1]
    %v267 = vld [vmem:[%s0] sm:$0xe]
    %v268 = vld [vmem:[%s0 + $0x4] sm:$0x3]
    %v269 = vld [vmem:[%s0 + $0x8] sm:$0xe]
    %v270 = vld [vmem:[%s0 + $0xc] sm:$0x3]
    %v271 = vld [vmem:[%s0] sm:$0xc]
    %v272 = vld [vmem:[%s0 + $0x4] sm:$0x7]
    %v273 = vld [vmem:[%s0 + $0x8] sm:$0xc]
    %v274 = vld [vmem:[%s0 + $0xc] sm:$0x7]
    %v275 = vld [vmem:[%s0] sm:$0x8]
    %v276 = vld [vmem:[%s0 + $0x4] sm:$0xf]
    %v277 = vld [vmem:[%s0 + $0x8] sm:$0x8]
    %v278 = vld [vmem:[%s0 + $0xc] sm:$0xf]
    %v283 = vunpack.c.l.b16 %v263
    %v284 = vunpack.c.l.b16 %v264
    %v285 = vunpack.c.l.b16 %v265
    %v286 = vunpack.c.l.b16 %v266
    %v287 = vpack.c.b16 %v284, %v283
    %v288 = vpack.c.b16 %v286, %v285
    %289 = vrot.lane.b32.xlu0 %v287, 124
    %v290 = vpop.permute.xlu0 %289
    %291 = vrot.lane.b32.xlu0 %v288, 124
    %v292 = vpop.permute.xlu0 %291
    %v294 = vshrl.u32 %v287, 16
    %v296 = vshll.u32 %v287, 16
    %v298 = vrot.slane %v296, 1
    %v299 = vor.u32 %v294, %v298
    %v301 = vshrl.u32 %v288, 16
    %v303 = vshll.u32 %v288, 16
    %v305 = vrot.slane %v303, 1
    %v306 = vor.u32 %v301, %v305
    %307 = vrot.lane.b32.xlu0 %v299, 28
    %v308 = vpop.permute.xlu0 %307
    %309 = vrot.lane.b32.xlu0 %v306, 28
    %v310 = vpop.permute.xlu0 %309
    %v315 = vunpack.c.l.b16 %v267
    %v316 = vunpack.c.l.b16 %v268
    %v317 = vunpack.c.l.b16 %v269
    %v318 = vunpack.c.l.b16 %v270
    %v319 = vpack.c.b16 %v316, %v315
    %v320 = vpack.c.b16 %v318, %v317
    %v321 = vrot.slane %v319, 1
    %v322 = vrot.slane %v320, 1
    %323 = vrot.lane.b32.xlu0 %v321, 60
    %v324 = vpop.permute.xlu0 %323
    %325 = vrot.lane.b32.xlu0 %v322, 60
    %v326 = vpop.permute.xlu0 %325
    %v328 = vshrl.u32 %v319, 16
    %v330 = vrot.slane %v328, 1
    %v331 = vshll.u32 %v319, 16
    %v333 = vrot.slane %v331, 2
    %v334 = vor.u32 %v330, %v333
    %v336 = vshrl.u32 %v320, 16
    %v338 = vrot.slane %v336, 1
    %v339 = vshll.u32 %v320, 16
    %v341 = vrot.slane %v339, 2
    %v342 = vor.u32 %v338, %v341
    %343 = vrot.lane.b32.xlu0 %v334, 92
    %v344 = vpop.permute.xlu0 %343
    %345 = vrot.lane.b32.xlu0 %v342, 92
    %v346 = vpop.permute.xlu0 %345
    %v351 = vunpack.c.l.b16 %v271
    %v352 = vunpack.c.l.b16 %v272
    %v353 = vunpack.c.l.b16 %v273
    %v354 = vunpack.c.l.b16 %v274
    %v355 = vpack.c.b16 %v352, %v351
    %v356 = vpack.c.b16 %v354, %v353
    %v357 = vrot.slane %v355, 2
    %v358 = vrot.slane %v356, 2
    %359 = vrot.lane.b32.xlu0 %v357, 124
    %v360 = vpop.permute.xlu0 %359
    %361 = vrot.lane.b32.xlu0 %v358, 124
    %v362 = vpop.permute.xlu0 %361
    %v364 = vshrl.u32 %v355, 16
    %v366 = vrot.slane %v364, 2
    %v367 = vshll.u32 %v355, 16
    %v369 = vrot.slane %v367, 3
    %v370 = vor.u32 %v366, %v369
    %v372 = vshrl.u32 %v356, 16
    %v374 = vrot.slane %v372, 2
    %v375 = vshll.u32 %v356, 16
    %v377 = vrot.slane %v375, 3
    %v378 = vor.u32 %v374, %v377
    %379 = vrot.lane.b32.xlu0 %v370, 28
    %v380 = vpop.permute.xlu0 %379
    %381 = vrot.lane.b32.xlu0 %v378, 28
    %v382 = vpop.permute.xlu0 %381
    %v387 = vunpack.c.l.b16 %v275
    %v388 = vunpack.c.l.b16 %v276
    %v389 = vunpack.c.l.b16 %v277
    %v390 = vunpack.c.l.b16 %v278
    %v391 = vpack.c.b16 %v388, %v387
    %v392 = vpack.c.b16 %v390, %v389
    %v393 = vrot.slane %v391, 3
    %v394 = vrot.slane %v392, 3
    %395 = vrot.lane.b32.xlu0 %v393, 60
    %v396 = vpop.permute.xlu0 %395
    %397 = vrot.lane.b32.xlu0 %v394, 60
    %v398 = vpop.permute.xlu0 %397
    %v400 = vshrl.u32 %v391, 16
    %v402 = vrot.slane %v400, 3
    %v403 = vshll.u32 %v391, 16
    %v405 = vrot.slane %v403, 4
    %v406 = vor.u32 %v402, %v405
    %v408 = vshrl.u32 %v392, 16
    %v410 = vrot.slane %v408, 3
    %v411 = vshll.u32 %v392, 16
    %v413 = vrot.slane %v411, 4
    %v414 = vor.u32 %v410, %v413
    %415 = vrot.lane.b32.xlu0 %v406, 92
    %v416 = vpop.permute.xlu0 %415
    %417 = vrot.lane.b32.xlu0 %v414, 92
    %v418 = vpop.permute.xlu0 %417
    %v421 = vsel %vm199, %v290, %v308
    %v424 = vsel %vm199, %v292, %v310
    %v426 = vsel %vm204, %v421, %v324
    %v428 = vsel %vm204, %v424, %v326
    %v430 = vsel %vm209, %v426, %v344
    %v432 = vsel %vm209, %v428, %v346
    %v435 = vsel %vm199, %v360, %v380
    %v438 = vsel %vm199, %v362, %v382
    %v440 = vsel %vm204, %v435, %v396
    %v442 = vsel %vm204, %v438, %v398
    %v444 = vsel %vm209, %v440, %v416
    %v446 = vsel %vm209, %v442, %v418
    %v451 = vunpack.c.l.b16 %v430
    %v452 = vunpack.c.l.b16 %v444
    %v453 = vunpack.c.h.b16 %v430
    %v454 = vunpack.c.h.b16 %v444
    %v455 = vunpack.c.l.b16 %v432
    %v456 = vunpack.c.l.b16 %v446
    %v457 = vunpack.c.h.b16 %v432
    %v458 = vunpack.c.h.b16 %v446
    %v459 = vpack.c.b16 %v452, %v451
    %v460 = vpack.c.b16 %v454, %v453
    %v461 = vpack.c.b16 %v456, %v455
    %v462 = vpack.c.b16 %v458, %v457
    %vm463 = vsmask.f32 4368
    %vm464 = vmor %vm250, %vm463
    %v466 = vshrl.u32 %v459, 16
    %v468 = vrot.slane %v466, 7
    %v469 = vshll.u32 %v459, 16
    %v471 = vor.u32 %v468, %v469
    %v472 = vrot.slane %v468, 4
    %v474 = vshll.u32 %v460, 16
    %v476 = vsel %vm464, %v472, %v474
    %v478 = vshrl.u32 %v461, 16
    %v480 = vrot.slane %v478, 7
    %v481 = vshll.u32 %v461, 16
    %v483 = vor.u32 %v480, %v481
    %v484 = vrot.slane %v480, 4
    %v486 = vshll.u32 %v462, 16
    %v488 = vsel %vm464, %v484, %v486
    %vm493 = vcmask 1043456
    %vm494 = vsmask.f32 7938
    %vm495 = vmand %vm493, %vm494
    %vm496 = vcmask 1047556
    %vm497 = vsmask.f32 7954
    %vm498 = vmand %vm496, %vm497
    %vm499 = vmor %vm498, %vm495
    %v500 = vld [vmem:[#allocation2 + $0x8] sm:$0xff]
    %v501 = vsel %vm499, %v471, %v500
    %502 = vst [vmem:[#allocation2 + $0x8] sm:$0xff] %v501
    %503 = vst [vmem:[#allocation2 + $0x10] sm:$0x11] %v476
    %v504 = vld [vmem:[#allocation2 + $0x60] sm:$0xff]
    %v505 = vsel %vm499, %v483, %v504
    %506 = vst [vmem:[#allocation2 + $0x60] sm:$0xff] %v505
    %507 = vst [vmem:[#allocation2 + $0x68] sm:$0x11] %v488
    %v508 = vld [vmem:[%s0] sm:$0xf]
    %v509 = vld [vmem:[%s0 + $0x4] sm:$0x1]
    %v510 = vld [vmem:[%s0 + $0x8] sm:$0xf]
    %v511 = vld [vmem:[%s0 + $0xc] sm:$0x1]
    %v512 = vld [vmem:[%s0] sm:$0xe]
    %v513 = vld [vmem:[%s0 + $0x4] sm:$0x3]
    %v514 = vld [vmem:[%s0 + $0x8] sm:$0xe]
    %v515 = vld [vmem:[%s0 + $0xc] sm:$0x3]
    %v516 = vld [vmem:[%s0] sm:$0xc]
    %v517 = vld [vmem:[%s0 + $0x4] sm:$0x7]
    %v518 = vld [vmem:[%s0 + $0x8] sm:$0xc]
    %v519 = vld [vmem:[%s0 + $0xc] sm:$0x7]
    %v520 = vld [vmem:[%s0] sm:$0x8]
    %v521 = vld [vmem:[%s0 + $0x4] sm:$0xf]
    %v522 = vld [vmem:[%s0 + $0x8] sm:$0x8]
    %v523 = vld [vmem:[%s0 + $0xc] sm:$0xf]
    %v528 = vunpack.c.l.b16 %v508
    %v529 = vunpack.c.l.b16 %v509
    %v530 = vunpack.c.l.b16 %v510
    %v531 = vunpack.c.l.b16 %v511
    %v532 = vpack.c.b16 %v529, %v528
    %v533 = vpack.c.b16 %v531, %v530
    %534 = vrot.lane.b32.xlu0 %v532, 120
    %v535 = vpop.permute.xlu0 %534
    %536 = vrot.lane.b32.xlu0 %v533, 120
    %v537 = vpop.permute.xlu0 %536
    %v539 = vshrl.u32 %v532, 16
    %v541 = vshll.u32 %v532, 16
    %v543 = vrot.slane %v541, 1
    %v544 = vor.u32 %v539, %v543
    %v546 = vshrl.u32 %v533, 16
    %v548 = vshll.u32 %v533, 16
    %v550 = vrot.slane %v548, 1
    %v551 = vor.u32 %v546, %v550
    %552 = vrot.lane.b32.xlu0 %v544, 24
    %v553 = vpop.permute.xlu0 %552
    %554 = vrot.lane.b32.xlu0 %v551, 24
    %v555 = vpop.permute.xlu0 %554
    %v560 = vunpack.c.l.b16 %v512
    %v561 = vunpack.c.l.b16 %v513
    %v562 = vunpack.c.l.b16 %v514
    %v563 = vunpack.c.l.b16 %v515
    %v564 = vpack.c.b16 %v561, %v560
    %v565 = vpack.c.b16 %v563, %v562
    %v566 = vrot.slane %v564, 1
    %v567 = vrot.slane %v565, 1
    %568 = vrot.lane.b32.xlu0 %v566, 56
    %v569 = vpop.permute.xlu0 %568
    %570 = vrot.lane.b32.xlu0 %v567, 56
    %v571 = vpop.permute.xlu0 %570
    %v573 = vshrl.u32 %v564, 16
    %v575 = vrot.slane %v573, 1
    %v576 = vshll.u32 %v564, 16
    %v578 = vrot.slane %v576, 2
    %v579 = vor.u32 %v575, %v578
    %v581 = vshrl.u32 %v565, 16
    %v583 = vrot.slane %v581, 1
    %v584 = vshll.u32 %v565, 16
    %v586 = vrot.slane %v584, 2
    %v587 = vor.u32 %v583, %v586
    %588 = vrot.lane.b32.xlu0 %v579, 88
    %v589 = vpop.permute.xlu0 %588
    %590 = vrot.lane.b32.xlu0 %v587, 88
    %v591 = vpop.permute.xlu0 %590
    %v596 = vunpack.c.l.b16 %v516
    %v597 = vunpack.c.l.b16 %v517
    %v598 = vunpack.c.l.b16 %v518
    %v599 = vunpack.c.l.b16 %v519
    %v600 = vpack.c.b16 %v597, %v596
    %v601 = vpack.c.b16 %v599, %v598
    %v602 = vrot.slane %v600, 2
    %v603 = vrot.slane %v601, 2
    %604 = vrot.lane.b32.xlu0 %v602, 120
    %v605 = vpop.permute.xlu0 %604
    %606 = vrot.lane.b32.xlu0 %v603, 120
    %v607 = vpop.permute.xlu0 %606
    %v609 = vshrl.u32 %v600, 16
    %v611 = vrot.slane %v609, 2
    %v612 = vshll.u32 %v600, 16
    %v614 = vrot.slane %v612, 3
    %v615 = vor.u32 %v611, %v614
    %v617 = vshrl.u32 %v601, 16
    %v619 = vrot.slane %v617, 2
    %v620 = vshll.u32 %v601, 16
    %v622 = vrot.slane %v620, 3
    %v623 = vor.u32 %v619, %v622
    %624 = vrot.lane.b32.xlu0 %v615, 24
    %v625 = vpop.permute.xlu0 %624
    %626 = vrot.lane.b32.xlu0 %v623, 24
    %v627 = vpop.permute.xlu0 %626
    %v632 = vunpack.c.l.b16 %v520
    %v633 = vunpack.c.l.b16 %v521
    %v634 = vunpack.c.l.b16 %v522
    %v635 = vunpack.c.l.b16 %v523
    %v636 = vpack.c.b16 %v633, %v632
    %v637 = vpack.c.b16 %v635, %v634
    %v638 = vrot.slane %v636, 3
    %v639 = vrot.slane %v637, 3
    %640 = vrot.lane.b32.xlu0 %v638, 56
    %v641 = vpop.permute.xlu0 %640
    %642 = vrot.lane.b32.xlu0 %v639, 56
    %v643 = vpop.permute.xlu0 %642
    %v645 = vshrl.u32 %v636, 16
    %v647 = vrot.slane %v645, 3
    %v648 = vshll.u32 %v636, 16
    %v650 = vrot.slane %v648, 4
    %v651 = vor.u32 %v647, %v650
    %v653 = vshrl.u32 %v637, 16
    %v655 = vrot.slane %v653, 3
    %v656 = vshll.u32 %v637, 16
    %v658 = vrot.slane %v656, 4
    %v659 = vor.u32 %v655, %v658
    %660 = vrot.lane.b32.xlu0 %v651, 88
    %v661 = vpop.permute.xlu0 %660
    %662 = vrot.lane.b32.xlu0 %v659, 88
    %v663 = vpop.permute.xlu0 %662
    %v666 = vsel %vm199, %v535, %v553
    %v669 = vsel %vm199, %v537, %v555
    %v671 = vsel %vm204, %v666, %v569
    %v673 = vsel %vm204, %v669, %v571
    %v675 = vsel %vm209, %v671, %v589
    %v677 = vsel %vm209, %v673, %v591
    %v680 = vsel %vm199, %v605, %v625
    %v683 = vsel %vm199, %v607, %v627
    %v685 = vsel %vm204, %v680, %v641
    %v687 = vsel %vm204, %v683, %v643
    %v689 = vsel %vm209, %v685, %v661
    %v691 = vsel %vm209, %v687, %v663
    %v696 = vunpack.c.l.b16 %v675
    %v697 = vunpack.c.l.b16 %v689
    %v698 = vunpack.c.h.b16 %v675
    %v699 = vunpack.c.h.b16 %v689
    %v700 = vunpack.c.l.b16 %v677
    %v701 = vunpack.c.l.b16 %v691
    %v702 = vunpack.c.h.b16 %v677
    %v703 = vunpack.c.h.b16 %v691
    %v704 = vpack.c.b16 %v697, %v696
    %v705 = vpack.c.b16 %v699, %v698
    %v706 = vpack.c.b16 %v701, %v700
    %v707 = vpack.c.b16 %v703, %v702
    %vm708 = vmor %vm249, %vm252
    %v709 = vrot.slane %v704, 7
    %v710 = vrot.slane %v709, 4
    %v711 = vrot.slane %v705, 7
    %v712 = vsel %vm708, %v710, %v711
    %v713 = vrot.slane %v706, 7
    %v714 = vrot.slane %v713, 4
    %v715 = vrot.slane %v707, 7
    %v716 = vsel %vm708, %v714, %v715
    %721 = vst [vmem:[#allocation2 + $0x10] sm:$0xee] %v709
    %vm722 = vcmask 1041408
    %vm723 = vsmask.f32 1280
    %vm724 = vmand %vm722, %vm723
    %vm725 = vcmask 1045508
    %vm726 = vsmask.f32 5376
    %vm727 = vmand %vm725, %vm726
    %vm728 = vmor %vm727, %vm724
    %v729 = vld [vmem:[#allocation2 + $0x18] sm:$0x33]
    %v730 = vsel %vm728, %v712, %v729
    %731 = vst [vmem:[#allocation2 + $0x18] sm:$0x33] %v730
    %732 = vst [vmem:[#allocation2 + $0x68] sm:$0xee] %v713
    %v733 = vld [vmem:[#allocation2 + $0x70] sm:$0x33]
    %v734 = vsel %vm728, %v716, %v733
    %735 = vst [vmem:[#allocation2 + $0x70] sm:$0x33] %v734
    %v736 = vld [vmem:[%s0] sm:$0xf]
    %v737 = vld [vmem:[%s0 + $0x4] sm:$0x1]
    %v738 = vld [vmem:[%s0 + $0x8] sm:$0xf]
    %v739 = vld [vmem:[%s0 + $0xc] sm:$0x1]
    %v740 = vld [vmem:[%s0] sm:$0xe]
    %v741 = vld [vmem:[%s0 + $0x4] sm:$0x3]
    %v742 = vld [vmem:[%s0 + $0x8] sm:$0xe]
    %v743 = vld [vmem:[%s0 + $0xc] sm:$0x3]
    %v744 = vld [vmem:[%s0] sm:$0xc]
    %v745 = vld [vmem:[%s0 + $0x4] sm:$0x7]
    %v746 = vld [vmem:[%s0 + $0x8] sm:$0xc]
    %v747 = vld [vmem:[%s0 + $0xc] sm:$0x7]
    %v748 = vld [vmem:[%s0] sm:$0x8]
    %v749 = vld [vmem:[%s0 + $0x4] sm:$0xf]
    %v750 = vld [vmem:[%s0 + $0x8] sm:$0x8]
    %v751 = vld [vmem:[%s0 + $0xc] sm:$0xf]
    %v756 = vunpack.c.l.b16 %v736
    %v757 = vunpack.c.l.b16 %v737
    %v758 = vunpack.c.l.b16 %v738
    %v759 = vunpack.c.l.b16 %v739
    %v760 = vpack.c.b16 %v757, %v756
    %v761 = vpack.c.b16 %v759, %v758
    %762 = vrot.lane.b32.xlu0 %v760, 116
    %v763 = vpop.permute.xlu0 %762
    %764 = vrot.lane.b32.xlu0 %v761, 116
    %v765 = vpop.permute.xlu0 %764
    %v767 = vshrl.u32 %v760, 16
    %v769 = vshll.u32 %v760, 16
    %v771 = vrot.slane %v769, 1
    %v772 = vor.u32 %v767, %v771
    %v774 = vshrl.u32 %v761, 16
    %v776 = vshll.u32 %v761, 16
    %v778 = vrot.slane %v776, 1
    %v779 = vor.u32 %v774, %v778
    %780 = vrot.lane.b32.xlu0 %v772, 20
    %v781 = vpop.permute.xlu0 %780
    %782 = vrot.lane.b32.xlu0 %v779, 20
    %v783 = vpop.permute.xlu0 %782
    %v788 = vunpack.c.l.b16 %v740
    %v789 = vunpack.c.l.b16 %v741
    %v790 = vunpack.c.l.b16 %v742
    %v791 = vunpack.c.l.b16 %v743
    %v792 = vpack.c.b16 %v789, %v788
    %v793 = vpack.c.b16 %v791, %v790
    %v794 = vrot.slane %v792, 1
    %v795 = vrot.slane %v793, 1
    %796 = vrot.lane.b32.xlu0 %v794, 52
    %v797 = vpop.permute.xlu0 %796
    %798 = vrot.lane.b32.xlu0 %v795, 52
    %v799 = vpop.permute.xlu0 %798
    %v801 = vshrl.u32 %v792, 16
    %v803 = vrot.slane %v801, 1
    %v804 = vshll.u32 %v792, 16
    %v806 = vrot.slane %v804, 2
    %v807 = vor.u32 %v803, %v806
    %v809 = vshrl.u32 %v793, 16
    %v811 = vrot.slane %v809, 1
    %v812 = vshll.u32 %v793, 16
    %v814 = vrot.slane %v812, 2
    %v815 = vor.u32 %v811, %v814
    %816 = vrot.lane.b32.xlu0 %v807, 84
    %v817 = vpop.permute.xlu0 %816
    %818 = vrot.lane.b32.xlu0 %v815, 84
    %v819 = vpop.permute.xlu0 %818
    %v824 = vunpack.c.l.b16 %v744
    %v825 = vunpack.c.l.b16 %v745
    %v826 = vunpack.c.l.b16 %v746
    %v827 = vunpack.c.l.b16 %v747
    %v828 = vpack.c.b16 %v825, %v824
    %v829 = vpack.c.b16 %v827, %v826
    %v830 = vrot.slane %v828, 2
    %v831 = vrot.slane %v829, 2
    %832 = vrot.lane.b32.xlu0 %v830, 116
    %v833 = vpop.permute.xlu0 %832
    %834 = vrot.lane.b32.xlu0 %v831, 116
    %v835 = vpop.permute.xlu0 %834
    %v837 = vshrl.u32 %v828, 16
    %v839 = vrot.slane %v837, 2
    %v840 = vshll.u32 %v828, 16
    %v842 = vrot.slane %v840, 3
    %v843 = vor.u32 %v839, %v842
    %v845 = vshrl.u32 %v829, 16
    %v847 = vrot.slane %v845, 2
    %v848 = vshll.u32 %v829, 16
    %v850 = vrot.slane %v848, 3
    %v851 = vor.u32 %v847, %v850
    %852 = vrot.lane.b32.xlu0 %v843, 20
    %v853 = vpop.permute.xlu0 %852
    %854 = vrot.lane.b32.xlu0 %v851, 20
    %v855 = vpop.permute.xlu0 %854
    %v860 = vunpack.c.l.b16 %v748
    %v861 = vunpack.c.l.b16 %v749
    %v862 = vunpack.c.l.b16 %v750
    %v863 = vunpack.c.l.b16 %v751
    %v864 = vpack.c.b16 %v861, %v860
    %v865 = vpack.c.b16 %v863, %v862
    %v866 = vrot.slane %v864, 3
    %v867 = vrot.slane %v865, 3
    %868 = vrot.lane.b32.xlu0 %v866, 52
    %v869 = vpop.permute.xlu0 %868
    %870 = vrot.lane.b32.xlu0 %v867, 52
    %v871 = vpop.permute.xlu0 %870
    %v873 = vshrl.u32 %v864, 16
    %v875 = vrot.slane %v873, 3
    %v876 = vshll.u32 %v864, 16
    %v878 = vrot.slane %v876, 4
    %v879 = vor.u32 %v875, %v878
    %v881 = vshrl.u32 %v865, 16
    %v883 = vrot.slane %v881, 3
    %v884 = vshll.u32 %v865, 16
    %v886 = vrot.slane %v884, 4
    %v887 = vor.u32 %v883, %v886
    %888 = vrot.lane.b32.xlu0 %v879, 84
    %v889 = vpop.permute.xlu0 %888
    %890 = vrot.lane.b32.xlu0 %v887, 84
    %v891 = vpop.permute.xlu0 %890
    %v894 = vsel %vm199, %v763, %v781
    %v897 = vsel %vm199, %v765, %v783
    %v899 = vsel %vm204, %v894, %v797
    %v901 = vsel %vm204, %v897, %v799
    %v903 = vsel %vm209, %v899, %v817
    %v905 = vsel %vm209, %v901, %v819
    %v908 = vsel %vm199, %v833, %v853
    %v911 = vsel %vm199, %v835, %v855
    %v913 = vsel %vm204, %v908, %v869
    %v915 = vsel %vm204, %v911, %v871
    %v917 = vsel %vm209, %v913, %v889
    %v919 = vsel %vm209, %v915, %v891
    %v924 = vunpack.c.l.b16 %v903
    %v925 = vunpack.c.l.b16 %v917
    %v926 = vunpack.c.h.b16 %v903
    %v927 = vunpack.c.h.b16 %v917
    %v928 = vunpack.c.l.b16 %v905
    %v929 = vunpack.c.l.b16 %v919
    %v930 = vunpack.c.h.b16 %v905
    %v931 = vunpack.c.h.b16 %v919
    %v932 = vpack.c.b16 %v925, %v924
    %v933 = vpack.c.b16 %v927, %v926
    %v934 = vpack.c.b16 %v929, %v928
    %v935 = vpack.c.b16 %v931, %v930
    %vm936 = vsmask.f32 5392
    %vm937 = vmor %vm723, %vm936
    %v939 = vshrl.u32 %v932, 16
    %v941 = vrot.slane %v939, 6
    %v942 = vshll.u32 %v932, 16
    %v944 = vrot.slane %v942, 7
    %v945 = vor.u32 %v941, %v944
    %v946 = vrot.slane %v945, 4
    %v948 = vshll.u32 %v933, 16
    %v950 = vrot.slane %v948, 7
    %v951 = vsel %vm937, %v946, %v950
    %v953 = vshrl.u32 %v934, 16
    %v955 = vrot.slane %v953, 6
    %v956 = vshll.u32 %v934, 16
    %v958 = vrot.slane %v956, 7
    %v959 = vor.u32 %v955, %v958
    %v960 = vrot.slane %v959, 4
    %v962 = vshll.u32 %v935, 16
    %v964 = vrot.slane %v962, 7
    %v965 = vsel %vm937, %v960, %v964
    %vm970 = vcmask 1043457
    %vm971 = vsmask.f32 7942
    %vm972 = vmand %vm970, %vm971
    %vm973 = vcmask 1047557
    %vm974 = vsmask.f32 7958
    %vm975 = vmand %vm973, %vm974
    %vm976 = vmor %vm975, %vm972
    %v977 = vld [vmem:[#allocation2 + $0x18] sm:$0xee]
    %v978 = vsel %vm976, %v945, %v977
    %979 = vst [vmem:[#allocation2 + $0x18] sm:$0xee] %v978
    %980 = vst [vmem:[#allocation2 + $0x20] sm:$0x33] %v951
    %v981 = vld [vmem:[#allocation2 + $0x70] sm:$0xee]
    %v982 = vsel %vm976, %v959, %v981
    %983 = vst [vmem:[#allocation2 + $0x70] sm:$0xee] %v982
    %984 = vst [vmem:[#allocation2 + $0x78] sm:$0x33] %v965
    %v985 = vld [vmem:[%s0] sm:$0xf]
    %v986 = vld [vmem:[%s0 + $0x4] sm:$0x1]
    %v987 = vld [vmem:[%s0 + $0x8] sm:$0xf]
    %v988 = vld [vmem:[%s0 + $0xc] sm:$0x1]
    %v989 = vld [vmem:[%s0] sm:$0xe]
    %v990 = vld [vmem:[%s0 + $0x4] sm:$0x3]
    %v991 = vld [vmem:[%s0 + $0x8] sm:$0xe]
    %v992 = vld [vmem:[%s0 + $0xc] sm:$0x3]
    %v993 = vld [vmem:[%s0] sm:$0xc]
    %v994 = vld [vmem:[%s0 + $0x4] sm:$0x7]
    %v995 = vld [vmem:[%s0 + $0x8] sm:$0xc]
    %v996 = vld [vmem:[%s0 + $0xc] sm:$0x7]
    %v997 = vld [vmem:[%s0] sm:$0x8]
    %v998 = vld [vmem:[%s0 + $0x4] sm:$0xf]
    %v999 = vld [vmem:[%s0 + $0x8] sm:$0x8]
    %v1000 = vld [vmem:[%s0 + $0xc] sm:$0xf]
    %v1005 = vunpack.c.l.b16 %v985
    %v1006 = vunpack.c.l.b16 %v986
    %v1007 = vunpack.c.l.b16 %v987
    %v1008 = vunpack.c.l.b16 %v988
    %v1009 = vpack.c.b16 %v1006, %v1005
    %v1010 = vpack.c.b16 %v1008, %v1007
    %1011 = vrot.lane.b32.xlu0 %v1009, 112
    %v1012 = vpop.permute.xlu0 %1011
    %1013 = vrot.lane.b32.xlu0 %v1010, 112
    %v1014 = vpop.permute.xlu0 %1013
    %v1016 = vshrl.u32 %v1009, 16
    %v1018 = vshll.u32 %v1009, 16
    %v1020 = vrot.slane %v1018, 1
    %v1021 = vor.u32 %v1016, %v1020
    %v1023 = vshrl.u32 %v1010, 16
    %v1025 = vshll.u32 %v1010, 16
    %v1027 = vrot.slane %v1025, 1
    %v1028 = vor.u32 %v1023, %v1027
    %1029 = vrot.lane.b32.xlu0 %v1021, 16
    %v1030 = vpop.permute.xlu0 %1029
    %1031 = vrot.lane.b32.xlu0 %v1028, 16
    %v1032 = vpop.permute.xlu0 %1031
    %v1037 = vunpack.c.l.b16 %v989
    %v1038 = vunpack.c.l.b16 %v990
    %v1039 = vunpack.c.l.b16 %v991
    %v1040 = vunpack.c.l.b16 %v992
    %v1041 = vpack.c.b16 %v1038, %v1037
    %v1042 = vpack.c.b16 %v1040, %v1039
    %v1043 = vrot.slane %v1041, 1
    %v1044 = vrot.slane %v1042, 1
    %1045 = vrot.lane.b32.xlu0 %v1043, 48
    %v1046 = vpop.permute.xlu0 %1045
    %1047 = vrot.lane.b32.xlu0 %v1044, 48
    %v1048 = vpop.permute.xlu0 %1047
    %v1050 = vshrl.u32 %v1041, 16
    %v1052 = vrot.slane %v1050, 1
    %v1053 = vshll.u32 %v1041, 16
    %v1055 = vrot.slane %v1053, 2
    %v1056 = vor.u32 %v1052, %v1055
    %v1058 = vshrl.u32 %v1042, 16
    %v1060 = vrot.slane %v1058, 1
    %v1061 = vshll.u32 %v1042, 16
    %v1063 = vrot.slane %v1061, 2
    %v1064 = vor.u32 %v1060, %v1063
    %1065 = vrot.lane.b32.xlu0 %v1056, 80
    %v1066 = vpop.permute.xlu0 %1065
    %1067 = vrot.lane.b32.xlu0 %v1064, 80
    %v1068 = vpop.permute.xlu0 %1067
    %v1073 = vunpack.c.l.b16 %v993
    %v1074 = vunpack.c.l.b16 %v994
    %v1075 = vunpack.c.l.b16 %v995
    %v1076 = vunpack.c.l.b16 %v996
    %v1077 = vpack.c.b16 %v1074, %v1073
    %v1078 = vpack.c.b16 %v1076, %v1075
    %v1079 = vrot.slane %v1077, 2
    %v1080 = vrot.slane %v1078, 2
    %1081 = vrot.lane.b32.xlu0 %v1079, 112
    %v1082 = vpop.permute.xlu0 %1081
    %1083 = vrot.lane.b32.xlu0 %v1080, 112
    %v1084 = vpop.permute.xlu0 %1083
    %v1086 = vshrl.u32 %v1077, 16
    %v1088 = vrot.slane %v1086, 2
    %v1089 = vshll.u32 %v1077, 16
    %v1091 = vrot.slane %v1089, 3
    %v1092 = vor.u32 %v1088, %v1091
    %v1094 = vshrl.u32 %v1078, 16
    %v1096 = vrot.slane %v1094, 2
    %v1097 = vshll.u32 %v1078, 16
    %v1099 = vrot.slane %v1097, 3
    %v1100 = vor.u32 %v1096, %v1099
    %1101 = vrot.lane.b32.xlu0 %v1092, 16
    %v1102 = vpop.permute.xlu0 %1101
    %1103 = vrot.lane.b32.xlu0 %v1100, 16
    %v1104 = vpop.permute.xlu0 %1103
    %v1109 = vunpack.c.l.b16 %v997
    %v1110 = vunpack.c.l.b16 %v998
    %v1111 = vunpack.c.l.b16 %v999
    %v1112 = vunpack.c.l.b16 %v1000
    %v1113 = vpack.c.b16 %v1110, %v1109
    %v1114 = vpack.c.b16 %v1112, %v1111
    %v1115 = vrot.slane %v1113, 3
    %v1116 = vrot.slane %v1114, 3
    %1117 = vrot.lane.b32.xlu0 %v1115, 48
    %v1118 = vpop.permute.xlu0 %1117
    %1119 = vrot.lane.b32.xlu0 %v1116, 48
    %v1120 = vpop.permute.xlu0 %1119
    %v1122 = vshrl.u32 %v1113, 16
    %v1124 = vrot.slane %v1122, 3
    %v1125 = vshll.u32 %v1113, 16
    %v1127 = vrot.slane %v1125, 4
    %v1128 = vor.u32 %v1124, %v1127
    %v1130 = vshrl.u32 %v1114, 16
    %v1132 = vrot.slane %v1130, 3
    %v1133 = vshll.u32 %v1114, 16
    %v1135 = vrot.slane %v1133, 4
    %v1136 = vor.u32 %v1132, %v1135
    %1137 = vrot.lane.b32.xlu0 %v1128, 80
    %v1138 = vpop.permute.xlu0 %1137
    %1139 = vrot.lane.b32.xlu0 %v1136, 80
    %v1140 = vpop.permute.xlu0 %1139
    %v1143 = vsel %vm199, %v1012, %v1030
    %v1146 = vsel %vm199, %v1014, %v1032
    %v1148 = vsel %vm204, %v1143, %v1046
    %v1150 = vsel %vm204, %v1146, %v1048
    %v1152 = vsel %vm209, %v1148, %v1066
    %v1154 = vsel %vm209, %v1150, %v1068
    %v1157 = vsel %vm199, %v1082, %v1102
    %v1160 = vsel %vm199, %v1084, %v1104
    %v1162 = vsel %vm204, %v1157, %v1118
    %v1164 = vsel %vm204, %v1160, %v1120
    %v1166 = vsel %vm209, %v1162, %v1138
    %v1168 = vsel %vm209, %v1164, %v1140
    %v1173 = vunpack.c.l.b16 %v1152
    %v1174 = vunpack.c.l.b16 %v1166
    %v1175 = vunpack.c.h.b16 %v1152
    %v1176 = vunpack.c.h.b16 %v1166
    %v1177 = vunpack.c.l.b16 %v1154
    %v1178 = vunpack.c.l.b16 %v1168
    %v1179 = vunpack.c.h.b16 %v1154
    %v1180 = vunpack.c.h.b16 %v1168
    %v1181 = vpack.c.b16 %v1174, %v1173
    %v1182 = vpack.c.b16 %v1176, %v1175
    %v1183 = vpack.c.b16 %v1178, %v1177
    %v1184 = vpack.c.b16 %v1180, %v1179
    %vm1185 = vmor %vm722, %vm725
    %v1186 = vrot.slane %v1181, 6
    %v1187 = vrot.slane %v1186, 4
    %v1188 = vrot.slane %v1182, 6
    %v1189 = vsel %vm1185, %v1187, %v1188
    %v1190 = vrot.slane %v1183, 6
    %v1191 = vrot.slane %v1190, 4
    %v1192 = vrot.slane %v1184, 6
    %v1193 = vsel %vm1185, %v1191, %v1192
    %1198 = vst [vmem:[#allocation2 + $0x20] sm:$0xcc] %v1186
    %vm1199 = vcmask 1042432
    %vm1200 = vsmask.f32 2304
    %vm1201 = vmand %vm1199, %vm1200
    %vm1202 = vcmask 1046532
    %vm1203 = vsmask.f32 6400
    %vm1204 = vmand %vm1202, %vm1203
    %vm1205 = vmor %vm1204, %vm1201
    %v1206 = vld [vmem:[#allocation2 + $0x28] sm:$0x77]
    %v1207 = vsel %vm1205, %v1189, %v1206
    %1208 = vst [vmem:[#allocation2 + $0x28] sm:$0x77] %v1207
    %1209 = vst [vmem:[#allocation2 + $0x78] sm:$0xcc] %v1190
    %v1210 = vld [vmem:[#allocation2 + $0x80] sm:$0x77]
    %v1211 = vsel %vm1205, %v1193, %v1210
    %1212 = vst [vmem:[#allocation2 + $0x80] sm:$0x77] %v1211
    %v1213 = vld [vmem:[%s0] sm:$0xf]
    %v1214 = vld [vmem:[%s0 + $0x4] sm:$0x1]
    %v1215 = vld [vmem:[%s0 + $0x8] sm:$0xf]
    %v1216 = vld [vmem:[%s0 + $0xc] sm:$0x1]
    %v1217 = vld [vmem:[%s0] sm:$0xe]
    %v1218 = vld [vmem:[%s0 + $0x4] sm:$0x3]
    %v1219 = vld [vmem:[%s0 + $0x8] sm:$0xe]
    %v1220 = vld [vmem:[%s0 + $0xc] sm:$0x3]
    %v1221 = vld [vmem:[%s0] sm:$0xc]
    %v1222 = vld [vmem:[%s0 + $0x4] sm:$0x7]
    %v1223 = vld [vmem:[%s0 + $0x8] sm:$0xc]
    %v1224 = vld [vmem:[%s0 + $0xc] sm:$0x7]
    %v1225 = vld [vmem:[%s0] sm:$0x8]
    %v1226 = vld [vmem:[%s0 + $0x4] sm:$0xf]
    %v1227 = vld [vmem:[%s0 + $0x8] sm:$0x8]
    %v1228 = vld [vmem:[%s0 + $0xc] sm:$0xf]
    %v1233 = vunpack.c.l.b16 %v1213
    %v1234 = vunpack.c.l.b16 %v1214
    %v1235 = vunpack.c.l.b16 %v1215
    %v1236 = vunpack.c.l.b16 %v1216
    %v1237 = vpack.c.b16 %v1234, %v1233
    %v1238 = vpack.c.b16 %v1236, %v1235
    %1239 = vrot.lane.b32.xlu0 %v1237, 108
    %v1240 = vpop.permute.xlu0 %1239
    %1241 = vrot.lane.b32.xlu0 %v1238, 108
    %v1242 = vpop.permute.xlu0 %1241
    %v1244 = vshrl.u32 %v1237, 16
    %v1246 = vshll.u32 %v1237, 16
    %v1248 = vrot.slane %v1246, 1
    %v1249 = vor.u32 %v1244, %v1248
    %v1251 = vshrl.u32 %v1238, 16
    %v1253 = vshll.u32 %v1238, 16
    %v1255 = vrot.slane %v1253, 1
    %v1256 = vor.u32 %v1251, %v1255
    %1257 = vrot.lane.b32.xlu0 %v1249, 12
    %v1258 = vpop.permute.xlu0 %1257
    %1259 = vrot.lane.b32.xlu0 %v1256, 12
    %v1260 = vpop.permute.xlu0 %1259
    %v1265 = vunpack.c.l.b16 %v1217
    %v1266 = vunpack.c.l.b16 %v1218
    %v1267 = vunpack.c.l.b16 %v1219
    %v1268 = vunpack.c.l.b16 %v1220
    %v1269 = vpack.c.b16 %v1266, %v1265
    %v1270 = vpack.c.b16 %v1268, %v1267
    %v1271 = vrot.slane %v1269, 1
    %v1272 = vrot.slane %v1270, 1
    %1273 = vrot.lane.b32.xlu0 %v1271, 44
    %v1274 = vpop.permute.xlu0 %1273
    %1275 = vrot.lane.b32.xlu0 %v1272, 44
    %v1276 = vpop.permute.xlu0 %1275
    %v1278 = vshrl.u32 %v1269, 16
    %v1280 = vrot.slane %v1278, 1
    %v1281 = vshll.u32 %v1269, 16
    %v1283 = vrot.slane %v1281, 2
    %v1284 = vor.u32 %v1280, %v1283
    %v1286 = vshrl.u32 %v1270, 16
    %v1288 = vrot.slane %v1286, 1
    %v1289 = vshll.u32 %v1270, 16
    %v1291 = vrot.slane %v1289, 2
    %v1292 = vor.u32 %v1288, %v1291
    %1293 = vrot.lane.b32.xlu0 %v1284, 76
    %v1294 = vpop.permute.xlu0 %1293
    %1295 = vrot.lane.b32.xlu0 %v1292, 76
    %v1296 = vpop.permute.xlu0 %1295
    %v1301 = vunpack.c.l.b16 %v1221
    %v1302 = vunpack.c.l.b16 %v1222
    %v1303 = vunpack.c.l.b16 %v1223
    %v1304 = vunpack.c.l.b16 %v1224
    %v1305 = vpack.c.b16 %v1302, %v1301
    %v1306 = vpack.c.b16 %v1304, %v1303
    %v1307 = vrot.slane %v1305, 2
    %v1308 = vrot.slane %v1306, 2
    %1309 = vrot.lane.b32.xlu0 %v1307, 108
    %v1310 = vpop.permute.xlu0 %1309
    %1311 = vrot.lane.b32.xlu0 %v1308, 108
    %v1312 = vpop.permute.xlu0 %1311
    %v1314 = vshrl.u32 %v1305, 16
    %v1316 = vrot.slane %v1314, 2
    %v1317 = vshll.u32 %v1305, 16
    %v1319 = vrot.slane %v1317, 3
    %v1320 = vor.u32 %v1316, %v1319
    %v1322 = vshrl.u32 %v1306, 16
    %v1324 = vrot.slane %v1322, 2
    %v1325 = vshll.u32 %v1306, 16
    %v1327 = vrot.slane %v1325, 3
    %v1328 = vor.u32 %v1324, %v1327
    %1329 = vrot.lane.b32.xlu0 %v1320, 12
    %v1330 = vpop.permute.xlu0 %1329
    %1331 = vrot.lane.b32.xlu0 %v1328, 12
    %v1332 = vpop.permute.xlu0 %1331
    %v1337 = vunpack.c.l.b16 %v1225
    %v1338 = vunpack.c.l.b16 %v1226
    %v1339 = vunpack.c.l.b16 %v1227
    %v1340 = vunpack.c.l.b16 %v1228
    %v1341 = vpack.c.b16 %v1338, %v1337
    %v1342 = vpack.c.b16 %v1340, %v1339
    %v1343 = vrot.slane %v1341, 3
    %v1344 = vrot.slane %v1342, 3
    %1345 = vrot.lane.b32.xlu0 %v1343, 44
    %v1346 = vpop.permute.xlu0 %1345
    %1347 = vrot.lane.b32.xlu0 %v1344, 44
    %v1348 = vpop.permute.xlu0 %1347
    %v1350 = vshrl.u32 %v1341, 16
    %v1352 = vrot.slane %v1350, 3
    %v1353 = vshll.u32 %v1341, 16
    %v1355 = vrot.slane %v1353, 4
    %v1356 = vor.u32 %v1352, %v1355
    %v1358 = vshrl.u32 %v1342, 16
    %v1360 = vrot.slane %v1358, 3
    %v1361 = vshll.u32 %v1342, 16
    %v1363 = vrot.slane %v1361, 4
    %v1364 = vor.u32 %v1360, %v1363
    %1365 = vrot.lane.b32.xlu0 %v1356, 76
    %v1366 = vpop.permute.xlu0 %1365
    %1367 = vrot.lane.b32.xlu0 %v1364, 76
    %v1368 = vpop.permute.xlu0 %1367
    %v1371 = vsel %vm199, %v1240, %v1258
    %v1374 = vsel %vm199, %v1242, %v1260
    %v1376 = vsel %vm204, %v1371, %v1274
    %v1378 = vsel %vm204, %v1374, %v1276
    %v1380 = vsel %vm209, %v1376, %v1294
    %v1382 = vsel %vm209, %v1378, %v1296
    %v1385 = vsel %vm199, %v1310, %v1330
    %v1388 = vsel %vm199, %v1312, %v1332
    %v1390 = vsel %vm204, %v1385, %v1346
    %v1392 = vsel %vm204, %v1388, %v1348
    %v1394 = vsel %vm209, %v1390, %v1366
    %v1396 = vsel %vm209, %v1392, %v1368
    %v1401 = vunpack.c.l.b16 %v1380
    %v1402 = vunpack.c.l.b16 %v1394
    %v1403 = vunpack.c.h.b16 %v1380
    %v1404 = vunpack.c.h.b16 %v1394
    %v1405 = vunpack.c.l.b16 %v1382
    %v1406 = vunpack.c.l.b16 %v1396
    %v1407 = vunpack.c.h.b16 %v1382
    %v1408 = vunpack.c.h.b16 %v1396
    %v1409 = vpack.c.b16 %v1402, %v1401
    %v1410 = vpack.c.b16 %v1404, %v1403
    %v1411 = vpack.c.b16 %v1406, %v1405
    %v1412 = vpack.c.b16 %v1408, %v1407
    %vm1413 = vsmask.f32 6416
    %vm1414 = vmor %vm1200, %vm1413
    %v1416 = vshrl.u32 %v1409, 16
    %v1418 = vrot.slane %v1416, 5
    %v1419 = vshll.u32 %v1409, 16
    %v1421 = vrot.slane %v1419, 6
    %v1422 = vor.u32 %v1418, %v1421
    %v1423 = vrot.slane %v1422, 4
    %v1425 = vshll.u32 %v1410, 16
    %v1427 = vrot.slane %v1425, 6
    %v1428 = vsel %vm1414, %v1423, %v1427
    %v1430 = vshrl.u32 %v1411, 16
    %v1432 = vrot.slane %v1430, 5
    %v1433 = vshll.u32 %v1411, 16
    %v1435 = vrot.slane %v1433, 6
    %v1436 = vor.u32 %v1432, %v1435
    %v1437 = vrot.slane %v1436, 4
    %v1439 = vshll.u32 %v1412, 16
    %v1441 = vrot.slane %v1439, 6
    %v1442 = vsel %vm1414, %v1437, %v1441
    %vm1447 = vcmask 1043458
    %vm1448 = vsmask.f32 7946
    %vm1449 = vmand %vm1447, %vm1448
    %vm1450 = vcmask 1047558
    %vm1451 = vsmask.f32 7962
    %vm1452 = vmand %vm1450, %vm1451
    %vm1453 = vmor %vm1452, %vm1449
    %v1454 = vld [vmem:[#allocation2 + $0x28] sm:$0xcc]
    %v1455 = vsel %vm1453, %v1422, %v1454
    %1456 = vst [vmem:[#allocation2 + $0x28] sm:$0xcc] %v1455
    %1457 = vst [vmem:[#allocation2 + $0x30] sm:$0x77] %v1428
    %v1458 = vld [vmem:[#allocation2 + $0x80] sm:$0xcc]
    %v1459 = vsel %vm1453, %v1436, %v1458
    %1460 = vst [vmem:[#allocation2 + $0x80] sm:$0xcc] %v1459
    %1461 = vst [vmem:[#allocation2 + $0x88] sm:$0x77] %v1442
    %v1462 = vld [vmem:[%s0] sm:$0xf]
    %v1463 = vld [vmem:[%s0 + $0x4] sm:$0x1]
    %v1464 = vld [vmem:[%s0 + $0x8] sm:$0xf]
    %v1465 = vld [vmem:[%s0 + $0xc] sm:$0x1]
    %v1466 = vld [vmem:[%s0] sm:$0xe]
    %v1467 = vld [vmem:[%s0 + $0x4] sm:$0x3]
    %v1468 = vld [vmem:[%s0 + $0x8] sm:$0xe]
    %v1469 = vld [vmem:[%s0 + $0xc] sm:$0x3]
    %v1470 = vld [vmem:[%s0] sm:$0xc]
    %v1471 = vld [vmem:[%s0 + $0x4] sm:$0x7]
    %v1472 = vld [vmem:[%s0 + $0x8] sm:$0xc]
    %v1473 = vld [vmem:[%s0 + $0xc] sm:$0x7]
    %v1474 = vld [vmem:[%s0] sm:$0x8]
    %v1475 = vld [vmem:[%s0 + $0x4] sm:$0xf]
    %v1476 = vld [vmem:[%s0 + $0x8] sm:$0x8]
    %v1477 = vld [vmem:[%s0 + $0xc] sm:$0xf]
    %v1482 = vunpack.c.l.b16 %v1462
    %v1483 = vunpack.c.l.b16 %v1463
    %v1484 = vunpack.c.l.b16 %v1464
    %v1485 = vunpack.c.l.b16 %v1465
    %v1486 = vpack.c.b16 %v1483, %v1482
    %v1487 = vpack.c.b16 %v1485, %v1484
    %1488 = vrot.lane.b32.xlu0 %v1486, 104
    %v1489 = vpop.permute.xlu0 %1488
    %1490 = vrot.lane.b32.xlu0 %v1487, 104
    %v1491 = vpop.permute.xlu0 %1490
    %v1493 = vshrl.u32 %v1486, 16
    %v1495 = vshll.u32 %v1486, 16
    %v1497 = vrot.slane %v1495, 1
    %v1498 = vor.u32 %v1493, %v1497
    %v1500 = vshrl.u32 %v1487, 16
    %v1502 = vshll.u32 %v1487, 16
    %v1504 = vrot.slane %v1502, 1
    %v1505 = vor.u32 %v1500, %v1504
    %1506 = vrot.lane.b32.xlu0 %v1498, 8
    %v1507 = vpop.permute.xlu0 %1506
    %1508 = vrot.lane.b32.xlu0 %v1505, 8
    %v1509 = vpop.permute.xlu0 %1508
    %v1514 = vunpack.c.l.b16 %v1466
    %v1515 = vunpack.c.l.b16 %v1467
    %v1516 = vunpack.c.l.b16 %v1468
    %v1517 = vunpack.c.l.b16 %v1469
    %v1518 = vpack.c.b16 %v1515, %v1514
    %v1519 = vpack.c.b16 %v1517, %v1516
    %v1520 = vrot.slane %v1518, 1
    %v1521 = vrot.slane %v1519, 1
    %1522 = vrot.lane.b32.xlu0 %v1520, 40
    %v1523 = vpop.permute.xlu0 %1522
    %1524 = vrot.lane.b32.xlu0 %v1521, 40
    %v1525 = vpop.permute.xlu0 %1524
    %v1527 = vshrl.u32 %v1518, 16
    %v1529 = vrot.slane %v1527, 1
    %v1530 = vshll.u32 %v1518, 16
    %v1532 = vrot.slane %v1530, 2
    %v1533 = vor.u32 %v1529, %v1532
    %v1535 = vshrl.u32 %v1519, 16
    %v1537 = vrot.slane %v1535, 1
    %v1538 = vshll.u32 %v1519, 16
    %v1540 = vrot.slane %v1538, 2
    %v1541 = vor.u32 %v1537, %v1540
    %1542 = vrot.lane.b32.xlu0 %v1533, 72
    %v1543 = vpop.permute.xlu0 %1542
    %1544 = vrot.lane.b32.xlu0 %v1541, 72
    %v1545 = vpop.permute.xlu0 %1544
    %v1550 = vunpack.c.l.b16 %v1470
    %v1551 = vunpack.c.l.b16 %v1471
    %v1552 = vunpack.c.l.b16 %v1472
    %v1553 = vunpack.c.l.b16 %v1473
    %v1554 = vpack.c.b16 %v1551, %v1550
    %v1555 = vpack.c.b16 %v1553, %v1552
    %v1556 = vrot.slane %v1554, 2
    %v1557 = vrot.slane %v1555, 2
    %1558 = vrot.lane.b32.xlu0 %v1556, 104
    %v1559 = vpop.permute.xlu0 %1558
    %1560 = vrot.lane.b32.xlu0 %v1557, 104
    %v1561 = vpop.permute.xlu0 %1560
    %v1563 = vshrl.u32 %v1554, 16
    %v1565 = vrot.slane %v1563, 2
    %v1566 = vshll.u32 %v1554, 16
    %v1568 = vrot.slane %v1566, 3
    %v1569 = vor.u32 %v1565, %v1568
    %v1571 = vshrl.u32 %v1555, 16
    %v1573 = vrot.slane %v1571, 2
    %v1574 = vshll.u32 %v1555, 16
    %v1576 = vrot.slane %v1574, 3
    %v1577 = vor.u32 %v1573, %v1576
    %1578 = vrot.lane.b32.xlu0 %v1569, 8
    %v1579 = vpop.permute.xlu0 %1578
    %1580 = vrot.lane.b32.xlu0 %v1577, 8
    %v1581 = vpop.permute.xlu0 %1580
    %v1586 = vunpack.c.l.b16 %v1474
    %v1587 = vunpack.c.l.b16 %v1475
    %v1588 = vunpack.c.l.b16 %v1476
    %v1589 = vunpack.c.l.b16 %v1477
    %v1590 = vpack.c.b16 %v1587, %v1586
    %v1591 = vpack.c.b16 %v1589, %v1588
    %v1592 = vrot.slane %v1590, 3
    %v1593 = vrot.slane %v1591, 3
    %1594 = vrot.lane.b32.xlu0 %v1592, 40
    %v1595 = vpop.permute.xlu0 %1594
    %1596 = vrot.lane.b32.xlu0 %v1593, 40
    %v1597 = vpop.permute.xlu0 %1596
    %v1599 = vshrl.u32 %v1590, 16
    %v1601 = vrot.slane %v1599, 3
    %v1602 = vshll.u32 %v1590, 16
    %v1604 = vrot.slane %v1602, 4
    %v1605 = vor.u32 %v1601, %v1604
    %v1607 = vshrl.u32 %v1591, 16
    %v1609 = vrot.slane %v1607, 3
    %v1610 = vshll.u32 %v1591, 16
    %v1612 = vrot.slane %v1610, 4
    %v1613 = vor.u32 %v1609, %v1612
    %1614 = vrot.lane.b32.xlu0 %v1605, 72
    %v1615 = vpop.permute.xlu0 %1614
    %1616 = vrot.lane.b32.xlu0 %v1613, 72
    %v1617 = vpop.permute.xlu0 %1616
    %v1620 = vsel %vm199, %v1489, %v1507
    %v1623 = vsel %vm199, %v1491, %v1509
    %v1625 = vsel %vm204, %v1620, %v1523
    %v1627 = vsel %vm204, %v1623, %v1525
    %v1629 = vsel %vm209, %v1625, %v1543
    %v1631 = vsel %vm209, %v1627, %v1545
    %v1634 = vsel %vm199, %v1559, %v1579
    %v1637 = vsel %vm199, %v1561, %v1581
    %v1639 = vsel %vm204, %v1634, %v1595
    %v1641 = vsel %vm204, %v1637, %v1597
    %v1643 = vsel %vm209, %v1639, %v1615
    %v1645 = vsel %vm209, %v1641, %v1617
    %v1650 = vunpack.c.l.b16 %v1629
    %v1651 = vunpack.c.l.b16 %v1643
    %v1652 = vunpack.c.h.b16 %v1629
    %v1653 = vunpack.c.h.b16 %v1643
    %v1654 = vunpack.c.l.b16 %v1631
    %v1655 = vunpack.c.l.b16 %v1645
    %v1656 = vunpack.c.h.b16 %v1631
    %v1657 = vunpack.c.h.b16 %v1645
    %v1658 = vpack.c.b16 %v1651, %v1650
    %v1659 = vpack.c.b16 %v1653, %v1652
    %v1660 = vpack.c.b16 %v1655, %v1654
    %v1661 = vpack.c.b16 %v1657, %v1656
    %vm1662 = vmor %vm1199, %vm1202
    %v1663 = vrot.slane %v1658, 5
    %v1664 = vrot.slane %v1663, 4
    %v1665 = vrot.slane %v1659, 5
    %v1666 = vsel %vm1662, %v1664, %v1665
    %v1667 = vrot.slane %v1660, 5
    %v1668 = vrot.slane %v1667, 4
    %v1669 = vrot.slane %v1661, 5
    %v1670 = vsel %vm1662, %v1668, %v1669
    %1675 = vst [vmem:[#allocation2 + $0x30] sm:$0x88] %v1663
    %vm1676 = vsmask.f32 3328
    %vm1677 = vmand %vm493, %vm1676
    %vm1678 = vsmask.f32 7424
    %vm1679 = vmand %vm496, %vm1678
    %vm1680 = vmor %vm1679, %vm1677
    %v1681 = vld [vmem:[#allocation2 + $0x38] sm:$0xff]
    %v1682 = vsel %vm1680, %v1666, %v1681
    %1683 = vst [vmem:[#allocation2 + $0x38] sm:$0xff] %v1682
    %1684 = vst [vmem:[#allocation2 + $0x88] sm:$0x88] %v1667
    %v1685 = vld [vmem:[#allocation2 + $0x90] sm:$0xff]
    %v1686 = vsel %vm1680, %v1670, %v1685
    %1687 = vst [vmem:[#allocation2 + $0x90] sm:$0xff] %v1686
    %v1688 = vld [vmem:[%s0] sm:$0xf]
    %v1689 = vld [vmem:[%s0 + $0x4] sm:$0x1]
    %v1690 = vld [vmem:[%s0 + $0x8] sm:$0xf]
    %v1691 = vld [vmem:[%s0 + $0xc] sm:$0x1]
    %v1692 = vld [vmem:[%s0] sm:$0xe]
    %v1693 = vld [vmem:[%s0 + $0x4] sm:$0x3]
    %v1694 = vld [vmem:[%s0 + $0x8] sm:$0xe]
    %v1695 = vld [vmem:[%s0 + $0xc] sm:$0x3]
    %v1696 = vld [vmem:[%s0] sm:$0xc]
    %v1697 = vld [vmem:[%s0 + $0x4] sm:$0x7]
    %v1698 = vld [vmem:[%s0 + $0x8] sm:$0xc]
    %v1699 = vld [vmem:[%s0 + $0xc] sm:$0x7]
    %v1700 = vld [vmem:[%s0] sm:$0x8]
    %v1701 = vld [vmem:[%s0 + $0x4] sm:$0xf]
    %v1702 = vld [vmem:[%s0 + $0x8] sm:$0x8]
    %v1703 = vld [vmem:[%s0 + $0xc] sm:$0xf]
    %v1708 = vunpack.c.l.b16 %v1688
    %v1709 = vunpack.c.l.b16 %v1689
    %v1710 = vunpack.c.l.b16 %v1690
    %v1711 = vunpack.c.l.b16 %v1691
    %v1712 = vpack.c.b16 %v1709, %v1708
    %v1713 = vpack.c.b16 %v1711, %v1710
    %1714 = vrot.lane.b32.xlu0 %v1712, 100
    %v1715 = vpop.permute.xlu0 %1714
    %1716 = vrot.lane.b32.xlu0 %v1713, 100
    %v1717 = vpop.permute.xlu0 %1716
    %v1719 = vshrl.u32 %v1712, 16
    %v1721 = vshll.u32 %v1712, 16
    %v1723 = vrot.slane %v1721, 1
    %v1724 = vor.u32 %v1719, %v1723
    %v1726 = vshrl.u32 %v1713, 16
    %v1728 = vshll.u32 %v1713, 16
    %v1730 = vrot.slane %v1728, 1
    %v1731 = vor.u32 %v1726, %v1730
    %1732 = vrot.lane.b32.xlu0 %v1724, 4
    %v1733 = vpop.permute.xlu0 %1732
    %1734 = vrot.lane.b32.xlu0 %v1731, 4
    %v1735 = vpop.permute.xlu0 %1734
    %v1740 = vunpack.c.l.b16 %v1692
    %v1741 = vunpack.c.l.b16 %v1693
    %v1742 = vunpack.c.l.b16 %v1694
    %v1743 = vunpack.c.l.b16 %v1695
    %v1744 = vpack.c.b16 %v1741, %v1740
    %v1745 = vpack.c.b16 %v1743, %v1742
    %v1746 = vrot.slane %v1744, 1
    %v1747 = vrot.slane %v1745, 1
    %1748 = vrot.lane.b32.xlu0 %v1746, 36
    %v1749 = vpop.permute.xlu0 %1748
    %1750 = vrot.lane.b32.xlu0 %v1747, 36
    %v1751 = vpop.permute.xlu0 %1750
    %v1753 = vshrl.u32 %v1744, 16
    %v1755 = vrot.slane %v1753, 1
    %v1756 = vshll.u32 %v1744, 16
    %v1758 = vrot.slane %v1756, 2
    %v1759 = vor.u32 %v1755, %v1758
    %v1761 = vshrl.u32 %v1745, 16
    %v1763 = vrot.slane %v1761, 1
    %v1764 = vshll.u32 %v1745, 16
    %v1766 = vrot.slane %v1764, 2
    %v1767 = vor.u32 %v1763, %v1766
    %1768 = vrot.lane.b32.xlu0 %v1759, 68
    %v1769 = vpop.permute.xlu0 %1768
    %1770 = vrot.lane.b32.xlu0 %v1767, 68
    %v1771 = vpop.permute.xlu0 %1770
    %v1776 = vunpack.c.l.b16 %v1696
    %v1777 = vunpack.c.l.b16 %v1697
    %v1778 = vunpack.c.l.b16 %v1698
    %v1779 = vunpack.c.l.b16 %v1699
    %v1780 = vpack.c.b16 %v1777, %v1776
    %v1781 = vpack.c.b16 %v1779, %v1778
    %v1782 = vrot.slane %v1780, 2
    %v1783 = vrot.slane %v1781, 2
    %1784 = vrot.lane.b32.xlu0 %v1782, 100
    %v1785 = vpop.permute.xlu0 %1784
    %1786 = vrot.lane.b32.xlu0 %v1783, 100
    %v1787 = vpop.permute.xlu0 %1786
    %v1789 = vshrl.u32 %v1780, 16
    %v1791 = vrot.slane %v1789, 2
    %v1792 = vshll.u32 %v1780, 16
    %v1794 = vrot.slane %v1792, 3
    %v1795 = vor.u32 %v1791, %v1794
    %v1797 = vshrl.u32 %v1781, 16
    %v1799 = vrot.slane %v1797, 2
    %v1800 = vshll.u32 %v1781, 16
    %v1802 = vrot.slane %v1800, 3
    %v1803 = vor.u32 %v1799, %v1802
    %1804 = vrot.lane.b32.xlu0 %v1795, 4
    %v1805 = vpop.permute.xlu0 %1804
    %1806 = vrot.lane.b32.xlu0 %v1803, 4
    %v1807 = vpop.permute.xlu0 %1806
    %v1812 = vunpack.c.l.b16 %v1700
    %v1813 = vunpack.c.l.b16 %v1701
    %v1814 = vunpack.c.l.b16 %v1702
    %v1815 = vunpack.c.l.b16 %v1703
    %v1816 = vpack.c.b16 %v1813, %v1812
    %v1817 = vpack.c.b16 %v1815, %v1814
    %v1818 = vrot.slane %v1816, 3
    %v1819 = vrot.slane %v1817, 3
    %1820 = vrot.lane.b32.xlu0 %v1818, 36
    %v1821 = vpop.permute.xlu0 %1820
    %1822 = vrot.lane.b32.xlu0 %v1819, 36
    %v1823 = vpop.permute.xlu0 %1822
    %v1825 = vshrl.u32 %v1816, 16
    %v1827 = vrot.slane %v1825, 3
    %v1828 = vshll.u32 %v1816, 16
    %v1830 = vrot.slane %v1828, 4
    %v1831 = vor.u32 %v1827, %v1830
    %v1833 = vshrl.u32 %v1817, 16
    %v1835 = vrot.slane %v1833, 3
    %v1836 = vshll.u32 %v1817, 16
    %v1838 = vrot.slane %v1836, 4
    %v1839 = vor.u32 %v1835, %v1838
    %1840 = vrot.lane.b32.xlu0 %v1831, 68
    %v1841 = vpop.permute.xlu0 %1840
    %1842 = vrot.lane.b32.xlu0 %v1839, 68
    %v1843 = vpop.permute.xlu0 %1842
    %v1846 = vsel %vm199, %v1715, %v1733
    %v1849 = vsel %vm199, %v1717, %v1735
    %v1851 = vsel %vm204, %v1846, %v1749
    %v1853 = vsel %vm204, %v1849, %v1751
    %v1855 = vsel %vm209, %v1851, %v1769
    %v1857 = vsel %vm209, %v1853, %v1771
    %v1860 = vsel %vm199, %v1785, %v1805
    %v1863 = vsel %vm199, %v1787, %v1807
    %v1865 = vsel %vm204, %v1860, %v1821
    %v1867 = vsel %vm204, %v1863, %v1823
    %v1869 = vsel %vm209, %v1865, %v1841
    %v1871 = vsel %vm209, %v1867, %v1843
    %v1876 = vunpack.c.l.b16 %v1855
    %v1877 = vunpack.c.l.b16 %v1869
    %v1878 = vunpack.c.h.b16 %v1855
    %v1879 = vunpack.c.h.b16 %v1869
    %v1880 = vunpack.c.l.b16 %v1857
    %v1881 = vunpack.c.l.b16 %v1871
    %v1882 = vunpack.c.h.b16 %v1857
    %v1883 = vunpack.c.h.b16 %v1871
    %v1884 = vpack.c.b16 %v1877, %v1876
    %v1885 = vpack.c.b16 %v1879, %v1878
    %v1886 = vpack.c.b16 %v1881, %v1880
    %v1887 = vpack.c.b16 %v1883, %v1882
    %vm1888 = vsmask.f32 7440
    %vm1889 = vmor %vm1676, %vm1888
    %v1891 = vshll.u32 %v1884, 16
    %v1893 = vrot.slane %v1891, 5
    %v1894 = vshrl.u32 %v1884, 16
    %v1896 = vrot.slane %v1894, 4
    %v1897 = vor.u32 %v1896, %v1893
    %v1898 = vrot.slane %v1897, 4
    %v1900 = vshll.u32 %v1885, 16
    %v1902 = vrot.slane %v1900, 5
    %v1903 = vsel %vm1889, %v1898, %v1902
    %v1905 = vshll.u32 %v1886, 16
    %v1907 = vrot.slane %v1905, 5
    %v1908 = vshrl.u32 %v1886, 16
    %v1910 = vrot.slane %v1908, 4
    %v1911 = vor.u32 %v1910, %v1907
    %v1912 = vrot.slane %v1911, 4
    %v1914 = vshll.u32 %v1887, 16
    %v1916 = vrot.slane %v1914, 5
    %v1917 = vsel %vm1889, %v1912, %v1916
    %vm1922 = vcmask 1043459
    %vm1923 = vsmask.f32 7950
    %vm1924 = vmand %vm1922, %vm1923
    %vm1925 = vcmask 1047559
    %vm1926 = vsmask.f32 7966
    %vm1927 = vmand %vm1925, %vm1926
    %vm1928 = vmor %vm1927, %vm1924
    %v1929 = vld [vmem:[#allocation2 + $0x38] sm:$0x88]
    %v1930 = vsel %vm1928, %v1893, %v1929
    %1931 = vst [vmem:[#allocation2 + $0x38] sm:$0x88] %v1930
    %1932 = vst [vmem:[#allocation2 + $0x40] sm:$0xff] %v1903
    %v1933 = vld [vmem:[#allocation2 + $0x90] sm:$0x88]
    %v1934 = vsel %vm1928, %v1907, %v1933
    %1935 = vst [vmem:[#allocation2 + $0x90] sm:$0x88] %v1934
    %1936 = vst [vmem:[#allocation2 + $0x98] sm:$0xff] %v1917
    %v1937 = vld [vmem:[%s0] sm:$0xf]
    %v1938 = vld [vmem:[%s0 + $0x4] sm:$0x1]
    %v1939 = vld [vmem:[%s0 + $0x8] sm:$0xf]
    %v1940 = vld [vmem:[%s0 + $0xc] sm:$0x1]
    %v1941 = vld [vmem:[%s0] sm:$0xe]
    %v1942 = vld [vmem:[%s0 + $0x4] sm:$0x3]
    %v1943 = vld [vmem:[%s0 + $0x8] sm:$0xe]
    %v1944 = vld [vmem:[%s0 + $0xc] sm:$0x3]
    %v1945 = vld [vmem:[%s0] sm:$0xc]
    %v1946 = vld [vmem:[%s0 + $0x4] sm:$0x7]
    %v1947 = vld [vmem:[%s0 + $0x8] sm:$0xc]
    %v1948 = vld [vmem:[%s0 + $0xc] sm:$0x7]
    %v1949 = vld [vmem:[%s0] sm:$0x8]
    %v1950 = vld [vmem:[%s0 + $0x4] sm:$0xf]
    %v1951 = vld [vmem:[%s0 + $0x8] sm:$0x8]
    %v1952 = vld [vmem:[%s0 + $0xc] sm:$0xf]
    %v1957 = vunpack.c.l.b16 %v1937
    %v1958 = vunpack.c.l.b16 %v1938
    %v1959 = vunpack.c.l.b16 %v1939
    %v1960 = vunpack.c.l.b16 %v1940
    %v1961 = vpack.c.b16 %v1958, %v1957
    %v1962 = vpack.c.b16 %v1960, %v1959
    %1963 = vrot.lane.b32.xlu0 %v1961, 96
    %v1964 = vpop.permute.xlu0 %1963
    %1965 = vrot.lane.b32.xlu0 %v1962, 96
    %v1966 = vpop.permute.xlu0 %1965
    %v1968 = vshrl.u32 %v1961, 16
    %v1970 = vshll.u32 %v1961, 16
    %v1972 = vrot.slane %v1970, 1
    %v1973 = vor.u32 %v1968, %v1972
    %v1975 = vshrl.u32 %v1962, 16
    %v1977 = vshll.u32 %v1962, 16
    %v1979 = vrot.slane %v1977, 1
    %v1980 = vor.u32 %v1975, %v1979
    %v1985 = vunpack.c.l.b16 %v1941
    %v1986 = vunpack.c.l.b16 %v1942
    %v1987 = vunpack.c.l.b16 %v1943
    %v1988 = vunpack.c.l.b16 %v1944
    %v1989 = vpack.c.b16 %v1986, %v1985
    %v1990 = vpack.c.b16 %v1988, %v1987
    %v1991 = vrot.slane %v1989, 1
    %v1992 = vrot.slane %v1990, 1
    %1993 = vrot.lane.b32.xlu0 %v1991, 32
    %v1994 = vpop.permute.xlu0 %1993
    %1995 = vrot.lane.b32.xlu0 %v1992, 32
    %v1996 = vpop.permute.xlu0 %1995
    %v1998 = vshrl.u32 %v1989, 16
    %v2000 = vrot.slane %v1998, 1
    %v2001 = vshll.u32 %v1989, 16
    %v2003 = vrot.slane %v2001, 2
    %v2004 = vor.u32 %v2000, %v2003
    %v2006 = vshrl.u32 %v1990, 16
    %v2008 = vrot.slane %v2006, 1
    %v2009 = vshll.u32 %v1990, 16
    %v2011 = vrot.slane %v2009, 2
    %v2012 = vor.u32 %v2008, %v2011
    %2013 = vrot.lane.b32.xlu0 %v2004, 64
    %v2014 = vpop.permute.xlu0 %2013
    %2015 = vrot.lane.b32.xlu0 %v2012, 64
    %v2016 = vpop.permute.xlu0 %2015
    %v2021 = vunpack.c.l.b16 %v1945
    %v2022 = vunpack.c.l.b16 %v1946
    %v2023 = vunpack.c.l.b16 %v1947
    %v2024 = vunpack.c.l.b16 %v1948
    %v2025 = vpack.c.b16 %v2022, %v2021
    %v2026 = vpack.c.b16 %v2024, %v2023
    %v2027 = vrot.slane %v2025, 2
    %v2028 = vrot.slane %v2026, 2
    %2029 = vrot.lane.b32.xlu0 %v2027, 96
    %v2030 = vpop.permute.xlu0 %2029
    %2031 = vrot.lane.b32.xlu0 %v2028, 96
    %v2032 = vpop.permute.xlu0 %2031
    %v2034 = vshrl.u32 %v2025, 16
    %v2036 = vrot.slane %v2034, 2
    %v2037 = vshll.u32 %v2025, 16
    %v2039 = vrot.slane %v2037, 3
    %v2040 = vor.u32 %v2036, %v2039
    %v2042 = vshrl.u32 %v2026, 16
    %v2044 = vrot.slane %v2042, 2
    %v2045 = vshll.u32 %v2026, 16
    %v2047 = vrot.slane %v2045, 3
    %v2048 = vor.u32 %v2044, %v2047
    %v2053 = vunpack.c.l.b16 %v1949
    %v2054 = vunpack.c.l.b16 %v1950
    %v2055 = vunpack.c.l.b16 %v1951
    %v2056 = vunpack.c.l.b16 %v1952
    %v2057 = vpack.c.b16 %v2054, %v2053
    %v2058 = vpack.c.b16 %v2056, %v2055
    %v2059 = vrot.slane %v2057, 3
    %v2060 = vrot.slane %v2058, 3
    %2061 = vrot.lane.b32.xlu0 %v2059, 32
    %v2062 = vpop.permute.xlu0 %2061
    %2063 = vrot.lane.b32.xlu0 %v2060, 32
    %v2064 = vpop.permute.xlu0 %2063
    %v2066 = vshrl.u32 %v2057, 16
    %v2068 = vrot.slane %v2066, 3
    %v2069 = vshll.u32 %v2057, 16
    %v2071 = vrot.slane %v2069, 4
    %v2072 = vor.u32 %v2068, %v2071
    %v2074 = vshrl.u32 %v2058, 16
    %v2076 = vrot.slane %v2074, 3
    %v2077 = vshll.u32 %v2058, 16
    %v2079 = vrot.slane %v2077, 4
    %v2080 = vor.u32 %v2076, %v2079
    %2081 = vrot.lane.b32.xlu0 %v2072, 64
    %v2082 = vpop.permute.xlu0 %2081
    %2083 = vrot.lane.b32.xlu0 %v2080, 64
    %v2084 = vpop.permute.xlu0 %2083
    %v2087 = vsel %vm199, %v1964, %v1973
    %v2090 = vsel %vm199, %v1966, %v1980
    %v2092 = vsel %vm204, %v2087, %v1994
    %v2094 = vsel %vm204, %v2090, %v1996
    %v2096 = vsel %vm209, %v2092, %v2014
    %v2098 = vsel %vm209, %v2094, %v2016
    %v2101 = vsel %vm199, %v2030, %v2040
    %v2104 = vsel %vm199, %v2032, %v2048
    %v2106 = vsel %vm204, %v2101, %v2062
    %v2108 = vsel %vm204, %v2104, %v2064
    %v2110 = vsel %vm209, %v2106, %v2082
    %v2112 = vsel %vm209, %v2108, %v2084
    %v2117 = vunpack.c.l.b16 %v2096
    %v2118 = vunpack.c.l.b16 %v2110
    %v2119 = vunpack.c.h.b16 %v2096
    %v2120 = vunpack.c.h.b16 %v2110
    %v2121 = vunpack.c.l.b16 %v2098
    %v2122 = vunpack.c.l.b16 %v2112
    %v2123 = vunpack.c.h.b16 %v2098
    %v2124 = vunpack.c.h.b16 %v2112
    %v2125 = vpack.c.b16 %v2118, %v2117
    %v2126 = vpack.c.b16 %v2120, %v2119
    %v2127 = vpack.c.b16 %v2122, %v2121
    %v2128 = vpack.c.b16 %v2124, %v2123
    %2133 = vst [vmem:[#allocation2 + $0x48] sm:$0xff] %v2125
    %v2134 = vld [vmem:[#allocation2 + $0x50] sm:$0x11]
    %v2135 = vsel %vm255, %v2126, %v2134
    %2136 = vst [vmem:[#allocation2 + $0x50] sm:$0x11] %v2135
    %2137 = vst [vmem:[#allocation2 + $0xa0] sm:$0xff] %v2127
    %v2138 = vld [vmem:[#allocation2 + $0xa8] sm:$0x11]
    %v2139 = vsel %vm255, %v2128, %v2138
    %2140 = vst [vmem:[#allocation2 + $0xa8] sm:$0x11] %v2139
    %v2141 = vld [vmem:[#allocation2] sm:$0xff]
    %v2142 = vld [vmem:[#allocation2 + $0x8] sm:$0xff]
    %v2143 = vld [vmem:[#allocation2 + $0x10] sm:$0xff]
    %v2144 = vld [vmem:[#allocation2 + $0x18] sm:$0xff]
    %v2145 = vld [vmem:[#allocation2 + $0x20] sm:$0xff]
    %v2146 = vld [vmem:[#allocation2 + $0x28] sm:$0xff]
    %v2147 = vld [vmem:[#allocation2 + $0x30] sm:$0xff]
    %v2148 = vld [vmem:[#allocation2 + $0x38] sm:$0xff]
    %v2149 = vld [vmem:[#allocation2 + $0x40] sm:$0xff]
    %v2150 = vld [vmem:[#allocation2 + $0x48] sm:$0xff]
    %v2151 = vld [vmem:[#allocation2 + $0x50] sm:$0x11]
    %v2152 = vld [vmem:[#allocation2 + $0x58] sm:$0xff]
    %v2153 = vld [vmem:[#allocation2 + $0x60] sm:$0xff]
    %v2154 = vld [vmem:[#allocation2 + $0x68] sm:$0xff]
    %v2155 = vld [vmem:[#allocation2 + $0x70] sm:$0xff]
    %v2156 = vld [vmem:[#allocation2 + $0x78] sm:$0xff]
    %v2157 = vld [vmem:[#allocation2 + $0x80] sm:$0xff]
    %v2158 = vld [vmem:[#allocation2 + $0x88] sm:$0xff]
    %v2159 = vld [vmem:[#allocation2 + $0x90] sm:$0xff]
    %v2160 = vld [vmem:[#allocation2 + $0x98] sm:$0xff]
    %v2161 = vld [vmem:[#allocation2 + $0xa0] sm:$0xff]
    %v2162 = vld [vmem:[#allocation2 + $0xa8] sm:$0x11]
    %v2186 = vunpack.c.l.s4 1966171168
    %v2187 = vunpack.c.0.s8 %v2186
    %v2188 = vlaneseq
    %v2189 = vshrl.u32 %v2188, 7
    %v2190 = vsub.s32 %v2187, %v2189
    %v2191 = vrot.slane %v2141, %v2190
    %v2192 = vcombine.high %v2191, %v2191
    %v2194 = vunpack.c.l.s4 1966171168
    %v2195 = vunpack.c.0.s8 %v2194
    %v2196 = vlaneseq
    %v2197 = vshrl.u32 %v2196, 7
    %v2198 = vsub.s32 %v2195, %v2197
    %v2199 = vrot.slane %v2191, %v2198
    %v2201 = vunpack.c.l.s4 1966171168
    %v2202 = vunpack.c.0.s8 %v2201
    %v2203 = vlaneseq
    %v2204 = vshrl.u32 %v2203, 7
    %v2205 = vsub.s32 %v2202, %v2204
    %v2206 = vrot.slane %v2192, %v2205
    %v2207 = vcombine.high %v2199, %v2199
    %v2208 = vcombine.high %v2206, %v2206
    %v2210 = vunpack.c.l.s4 1966171168
    %v2211 = vunpack.c.0.s8 %v2210
    %v2212 = vlaneseq
    %v2213 = vshrl.u32 %v2212, 7
    %v2214 = vsub.s32 %v2211, %v2213
    %v2215 = vrot.slane %v2142, %v2214
    %v2216 = vcombine.high %v2215, %v2215
    %v2218 = vunpack.c.l.s4 1966171168
    %v2219 = vunpack.c.0.s8 %v2218
    %v2220 = vlaneseq
    %v2221 = vshrl.u32 %v2220, 7
    %v2222 = vsub.s32 %v2219, %v2221
    %v2223 = vrot.slane %v2215, %v2222
    %v2225 = vunpack.c.l.s4 1966171168
    %v2226 = vunpack.c.0.s8 %v2225
    %v2227 = vlaneseq
    %v2228 = vshrl.u32 %v2227, 7
    %v2229 = vsub.s32 %v2226, %v2228
    %v2230 = vrot.slane %v2216, %v2229
    %v2231 = vcombine.high %v2223, %v2223
    %v2232 = vcombine.high %v2230, %v2230
    %v2234 = vunpack.c.l.s4 1966171168
    %v2235 = vunpack.c.0.s8 %v2234
    %v2236 = vlaneseq
    %v2237 = vshrl.u32 %v2236, 7
    %v2238 = vsub.s32 %v2235, %v2237
    %v2239 = vrot.slane %v2143, %v2238
    %v2240 = vcombine.high %v2239, %v2239
    %v2242 = vunpack.c.l.s4 1966171168
    %v2243 = vunpack.c.0.s8 %v2242
    %v2244 = vlaneseq
    %v2245 = vshrl.u32 %v2244, 7
    %v2246 = vsub.s32 %v2243, %v2245
    %v2247 = vrot.slane %v2239, %v2246
    %v2249 = vunpack.c.l.s4 1966171168
    %v2250 = vunpack.c.0.s8 %v2249
    %v2251 = vlaneseq
    %v2252 = vshrl.u32 %v2251, 7
    %v2253 = vsub.s32 %v2250, %v2252
    %v2254 = vrot.slane %v2240, %v2253
    %v2255 = vcombine.high %v2247, %v2247
    %v2256 = vcombine.high %v2254, %v2254
    %v2258 = vunpack.c.l.s4 1966171168
    %v2259 = vunpack.c.0.s8 %v2258
    %v2260 = vlaneseq
    %v2261 = vshrl.u32 %v2260, 7
    %v2262 = vsub.s32 %v2259, %v2261
    %v2263 = vrot.slane %v2144, %v2262
    %v2264 = vcombine.high %v2263, %v2263
    %v2266 = vunpack.c.l.s4 1966171168
    %v2267 = vunpack.c.0.s8 %v2266
    %v2268 = vlaneseq
    %v2269 = vshrl.u32 %v2268, 7
    %v2270 = vsub.s32 %v2267, %v2269
    %v2271 = vrot.slane %v2263, %v2270
    %v2273 = vunpack.c.l.s4 1966171168
    %v2274 = vunpack.c.0.s8 %v2273
    %v2275 = vlaneseq
    %v2276 = vshrl.u32 %v2275, 7
    %v2277 = vsub.s32 %v2274, %v2276
    %v2278 = vrot.slane %v2264, %v2277
    %v2279 = vcombine.high %v2271, %v2271
    %v2280 = vcombine.high %v2278, %v2278
    %v2282 = vunpack.c.l.s4 1966171168
    %v2283 = vunpack.c.0.s8 %v2282
    %v2284 = vlaneseq
    %v2285 = vshrl.u32 %v2284, 7
    %v2286 = vsub.s32 %v2283, %v2285
    %v2287 = vrot.slane %v2145, %v2286
    %v2288 = vcombine.high %v2287, %v2287
    %v2290 = vunpack.c.l.s4 1966171168
    %v2291 = vunpack.c.0.s8 %v2290
    %v2292 = vlaneseq
    %v2293 = vshrl.u32 %v2292, 7
    %v2294 = vsub.s32 %v2291, %v2293
    %v2295 = vrot.slane %v2287, %v2294
    %v2297 = vunpack.c.l.s4 1966171168
    %v2298 = vunpack.c.0.s8 %v2297
    %v2299 = vlaneseq
    %v2300 = vshrl.u32 %v2299, 7
    %v2301 = vsub.s32 %v2298, %v2300
    %v2302 = vrot.slane %v2288, %v2301
    %v2303 = vcombine.high %v2295, %v2295
    %v2304 = vcombine.high %v2302, %v2302
    %v2306 = vunpack.c.l.s4 1966171168
    %v2307 = vunpack.c.0.s8 %v2306
    %v2308 = vlaneseq
    %v2309 = vshrl.u32 %v2308, 7
    %v2310 = vsub.s32 %v2307, %v2309
    %v2311 = vrot.slane %v2146, %v2310
    %v2312 = vcombine.high %v2311, %v2311
    %v2314 = vunpack.c.l.s4 1966171168
    %v2315 = vunpack.c.0.s8 %v2314
    %v2316 = vlaneseq
    %v2317 = vshrl.u32 %v2316, 7
    %v2318 = vsub.s32 %v2315, %v2317
    %v2319 = vrot.slane %v2311, %v2318
    %v2321 = vunpack.c.l.s4 1966171168
    %v2322 = vunpack.c.0.s8 %v2321
    %v2323 = vlaneseq
    %v2324 = vshrl.u32 %v2323, 7
    %v2325 = vsub.s32 %v2322, %v2324
    %v2326 = vrot.slane %v2312, %v2325
    %v2327 = vcombine.high %v2319, %v2319
    %v2328 = vcombine.high %v2326, %v2326
    %v2330 = vunpack.c.l.s4 1966171168
    %v2331 = vunpack.c.0.s8 %v2330
    %v2332 = vlaneseq
    %v2333 = vshrl.u32 %v2332, 7
    %v2334 = vsub.s32 %v2331, %v2333
    %v2335 = vrot.slane %v2147, %v2334
    %v2336 = vcombine.high %v2335, %v2335
    %v2338 = vunpack.c.l.s4 1966171168
    %v2339 = vunpack.c.0.s8 %v2338
    %v2340 = vlaneseq
    %v2341 = vshrl.u32 %v2340, 7
    %v2342 = vsub.s32 %v2339, %v2341
    %v2343 = vrot.slane %v2335, %v2342
    %v2345 = vunpack.c.l.s4 1966171168
    %v2346 = vunpack.c.0.s8 %v2345
    %v2347 = vlaneseq
    %v2348 = vshrl.u32 %v2347, 7
    %v2349 = vsub.s32 %v2346, %v2348
    %v2350 = vrot.slane %v2336, %v2349
    %v2351 = vcombine.high %v2343, %v2343
    %v2352 = vcombine.high %v2350, %v2350
    %v2354 = vunpack.c.l.s4 1966171168
    %v2355 = vunpack.c.0.s8 %v2354
    %v2356 = vlaneseq
    %v2357 = vshrl.u32 %v2356, 7
    %v2358 = vsub.s32 %v2355, %v2357
    %v2359 = vrot.slane %v2148, %v2358
    %v2360 = vcombine.high %v2359, %v2359
    %v2362 = vunpack.c.l.s4 1966171168
    %v2363 = vunpack.c.0.s8 %v2362
    %v2364 = vlaneseq
    %v2365 = vshrl.u32 %v2364, 7
    %v2366 = vsub.s32 %v2363, %v2365
    %v2367 = vrot.slane %v2359, %v2366
    %v2369 = vunpack.c.l.s4 1966171168
    %v2370 = vunpack.c.0.s8 %v2369
    %v2371 = vlaneseq
    %v2372 = vshrl.u32 %v2371, 7
    %v2373 = vsub.s32 %v2370, %v2372
    %v2374 = vrot.slane %v2360, %v2373
    %v2375 = vcombine.high %v2367, %v2367
    %v2376 = vcombine.high %v2374, %v2374
    %v2378 = vunpack.c.l.s4 1966171168
    %v2379 = vunpack.c.0.s8 %v2378
    %v2380 = vlaneseq
    %v2381 = vshrl.u32 %v2380, 7
    %v2382 = vsub.s32 %v2379, %v2381
    %v2383 = vrot.slane %v2149, %v2382
    %v2384 = vcombine.high %v2383, %v2383
    %v2386 = vunpack.c.l.s4 1966171168
    %v2387 = vunpack.c.0.s8 %v2386
    %v2388 = vlaneseq
    %v2389 = vshrl.u32 %v2388, 7
    %v2390 = vsub.s32 %v2387, %v2389
    %v2391 = vrot.slane %v2383, %v2390
    %v2393 = vunpack.c.l.s4 1966171168
    %v2394 = vunpack.c.0.s8 %v2393
    %v2395 = vlaneseq
    %v2396 = vshrl.u32 %v2395, 7
    %v2397 = vsub.s32 %v2394, %v2396
    %v2398 = vrot.slane %v2384, %v2397
    %v2399 = vcombine.high %v2391, %v2391
    %v2400 = vcombine.high %v2398, %v2398
    %v2402 = vunpack.c.l.s4 1966171168
    %v2403 = vunpack.c.0.s8 %v2402
    %v2404 = vlaneseq
    %v2405 = vshrl.u32 %v2404, 7
    %v2406 = vsub.s32 %v2403, %v2405
    %v2407 = vrot.slane %v2150, %v2406
    %v2408 = vcombine.high %v2407, %v2407
    %v2410 = vunpack.c.l.s4 1966171168
    %v2411 = vunpack.c.0.s8 %v2410
    %v2412 = vlaneseq
    %v2413 = vshrl.u32 %v2412, 7
    %v2414 = vsub.s32 %v2411, %v2413
    %v2415 = vrot.slane %v2407, %v2414
    %v2417 = vunpack.c.l.s4 1966171168
    %v2418 = vunpack.c.0.s8 %v2417
    %v2419 = vlaneseq
    %v2420 = vshrl.u32 %v2419, 7
    %v2421 = vsub.s32 %v2418, %v2420
    %v2422 = vrot.slane %v2408, %v2421
    %v2423 = vcombine.high %v2415, %v2415
    %v2424 = vcombine.high %v2422, %v2422
    %v2426 = vunpack.c.l.s4 1966171168
    %v2427 = vunpack.c.0.s8 %v2426
    %v2428 = vlaneseq
    %v2429 = vshrl.u32 %v2428, 7
    %v2430 = vsub.s32 %v2427, %v2429
    %v2431 = vrot.slane %v2151, %v2430
    %v2433 = vunpack.c.l.s4 1966171168
    %v2434 = vunpack.c.0.s8 %v2433
    %v2435 = vlaneseq
    %v2436 = vshrl.u32 %v2435, 7
    %v2437 = vsub.s32 %v2434, %v2436
    %v2438 = vrot.slane %v2431, %v2437
    %v2440 = vunpack.c.l.s4 1966171168
    %v2441 = vunpack.c.0.s8 %v2440
    %v2442 = vlaneseq
    %v2443 = vshrl.u32 %v2442, 7
    %v2444 = vsub.s32 %v2441, %v2443
    %v2445 = vrot.slane %v2152, %v2444
    %v2446 = vcombine.high %v2445, %v2445
    %v2448 = vunpack.c.l.s4 1966171168
    %v2449 = vunpack.c.0.s8 %v2448
    %v2450 = vlaneseq
    %v2451 = vshrl.u32 %v2450, 7
    %v2452 = vsub.s32 %v2449, %v2451
    %v2453 = vrot.slane %v2445, %v2452
    %v2455 = vunpack.c.l.s4 1966171168
    %v2456 = vunpack.c.0.s8 %v2455
    %v2457 = vlaneseq
    %v2458 = vshrl.u32 %v2457, 7
    %v2459 = vsub.s32 %v2456, %v2458
    %v2460 = vrot.slane %v2446, %v2459
    %v2461 = vcombine.high %v2453, %v2453
    %v2462 = vcombine.high %v2460, %v2460
    %v2464 = vunpack.c.l.s4 1966171168
    %v2465 = vunpack.c.0.s8 %v2464
    %v2466 = vlaneseq
    %v2467 = vshrl.u32 %v2466, 7
    %v2468 = vsub.s32 %v2465, %v2467
    %v2469 = vrot.slane %v2153, %v2468
    %v2470 = vcombine.high %v2469, %v2469
    %v2472 = vunpack.c.l.s4 1966171168
    %v2473 = vunpack.c.0.s8 %v2472
    %v2474 = vlaneseq
    %v2475 = vshrl.u32 %v2474, 7
    %v2476 = vsub.s32 %v2473, %v2475
    %v2477 = vrot.slane %v2469, %v2476
    %v2479 = vunpack.c.l.s4 1966171168
    %v2480 = vunpack.c.0.s8 %v2479
    %v2481 = vlaneseq
    %v2482 = vshrl.u32 %v2481, 7
    %v2483 = vsub.s32 %v2480, %v2482
    %v2484 = vrot.slane %v2470, %v2483
    %v2485 = vcombine.high %v2477, %v2477
    %v2486 = vcombine.high %v2484, %v2484
    %v2488 = vunpack.c.l.s4 1966171168
    %v2489 = vunpack.c.0.s8 %v2488
    %v2490 = vlaneseq
    %v2491 = vshrl.u32 %v2490, 7
    %v2492 = vsub.s32 %v2489, %v2491
    %v2493 = vrot.slane %v2154, %v2492
    %v2494 = vcombine.high %v2493, %v2493
    %v2496 = vunpack.c.l.s4 1966171168
    %v2497 = vunpack.c.0.s8 %v2496
    %v2498 = vlaneseq
    %v2499 = vshrl.u32 %v2498, 7
    %v2500 = vsub.s32 %v2497, %v2499
    %v2501 = vrot.slane %v2493, %v2500
    %v2503 = vunpack.c.l.s4 1966171168
    %v2504 = vunpack.c.0.s8 %v2503
    %v2505 = vlaneseq
    %v2506 = vshrl.u32 %v2505, 7
    %v2507 = vsub.s32 %v2504, %v2506
    %v2508 = vrot.slane %v2494, %v2507
    %v2509 = vcombine.high %v2501, %v2501
    %v2510 = vcombine.high %v2508, %v2508
    %v2512 = vunpack.c.l.s4 1966171168
    %v2513 = vunpack.c.0.s8 %v2512
    %v2514 = vlaneseq
    %v2515 = vshrl.u32 %v2514, 7
    %v2516 = vsub.s32 %v2513, %v2515
    %v2517 = vrot.slane %v2155, %v2516
    %v2518 = vcombine.high %v2517, %v2517
    %v2520 = vunpack.c.l.s4 1966171168
    %v2521 = vunpack.c.0.s8 %v2520
    %v2522 = vlaneseq
    %v2523 = vshrl.u32 %v2522, 7
    %v2524 = vsub.s32 %v2521, %v2523
    %v2525 = vrot.slane %v2517, %v2524
    %v2527 = vunpack.c.l.s4 1966171168
    %v2528 = vunpack.c.0.s8 %v2527
    %v2529 = vlaneseq
    %v2530 = vshrl.u32 %v2529, 7
    %v2531 = vsub.s32 %v2528, %v2530
    %v2532 = vrot.slane %v2518, %v2531
    %v2533 = vcombine.high %v2525, %v2525
    %v2534 = vcombine.high %v2532, %v2532
    %v2536 = vunpack.c.l.s4 1966171168
    %v2537 = vunpack.c.0.s8 %v2536
    %v2538 = vlaneseq
    %v2539 = vshrl.u32 %v2538, 7
    %v2540 = vsub.s32 %v2537, %v2539
    %v2541 = vrot.slane %v2156, %v2540
    %v2542 = vcombine.high %v2541, %v2541
    %v2544 = vunpack.c.l.s4 1966171168
    %v2545 = vunpack.c.0.s8 %v2544
    %v2546 = vlaneseq
    %v2547 = vshrl.u32 %v2546, 7
    %v2548 = vsub.s32 %v2545, %v2547
    %v2549 = vrot.slane %v2541, %v2548
    %v2551 = vunpack.c.l.s4 1966171168
    %v2552 = vunpack.c.0.s8 %v2551
    %v2553 = vlaneseq
    %v2554 = vshrl.u32 %v2553, 7
    %v2555 = vsub.s32 %v2552, %v2554
    %v2556 = vrot.slane %v2542, %v2555
    %v2557 = vcombine.high %v2549, %v2549
    %v2558 = vcombine.high %v2556, %v2556
    %v2560 = vunpack.c.l.s4 1966171168
    %v2561 = vunpack.c.0.s8 %v2560
    %v2562 = vlaneseq
    %v2563 = vshrl.u32 %v2562, 7
    %v2564 = vsub.s32 %v2561, %v2563
    %v2565 = vrot.slane %v2157, %v2564
    %v2566 = vcombine.high %v2565, %v2565
    %v2568 = vunpack.c.l.s4 1966171168
    %v2569 = vunpack.c.0.s8 %v2568
    %v2570 = vlaneseq
    %v2571 = vshrl.u32 %v2570, 7
    %v2572 = vsub.s32 %v2569, %v2571
    %v2573 = vrot.slane %v2565, %v2572
    %v2575 = vunpack.c.l.s4 1966171168
    %v2576 = vunpack.c.0.s8 %v2575
    %v2577 = vlaneseq
    %v2578 = vshrl.u32 %v2577, 7
    %v2579 = vsub.s32 %v2576, %v2578
    %v2580 = vrot.slane %v2566, %v2579
    %v2581 = vcombine.high %v2573, %v2573
    %v2582 = vcombine.high %v2580, %v2580
    %v2584 = vunpack.c.l.s4 1966171168
    %v2585 = vunpack.c.0.s8 %v2584
    %v2586 = vlaneseq
    %v2587 = vshrl.u32 %v2586, 7
    %v2588 = vsub.s32 %v2585, %v2587
    %v2589 = vrot.slane %v2158, %v2588
    %v2590 = vcombine.high %v2589, %v2589
    %v2592 = vunpack.c.l.s4 1966171168
    %v2593 = vunpack.c.0.s8 %v2592
    %v2594 = vlaneseq
    %v2595 = vshrl.u32 %v2594, 7
    %v2596 = vsub.s32 %v2593, %v2595
    %v2597 = vrot.slane %v2589, %v2596
    %v2599 = vunpack.c.l.s4 1966171168
    %v2600 = vunpack.c.0.s8 %v2599
    %v2601 = vlaneseq
    %v2602 = vshrl.u32 %v2601, 7
    %v2603 = vsub.s32 %v2600, %v2602
    %v2604 = vrot.slane %v2590, %v2603
    %v2605 = vcombine.high %v2597, %v2597
    %v2606 = vcombine.high %v2604, %v2604
    %v2608 = vunpack.c.l.s4 1966171168
    %v2609 = vunpack.c.0.s8 %v2608
    %v2610 = vlaneseq
    %v2611 = vshrl.u32 %v2610, 7
    %v2612 = vsub.s32 %v2609, %v2611
    %v2613 = vrot.slane %v2159, %v2612
    %v2614 = vcombine.high %v2613, %v2613
    %v2616 = vunpack.c.l.s4 1966171168
    %v2617 = vunpack.c.0.s8 %v2616
    %v2618 = vlaneseq
    %v2619 = vshrl.u32 %v2618, 7
    %v2620 = vsub.s32 %v2617, %v2619
    %v2621 = vrot.slane %v2613, %v2620
    %v2623 = vunpack.c.l.s4 1966171168
    %v2624 = vunpack.c.0.s8 %v2623
    %v2625 = vlaneseq
    %v2626 = vshrl.u32 %v2625, 7
    %v2627 = vsub.s32 %v2624, %v2626
    %v2628 = vrot.slane %v2614, %v2627
    %v2629 = vcombine.high %v2621, %v2621
    %v2630 = vcombine.high %v2628, %v2628
    %v2632 = vunpack.c.l.s4 1966171168
    %v2633 = vunpack.c.0.s8 %v2632
    %v2634 = vlaneseq
    %v2635 = vshrl.u32 %v2634, 7
    %v2636 = vsub.s32 %v2633, %v2635
    %v2637 = vrot.slane %v2160, %v2636
    %v2638 = vcombine.high %v2637, %v2637
    %v2640 = vunpack.c.l.s4 1966171168
    %v2641 = vunpack.c.0.s8 %v2640
    %v2642 = vlaneseq
    %v2643 = vshrl.u32 %v2642, 7
    %v2644 = vsub.s32 %v2641, %v2643
    %v2645 = vrot.slane %v2637, %v2644
    %v2647 = vunpack.c.l.s4 1966171168
    %v2648 = vunpack.c.0.s8 %v2647
    %v2649 = vlaneseq
    %v2650 = vshrl.u32 %v2649, 7
    %v2651 = vsub.s32 %v2648, %v2650
    %v2652 = vrot.slane %v2638, %v2651
    %v2653 = vcombine.high %v2645, %v2645
    %v2654 = vcombine.high %v2652, %v2652
    %v2656 = vunpack.c.l.s4 1966171168
    %v2657 = vunpack.c.0.s8 %v2656
    %v2658 = vlaneseq
    %v2659 = vshrl.u32 %v2658, 7
    %v2660 = vsub.s32 %v2657, %v2659
    %v2661 = vrot.slane %v2161, %v2660
    %v2662 = vcombine.high %v2661, %v2661
    %v2664 = vunpack.c.l.s4 1966171168
    %v2665 = vunpack.c.0.s8 %v2664
    %v2666 = vlaneseq
    %v2667 = vshrl.u32 %v2666, 7
    %v2668 = vsub.s32 %v2665, %v2667
    %v2669 = vrot.slane %v2661, %v2668
    %v2671 = vunpack.c.l.s4 1966171168
    %v2672 = vunpack.c.0.s8 %v2671
    %v2673 = vlaneseq
    %v2674 = vshrl.u32 %v2673, 7
    %v2675 = vsub.s32 %v2672, %v2674
    %v2676 = vrot.slane %v2662, %v2675
    %v2677 = vcombine.high %v2669, %v2669
    %v2678 = vcombine.high %v2676, %v2676
    %v2680 = vunpack.c.l.s4 1966171168
    %v2681 = vunpack.c.0.s8 %v2680
    %v2682 = vlaneseq
    %v2683 = vshrl.u32 %v2682, 7
    %v2684 = vsub.s32 %v2681, %v2683
    %v2685 = vrot.slane %v2162, %v2684
    %v2687 = vunpack.c.l.s4 1966171168
    %v2688 = vunpack.c.0.s8 %v2687
    %v2689 = vlaneseq
    %v2690 = vshrl.u32 %v2689, 7
    %v2691 = vsub.s32 %v2688, %v2690
    %v2692 = vrot.slane %v2685, %v2691
    %v2693 = vunpack.i.l.s16 %v2199
    %v2694 = vunpack.i.h.s16 %v2199
    %v2695 = vunpack.i.l.s16 %v2206
    %v2696 = vunpack.i.h.s16 %v2206
    %v2697 = vunpack.i.l.s16 %v2207
    %v2698 = vunpack.i.h.s16 %v2207
    %v2699 = vunpack.i.l.s16 %v2208
    %v2700 = vunpack.i.h.s16 %v2208
    %v2701 = vunpack.i.l.s16 %v2223
    %v2702 = vunpack.i.h.s16 %v2223
    %v2703 = vunpack.i.l.s16 %v2230
    %v2704 = vunpack.i.h.s16 %v2230
    %v2705 = vunpack.i.l.s16 %v2231
    %v2706 = vunpack.i.h.s16 %v2231
    %v2707 = vunpack.i.l.s16 %v2232
    %v2708 = vunpack.i.h.s16 %v2232
    %v2709 = vunpack.i.l.s16 %v2247
    %v2710 = vunpack.i.h.s16 %v2247
    %v2711 = vunpack.i.l.s16 %v2254
    %v2712 = vunpack.i.h.s16 %v2254
    %v2713 = vunpack.i.l.s16 %v2255
    %v2714 = vunpack.i.h.s16 %v2255
    %v2715 = vunpack.i.l.s16 %v2256
    %v2716 = vunpack.i.h.s16 %v2256
    %v2717 = vunpack.i.l.s16 %v2271
    %v2718 = vunpack.i.h.s16 %v2271
    %v2719 = vunpack.i.l.s16 %v2278
    %v2720 = vunpack.i.h.s16 %v2278
    %v2721 = vunpack.i.l.s16 %v2279
    %v2722 = vunpack.i.h.s16 %v2279
    %v2723 = vunpack.i.l.s16 %v2280
    %v2724 = vunpack.i.h.s16 %v2280
    %v2725 = vunpack.i.l.s16 %v2295
    %v2726 = vunpack.i.h.s16 %v2295
    %v2727 = vunpack.i.l.s16 %v2302
    %v2728 = vunpack.i.h.s16 %v2302
    %v2729 = vunpack.i.l.s16 %v2303
    %v2730 = vunpack.i.h.s16 %v2303
    %v2731 = vunpack.i.l.s16 %v2304
    %v2732 = vunpack.i.h.s16 %v2304
    %v2733 = vunpack.i.l.s16 %v2319
    %v2734 = vunpack.i.h.s16 %v2319
    %v2735 = vunpack.i.l.s16 %v2326
    %v2736 = vunpack.i.h.s16 %v2326
    %v2737 = vunpack.i.l.s16 %v2327
    %v2738 = vunpack.i.h.s16 %v2327
    %v2739 = vunpack.i.l.s16 %v2328
    %v2740 = vunpack.i.h.s16 %v2328
    %v2741 = vunpack.i.l.s16 %v2343
    %v2742 = vunpack.i.h.s16 %v2343
    %v2743 = vunpack.i.l.s16 %v2350
    %v2744 = vunpack.i.h.s16 %v2350
    %v2745 = vunpack.i.l.s16 %v2351
    %v2746 = vunpack.i.h.s16 %v2351
    %v2747 = vunpack.i.l.s16 %v2352
    %v2748 = vunpack.i.h.s16 %v2352
    %v2749 = vunpack.i.l.s16 %v2367
    %v2750 = vunpack.i.h.s16 %v2367
    %v2751 = vunpack.i.l.s16 %v2374
    %v2752 = vunpack.i.h.s16 %v2374
    %v2753 = vunpack.i.l.s16 %v2375
    %v2754 = vunpack.i.h.s16 %v2375
    %v2755 = vunpack.i.l.s16 %v2376
    %v2756 = vunpack.i.h.s16 %v2376
    %v2757 = vunpack.i.l.s16 %v2391
    %v2758 = vunpack.i.h.s16 %v2391
    %v2759 = vunpack.i.l.s16 %v2398
    %v2760 = vunpack.i.h.s16 %v2398
    %v2761 = vunpack.i.l.s16 %v2399
    %v2762 = vunpack.i.h.s16 %v2399
    %v2763 = vunpack.i.l.s16 %v2400
    %v2764 = vunpack.i.h.s16 %v2400
    %v2765 = vunpack.i.l.s16 %v2415
    %v2766 = vunpack.i.h.s16 %v2415
    %v2767 = vunpack.i.l.s16 %v2422
    %v2768 = vunpack.i.h.s16 %v2422
    %v2769 = vunpack.i.l.s16 %v2423
    %v2770 = vunpack.i.h.s16 %v2423
    %v2771 = vunpack.i.l.s16 %v2424
    %v2772 = vunpack.i.h.s16 %v2424
    %v2773 = vunpack.i.l.s16 %v2438
    %v2774 = vunpack.i.l.s16 %v2453
    %v2775 = vunpack.i.h.s16 %v2453
    %v2776 = vunpack.i.l.s16 %v2460
    %v2777 = vunpack.i.h.s16 %v2460
    %v2778 = vunpack.i.l.s16 %v2461
    %v2779 = vunpack.i.h.s16 %v2461
    %v2780 = vunpack.i.l.s16 %v2462
    %v2781 = vunpack.i.h.s16 %v2462
    %v2782 = vunpack.i.l.s16 %v2477
    %v2783 = vunpack.i.h.s16 %v2477
    %v2784 = vunpack.i.l.s16 %v2484
    %v2785 = vunpack.i.h.s16 %v2484
    %v2786 = vunpack.i.l.s16 %v2485
    %v2787 = vunpack.i.h.s16 %v2485
    %v2788 = vunpack.i.l.s16 %v2486
    %v2789 = vunpack.i.h.s16 %v2486
    %v2790 = vunpack.i.l.s16 %v2501
    %v2791 = vunpack.i.h.s16 %v2501
    %v2792 = vunpack.i.l.s16 %v2508
    %v2793 = vunpack.i.h.s16 %v2508
    %v2794 = vunpack.i.l.s16 %v2509
    %v2795 = vunpack.i.h.s16 %v2509
    %v2796 = vunpack.i.l.s16 %v2510
    %v2797 = vunpack.i.h.s16 %v2510
    %v2798 = vunpack.i.l.s16 %v2525
    %v2799 = vunpack.i.h.s16 %v2525
    %v2800 = vunpack.i.l.s16 %v2532
    %v2801 = vunpack.i.h.s16 %v2532
    %v2802 = vunpack.i.l.s16 %v2533
    %v2803 = vunpack.i.h.s16 %v2533
    %v2804 = vunpack.i.l.s16 %v2534
    %v2805 = vunpack.i.h.s16 %v2534
    %v2806 = vunpack.i.l.s16 %v2549
    %v2807 = vunpack.i.h.s16 %v2549
    %v2808 = vunpack.i.l.s16 %v2556
    %v2809 = vunpack.i.h.s16 %v2556
    %v2810 = vunpack.i.l.s16 %v2557
    %v2811 = vunpack.i.h.s16 %v2557
    %v2812 = vunpack.i.l.s16 %v2558
    %v2813 = vunpack.i.h.s16 %v2558
    %v2814 = vunpack.i.l.s16 %v2573
    %v2815 = vunpack.i.h.s16 %v2573
    %v2816 = vunpack.i.l.s16 %v2580
    %v2817 = vunpack.i.h.s16 %v2580
    %v2818 = vunpack.i.l.s16 %v2581
    %v2819 = vunpack.i.h.s16 %v2581
    %v2820 = vunpack.i.l.s16 %v2582
    %v2821 = vunpack.i.h.s16 %v2582
    %v2822 = vunpack.i.l.s16 %v2597
    %v2823 = vunpack.i.h.s16 %v2597
    %v2824 = vunpack.i.l.s16 %v2604
    %v2825 = vunpack.i.h.s16 %v2604
    %v2826 = vunpack.i.l.s16 %v2605
    %v2827 = vunpack.i.h.s16 %v2605
    %v2828 = vunpack.i.l.s16 %v2606
    %v2829 = vunpack.i.h.s16 %v2606
    %v2830 = vunpack.i.l.s16 %v2621
    %v2831 = vunpack.i.h.s16 %v2621
    %v2832 = vunpack.i.l.s16 %v2628
    %v2833 = vunpack.i.h.s16 %v2628
    %v2834 = vunpack.i.l.s16 %v2629
    %v2835 = vunpack.i.h.s16 %v2629
    %v2836 = vunpack.i.l.s16 %v2630
    %v2837 = vunpack.i.h.s16 %v2630
    %v2838 = vunpack.i.l.s16 %v2645
    %v2839 = vunpack.i.h.s16 %v2645
    %v2840 = vunpack.i.l.s16 %v2652
    %v2841 = vunpack.i.h.s16 %v2652
    %v2842 = vunpack.i.l.s16 %v2653
    %v2843 = vunpack.i.h.s16 %v2653
    %v2844 = vunpack.i.l.s16 %v2654
    %v2845 = vunpack.i.h.s16 %v2654
    %v2846 = vunpack.i.l.s16 %v2669
    %v2847 = vunpack.i.h.s16 %v2669
    %v2848 = vunpack.i.l.s16 %v2676
    %v2849 = vunpack.i.h.s16 %v2676
    %v2850 = vunpack.i.l.s16 %v2677
    %v2851 = vunpack.i.h.s16 %v2677
    %v2852 = vunpack.i.l.s16 %v2678
    %v2853 = vunpack.i.h.s16 %v2678
    %v2854 = vunpack.i.l.s16 %v2692
    %v2855 = vld [vmem:[%s2] sm:$0xf]
    %v2856 = vld [vmem:[%s2 + $0x4] sm:$0xf]
    %v2857 = vld [vmem:[%s2 + $0x8] sm:$0xf]
    %v2858 = vld [vmem:[%s2 + $0xc] sm:$0xf]
    %v2859 = vld [vmem:[%s2 + $0x10] sm:$0xf]
    %v2860 = vld [vmem:[%s2 + $0x14] sm:$0xf]
    %v2861 = vld [vmem:[%s2 + $0x18] sm:$0xf]
    %v2862 = vld [vmem:[%s2 + $0x1c] sm:$0xf]
    %v2863 = vld [vmem:[%s2 + $0x20] sm:$0xf]
    %v2864 = vld [vmem:[%s2 + $0x24] sm:$0xf]
    %v2865 = vld [vmem:[%s2 + $0x28] sm:$0xf]
    %v2866 = vld [vmem:[%s2 + $0x2c] sm:$0xf]
    %v2867 = vld [vmem:[%s2 + $0x30] sm:$0xf]
    %v2868 = vld [vmem:[%s2 + $0x34] sm:$0xf]
    %v2869 = vld [vmem:[%s2 + $0x38] sm:$0xf]
    %v2870 = vld [vmem:[%s2 + $0x3c] sm:$0xf]
    %v2871 = vld [vmem:[%s2 + $0x40] sm:$0xf]
    %v2872 = vld [vmem:[%s2 + $0x44] sm:$0xf]
    %v2873 = vld [vmem:[%s2 + $0x48] sm:$0xf]
    %v2874 = vld [vmem:[%s2 + $0x4c] sm:$0xf]
    %v2875 = vld [vmem:[%s2 + $0x50] sm:$0xf]
    %v2876 = vld [vmem:[%s2 + $0x54] sm:$0xf]
    %v2877 = vld [vmem:[%s2 + $0x58] sm:$0xf]
    %v2878 = vld [vmem:[%s2 + $0x5c] sm:$0xf]
    %v2879 = vld [vmem:[%s2 + $0x60] sm:$0xf]
    %v2880 = vld [vmem:[%s2 + $0x64] sm:$0xf]
    %v2881 = vld [vmem:[%s2 + $0x68] sm:$0xf]
    %v2882 = vld [vmem:[%s2 + $0x6c] sm:$0xf]
    %v2883 = vld [vmem:[%s2 + $0x70] sm:$0xf]
    %v2884 = vld [vmem:[%s2 + $0x74] sm:$0xf]
    %v2885 = vld [vmem:[%s2 + $0x78] sm:$0xf]
    %v2886 = vld [vmem:[%s2 + $0x7c] sm:$0xf]
    %v2887 = vld [vmem:[%s3] sm:$0x1]
    %v2889 = vlaneseq
    %v2890 = vshrl.u32 %v2889, 7
    %v2891 = vsub.s32 0, %v2890
    %v2892 = vrot.slane %v2887, %v2891
    %v2894 = vpack.i.b16 %v2694, %v2693
    %v2895 = vpack.i.b16 %v2696, %v2695
    %v2896 = vpack.i.b16 %v2698, %v2697
    %v2897 = vpack.i.b16 %v2700, %v2699
    %v2898 = vpack.i.b16 %v2702, %v2701
    %v2899 = vpack.i.b16 %v2704, %v2703
    %v2900 = vpack.i.b16 %v2706, %v2705
    %v2901 = vpack.i.b16 %v2708, %v2707
    %v2902 = vpack.i.b16 %v2710, %v2709
    %v2903 = vpack.i.b16 %v2712, %v2711
    %v2904 = vpack.i.b16 %v2714, %v2713
    %v2905 = vpack.i.b16 %v2716, %v2715
    %v2906 = vpack.i.b16 %v2718, %v2717
    %v2907 = vpack.i.b16 %v2720, %v2719
    %v2908 = vpack.i.b16 %v2722, %v2721
    %v2909 = vpack.i.b16 %v2724, %v2723
    %v2910 = vpack.i.b16 %v2726, %v2725
    %v2911 = vpack.i.b16 %v2728, %v2727
    %v2912 = vpack.i.b16 %v2730, %v2729
    %v2913 = vpack.i.b16 %v2732, %v2731
    %v2914 = vpack.i.b16 %v2734, %v2733
    %v2915 = vpack.i.b16 %v2736, %v2735
    %v2916 = vpack.i.b16 %v2738, %v2737
    %v2917 = vpack.i.b16 %v2740, %v2739
    %v2918 = vpack.i.b16 %v2742, %v2741
    %v2919 = vpack.i.b16 %v2744, %v2743
    %v2920 = vpack.i.b16 %v2746, %v2745
    %v2921 = vpack.i.b16 %v2748, %v2747
    %v2922 = vpack.i.b16 %v2750, %v2749
    %v2923 = vpack.i.b16 %v2752, %v2751
    %v2924 = vpack.i.b16 %v2754, %v2753
    %v2925 = vpack.i.b16 %v2756, %v2755
    %v2926 = vpack.i.b16 %v2758, %v2757
    %v2927 = vpack.i.b16 %v2760, %v2759
    %v2928 = vpack.i.b16 %v2762, %v2761
    %v2929 = vpack.i.b16 %v2764, %v2763
    %v2930 = vpack.i.b16 %v2766, %v2765
    %v2931 = vpack.i.b16 %v2768, %v2767
    %v2932 = vpack.i.b16 %v2770, %v2769
    %v2933 = vpack.i.b16 %v2772, %v2771
    %v2934 = vpack.i.b16 %v2774, %v2773
    %v2935 = vpack.i.b16 %v2776, %v2775
    %v2936 = vpack.i.b16 %v2778, %v2777
    %v2937 = vpack.i.b16 %v2780, %v2779
    %v2938 = vpack.i.b16 %v2782, %v2781
    %v2939 = vpack.i.b16 %v2784, %v2783
    %v2940 = vpack.i.b16 %v2786, %v2785
    %v2941 = vpack.i.b16 %v2788, %v2787
    %v2942 = vpack.i.b16 %v2790, %v2789
    %v2943 = vpack.i.b16 %v2792, %v2791
    %v2944 = vpack.i.b16 %v2794, %v2793
    %v2945 = vpack.i.b16 %v2796, %v2795
    %v2946 = vpack.i.b16 %v2798, %v2797
    %v2947 = vpack.i.b16 %v2800, %v2799
    %v2948 = vpack.i.b16 %v2802, %v2801
    %v2949 = vpack.i.b16 %v2804, %v2803
    %v2950 = vpack.i.b16 %v2806, %v2805
    %v2951 = vpack.i.b16 %v2808, %v2807
    %v2952 = vpack.i.b16 %v2810, %v2809
    %v2953 = vpack.i.b16 %v2812, %v2811
    %v2954 = vpack.i.b16 %v2814, %v2813
    %v2955 = vpack.i.b16 %v2816, %v2815
    %v2956 = vpack.i.b16 %v2818, %v2817
    %v2957 = vpack.i.b16 %v2820, %v2819
    %v2958 = vpack.i.b16 %v2822, %v2821
    %v2959 = vpack.i.b16 %v2824, %v2823
    %v2960 = vpack.i.b16 %v2826, %v2825
    %v2961 = vpack.i.b16 %v2828, %v2827
    %v2962 = vpack.i.b16 %v2830, %v2829
    %v2963 = vpack.i.b16 %v2832, %v2831
    %v2964 = vpack.i.b16 %v2834, %v2833
    %v2965 = vpack.i.b16 %v2836, %v2835
    %v2966 = vpack.i.b16 %v2838, %v2837
    %v2967 = vpack.i.b16 %v2840, %v2839
    %v2968 = vpack.i.b16 %v2842, %v2841
    %v2969 = vpack.i.b16 %v2844, %v2843
    %v2970 = vpack.i.b16 %v2846, %v2845
    %v2971 = vpack.i.b16 %v2848, %v2847
    %v2972 = vpack.i.b16 %v2850, %v2849
    %v2973 = vpack.i.b16 %v2852, %v2851
    %v2974 = vpack.i.b16 %v2854, %v2853
    %v2975 = vcombine.low %v2894, %v2895
    %v2976 = vcombine.low %v2896, %v2897
    %v2977 = vcombine.low %v2898, %v2899
    %v2978 = vcombine.low %v2900, %v2901
    %v2980 = vunpack.c.l.s4 1966171168
    %v2981 = vunpack.c.0.s8 %v2980
    %v2982 = vlaneseq
    %v2983 = vshrl.u32 %v2982, 7
    %v2984 = vsub.s32 %v2981, %v2983
    %v2985 = vrot.slane %v2975, %v2984
    %v2987 = vunpack.c.l.s4 1966171168
    %v2988 = vunpack.c.0.s8 %v2987
    %v2989 = vlaneseq
    %v2990 = vshrl.u32 %v2989, 7
    %v2991 = vsub.s32 %v2988, %v2990
    %v2992 = vrot.slane %v2976, %v2991
    %v2994 = vunpack.c.l.s4 1966171168
    %v2995 = vunpack.c.0.s8 %v2994
    %v2996 = vlaneseq
    %v2997 = vshrl.u32 %v2996, 7
    %v2998 = vsub.s32 %v2995, %v2997
    %v2999 = vrot.slane %v2977, %v2998
    %v3001 = vunpack.c.l.s4 1966171168
    %v3002 = vunpack.c.0.s8 %v3001
    %v3003 = vlaneseq
    %v3004 = vshrl.u32 %v3003, 7
    %v3005 = vsub.s32 %v3002, %v3004
    %v3006 = vrot.slane %v2978, %v3005
    %v3007 = vcombine.low %v2985, %v2992
    %v3008 = vcombine.high %v2985, %v2992
    %v3009 = vcombine.low %v2999, %v3006
    %v3010 = vcombine.high %v2999, %v3006
    %v3012 = vunpack.c.l.s4 1966171168
    %v3013 = vunpack.c.0.s8 %v3012
    %v3014 = vlaneseq
    %v3015 = vshrl.u32 %v3014, 7
    %v3016 = vsub.s32 %v3013, %v3015
    %v3017 = vrot.slane %v3007, %v3016
    %v3019 = vunpack.c.l.s4 1966171168
    %v3020 = vunpack.c.0.s8 %v3019
    %v3021 = vlaneseq
    %v3022 = vshrl.u32 %v3021, 7
    %v3023 = vsub.s32 %v3020, %v3022
    %v3024 = vrot.slane %v3008, %v3023
    %v3026 = vunpack.c.l.s4 1966171168
    %v3027 = vunpack.c.0.s8 %v3026
    %v3028 = vlaneseq
    %v3029 = vshrl.u32 %v3028, 7
    %v3030 = vsub.s32 %v3027, %v3029
    %v3031 = vrot.slane %v3009, %v3030
    %v3033 = vunpack.c.l.s4 1966171168
    %v3034 = vunpack.c.0.s8 %v3033
    %v3035 = vlaneseq
    %v3036 = vshrl.u32 %v3035, 7
    %v3037 = vsub.s32 %v3034, %v3036
    %v3038 = vrot.slane %v3010, %v3037
    %v3039 = vcombine.low %v3017, %v3031
    %v3040 = vcombine.low %v3024, %v3038
    %v3041 = vcombine.low %v2902, %v2903
    %v3042 = vcombine.low %v2904, %v2905
    %v3043 = vcombine.low %v2906, %v2907
    %v3044 = vcombine.low %v2908, %v2909
    %v3046 = vunpack.c.l.s4 1966171168
    %v3047 = vunpack.c.0.s8 %v3046
    %v3048 = vlaneseq
    %v3049 = vshrl.u32 %v3048, 7
    %v3050 = vsub.s32 %v3047, %v3049
    %v3051 = vrot.slane %v3041, %v3050
    %v3053 = vunpack.c.l.s4 1966171168
    %v3054 = vunpack.c.0.s8 %v3053
    %v3055 = vlaneseq
    %v3056 = vshrl.u32 %v3055, 7
    %v3057 = vsub.s32 %v3054, %v3056
    %v3058 = vrot.slane %v3042, %v3057
    %v3060 = vunpack.c.l.s4 1966171168
    %v3061 = vunpack.c.0.s8 %v3060
    %v3062 = vlaneseq
    %v3063 = vshrl.u32 %v3062, 7
    %v3064 = vsub.s32 %v3061, %v3063
    %v3065 = vrot.slane %v3043, %v3064
    %v3067 = vunpack.c.l.s4 1966171168
    %v3068 = vunpack.c.0.s8 %v3067
    %v3069 = vlaneseq
    %v3070 = vshrl.u32 %v3069, 7
    %v3071 = vsub.s32 %v3068, %v3070
    %v3072 = vrot.slane %v3044, %v3071
    %v3073 = vcombine.low %v3051, %v3058
    %v3074 = vcombine.high %v3051, %v3058
    %v3075 = vcombine.low %v3065, %v3072
    %v3076 = vcombine.high %v3065, %v3072
    %v3078 = vunpack.c.l.s4 1966171168
    %v3079 = vunpack.c.0.s8 %v3078
    %v3080 = vlaneseq
    %v3081 = vshrl.u32 %v3080, 7
    %v3082 = vsub.s32 %v3079, %v3081
    %v3083 = vrot.slane %v3073, %v3082
    %v3085 = vunpack.c.l.s4 1966171168
    %v3086 = vunpack.c.0.s8 %v3085
    %v3087 = vlaneseq
    %v3088 = vshrl.u32 %v3087, 7
    %v3089 = vsub.s32 %v3086, %v3088
    %v3090 = vrot.slane %v3074, %v3089
    %v3092 = vunpack.c.l.s4 1966171168
    %v3093 = vunpack.c.0.s8 %v3092
    %v3094 = vlaneseq
    %v3095 = vshrl.u32 %v3094, 7
    %v3096 = vsub.s32 %v3093, %v3095
    %v3097 = vrot.slane %v3075, %v3096
    %v3099 = vunpack.c.l.s4 1966171168
    %v3100 = vunpack.c.0.s8 %v3099
    %v3101 = vlaneseq
    %v3102 = vshrl.u32 %v3101, 7
    %v3103 = vsub.s32 %v3100, %v3102
    %v3104 = vrot.slane %v3076, %v3103
    %v3105 = vcombine.low %v3083, %v3097
    %v3106 = vcombine.low %v3090, %v3104
    %v3107 = vcombine.low %v2910, %v2911
    %v3108 = vcombine.low %v2912, %v2913
    %v3109 = vcombine.low %v2914, %v2915
    %v3110 = vcombine.low %v2916, %v2917
    %v3112 = vunpack.c.l.s4 1966171168
    %v3113 = vunpack.c.0.s8 %v3112
    %v3114 = vlaneseq
    %v3115 = vshrl.u32 %v3114, 7
    %v3116 = vsub.s32 %v3113, %v3115
    %v3117 = vrot.slane %v3107, %v3116
    %v3119 = vunpack.c.l.s4 1966171168
    %v3120 = vunpack.c.0.s8 %v3119
    %v3121 = vlaneseq
    %v3122 = vshrl.u32 %v3121, 7
    %v3123 = vsub.s32 %v3120, %v3122
    %v3124 = vrot.slane %v3108, %v3123
    %v3126 = vunpack.c.l.s4 1966171168
    %v3127 = vunpack.c.0.s8 %v3126
    %v3128 = vlaneseq
    %v3129 = vshrl.u32 %v3128, 7
    %v3130 = vsub.s32 %v3127, %v3129
    %v3131 = vrot.slane %v3109, %v3130
    %v3133 = vunpack.c.l.s4 1966171168
    %v3134 = vunpack.c.0.s8 %v3133
    %v3135 = vlaneseq
    %v3136 = vshrl.u32 %v3135, 7
    %v3137 = vsub.s32 %v3134, %v3136
    %v3138 = vrot.slane %v3110, %v3137
    %v3139 = vcombine.low %v3117, %v3124
    %v3140 = vcombine.high %v3117, %v3124
    %v3141 = vcombine.low %v3131, %v3138
    %v3142 = vcombine.high %v3131, %v3138
    %v3144 = vunpack.c.l.s4 1966171168
    %v3145 = vunpack.c.0.s8 %v3144
    %v3146 = vlaneseq
    %v3147 = vshrl.u32 %v3146, 7
    %v3148 = vsub.s32 %v3145, %v3147
    %v3149 = vrot.slane %v3139, %v3148
    %v3151 = vunpack.c.l.s4 1966171168
    %v3152 = vunpack.c.0.s8 %v3151
    %v3153 = vlaneseq
    %v3154 = vshrl.u32 %v3153, 7
    %v3155 = vsub.s32 %v3152, %v3154
    %v3156 = vrot.slane %v3140, %v3155
    %v3158 = vunpack.c.l.s4 1966171168
    %v3159 = vunpack.c.0.s8 %v3158
    %v3160 = vlaneseq
    %v3161 = vshrl.u32 %v3160, 7
    %v3162 = vsub.s32 %v3159, %v3161
    %v3163 = vrot.slane %v3141, %v3162
    %v3165 = vunpack.c.l.s4 1966171168
    %v3166 = vunpack.c.0.s8 %v3165
    %v3167 = vlaneseq
    %v3168 = vshrl.u32 %v3167, 7
    %v3169 = vsub.s32 %v3166, %v3168
    %v3170 = vrot.slane %v3142, %v3169
    %v3171 = vcombine.low %v3149, %v3163
    %v3172 = vcombine.low %v3156, %v3170
    %v3173 = vcombine.low %v2918, %v2919
    %v3174 = vcombine.low %v2920, %v2921
    %v3175 = vcombine.low %v2922, %v2923
    %v3176 = vcombine.low %v2924, %v2925
    %v3178 = vunpack.c.l.s4 1966171168
    %v3179 = vunpack.c.0.s8 %v3178
    %v3180 = vlaneseq
    %v3181 = vshrl.u32 %v3180, 7
    %v3182 = vsub.s32 %v3179, %v3181
    %v3183 = vrot.slane %v3173, %v3182
    %v3185 = vunpack.c.l.s4 1966171168
    %v3186 = vunpack.c.0.s8 %v3185
    %v3187 = vlaneseq
    %v3188 = vshrl.u32 %v3187, 7
    %v3189 = vsub.s32 %v3186, %v3188
    %v3190 = vrot.slane %v3174, %v3189
    %v3192 = vunpack.c.l.s4 1966171168
    %v3193 = vunpack.c.0.s8 %v3192
    %v3194 = vlaneseq
    %v3195 = vshrl.u32 %v3194, 7
    %v3196 = vsub.s32 %v3193, %v3195
    %v3197 = vrot.slane %v3175, %v3196
    %v3199 = vunpack.c.l.s4 1966171168
    %v3200 = vunpack.c.0.s8 %v3199
    %v3201 = vlaneseq
    %v3202 = vshrl.u32 %v3201, 7
    %v3203 = vsub.s32 %v3200, %v3202
    %v3204 = vrot.slane %v3176, %v3203
    %v3205 = vcombine.low %v3183, %v3190
    %v3206 = vcombine.high %v3183, %v3190
    %v3207 = vcombine.low %v3197, %v3204
    %v3208 = vcombine.high %v3197, %v3204
    %v3210 = vunpack.c.l.s4 1966171168
    %v3211 = vunpack.c.0.s8 %v3210
    %v3212 = vlaneseq
    %v3213 = vshrl.u32 %v3212, 7
    %v3214 = vsub.s32 %v3211, %v3213
    %v3215 = vrot.slane %v3205, %v3214
    %v3217 = vunpack.c.l.s4 1966171168
    %v3218 = vunpack.c.0.s8 %v3217
    %v3219 = vlaneseq
    %v3220 = vshrl.u32 %v3219, 7
    %v3221 = vsub.s32 %v3218, %v3220
    %v3222 = vrot.slane %v3206, %v3221
    %v3224 = vunpack.c.l.s4 1966171168
    %v3225 = vunpack.c.0.s8 %v3224
    %v3226 = vlaneseq
    %v3227 = vshrl.u32 %v3226, 7
    %v3228 = vsub.s32 %v3225, %v3227
    %v3229 = vrot.slane %v3207, %v3228
    %v3231 = vunpack.c.l.s4 1966171168
    %v3232 = vunpack.c.0.s8 %v3231
    %v3233 = vlaneseq
    %v3234 = vshrl.u32 %v3233, 7
    %v3235 = vsub.s32 %v3232, %v3234
    %v3236 = vrot.slane %v3208, %v3235
    %v3237 = vcombine.low %v3215, %v3229
    %v3238 = vcombine.low %v3222, %v3236
    %v3239 = vcombine.low %v2926, %v2927
    %v3240 = vcombine.low %v2928, %v2929
    %v3241 = vcombine.low %v2930, %v2931
    %v3242 = vcombine.low %v2932, %v2933
    %v3244 = vunpack.c.l.s4 1966171168
    %v3245 = vunpack.c.0.s8 %v3244
    %v3246 = vlaneseq
    %v3247 = vshrl.u32 %v3246, 7
    %v3248 = vsub.s32 %v3245, %v3247
    %v3249 = vrot.slane %v3239, %v3248
    %v3251 = vunpack.c.l.s4 1966171168
    %v3252 = vunpack.c.0.s8 %v3251
    %v3253 = vlaneseq
    %v3254 = vshrl.u32 %v3253, 7
    %v3255 = vsub.s32 %v3252, %v3254
    %v3256 = vrot.slane %v3240, %v3255
    %v3258 = vunpack.c.l.s4 1966171168
    %v3259 = vunpack.c.0.s8 %v3258
    %v3260 = vlaneseq
    %v3261 = vshrl.u32 %v3260, 7
    %v3262 = vsub.s32 %v3259, %v3261
    %v3263 = vrot.slane %v3241, %v3262
    %v3265 = vunpack.c.l.s4 1966171168
    %v3266 = vunpack.c.0.s8 %v3265
    %v3267 = vlaneseq
    %v3268 = vshrl.u32 %v3267, 7
    %v3269 = vsub.s32 %v3266, %v3268
    %v3270 = vrot.slane %v3242, %v3269
    %v3271 = vcombine.low %v3249, %v3256
    %v3272 = vcombine.high %v3249, %v3256
    %v3273 = vcombine.low %v3263, %v3270
    %v3274 = vcombine.high %v3263, %v3270
    %v3276 = vunpack.c.l.s4 1966171168
    %v3277 = vunpack.c.0.s8 %v3276
    %v3278 = vlaneseq
    %v3279 = vshrl.u32 %v3278, 7
    %v3280 = vsub.s32 %v3277, %v3279
    %v3281 = vrot.slane %v3271, %v3280
    %v3283 = vunpack.c.l.s4 1966171168
    %v3284 = vunpack.c.0.s8 %v3283
    %v3285 = vlaneseq
    %v3286 = vshrl.u32 %v3285, 7
    %v3287 = vsub.s32 %v3284, %v3286
    %v3288 = vrot.slane %v3272, %v3287
    %v3290 = vunpack.c.l.s4 1966171168
    %v3291 = vunpack.c.0.s8 %v3290
    %v3292 = vlaneseq
    %v3293 = vshrl.u32 %v3292, 7
    %v3294 = vsub.s32 %v3291, %v3293
    %v3295 = vrot.slane %v3273, %v3294
    %v3297 = vunpack.c.l.s4 1966171168
    %v3298 = vunpack.c.0.s8 %v3297
    %v3299 = vlaneseq
    %v3300 = vshrl.u32 %v3299, 7
    %v3301 = vsub.s32 %v3298, %v3300
    %v3302 = vrot.slane %v3274, %v3301
    %v3303 = vcombine.low %v3281, %v3295
    %v3304 = vcombine.low %v3288, %v3302
    %v3305 = vcombine.low %v2934, %v2935
    %v3306 = vcombine.low %v2936, %v2937
    %v3307 = vcombine.low %v2938, %v2939
    %v3308 = vcombine.low %v2940, %v2941
    %v3310 = vunpack.c.l.s4 1966171168
    %v3311 = vunpack.c.0.s8 %v3310
    %v3312 = vlaneseq
    %v3313 = vshrl.u32 %v3312, 7
    %v3314 = vsub.s32 %v3311, %v3313
    %v3315 = vrot.slane %v3305, %v3314
    %v3317 = vunpack.c.l.s4 1966171168
    %v3318 = vunpack.c.0.s8 %v3317
    %v3319 = vlaneseq
    %v3320 = vshrl.u32 %v3319, 7
    %v3321 = vsub.s32 %v3318, %v3320
    %v3322 = vrot.slane %v3306, %v3321
    %v3324 = vunpack.c.l.s4 1966171168
    %v3325 = vunpack.c.0.s8 %v3324
    %v3326 = vlaneseq
    %v3327 = vshrl.u32 %v3326, 7
    %v3328 = vsub.s32 %v3325, %v3327
    %v3329 = vrot.slane %v3307, %v3328
    %v3331 = vunpack.c.l.s4 1966171168
    %v3332 = vunpack.c.0.s8 %v3331
    %v3333 = vlaneseq
    %v3334 = vshrl.u32 %v3333, 7
    %v3335 = vsub.s32 %v3332, %v3334
    %v3336 = vrot.slane %v3308, %v3335
    %v3337 = vcombine.low %v3315, %v3322
    %v3338 = vcombine.high %v3315, %v3322
    %v3339 = vcombine.low %v3329, %v3336
    %v3340 = vcombine.high %v3329, %v3336
    %v3342 = vunpack.c.l.s4 1966171168
    %v3343 = vunpack.c.0.s8 %v3342
    %v3344 = vlaneseq
    %v3345 = vshrl.u32 %v3344, 7
    %v3346 = vsub.s32 %v3343, %v3345
    %v3347 = vrot.slane %v3337, %v3346
    %v3349 = vunpack.c.l.s4 1966171168
    %v3350 = vunpack.c.0.s8 %v3349
    %v3351 = vlaneseq
    %v3352 = vshrl.u32 %v3351, 7
    %v3353 = vsub.s32 %v3350, %v3352
    %v3354 = vrot.slane %v3338, %v3353
    %v3356 = vunpack.c.l.s4 1966171168
    %v3357 = vunpack.c.0.s8 %v3356
    %v3358 = vlaneseq
    %v3359 = vshrl.u32 %v3358, 7
    %v3360 = vsub.s32 %v3357, %v3359
    %v3361 = vrot.slane %v3339, %v3360
    %v3363 = vunpack.c.l.s4 1966171168
    %v3364 = vunpack.c.0.s8 %v3363
    %v3365 = vlaneseq
    %v3366 = vshrl.u32 %v3365, 7
    %v3367 = vsub.s32 %v3364, %v3366
    %v3368 = vrot.slane %v3340, %v3367
    %v3369 = vcombine.low %v3347, %v3361
    %v3370 = vcombine.low %v3354, %v3368
    %v3371 = vcombine.low %v2942, %v2943
    %v3372 = vcombine.low %v2944, %v2945
    %v3373 = vcombine.low %v2946, %v2947
    %v3374 = vcombine.low %v2948, %v2949
    %v3376 = vunpack.c.l.s4 1966171168
    %v3377 = vunpack.c.0.s8 %v3376
    %v3378 = vlaneseq
    %v3379 = vshrl.u32 %v3378, 7
    %v3380 = vsub.s32 %v3377, %v3379
    %v3381 = vrot.slane %v3371, %v3380
    %v3383 = vunpack.c.l.s4 1966171168
    %v3384 = vunpack.c.0.s8 %v3383
    %v3385 = vlaneseq
    %v3386 = vshrl.u32 %v3385, 7
    %v3387 = vsub.s32 %v3384, %v3386
    %v3388 = vrot.slane %v3372, %v3387
    %v3390 = vunpack.c.l.s4 1966171168
    %v3391 = vunpack.c.0.s8 %v3390
    %v3392 = vlaneseq
    %v3393 = vshrl.u32 %v3392, 7
    %v3394 = vsub.s32 %v3391, %v3393
    %v3395 = vrot.slane %v3373, %v3394
    %v3397 = vunpack.c.l.s4 1966171168
    %v3398 = vunpack.c.0.s8 %v3397
    %v3399 = vlaneseq
    %v3400 = vshrl.u32 %v3399, 7
    %v3401 = vsub.s32 %v3398, %v3400
    %v3402 = vrot.slane %v3374, %v3401
    %v3403 = vcombine.low %v3381, %v3388
    %v3404 = vcombine.high %v3381, %v3388
    %v3405 = vcombine.low %v3395, %v3402
    %v3406 = vcombine.high %v3395, %v3402
    %v3408 = vunpack.c.l.s4 1966171168
    %v3409 = vunpack.c.0.s8 %v3408
    %v3410 = vlaneseq
    %v3411 = vshrl.u32 %v3410, 7
    %v3412 = vsub.s32 %v3409, %v3411
    %v3413 = vrot.slane %v3403, %v3412
    %v3415 = vunpack.c.l.s4 1966171168
    %v3416 = vunpack.c.0.s8 %v3415
    %v3417 = vlaneseq
    %v3418 = vshrl.u32 %v3417, 7
    %v3419 = vsub.s32 %v3416, %v3418
    %v3420 = vrot.slane %v3404, %v3419
    %v3422 = vunpack.c.l.s4 1966171168
    %v3423 = vunpack.c.0.s8 %v3422
    %v3424 = vlaneseq
    %v3425 = vshrl.u32 %v3424, 7
    %v3426 = vsub.s32 %v3423, %v3425
    %v3427 = vrot.slane %v3405, %v3426
    %v3429 = vunpack.c.l.s4 1966171168
    %v3430 = vunpack.c.0.s8 %v3429
    %v3431 = vlaneseq
    %v3432 = vshrl.u32 %v3431, 7
    %v3433 = vsub.s32 %v3430, %v3432
    %v3434 = vrot.slane %v3406, %v3433
    %v3435 = vcombine.low %v3413, %v3427
    %v3436 = vcombine.low %v3420, %v3434
    %v3437 = vcombine.low %v2950, %v2951
    %v3438 = vcombine.low %v2952, %v2953
    %v3439 = vcombine.low %v2954, %v2955
    %v3440 = vcombine.low %v2956, %v2957
    %v3442 = vunpack.c.l.s4 1966171168
    %v3443 = vunpack.c.0.s8 %v3442
    %v3444 = vlaneseq
    %v3445 = vshrl.u32 %v3444, 7
    %v3446 = vsub.s32 %v3443, %v3445
    %v3447 = vrot.slane %v3437, %v3446
    %v3449 = vunpack.c.l.s4 1966171168
    %v3450 = vunpack.c.0.s8 %v3449
    %v3451 = vlaneseq
    %v3452 = vshrl.u32 %v3451, 7
    %v3453 = vsub.s32 %v3450, %v3452
    %v3454 = vrot.slane %v3438, %v3453
    %v3456 = vunpack.c.l.s4 1966171168
    %v3457 = vunpack.c.0.s8 %v3456
    %v3458 = vlaneseq
    %v3459 = vshrl.u32 %v3458, 7
    %v3460 = vsub.s32 %v3457, %v3459
    %v3461 = vrot.slane %v3439, %v3460
    %v3463 = vunpack.c.l.s4 1966171168
    %v3464 = vunpack.c.0.s8 %v3463
    %v3465 = vlaneseq
    %v3466 = vshrl.u32 %v3465, 7
    %v3467 = vsub.s32 %v3464, %v3466
    %v3468 = vrot.slane %v3440, %v3467
    %v3469 = vcombine.low %v3447, %v3454
    %v3470 = vcombine.high %v3447, %v3454
    %v3471 = vcombine.low %v3461, %v3468
    %v3472 = vcombine.high %v3461, %v3468
    %v3474 = vunpack.c.l.s4 1966171168
    %v3475 = vunpack.c.0.s8 %v3474
    %v3476 = vlaneseq
    %v3477 = vshrl.u32 %v3476, 7
    %v3478 = vsub.s32 %v3475, %v3477
    %v3479 = vrot.slane %v3469, %v3478
    %v3481 = vunpack.c.l.s4 1966171168
    %v3482 = vunpack.c.0.s8 %v3481
    %v3483 = vlaneseq
    %v3484 = vshrl.u32 %v3483, 7
    %v3485 = vsub.s32 %v3482, %v3484
    %v3486 = vrot.slane %v3470, %v3485
    %v3488 = vunpack.c.l.s4 1966171168
    %v3489 = vunpack.c.0.s8 %v3488
    %v3490 = vlaneseq
    %v3491 = vshrl.u32 %v3490, 7
    %v3492 = vsub.s32 %v3489, %v3491
    %v3493 = vrot.slane %v3471, %v3492
    %v3495 = vunpack.c.l.s4 1966171168
    %v3496 = vunpack.c.0.s8 %v3495
    %v3497 = vlaneseq
    %v3498 = vshrl.u32 %v3497, 7
    %v3499 = vsub.s32 %v3496, %v3498
    %v3500 = vrot.slane %v3472, %v3499
    %v3501 = vcombine.low %v3479, %v3493
    %v3502 = vcombine.low %v3486, %v3500
    %v3503 = vcombine.low %v2958, %v2959
    %v3504 = vcombine.low %v2960, %v2961
    %v3505 = vcombine.low %v2962, %v2963
    %v3506 = vcombine.low %v2964, %v2965
    %v3508 = vunpack.c.l.s4 1966171168
    %v3509 = vunpack.c.0.s8 %v3508
    %v3510 = vlaneseq
    %v3511 = vshrl.u32 %v3510, 7
    %v3512 = vsub.s32 %v3509, %v3511
    %v3513 = vrot.slane %v3503, %v3512
    %v3515 = vunpack.c.l.s4 1966171168
    %v3516 = vunpack.c.0.s8 %v3515
    %v3517 = vlaneseq
    %v3518 = vshrl.u32 %v3517, 7
    %v3519 = vsub.s32 %v3516, %v3518
    %v3520 = vrot.slane %v3504, %v3519
    %v3522 = vunpack.c.l.s4 1966171168
    %v3523 = vunpack.c.0.s8 %v3522
    %v3524 = vlaneseq
    %v3525 = vshrl.u32 %v3524, 7
    %v3526 = vsub.s32 %v3523, %v3525
    %v3527 = vrot.slane %v3505, %v3526
    %v3529 = vunpack.c.l.s4 1966171168
    %v3530 = vunpack.c.0.s8 %v3529
    %v3531 = vlaneseq
    %v3532 = vshrl.u32 %v3531, 7
    %v3533 = vsub.s32 %v3530, %v3532
    %v3534 = vrot.slane %v3506, %v3533
    %v3535 = vcombine.low %v3513, %v3520
    %v3536 = vcombine.high %v3513, %v3520
    %v3537 = vcombine.low %v3527, %v3534
    %v3538 = vcombine.high %v3527, %v3534
    %v3540 = vunpack.c.l.s4 1966171168
    %v3541 = vunpack.c.0.s8 %v3540
    %v3542 = vlaneseq
    %v3543 = vshrl.u32 %v3542, 7
    %v3544 = vsub.s32 %v3541, %v3543
    %v3545 = vrot.slane %v3535, %v3544
    %v3547 = vunpack.c.l.s4 1966171168
    %v3548 = vunpack.c.0.s8 %v3547
    %v3549 = vlaneseq
    %v3550 = vshrl.u32 %v3549, 7
    %v3551 = vsub.s32 %v3548, %v3550
    %v3552 = vrot.slane %v3536, %v3551
    %v3554 = vunpack.c.l.s4 1966171168
    %v3555 = vunpack.c.0.s8 %v3554
    %v3556 = vlaneseq
    %v3557 = vshrl.u32 %v3556, 7
    %v3558 = vsub.s32 %v3555, %v3557
    %v3559 = vrot.slane %v3537, %v3558
    %v3561 = vunpack.c.l.s4 1966171168
    %v3562 = vunpack.c.0.s8 %v3561
    %v3563 = vlaneseq
    %v3564 = vshrl.u32 %v3563, 7
    %v3565 = vsub.s32 %v3562, %v3564
    %v3566 = vrot.slane %v3538, %v3565
    %v3567 = vcombine.low %v3545, %v3559
    %v3568 = vcombine.low %v3552, %v3566
    %v3569 = vcombine.low %v2966, %v2967
    %v3570 = vcombine.low %v2968, %v2969
    %v3571 = vcombine.low %v2970, %v2971
    %v3572 = vcombine.low %v2972, %v2973
    %v3574 = vunpack.c.l.s4 1966171168
    %v3575 = vunpack.c.0.s8 %v3574
    %v3576 = vlaneseq
    %v3577 = vshrl.u32 %v3576, 7
    %v3578 = vsub.s32 %v3575, %v3577
    %v3579 = vrot.slane %v3569, %v3578
    %v3581 = vunpack.c.l.s4 1966171168
    %v3582 = vunpack.c.0.s8 %v3581
    %v3583 = vlaneseq
    %v3584 = vshrl.u32 %v3583, 7
    %v3585 = vsub.s32 %v3582, %v3584
    %v3586 = vrot.slane %v3570, %v3585
    %v3588 = vunpack.c.l.s4 1966171168
    %v3589 = vunpack.c.0.s8 %v3588
    %v3590 = vlaneseq
    %v3591 = vshrl.u32 %v3590, 7
    %v3592 = vsub.s32 %v3589, %v3591
    %v3593 = vrot.slane %v3571, %v3592
    %v3595 = vunpack.c.l.s4 1966171168
    %v3596 = vunpack.c.0.s8 %v3595
    %v3597 = vlaneseq
    %v3598 = vshrl.u32 %v3597, 7
    %v3599 = vsub.s32 %v3596, %v3598
    %v3600 = vrot.slane %v3572, %v3599
    %v3601 = vcombine.low %v3579, %v3586
    %v3602 = vcombine.high %v3579, %v3586
    %v3603 = vcombine.low %v3593, %v3600
    %v3604 = vcombine.high %v3593, %v3600
    %v3606 = vunpack.c.l.s4 1966171168
    %v3607 = vunpack.c.0.s8 %v3606
    %v3608 = vlaneseq
    %v3609 = vshrl.u32 %v3608, 7
    %v3610 = vsub.s32 %v3607, %v3609
    %v3611 = vrot.slane %v3601, %v3610
    %v3613 = vunpack.c.l.s4 1966171168
    %v3614 = vunpack.c.0.s8 %v3613
    %v3615 = vlaneseq
    %v3616 = vshrl.u32 %v3615, 7
    %v3617 = vsub.s32 %v3614, %v3616
    %v3618 = vrot.slane %v3602, %v3617
    %v3620 = vunpack.c.l.s4 1966171168
    %v3621 = vunpack.c.0.s8 %v3620
    %v3622 = vlaneseq
    %v3623 = vshrl.u32 %v3622, 7
    %v3624 = vsub.s32 %v3621, %v3623
    %v3625 = vrot.slane %v3603, %v3624
    %v3627 = vunpack.c.l.s4 1966171168
    %v3628 = vunpack.c.0.s8 %v3627
    %v3629 = vlaneseq
    %v3630 = vshrl.u32 %v3629, 7
    %v3631 = vsub.s32 %v3628, %v3630
    %v3632 = vrot.slane %v3604, %v3631
    %v3633 = vcombine.low %v3611, %v3625
    %v3634 = vcombine.low %v3618, %v3632
    %v3636 = vunpack.c.l.s4 1966171168
    %v3637 = vunpack.c.0.s8 %v3636
    %v3638 = vlaneseq
    %v3639 = vshrl.u32 %v3638, 7
    %v3640 = vsub.s32 %v3637, %v3639
    %v3641 = vrot.slane %v2974, %v3640
    %v3642 = vcombine.high %v3641, %v3641
    %v3644 = vunpack.c.l.s4 1966171168
    %v3645 = vunpack.c.0.s8 %v3644
    %v3646 = vlaneseq
    %v3647 = vshrl.u32 %v3646, 7
    %v3648 = vsub.s32 %v3645, %v3647
    %v3649 = vrot.slane %v3641, %v3648
    %v3651 = vunpack.c.l.s4 1966171168
    %v3652 = vunpack.c.0.s8 %v3651
    %v3653 = vlaneseq
    %v3654 = vshrl.u32 %v3653, 7
    %v3655 = vsub.s32 %v3652, %v3654
    %v3656 = vrot.slane %v3642, %v3655
    %v3711 = vunpack.c.l.b16 %v2855
    %v3712 = vunpack.c.l.b16 %v2856
    %v3713 = vunpack.c.l.b16 %v2857
    %v3714 = vunpack.c.l.b16 %v2858
    %v3715 = vunpack.c.l.b16 %v2859
    %v3716 = vunpack.c.l.b16 %v2860
    %v3717 = vunpack.c.l.b16 %v2861
    %v3718 = vunpack.c.l.b16 %v2862
    %v3719 = vunpack.c.l.b16 %v2863
    %v3720 = vunpack.c.l.b16 %v2864
    %v3721 = vunpack.c.l.b16 %v2865
    %v3722 = vunpack.c.l.b16 %v2866
    %v3723 = vunpack.c.l.b16 %v2867
    %v3724 = vunpack.c.l.b16 %v2868
    %v3725 = vunpack.c.l.b16 %v2869
    %v3726 = vunpack.c.l.b16 %v2870
    %v3727 = vunpack.c.l.b16 %v2871
    %v3728 = vunpack.c.l.b16 %v2872
    %v3729 = vunpack.c.l.b16 %v2873
    %v3730 = vunpack.c.l.b16 %v2874
    %v3731 = vunpack.c.l.b16 %v2875
    %v3732 = vunpack.c.l.b16 %v2876
    %v3733 = vunpack.c.l.b16 %v2877
    %v3734 = vunpack.c.l.b16 %v2878
    %v3735 = vunpack.c.l.b16 %v2879
    %v3736 = vunpack.c.l.b16 %v2880
    %v3737 = vunpack.c.l.b16 %v2881
    %v3738 = vunpack.c.l.b16 %v2882
    %v3739 = vunpack.c.l.b16 %v2883
    %v3740 = vunpack.c.l.b16 %v2884
    %v3741 = vunpack.c.l.b16 %v2885
    %v3742 = vunpack.c.l.b16 %v2886
    %v3743 = vpack.c.b16 %v3712, %v3711
    %v3744 = vpack.c.b16 %v3714, %v3713
    %v3745 = vpack.c.b16 %v3716, %v3715
    %v3746 = vpack.c.b16 %v3718, %v3717
    %v3747 = vpack.c.b16 %v3720, %v3719
    %v3748 = vpack.c.b16 %v3722, %v3721
    %v3749 = vpack.c.b16 %v3724, %v3723
    %v3750 = vpack.c.b16 %v3726, %v3725
    %v3751 = vpack.c.b16 %v3728, %v3727
    %v3752 = vpack.c.b16 %v3730, %v3729
    %v3753 = vpack.c.b16 %v3732, %v3731
    %v3754 = vpack.c.b16 %v3734, %v3733
    %v3755 = vpack.c.b16 %v3736, %v3735
    %v3756 = vpack.c.b16 %v3738, %v3737
    %v3757 = vpack.c.b16 %v3740, %v3739
    %v3758 = vpack.c.b16 %v3742, %v3741
    %3775 = vmatprep.subr.bf16.mxu0 0
    %3776 = vmatpush1.bf16.msra.mxu0 %v3743
    %3777 = vmatprep.subr.bf16.mxu0 0
    %3778 = vmatpush1.bf16.msra.mxu0 %v3744
    %3779 = vmatprep.subr.bf16.mxu0 0
    %3780 = vmatpush1.bf16.msra.mxu0 %v3745
    %3781 = vmatprep.subr.bf16.mxu0 0
    %3782 = vmatpush1.bf16.msra.mxu0 %v3746
    %3783 = vmatprep.subr.bf16.mxu0 0
    %3784 = vmatpush1.bf16.msra.mxu0 %v3747
    %3785 = vmatprep.subr.bf16.mxu0 0
    %3786 = vmatpush1.bf16.msra.mxu0 %v3748
    %3787 = vmatprep.subr.bf16.mxu0 0
    %3788 = vmatpush1.bf16.msra.mxu0 %v3749
    %3789 = vmatprep.subr.bf16.mxu0 0
    %3790 = vmatpush1.bf16.msra.mxu0 %v3750
    %3791 = vmatprep.subr.bf16.mxu0 0
    %3792 = vmatpush1.bf16.msra.mxu0 %v3751
    %3793 = vmatprep.subr.bf16.mxu0 0
    %3794 = vmatpush1.bf16.msra.mxu0 %v3752
    %3795 = vmatprep.subr.bf16.mxu0 0
    %3796 = vmatpush1.bf16.msra.mxu0 %v3753
    %3797 = vmatprep.subr.bf16.mxu0 0
    %3798 = vmatpush1.bf16.msra.mxu0 %v3754
    %3799 = vmatprep.subr.bf16.mxu0 0
    %3800 = vmatpush1.bf16.msra.mxu0 %v3755
    %3801 = vmatprep.subr.bf16.mxu0 0
    %3802 = vmatpush1.bf16.msra.mxu0 %v3756
    %3803 = vmatprep.subr.bf16.mxu0 0
    %3804 = vmatpush1.bf16.msra.mxu0 %v3757
    %3805 = vmatprep.subr.bf16.mxu0 0
    %3806 = vmatpush1.bf16.msra.mxu0 %v3758
    %3807 = vmatprep.mubr.bf16.mxu0 %v3040
    %3808 = vmatmul.mubr.bf16.gmra.mrb[0].mxu0 %v3039
    %v3809 = vpop.f32.mrb[0].mxu0
    %v3810 = vadd.f32 %v2892, %v3809
    %v3811 = vpop.f32.mrb[0].mxu0
    %v3812 = vpop.f32.mrb[0].mxu0
    %v3813 = vadd.f32 %v2892, %v3812
    %v3814 = vpop.f32.mrb[0].mxu0
    %3815 = vmatprep.mubr.bf16.mxu0 %v3106
    %3816 = vmatmul.mubr.bf16.gmra.mrb[0].mxu0 %v3105
    %v3817 = vpop.f32.mrb[0].mxu0
    %v3818 = vadd.f32 %v2892, %v3817
    %v3819 = vpop.f32.mrb[0].mxu0
    %v3820 = vpop.f32.mrb[0].mxu0
    %v3821 = vadd.f32 %v2892, %v3820
    %v3822 = vpop.f32.mrb[0].mxu0
    %3823 = vmatprep.mubr.bf16.mxu0 %v3172
    %3824 = vmatmul.mubr.bf16.gmra.mrb[0].mxu0 %v3171
    %v3825 = vpop.f32.mrb[0].mxu0
    %v3826 = vadd.f32 %v2892, %v3825
    %v3827 = vpop.f32.mrb[0].mxu0
    %v3828 = vpop.f32.mrb[0].mxu0
    %v3829 = vadd.f32 %v2892, %v3828
    %v3830 = vpop.f32.mrb[0].mxu0
    %3831 = vmatprep.mubr.bf16.mxu0 %v3238
    %3832 = vmatmul.mubr.bf16.gmra.mrb[0].mxu0 %v3237
    %v3833 = vpop.f32.mrb[0].mxu0
    %v3834 = vadd.f32 %v2892, %v3833
    %v3835 = vpop.f32.mrb[0].mxu0
    %v3836 = vpop.f32.mrb[0].mxu0
    %v3837 = vadd.f32 %v2892, %v3836
    %v3838 = vpop.f32.mrb[0].mxu0
    %3839 = vmatprep.mubr.bf16.mxu0 %v3304
    %3840 = vmatmul.mubr.bf16.gmra.mrb[0].mxu0 %v3303
    %v3841 = vpop.f32.mrb[0].mxu0
    %v3842 = vadd.f32 %v2892, %v3841
    %v3843 = vpop.f32.mrb[0].mxu0
    %v3844 = vpop.f32.mrb[0].mxu0
    %v3845 = vadd.f32 %v2892, %v3844
    %v3846 = vpop.f32.mrb[0].mxu0
    %3847 = vmatprep.mubr.bf16.mxu0 %v3370
    %3848 = vmatmul.mubr.bf16.gmra.mrb[0].mxu0 %v3369
    %v3849 = vpop.f32.mrb[0].mxu0
    %v3850 = vadd.f32 %v2892, %v3849
    %v3851 = vpop.f32.mrb[0].mxu0
    %v3852 = vpop.f32.mrb[0].mxu0
    %v3853 = vadd.f32 %v2892, %v3852
    %v3854 = vpop.f32.mrb[0].mxu0
    %3855 = vmatprep.mubr.bf16.mxu0 %v3436
    %3856 = vmatmul.mubr.bf16.gmra.mrb[0].mxu0 %v3435
    %v3857 = vpop.f32.mrb[0].mxu0
    %v3858 = vadd.f32 %v2892, %v3857
    %v3859 = vpop.f32.mrb[0].mxu0
    %v3860 = vpop.f32.mrb[0].mxu0
    %v3861 = vadd.f32 %v2892, %v3860
    %v3862 = vpop.f32.mrb[0].mxu0
    %3863 = vmatprep.mubr.bf16.mxu0 %v3502
    %3864 = vmatmul.mubr.bf16.gmra.mrb[0].mxu0 %v3501
    %v3865 = vpop.f32.mrb[0].mxu0
    %v3866 = vadd.f32 %v2892, %v3865
    %v3867 = vpop.f32.mrb[0].mxu0
    %v3868 = vpop.f32.mrb[0].mxu0
    %v3869 = vadd.f32 %v2892, %v3868
    %v3870 = vpop.f32.mrb[0].mxu0
    %3871 = vmatprep.mubr.bf16.mxu0 %v3568
    %3872 = vmatmul.mubr.bf16.gmra.mrb[0].mxu0 %v3567
    %v3873 = vpop.f32.mrb[0].mxu0
    %v3874 = vadd.f32 %v2892, %v3873
    %v3875 = vpop.f32.mrb[0].mxu0
    %v3876 = vpop.f32.mrb[0].mxu0
    %v3877 = vadd.f32 %v2892, %v3876
    %v3878 = vpop.f32.mrb[0].mxu0
    %3879 = vmatprep.mubr.bf16.mxu0 %v3634
    %3880 = vmatmul.mubr.bf16.gmra.mrb[0].mxu0 %v3633
    %v3881 = vpop.f32.mrb[0].mxu0
    %v3882 = vadd.f32 %v2892, %v3881
    %v3883 = vpop.f32.mrb[0].mxu0
    %v3884 = vpop.f32.mrb[0].mxu0
    %v3885 = vadd.f32 %v2892, %v3884
    %v3886 = vpop.f32.mrb[0].mxu0
    %3887 = vmatprep.mubr.bf16.mxu0 %v3656
    %3888 = vmatmul.mubr.bf16.gmra.mrb[0].mxu0 %v3649
    %v3889 = vpop.f32.mrb[0].mxu0
    %v3890 = vadd.f32 %v2892, %v3889
    %v3891 = vpop.f32.mrb[0].mxu0
    %v3892 = vpop.f32.mrb[0].mxu0
    %v3893 = vpop.f32.mrb[0].mxu0
    %3894 = vdwg.mxu0
    %v3895 = vmul.f32 %v3810, 1.442695
    %v3896 = vpow.pop %v3895
    %v3897 = vmul.f32 %v3813, 1.442695
    %v3898 = vpow.pop %v3897
    %v3899 = vmul.f32 %v3818, 1.442695
    %v3900 = vpow.pop %v3899
    %v3901 = vmul.f32 %v3821, 1.442695
    %v3902 = vpow.pop %v3901
    %v3903 = vmul.f32 %v3826, 1.442695
    %v3904 = vpow.pop %v3903
    %v3905 = vmul.f32 %v3829, 1.442695
    %v3906 = vpow.pop %v3905
    %v3907 = vmul.f32 %v3834, 1.442695
    %v3908 = vpow.pop %v3907
    %v3909 = vmul.f32 %v3837, 1.442695
    %v3910 = vpow.pop %v3909
    %v3911 = vmul.f32 %v3842, 1.442695
    %v3912 = vpow.pop %v3911
    %v3913 = vmul.f32 %v3845, 1.442695
    %v3914 = vpow.pop %v3913
    %v3915 = vmul.f32 %v3850, 1.442695
    %v3916 = vpow.pop %v3915
    %v3917 = vmul.f32 %v3853, 1.442695
    %v3918 = vpow.pop %v3917
    %v3919 = vmul.f32 %v3858, 1.442695
    %v3920 = vpow.pop %v3919
    %v3921 = vmul.f32 %v3861, 1.442695
    %v3922 = vpow.pop %v3921
    %v3923 = vmul.f32 %v3866, 1.442695
    %v3924 = vpow.pop %v3923
    %v3925 = vmul.f32 %v3869, 1.442695
    %v3926 = vpow.pop %v3925
    %v3927 = vmul.f32 %v3874, 1.442695
    %v3928 = vpow.pop %v3927
    %v3929 = vmul.f32 %v3877, 1.442695
    %v3930 = vpow.pop %v3929
    %v3931 = vmul.f32 %v3882, 1.442695
    %v3932 = vpow.pop %v3931
    %v3933 = vmul.f32 %v3885, 1.442695
    %v3934 = vpow.pop %v3933
    %v3935 = vmul.f32 %v3890, 1.442695
    %v3936 = vpow.pop %v3935
    %v3937 = vsub.f32 %v3896, 1.0
    %v3938 = vsub.f32 %v3898, 1.0
    %v3939 = vsub.f32 %v3900, 1.0
    %v3940 = vsub.f32 %v3902, 1.0
    %v3941 = vsub.f32 %v3904, 1.0
    %v3942 = vsub.f32 %v3906, 1.0
    %v3943 = vsub.f32 %v3908, 1.0
    %v3944 = vsub.f32 %v3910, 1.0
    %v3945 = vsub.f32 %v3912, 1.0
    %v3946 = vsub.f32 %v3914, 1.0
    %v3947 = vsub.f32 %v3916, 1.0
    %v3948 = vsub.f32 %v3918, 1.0
    %v3949 = vsub.f32 %v3920, 1.0
    %v3950 = vsub.f32 %v3922, 1.0
    %v3951 = vsub.f32 %v3924, 1.0
    %v3952 = vsub.f32 %v3926, 1.0
    %v3953 = vsub.f32 %v3928, 1.0
    %v3954 = vsub.f32 %v3930, 1.0
    %v3955 = vsub.f32 %v3932, 1.0
    %v3956 = vsub.f32 %v3934, 1.0
    %v3957 = vsub.f32 %v3936, 1.0
    %v3958 = vmul.f32 %v3810, 0.5
    %v3959 = vmul.f32 %v3813, 0.5
    %v3960 = vmul.f32 %v3818, 0.5
    %v3961 = vmul.f32 %v3821, 0.5
    %v3962 = vmul.f32 %v3826, 0.5
    %v3963 = vmul.f32 %v3829, 0.5
    %v3964 = vmul.f32 %v3834, 0.5
    %v3965 = vmul.f32 %v3837, 0.5
    %v3966 = vmul.f32 %v3842, 0.5
    %v3967 = vmul.f32 %v3845, 0.5
    %v3968 = vmul.f32 %v3850, 0.5
    %v3969 = vmul.f32 %v3853, 0.5
    %v3970 = vmul.f32 %v3858, 0.5
    %v3971 = vmul.f32 %v3861, 0.5
    %v3972 = vmul.f32 %v3866, 0.5
    %v3973 = vmul.f32 %v3869, 0.5
    %v3974 = vmul.f32 %v3874, 0.5
    %v3975 = vmul.f32 %v3877, 0.5
    %v3976 = vmul.f32 %v3882, 0.5
    %v3977 = vmul.f32 %v3885, 0.5
    %v3978 = vmul.f32 %v3890, 0.5
    %v3979 = vmul.f32 %v3958, %v3810
    %v3980 = vmul.f32 %v3959, %v3813
    %v3981 = vmul.f32 %v3960, %v3818
    %v3982 = vmul.f32 %v3961, %v3821
    %v3983 = vmul.f32 %v3962, %v3826
    %v3984 = vmul.f32 %v3963, %v3829
    %v3985 = vmul.f32 %v3964, %v3834
    %v3986 = vmul.f32 %v3965, %v3837
    %v3987 = vmul.f32 %v3966, %v3842
    %v3988 = vmul.f32 %v3967, %v3845
    %v3989 = vmul.f32 %v3968, %v3850
    %v3990 = vmul.f32 %v3969, %v3853
    %v3991 = vmul.f32 %v3970, %v3858
    %v3992 = vmul.f32 %v3971, %v3861
    %v3993 = vmul.f32 %v3972, %v3866
    %v3994 = vmul.f32 %v3973, %v3869
    %v3995 = vmul.f32 %v3974, %v3874
    %v3996 = vmul.f32 %v3975, %v3877
    %v3997 = vmul.f32 %v3976, %v3882
    %v3998 = vmul.f32 %v3977, %v3885
    %v3999 = vmul.f32 %v3978, %v3890
    %v4000 = vadd.f32 %v3810, %v3979
    %v4001 = vadd.f32 %v3813, %v3980
    %v4002 = vadd.f32 %v3818, %v3981
    %v4003 = vadd.f32 %v3821, %v3982
    %v4004 = vadd.f32 %v3826, %v3983
    %v4005 = vadd.f32 %v3829, %v3984
    %v4006 = vadd.f32 %v3834, %v3985
    %v4007 = vadd.f32 %v3837, %v3986
    %v4008 = vadd.f32 %v3842, %v3987
    %v4009 = vadd.f32 %v3845, %v3988
    %v4010 = vadd.f32 %v3850, %v3989
    %v4011 = vadd.f32 %v3853, %v3990
    %v4012 = vadd.f32 %v3858, %v3991
    %v4013 = vadd.f32 %v3861, %v3992
    %v4014 = vadd.f32 %v3866, %v3993
    %v4015 = vadd.f32 %v3869, %v3994
    %v4016 = vadd.f32 %v3874, %v3995
    %v4017 = vadd.f32 %v3877, %v3996
    %v4018 = vadd.f32 %v3882, %v3997
    %v4019 = vadd.f32 %v3885, %v3998
    %v4020 = vadd.f32 %v3890, %v3999
    %vm4021 = vcmp.gt.f32.partialorder %v3810, -0.001
    %vm4022 = vcmp.gt.f32.partialorder %v3813, -0.001
    %vm4023 = vcmp.gt.f32.partialorder %v3818, -0.001
    %vm4024 = vcmp.gt.f32.partialorder %v3821, -0.001
    %vm4025 = vcmp.gt.f32.partialorder %v3826, -0.001
    %vm4026 = vcmp.gt.f32.partialorder %v3829, -0.001
    %vm4027 = vcmp.gt.f32.partialorder %v3834, -0.001
    %vm4028 = vcmp.gt.f32.partialorder %v3837, -0.001
    %vm4029 = vcmp.gt.f32.partialorder %v3842, -0.001
    %vm4030 = vcmp.gt.f32.partialorder %v3845, -0.001
    %vm4031 = vcmp.gt.f32.partialorder %v3850, -0.001
    %vm4032 = vcmp.gt.f32.partialorder %v3853, -0.001
    %vm4033 = vcmp.gt.f32.partialorder %v3858, -0.001
    %vm4034 = vcmp.gt.f32.partialorder %v3861, -0.001
    %vm4035 = vcmp.gt.f32.partialorder %v3866, -0.001
    %vm4036 = vcmp.gt.f32.partialorder %v3869, -0.001
    %vm4037 = vcmp.gt.f32.partialorder %v3874, -0.001
    %vm4038 = vcmp.gt.f32.partialorder %v3877, -0.001
    %vm4039 = vcmp.gt.f32.partialorder %v3882, -0.001
    %vm4040 = vcmp.gt.f32.partialorder %v3885, -0.001
    %vm4041 = vcmp.gt.f32.partialorder %v3890, -0.001
    %v4042 = vsel %vm4021, %v4000, %v3937
    %v4043 = vsel %vm4022, %v4001, %v3938
    %v4044 = vsel %vm4023, %v4002, %v3939
    %v4045 = vsel %vm4024, %v4003, %v3940
    %v4046 = vsel %vm4025, %v4004, %v3941
    %v4047 = vsel %vm4026, %v4005, %v3942
    %v4048 = vsel %vm4027, %v4006, %v3943
    %v4049 = vsel %vm4028, %v4007, %v3944
    %v4050 = vsel %vm4029, %v4008, %v3945
    %v4051 = vsel %vm4030, %v4009, %v3946
    %v4052 = vsel %vm4031, %v4010, %v3947
    %v4053 = vsel %vm4032, %v4011, %v3948
    %v4054 = vsel %vm4033, %v4012, %v3949
    %v4055 = vsel %vm4034, %v4013, %v3950
    %v4056 = vsel %vm4035, %v4014, %v3951
    %v4057 = vsel %vm4036, %v4015, %v3952
    %v4058 = vsel %vm4037, %v4016, %v3953
    %v4059 = vsel %vm4038, %v4017, %v3954
    %v4060 = vsel %vm4039, %v4018, %v3955
    %v4061 = vsel %vm4040, %v4019, %v3956
    %v4062 = vsel %vm4041, %v4020, %v3957
    %vm4063 = vcmp.gt.f32.partialorder %v3810, 0.0
    %vm4064 = vcmp.gt.f32.partialorder %v3813, 0.0
    %vm4065 = vcmp.gt.f32.partialorder %v3818, 0.0
    %vm4066 = vcmp.gt.f32.partialorder %v3821, 0.0
    %vm4067 = vcmp.gt.f32.partialorder %v3826, 0.0
    %vm4068 = vcmp.gt.f32.partialorder %v3829, 0.0
    %vm4069 = vcmp.gt.f32.partialorder %v3834, 0.0
    %vm4070 = vcmp.gt.f32.partialorder %v3837, 0.0
    %vm4071 = vcmp.gt.f32.partialorder %v3842, 0.0
    %vm4072 = vcmp.gt.f32.partialorder %v3845, 0.0
    %vm4073 = vcmp.gt.f32.partialorder %v3850, 0.0
    %vm4074 = vcmp.gt.f32.partialorder %v3853, 0.0
    %vm4075 = vcmp.gt.f32.partialorder %v3858, 0.0
    %vm4076 = vcmp.gt.f32.partialorder %v3861, 0.0
    %vm4077 = vcmp.gt.f32.partialorder %v3866, 0.0
    %vm4078 = vcmp.gt.f32.partialorder %v3869, 0.0
    %vm4079 = vcmp.gt.f32.partialorder %v3874, 0.0
    %vm4080 = vcmp.gt.f32.partialorder %v3877, 0.0
    %vm4081 = vcmp.gt.f32.partialorder %v3882, 0.0
    %vm4082 = vcmp.gt.f32.partialorder %v3885, 0.0
    %vm4083 = vcmp.gt.f32.partialorder %v3890, 0.0
    %v4084 = vsel %vm4063, %v3810, %v4042
    %v4085 = vsel %vm4064, %v3813, %v4043
    %v4086 = vsel %vm4065, %v3818, %v4044
    %v4087 = vsel %vm4066, %v3821, %v4045
    %v4088 = vsel %vm4067, %v3826, %v4046
    %v4089 = vsel %vm4068, %v3829, %v4047
    %v4090 = vsel %vm4069, %v3834, %v4048
    %v4091 = vsel %vm4070, %v3837, %v4049
    %v4092 = vsel %vm4071, %v3842, %v4050
    %v4093 = vsel %vm4072, %v3845, %v4051
    %v4094 = vsel %vm4073, %v3850, %v4052
    %v4095 = vsel %vm4074, %v3853, %v4053
    %v4096 = vsel %vm4075, %v3858, %v4054
    %v4097 = vsel %vm4076, %v3861, %v4055
    %v4098 = vsel %vm4077, %v3866, %v4056
    %v4099 = vsel %vm4078, %v3869, %v4057
    %v4100 = vsel %vm4079, %v3874, %v4058
    %v4101 = vsel %vm4080, %v3877, %v4059
    %v4102 = vsel %vm4081, %v3882, %v4060
    %v4103 = vsel %vm4082, %v3885, %v4061
    %v4104 = vsel %vm4083, %v3890, %v4062
    %v4105 = vpack.c.bf16 %v4085, %v4084
    %v4106 = vpack.c.bf16 %v4087, %v4086
    %v4107 = vpack.c.bf16 %v4089, %v4088
    %v4108 = vpack.c.bf16 %v4091, %v4090
    %v4109 = vpack.c.bf16 %v4093, %v4092
    %v4110 = vpack.c.bf16 %v4095, %v4094
    %v4111 = vpack.c.bf16 %v4097, %v4096
    %v4112 = vpack.c.bf16 %v4099, %v4098
    %v4113 = vpack.c.bf16 %v4101, %v4100
    %v4114 = vpack.c.bf16 %v4103, %v4102
    %v4115 = vpack.c.bf16 %v4104, %v4104
    %v4127 = vcombine.high %v4105, %v4105
    %v4129 = vunpack.c.l.s4 1966171168
    %v4130 = vunpack.c.0.s8 %v4129
    %v4131 = vlaneseq
    %v4132 = vshrl.u32 %v4131, 7
    %v4133 = vsub.s32 %v4130, %v4132
    %v4134 = vrot.slane %v4105, %v4133
    %v4136 = vunpack.c.l.s4 1966171168
    %v4137 = vunpack.c.0.s8 %v4136
    %v4138 = vlaneseq
    %v4139 = vshrl.u32 %v4138, 7
    %v4140 = vsub.s32 %v4137, %v4139
    %v4141 = vrot.slane %v4127, %v4140
    %v4142 = vcombine.high %v4134, %v4134
    %v4143 = vcombine.high %v4141, %v4141
    %v4145 = vunpack.c.l.s4 1966171168
    %v4146 = vunpack.c.0.s8 %v4145
    %v4147 = vlaneseq
    %v4148 = vshrl.u32 %v4147, 7
    %v4149 = vsub.s32 %v4146, %v4148
    %v4150 = vrot.slane %v4134, %v4149
    %v4152 = vunpack.c.l.s4 1966171168
    %v4153 = vunpack.c.0.s8 %v4152
    %v4154 = vlaneseq
    %v4155 = vshrl.u32 %v4154, 7
    %v4156 = vsub.s32 %v4153, %v4155
    %v4157 = vrot.slane %v4141, %v4156
    %v4159 = vunpack.c.l.s4 1966171168
    %v4160 = vunpack.c.0.s8 %v4159
    %v4161 = vlaneseq
    %v4162 = vshrl.u32 %v4161, 7
    %v4163 = vsub.s32 %v4160, %v4162
    %v4164 = vrot.slane %v4142, %v4163
    %v4166 = vunpack.c.l.s4 1966171168
    %v4167 = vunpack.c.0.s8 %v4166
    %v4168 = vlaneseq
    %v4169 = vshrl.u32 %v4168, 7
    %v4170 = vsub.s32 %v4167, %v4169
    %v4171 = vrot.slane %v4143, %v4170
    %v4172 = vcombine.high %v4150, %v4150
    %v4173 = vcombine.high %v4157, %v4157
    %v4174 = vcombine.high %v4164, %v4164
    %v4175 = vcombine.high %v4171, %v4171
    %v4176 = vcombine.high %v4106, %v4106
    %v4178 = vunpack.c.l.s4 1966171168
    %v4179 = vunpack.c.0.s8 %v4178
    %v4180 = vlaneseq
    %v4181 = vshrl.u32 %v4180, 7
    %v4182 = vsub.s32 %v4179, %v4181
    %v4183 = vrot.slane %v4106, %v4182
    %v4185 = vunpack.c.l.s4 1966171168
    %v4186 = vunpack.c.0.s8 %v4185
    %v4187 = vlaneseq
    %v4188 = vshrl.u32 %v4187, 7
    %v4189 = vsub.s32 %v4186, %v4188
    %v4190 = vrot.slane %v4176, %v4189
    %v4191 = vcombine.high %v4183, %v4183
    %v4192 = vcombine.high %v4190, %v4190
    %v4194 = vunpack.c.l.s4 1966171168
    %v4195 = vunpack.c.0.s8 %v4194
    %v4196 = vlaneseq
    %v4197 = vshrl.u32 %v4196, 7
    %v4198 = vsub.s32 %v4195, %v4197
    %v4199 = vrot.slane %v4183, %v4198
    %v4201 = vunpack.c.l.s4 1966171168
    %v4202 = vunpack.c.0.s8 %v4201
    %v4203 = vlaneseq
    %v4204 = vshrl.u32 %v4203, 7
    %v4205 = vsub.s32 %v4202, %v4204
    %v4206 = vrot.slane %v4190, %v4205
    %v4208 = vunpack.c.l.s4 1966171168
    %v4209 = vunpack.c.0.s8 %v4208
    %v4210 = vlaneseq
    %v4211 = vshrl.u32 %v4210, 7
    %v4212 = vsub.s32 %v4209, %v4211
    %v4213 = vrot.slane %v4191, %v4212
    %v4215 = vunpack.c.l.s4 1966171168
    %v4216 = vunpack.c.0.s8 %v4215
    %v4217 = vlaneseq
    %v4218 = vshrl.u32 %v4217, 7
    %v4219 = vsub.s32 %v4216, %v4218
    %v4220 = vrot.slane %v4192, %v4219
    %v4221 = vcombine.high %v4199, %v4199
    %v4222 = vcombine.high %v4206, %v4206
    %v4223 = vcombine.high %v4213, %v4213
    %v4224 = vcombine.high %v4220, %v4220
    %v4225 = vcombine.high %v4107, %v4107
    %v4227 = vunpack.c.l.s4 1966171168
    %v4228 = vunpack.c.0.s8 %v4227
    %v4229 = vlaneseq
    %v4230 = vshrl.u32 %v4229, 7
    %v4231 = vsub.s32 %v4228, %v4230
    %v4232 = vrot.slane %v4107, %v4231
    %v4234 = vunpack.c.l.s4 1966171168
    %v4235 = vunpack.c.0.s8 %v4234
    %v4236 = vlaneseq
    %v4237 = vshrl.u32 %v4236, 7
    %v4238 = vsub.s32 %v4235, %v4237
    %v4239 = vrot.slane %v4225, %v4238
    %v4240 = vcombine.high %v4232, %v4232
    %v4241 = vcombine.high %v4239, %v4239
    %v4243 = vunpack.c.l.s4 1966171168
    %v4244 = vunpack.c.0.s8 %v4243
    %v4245 = vlaneseq
    %v4246 = vshrl.u32 %v4245, 7
    %v4247 = vsub.s32 %v4244, %v4246
    %v4248 = vrot.slane %v4232, %v4247
    %v4250 = vunpack.c.l.s4 1966171168
    %v4251 = vunpack.c.0.s8 %v4250
    %v4252 = vlaneseq
    %v4253 = vshrl.u32 %v4252, 7
    %v4254 = vsub.s32 %v4251, %v4253
    %v4255 = vrot.slane %v4239, %v4254
    %v4257 = vunpack.c.l.s4 1966171168
    %v4258 = vunpack.c.0.s8 %v4257
    %v4259 = vlaneseq
    %v4260 = vshrl.u32 %v4259, 7
    %v4261 = vsub.s32 %v4258, %v4260
    %v4262 = vrot.slane %v4240, %v4261
    %v4264 = vunpack.c.l.s4 1966171168
    %v4265 = vunpack.c.0.s8 %v4264
    %v4266 = vlaneseq
    %v4267 = vshrl.u32 %v4266, 7
    %v4268 = vsub.s32 %v4265, %v4267
    %v4269 = vrot.slane %v4241, %v4268
    %v4270 = vcombine.high %v4248, %v4248
    %v4271 = vcombine.high %v4255, %v4255
    %v4272 = vcombine.high %v4262, %v4262
    %v4273 = vcombine.high %v4269, %v4269
    %v4274 = vcombine.high %v4108, %v4108
    %v4276 = vunpack.c.l.s4 1966171168
    %v4277 = vunpack.c.0.s8 %v4276
    %v4278 = vlaneseq
    %v4279 = vshrl.u32 %v4278, 7
    %v4280 = vsub.s32 %v4277, %v4279
    %v4281 = vrot.slane %v4108, %v4280
    %v4283 = vunpack.c.l.s4 1966171168
    %v4284 = vunpack.c.0.s8 %v4283
    %v4285 = vlaneseq
    %v4286 = vshrl.u32 %v4285, 7
    %v4287 = vsub.s32 %v4284, %v4286
    %v4288 = vrot.slane %v4274, %v4287
    %v4289 = vcombine.high %v4281, %v4281
    %v4290 = vcombine.high %v4288, %v4288
    %v4292 = vunpack.c.l.s4 1966171168
    %v4293 = vunpack.c.0.s8 %v4292
    %v4294 = vlaneseq
    %v4295 = vshrl.u32 %v4294, 7
    %v4296 = vsub.s32 %v4293, %v4295
    %v4297 = vrot.slane %v4281, %v4296
    %v4299 = vunpack.c.l.s4 1966171168
    %v4300 = vunpack.c.0.s8 %v4299
    %v4301 = vlaneseq
    %v4302 = vshrl.u32 %v4301, 7
    %v4303 = vsub.s32 %v4300, %v4302
    %v4304 = vrot.slane %v4288, %v4303
    %v4306 = vunpack.c.l.s4 1966171168
    %v4307 = vunpack.c.0.s8 %v4306
    %v4308 = vlaneseq
    %v4309 = vshrl.u32 %v4308, 7
    %v4310 = vsub.s32 %v4307, %v4309
    %v4311 = vrot.slane %v4289, %v4310
    %v4313 = vunpack.c.l.s4 1966171168
    %v4314 = vunpack.c.0.s8 %v4313
    %v4315 = vlaneseq
    %v4316 = vshrl.u32 %v4315, 7
    %v4317 = vsub.s32 %v4314, %v4316
    %v4318 = vrot.slane %v4290, %v4317
    %v4319 = vcombine.high %v4297, %v4297
    %v4320 = vcombine.high %v4304, %v4304
    %v4321 = vcombine.high %v4311, %v4311
    %v4322 = vcombine.high %v4318, %v4318
    %v4323 = vcombine.high %v4109, %v4109
    %v4325 = vunpack.c.l.s4 1966171168
    %v4326 = vunpack.c.0.s8 %v4325
    %v4327 = vlaneseq
    %v4328 = vshrl.u32 %v4327, 7
    %v4329 = vsub.s32 %v4326, %v4328
    %v4330 = vrot.slane %v4109, %v4329
    %v4332 = vunpack.c.l.s4 1966171168
    %v4333 = vunpack.c.0.s8 %v4332
    %v4334 = vlaneseq
    %v4335 = vshrl.u32 %v4334, 7
    %v4336 = vsub.s32 %v4333, %v4335
    %v4337 = vrot.slane %v4323, %v4336
    %v4338 = vcombine.high %v4330, %v4330
    %v4339 = vcombine.high %v4337, %v4337
    %v4341 = vunpack.c.l.s4 1966171168
    %v4342 = vunpack.c.0.s8 %v4341
    %v4343 = vlaneseq
    %v4344 = vshrl.u32 %v4343, 7
    %v4345 = vsub.s32 %v4342, %v4344
    %v4346 = vrot.slane %v4330, %v4345
    %v4348 = vunpack.c.l.s4 1966171168
    %v4349 = vunpack.c.0.s8 %v4348
    %v4350 = vlaneseq
    %v4351 = vshrl.u32 %v4350, 7
    %v4352 = vsub.s32 %v4349, %v4351
    %v4353 = vrot.slane %v4337, %v4352
    %v4355 = vunpack.c.l.s4 1966171168
    %v4356 = vunpack.c.0.s8 %v4355
    %v4357 = vlaneseq
    %v4358 = vshrl.u32 %v4357, 7
    %v4359 = vsub.s32 %v4356, %v4358
    %v4360 = vrot.slane %v4338, %v4359
    %v4362 = vunpack.c.l.s4 1966171168
    %v4363 = vunpack.c.0.s8 %v4362
    %v4364 = vlaneseq
    %v4365 = vshrl.u32 %v4364, 7
    %v4366 = vsub.s32 %v4363, %v4365
    %v4367 = vrot.slane %v4339, %v4366
    %v4368 = vcombine.high %v4346, %v4346
    %v4369 = vcombine.high %v4353, %v4353
    %v4370 = vcombine.high %v4360, %v4360
    %v4371 = vcombine.high %v4367, %v4367
    %v4372 = vcombine.high %v4110, %v4110
    %v4374 = vunpack.c.l.s4 1966171168
    %v4375 = vunpack.c.0.s8 %v4374
    %v4376 = vlaneseq
    %v4377 = vshrl.u32 %v4376, 7
    %v4378 = vsub.s32 %v4375, %v4377
    %v4379 = vrot.slane %v4110, %v4378
    %v4381 = vunpack.c.l.s4 1966171168
    %v4382 = vunpack.c.0.s8 %v4381
    %v4383 = vlaneseq
    %v4384 = vshrl.u32 %v4383, 7
    %v4385 = vsub.s32 %v4382, %v4384
    %v4386 = vrot.slane %v4372, %v4385
    %v4387 = vcombine.high %v4379, %v4379
    %v4388 = vcombine.high %v4386, %v4386
    %v4390 = vunpack.c.l.s4 1966171168
    %v4391 = vunpack.c.0.s8 %v4390
    %v4392 = vlaneseq
    %v4393 = vshrl.u32 %v4392, 7
    %v4394 = vsub.s32 %v4391, %v4393
    %v4395 = vrot.slane %v4379, %v4394
    %v4397 = vunpack.c.l.s4 1966171168
    %v4398 = vunpack.c.0.s8 %v4397
    %v4399 = vlaneseq
    %v4400 = vshrl.u32 %v4399, 7
    %v4401 = vsub.s32 %v4398, %v4400
    %v4402 = vrot.slane %v4386, %v4401
    %v4404 = vunpack.c.l.s4 1966171168
    %v4405 = vunpack.c.0.s8 %v4404
    %v4406 = vlaneseq
    %v4407 = vshrl.u32 %v4406, 7
    %v4408 = vsub.s32 %v4405, %v4407
    %v4409 = vrot.slane %v4387, %v4408
    %v4411 = vunpack.c.l.s4 1966171168
    %v4412 = vunpack.c.0.s8 %v4411
    %v4413 = vlaneseq
    %v4414 = vshrl.u32 %v4413, 7
    %v4415 = vsub.s32 %v4412, %v4414
    %v4416 = vrot.slane %v4388, %v4415
    %v4417 = vcombine.high %v4395, %v4395
    %v4418 = vcombine.high %v4402, %v4402
    %v4419 = vcombine.high %v4409, %v4409
    %v4420 = vcombine.high %v4416, %v4416
    %v4421 = vcombine.high %v4111, %v4111
    %v4423 = vunpack.c.l.s4 1966171168
    %v4424 = vunpack.c.0.s8 %v4423
    %v4425 = vlaneseq
    %v4426 = vshrl.u32 %v4425, 7
    %v4427 = vsub.s32 %v4424, %v4426
    %v4428 = vrot.slane %v4111, %v4427
    %v4430 = vunpack.c.l.s4 1966171168
    %v4431 = vunpack.c.0.s8 %v4430
    %v4432 = vlaneseq
    %v4433 = vshrl.u32 %v4432, 7
    %v4434 = vsub.s32 %v4431, %v4433
    %v4435 = vrot.slane %v4421, %v4434
    %v4436 = vcombine.high %v4428, %v4428
    %v4437 = vcombine.high %v4435, %v4435
    %v4439 = vunpack.c.l.s4 1966171168
    %v4440 = vunpack.c.0.s8 %v4439
    %v4441 = vlaneseq
    %v4442 = vshrl.u32 %v4441, 7
    %v4443 = vsub.s32 %v4440, %v4442
    %v4444 = vrot.slane %v4428, %v4443
    %v4446 = vunpack.c.l.s4 1966171168
    %v4447 = vunpack.c.0.s8 %v4446
    %v4448 = vlaneseq
    %v4449 = vshrl.u32 %v4448, 7
    %v4450 = vsub.s32 %v4447, %v4449
    %v4451 = vrot.slane %v4435, %v4450
    %v4453 = vunpack.c.l.s4 1966171168
    %v4454 = vunpack.c.0.s8 %v4453
    %v4455 = vlaneseq
    %v4456 = vshrl.u32 %v4455, 7
    %v4457 = vsub.s32 %v4454, %v4456
    %v4458 = vrot.slane %v4436, %v4457
    %v4460 = vunpack.c.l.s4 1966171168
    %v4461 = vunpack.c.0.s8 %v4460
    %v4462 = vlaneseq
    %v4463 = vshrl.u32 %v4462, 7
    %v4464 = vsub.s32 %v4461, %v4463
    %v4465 = vrot.slane %v4437, %v4464
    %v4466 = vcombine.high %v4444, %v4444
    %v4467 = vcombine.high %v4451, %v4451
    %v4468 = vcombine.high %v4458, %v4458
    %v4469 = vcombine.high %v4465, %v4465
    %v4470 = vcombine.high %v4112, %v4112
    %v4472 = vunpack.c.l.s4 1966171168
    %v4473 = vunpack.c.0.s8 %v4472
    %v4474 = vlaneseq
    %v4475 = vshrl.u32 %v4474, 7
    %v4476 = vsub.s32 %v4473, %v4475
    %v4477 = vrot.slane %v4112, %v4476
    %v4479 = vunpack.c.l.s4 1966171168
    %v4480 = vunpack.c.0.s8 %v4479
    %v4481 = vlaneseq
    %v4482 = vshrl.u32 %v4481, 7
    %v4483 = vsub.s32 %v4480, %v4482
    %v4484 = vrot.slane %v4470, %v4483
    %v4485 = vcombine.high %v4477, %v4477
    %v4486 = vcombine.high %v4484, %v4484
    %v4488 = vunpack.c.l.s4 1966171168
    %v4489 = vunpack.c.0.s8 %v4488
    %v4490 = vlaneseq
    %v4491 = vshrl.u32 %v4490, 7
    %v4492 = vsub.s32 %v4489, %v4491
    %v4493 = vrot.slane %v4477, %v4492
    %v4495 = vunpack.c.l.s4 1966171168
    %v4496 = vunpack.c.0.s8 %v4495
    %v4497 = vlaneseq
    %v4498 = vshrl.u32 %v4497, 7
    %v4499 = vsub.s32 %v4496, %v4498
    %v4500 = vrot.slane %v4484, %v4499
    %v4502 = vunpack.c.l.s4 1966171168
    %v4503 = vunpack.c.0.s8 %v4502
    %v4504 = vlaneseq
    %v4505 = vshrl.u32 %v4504, 7
    %v4506 = vsub.s32 %v4503, %v4505
    %v4507 = vrot.slane %v4485, %v4506
    %v4509 = vunpack.c.l.s4 1966171168
    %v4510 = vunpack.c.0.s8 %v4509
    %v4511 = vlaneseq
    %v4512 = vshrl.u32 %v4511, 7
    %v4513 = vsub.s32 %v4510, %v4512
    %v4514 = vrot.slane %v4486, %v4513
    %v4515 = vcombine.high %v4493, %v4493
    %v4516 = vcombine.high %v4500, %v4500
    %v4517 = vcombine.high %v4507, %v4507
    %v4518 = vcombine.high %v4514, %v4514
    %v4519 = vcombine.high %v4113, %v4113
    %v4521 = vunpack.c.l.s4 1966171168
    %v4522 = vunpack.c.0.s8 %v4521
    %v4523 = vlaneseq
    %v4524 = vshrl.u32 %v4523, 7
    %v4525 = vsub.s32 %v4522, %v4524
    %v4526 = vrot.slane %v4113, %v4525
    %v4528 = vunpack.c.l.s4 1966171168
    %v4529 = vunpack.c.0.s8 %v4528
    %v4530 = vlaneseq
    %v4531 = vshrl.u32 %v4530, 7
    %v4532 = vsub.s32 %v4529, %v4531
    %v4533 = vrot.slane %v4519, %v4532
    %v4534 = vcombine.high %v4526, %v4526
    %v4535 = vcombine.high %v4533, %v4533
    %v4537 = vunpack.c.l.s4 1966171168
    %v4538 = vunpack.c.0.s8 %v4537
    %v4539 = vlaneseq
    %v4540 = vshrl.u32 %v4539, 7
    %v4541 = vsub.s32 %v4538, %v4540
    %v4542 = vrot.slane %v4526, %v4541
    %v4544 = vunpack.c.l.s4 1966171168
    %v4545 = vunpack.c.0.s8 %v4544
    %v4546 = vlaneseq
    %v4547 = vshrl.u32 %v4546, 7
    %v4548 = vsub.s32 %v4545, %v4547
    %v4549 = vrot.slane %v4533, %v4548
    %v4551 = vunpack.c.l.s4 1966171168
    %v4552 = vunpack.c.0.s8 %v4551
    %v4553 = vlaneseq
    %v4554 = vshrl.u32 %v4553, 7
    %v4555 = vsub.s32 %v4552, %v4554
    %v4556 = vrot.slane %v4534, %v4555
    %v4558 = vunpack.c.l.s4 1966171168
    %v4559 = vunpack.c.0.s8 %v4558
    %v4560 = vlaneseq
    %v4561 = vshrl.u32 %v4560, 7
    %v4562 = vsub.s32 %v4559, %v4561
    %v4563 = vrot.slane %v4535, %v4562
    %v4564 = vcombine.high %v4542, %v4542
    %v4565 = vcombine.high %v4549, %v4549
    %v4566 = vcombine.high %v4556, %v4556
    %v4567 = vcombine.high %v4563, %v4563
    %v4568 = vcombine.high %v4114, %v4114
    %v4570 = vunpack.c.l.s4 1966171168
    %v4571 = vunpack.c.0.s8 %v4570
    %v4572 = vlaneseq
    %v4573 = vshrl.u32 %v4572, 7
    %v4574 = vsub.s32 %v4571, %v4573
    %v4575 = vrot.slane %v4114, %v4574
    %v4577 = vunpack.c.l.s4 1966171168
    %v4578 = vunpack.c.0.s8 %v4577
    %v4579 = vlaneseq
    %v4580 = vshrl.u32 %v4579, 7
    %v4581 = vsub.s32 %v4578, %v4580
    %v4582 = vrot.slane %v4568, %v4581
    %v4583 = vcombine.high %v4575, %v4575
    %v4584 = vcombine.high %v4582, %v4582
    %v4586 = vunpack.c.l.s4 1966171168
    %v4587 = vunpack.c.0.s8 %v4586
    %v4588 = vlaneseq
    %v4589 = vshrl.u32 %v4588, 7
    %v4590 = vsub.s32 %v4587, %v4589
    %v4591 = vrot.slane %v4575, %v4590
    %v4593 = vunpack.c.l.s4 1966171168
    %v4594 = vunpack.c.0.s8 %v4593
    %v4595 = vlaneseq
    %v4596 = vshrl.u32 %v4595, 7
    %v4597 = vsub.s32 %v4594, %v4596
    %v4598 = vrot.slane %v4582, %v4597
    %v4600 = vunpack.c.l.s4 1966171168
    %v4601 = vunpack.c.0.s8 %v4600
    %v4602 = vlaneseq
    %v4603 = vshrl.u32 %v4602, 7
    %v4604 = vsub.s32 %v4601, %v4603
    %v4605 = vrot.slane %v4583, %v4604
    %v4607 = vunpack.c.l.s4 1966171168
    %v4608 = vunpack.c.0.s8 %v4607
    %v4609 = vlaneseq
    %v4610 = vshrl.u32 %v4609, 7
    %v4611 = vsub.s32 %v4608, %v4610
    %v4612 = vrot.slane %v4584, %v4611
    %v4613 = vcombine.high %v4591, %v4591
    %v4614 = vcombine.high %v4598, %v4598
    %v4615 = vcombine.high %v4605, %v4605
    %v4616 = vcombine.high %v4612, %v4612
    %v4618 = vunpack.c.l.s4 1966171168
    %v4619 = vunpack.c.0.s8 %v4618
    %v4620 = vlaneseq
    %v4621 = vshrl.u32 %v4620, 7
    %v4622 = vsub.s32 %v4619, %v4621
    %v4623 = vrot.slane %v4115, %v4622
    %v4625 = vunpack.c.l.s4 1966171168
    %v4626 = vunpack.c.0.s8 %v4625
    %v4627 = vlaneseq
    %v4628 = vshrl.u32 %v4627, 7
    %v4629 = vsub.s32 %v4626, %v4628
    %v4630 = vrot.slane %v4623, %v4629
    %v4631 = vunpack.i.l.s16 %v4150
    %v4632 = vunpack.i.h.s16 %v4150
    %v4633 = vunpack.i.l.s16 %v4164
    %v4634 = vunpack.i.h.s16 %v4164
    %v4635 = vunpack.i.l.s16 %v4172
    %v4636 = vunpack.i.h.s16 %v4172
    %v4637 = vunpack.i.l.s16 %v4174
    %v4638 = vunpack.i.h.s16 %v4174
    %v4639 = vunpack.i.l.s16 %v4157
    %v4640 = vunpack.i.h.s16 %v4157
    %v4641 = vunpack.i.l.s16 %v4171
    %v4642 = vunpack.i.h.s16 %v4171
    %v4643 = vunpack.i.l.s16 %v4173
    %v4644 = vunpack.i.h.s16 %v4173
    %v4645 = vunpack.i.l.s16 %v4175
    %v4646 = vunpack.i.h.s16 %v4175
    %v4647 = vunpack.i.l.s16 %v4199
    %v4648 = vunpack.i.h.s16 %v4199
    %v4649 = vunpack.i.l.s16 %v4213
    %v4650 = vunpack.i.h.s16 %v4213
    %v4651 = vunpack.i.l.s16 %v4221
    %v4652 = vunpack.i.h.s16 %v4221
    %v4653 = vunpack.i.l.s16 %v4223
    %v4654 = vunpack.i.h.s16 %v4223
    %v4655 = vunpack.i.l.s16 %v4206
    %v4656 = vunpack.i.h.s16 %v4206
    %v4657 = vunpack.i.l.s16 %v4220
    %v4658 = vunpack.i.h.s16 %v4220
    %v4659 = vunpack.i.l.s16 %v4222
    %v4660 = vunpack.i.h.s16 %v4222
    %v4661 = vunpack.i.l.s16 %v4224
    %v4662 = vunpack.i.h.s16 %v4224
    %v4663 = vunpack.i.l.s16 %v4248
    %v4664 = vunpack.i.h.s16 %v4248
    %v4665 = vunpack.i.l.s16 %v4262
    %v4666 = vunpack.i.h.s16 %v4262
    %v4667 = vunpack.i.l.s16 %v4270
    %v4668 = vunpack.i.h.s16 %v4270
    %v4669 = vunpack.i.l.s16 %v4272
    %v4670 = vunpack.i.h.s16 %v4272
    %v4671 = vunpack.i.l.s16 %v4255
    %v4672 = vunpack.i.h.s16 %v4255
    %v4673 = vunpack.i.l.s16 %v4269
    %v4674 = vunpack.i.h.s16 %v4269
    %v4675 = vunpack.i.l.s16 %v4271
    %v4676 = vunpack.i.h.s16 %v4271
    %v4677 = vunpack.i.l.s16 %v4273
    %v4678 = vunpack.i.h.s16 %v4273
    %v4679 = vunpack.i.l.s16 %v4297
    %v4680 = vunpack.i.h.s16 %v4297
    %v4681 = vunpack.i.l.s16 %v4311
    %v4682 = vunpack.i.h.s16 %v4311
    %v4683 = vunpack.i.l.s16 %v4319
    %v4684 = vunpack.i.h.s16 %v4319
    %v4685 = vunpack.i.l.s16 %v4321
    %v4686 = vunpack.i.h.s16 %v4321
    %v4687 = vunpack.i.l.s16 %v4304
    %v4688 = vunpack.i.h.s16 %v4304
    %v4689 = vunpack.i.l.s16 %v4318
    %v4690 = vunpack.i.h.s16 %v4318
    %v4691 = vunpack.i.l.s16 %v4320
    %v4692 = vunpack.i.h.s16 %v4320
    %v4693 = vunpack.i.l.s16 %v4322
    %v4694 = vunpack.i.h.s16 %v4322
    %v4695 = vunpack.i.l.s16 %v4346
    %v4696 = vunpack.i.h.s16 %v4346
    %v4697 = vunpack.i.l.s16 %v4360
    %v4698 = vunpack.i.h.s16 %v4360
    %v4699 = vunpack.i.l.s16 %v4368
    %v4700 = vunpack.i.h.s16 %v4368
    %v4701 = vunpack.i.l.s16 %v4370
    %v4702 = vunpack.i.h.s16 %v4370
    %v4703 = vunpack.i.l.s16 %v4353
    %v4704 = vunpack.i.h.s16 %v4353
    %v4705 = vunpack.i.l.s16 %v4367
    %v4706 = vunpack.i.h.s16 %v4367
    %v4707 = vunpack.i.l.s16 %v4369
    %v4708 = vunpack.i.h.s16 %v4369
    %v4709 = vunpack.i.l.s16 %v4371
    %v4710 = vunpack.i.h.s16 %v4371
    %v4711 = vunpack.i.l.s16 %v4395
    %v4712 = vunpack.i.h.s16 %v4395
    %v4713 = vunpack.i.l.s16 %v4409
    %v4714 = vunpack.i.h.s16 %v4409
    %v4715 = vunpack.i.l.s16 %v4417
    %v4716 = vunpack.i.h.s16 %v4417
    %v4717 = vunpack.i.l.s16 %v4419
    %v4718 = vunpack.i.h.s16 %v4419
    %v4719 = vunpack.i.l.s16 %v4402
    %v4720 = vunpack.i.h.s16 %v4402
    %v4721 = vunpack.i.l.s16 %v4416
    %v4722 = vunpack.i.h.s16 %v4416
    %v4723 = vunpack.i.l.s16 %v4418
    %v4724 = vunpack.i.h.s16 %v4418
    %v4725 = vunpack.i.l.s16 %v4420
    %v4726 = vunpack.i.h.s16 %v4420
    %v4727 = vunpack.i.l.s16 %v4444
    %v4728 = vunpack.i.h.s16 %v4444
    %v4729 = vunpack.i.l.s16 %v4458
    %v4730 = vunpack.i.h.s16 %v4458
    %v4731 = vunpack.i.l.s16 %v4466
    %v4732 = vunpack.i.h.s16 %v4466
    %v4733 = vunpack.i.l.s16 %v4468
    %v4734 = vunpack.i.h.s16 %v4468
    %v4735 = vunpack.i.l.s16 %v4451
    %v4736 = vunpack.i.h.s16 %v4451
    %v4737 = vunpack.i.l.s16 %v4465
    %v4738 = vunpack.i.h.s16 %v4465
    %v4739 = vunpack.i.l.s16 %v4467
    %v4740 = vunpack.i.h.s16 %v4467
    %v4741 = vunpack.i.l.s16 %v4469
    %v4742 = vunpack.i.h.s16 %v4469
    %v4743 = vunpack.i.l.s16 %v4493
    %v4744 = vunpack.i.h.s16 %v4493
    %v4745 = vunpack.i.l.s16 %v4507
    %v4746 = vunpack.i.h.s16 %v4507
    %v4747 = vunpack.i.l.s16 %v4515
    %v4748 = vunpack.i.h.s16 %v4515
    %v4749 = vunpack.i.l.s16 %v4517
    %v4750 = vunpack.i.h.s16 %v4517
    %v4751 = vunpack.i.l.s16 %v4500
    %v4752 = vunpack.i.h.s16 %v4500
    %v4753 = vunpack.i.l.s16 %v4514
    %v4754 = vunpack.i.h.s16 %v4514
    %v4755 = vunpack.i.l.s16 %v4516
    %v4756 = vunpack.i.h.s16 %v4516
    %v4757 = vunpack.i.l.s16 %v4518
    %v4758 = vunpack.i.h.s16 %v4518
    %v4759 = vunpack.i.l.s16 %v4542
    %v4760 = vunpack.i.h.s16 %v4542
    %v4761 = vunpack.i.l.s16 %v4556
    %v4762 = vunpack.i.h.s16 %v4556
    %v4763 = vunpack.i.l.s16 %v4564
    %v4764 = vunpack.i.h.s16 %v4564
    %v4765 = vunpack.i.l.s16 %v4566
    %v4766 = vunpack.i.h.s16 %v4566
    %v4767 = vunpack.i.l.s16 %v4549
    %v4768 = vunpack.i.h.s16 %v4549
    %v4769 = vunpack.i.l.s16 %v4563
    %v4770 = vunpack.i.h.s16 %v4563
    %v4771 = vunpack.i.l.s16 %v4565
    %v4772 = vunpack.i.h.s16 %v4565
    %v4773 = vunpack.i.l.s16 %v4567
    %v4774 = vunpack.i.h.s16 %v4567
    %v4775 = vunpack.i.l.s16 %v4591
    %v4776 = vunpack.i.h.s16 %v4591
    %v4777 = vunpack.i.l.s16 %v4605
    %v4778 = vunpack.i.h.s16 %v4605
    %v4779 = vunpack.i.l.s16 %v4613
    %v4780 = vunpack.i.h.s16 %v4613
    %v4781 = vunpack.i.l.s16 %v4615
    %v4782 = vunpack.i.h.s16 %v4615
    %v4783 = vunpack.i.l.s16 %v4598
    %v4784 = vunpack.i.h.s16 %v4598
    %v4785 = vunpack.i.l.s16 %v4612
    %v4786 = vunpack.i.h.s16 %v4612
    %v4787 = vunpack.i.l.s16 %v4614
    %v4788 = vunpack.i.h.s16 %v4614
    %v4789 = vunpack.i.l.s16 %v4616
    %v4790 = vunpack.i.h.s16 %v4616
    %v4791 = vunpack.i.l.s16 %v4630
    %v4792 = vunpack.i.h.s16 %v4630
    %v4793 = vpack.i.b16 %v4632, %v4631
    %v4794 = vpack.i.b16 %v4634, %v4633
    %v4795 = vpack.i.b16 %v4636, %v4635
    %v4796 = vpack.i.b16 %v4638, %v4637
    %v4798 = vpack.i.b16 %v4641, %v4640
    %v4799 = vpack.i.b16 %v4643, %v4642
    %v4800 = vpack.i.b16 %v4645, %v4644
    %v4801 = vpack.i.b16 %v4647, %v4646
    %v4803 = vpack.i.b16 %v4650, %v4649
    %v4804 = vpack.i.b16 %v4652, %v4651
    %v4805 = vpack.i.b16 %v4654, %v4653
    %v4806 = vpack.i.b16 %v4656, %v4655
    %v4808 = vpack.i.b16 %v4659, %v4658
    %v4809 = vpack.i.b16 %v4661, %v4660
    %v4810 = vpack.i.b16 %v4663, %v4662
    %v4811 = vpack.i.b16 %v4665, %v4664
    %v4813 = vpack.i.b16 %v4668, %v4667
    %v4814 = vpack.i.b16 %v4670, %v4669
    %v4815 = vpack.i.b16 %v4672, %v4671
    %v4816 = vpack.i.b16 %v4674, %v4673
    %v4818 = vpack.i.b16 %v4677, %v4676
    %v4819 = vpack.i.b16 %v4679, %v4678
    %v4820 = vpack.i.b16 %v4681, %v4680
    %v4821 = vpack.i.b16 %v4683, %v4682
    %v4823 = vpack.i.b16 %v4686, %v4685
    %v4824 = vpack.i.b16 %v4688, %v4687
    %v4825 = vpack.i.b16 %v4690, %v4689
    %v4826 = vpack.i.b16 %v4692, %v4691
    %v4828 = vpack.i.b16 %v4695, %v4694
    %v4829 = vpack.i.b16 %v4697, %v4696
    %v4830 = vpack.i.b16 %v4699, %v4698
    %v4831 = vpack.i.b16 %v4701, %v4700
    %v4833 = vpack.i.b16 %v4704, %v4703
    %v4834 = vpack.i.b16 %v4706, %v4705
    %v4835 = vpack.i.b16 %v4708, %v4707
    %v4836 = vpack.i.b16 %v4710, %v4709
    %v4838 = vpack.i.b16 %v4713, %v4712
    %v4839 = vpack.i.b16 %v4715, %v4714
    %v4840 = vpack.i.b16 %v4717, %v4716
    %v4841 = vpack.i.b16 %v4719, %v4718
    %v4843 = vpack.i.b16 %v4722, %v4721
    %v4844 = vpack.i.b16 %v4724, %v4723
    %v4845 = vpack.i.b16 %v4726, %v4725
    %v4846 = vpack.i.b16 %v4728, %v4727
    %v4848 = vpack.i.b16 %v4731, %v4730
    %v4849 = vpack.i.b16 %v4733, %v4732
    %v4850 = vpack.i.b16 %v4735, %v4734
    %v4851 = vpack.i.b16 %v4737, %v4736
    %v4853 = vpack.i.b16 %v4740, %v4739
    %v4854 = vpack.i.b16 %v4742, %v4741
    %v4855 = vpack.i.b16 %v4744, %v4743
    %v4856 = vpack.i.b16 %v4746, %v4745
    %v4858 = vpack.i.b16 %v4749, %v4748
    %v4859 = vpack.i.b16 %v4751, %v4750
    %v4860 = vpack.i.b16 %v4753, %v4752
    %v4861 = vpack.i.b16 %v4755, %v4754
    %v4863 = vpack.i.b16 %v4758, %v4757
    %v4864 = vpack.i.b16 %v4760, %v4759
    %v4865 = vpack.i.b16 %v4762, %v4761
    %v4866 = vpack.i.b16 %v4764, %v4763
    %v4868 = vpack.i.b16 %v4767, %v4766
    %v4869 = vpack.i.b16 %v4769, %v4768
    %v4870 = vpack.i.b16 %v4771, %v4770
    %v4871 = vpack.i.b16 %v4773, %v4772
    %v4873 = vpack.i.b16 %v4776, %v4775
    %v4874 = vpack.i.b16 %v4778, %v4777
    %v4875 = vpack.i.b16 %v4780, %v4779
    %v4876 = vpack.i.b16 %v4782, %v4781
    %v4878 = vpack.i.b16 %v4785, %v4784
    %v4879 = vpack.i.b16 %v4787, %v4786
    %v4880 = vpack.i.b16 %v4789, %v4788
    %v4881 = vpack.i.b16 %v4791, %v4790
    %v4883 = vcombine.low %v4793, %v4795
    %v4884 = vcombine.low %v4794, %v4796
    %v4886 = vunpack.c.l.s4 1935823168
    %v4887 = vunpack.c.0.s8 %v4886
    %v4888 = vlaneseq
    %v4889 = vshrl.u32 %v4888, 7
    %v4890 = vsub.s32 %v4887, %v4889
    %v4891 = vrot.slane %v4883, %v4890
    %v4893 = vunpack.c.l.s4 1935823168
    %v4894 = vunpack.c.0.s8 %v4893
    %v4895 = vlaneseq
    %v4896 = vshrl.u32 %v4895, 7
    %v4897 = vsub.s32 %v4894, %v4896
    %v4898 = vrot.slane %v4884, %v4897
    %v4899 = vcombine.low %v4891, %v4898
    %v4901 = vunpack.c.l.s4 1935823168
    %v4902 = vunpack.c.0.s8 %v4901
    %v4903 = vlaneseq
    %v4904 = vshrl.u32 %v4903, 7
    %v4905 = vsub.s32 %v4902, %v4904
    %v4906 = vrot.slane %v4899, %v4905
    %v4908 = vunpack.c.l.s4 1935823168
    %v4909 = vunpack.c.0.s8 %v4908
    %v4910 = vlaneseq
    %v4911 = vshrl.u32 %v4910, 7
    %v4912 = vsub.s32 %v4909, %v4911
    %v4913 = vrot.slane %v4639, %v4912
    %v4915 = vunpack.c.l.s4 1935823168
    %v4916 = vunpack.c.0.s8 %v4915
    %v4917 = vlaneseq
    %v4918 = vshrl.u32 %v4917, 7
    %v4919 = vsub.s32 %v4916, %v4918
    %v4920 = vrot.slane %v4913, %v4919
    %v4921 = vcombine.low %v4798, %v4800
    %v4922 = vcombine.low %v4799, %v4801
    %v4924 = vunpack.c.l.s4 1935823168
    %v4925 = vunpack.c.0.s8 %v4924
    %v4926 = vlaneseq
    %v4927 = vshrl.u32 %v4926, 7
    %v4928 = vsub.s32 %v4925, %v4927
    %v4929 = vrot.slane %v4921, %v4928
    %v4931 = vunpack.c.l.s4 1935823168
    %v4932 = vunpack.c.0.s8 %v4931
    %v4933 = vlaneseq
    %v4934 = vshrl.u32 %v4933, 7
    %v4935 = vsub.s32 %v4932, %v4934
    %v4936 = vrot.slane %v4922, %v4935
    %v4937 = vcombine.low %v4929, %v4936
    %v4939 = vunpack.c.l.s4 1935823168
    %v4940 = vunpack.c.0.s8 %v4939
    %v4941 = vlaneseq
    %v4942 = vshrl.u32 %v4941, 7
    %v4943 = vsub.s32 %v4940, %v4942
    %v4944 = vrot.slane %v4937, %v4943
    %v4946 = vunpack.c.l.s4 1935823168
    %v4947 = vunpack.c.0.s8 %v4946
    %v4948 = vlaneseq
    %v4949 = vshrl.u32 %v4948, 7
    %v4950 = vsub.s32 %v4947, %v4949
    %v4951 = vrot.slane %v4648, %v4950
    %v4953 = vunpack.c.l.s4 1935823168
    %v4954 = vunpack.c.0.s8 %v4953
    %v4955 = vlaneseq
    %v4956 = vshrl.u32 %v4955, 7
    %v4957 = vsub.s32 %v4954, %v4956
    %v4958 = vrot.slane %v4951, %v4957
    %v4959 = vcombine.low %v4803, %v4805
    %v4960 = vcombine.low %v4804, %v4806
    %v4962 = vunpack.c.l.s4 1935823168
    %v4963 = vunpack.c.0.s8 %v4962
    %v4964 = vlaneseq
    %v4965 = vshrl.u32 %v4964, 7
    %v4966 = vsub.s32 %v4963, %v4965
    %v4967 = vrot.slane %v4959, %v4966
    %v4969 = vunpack.c.l.s4 1935823168
    %v4970 = vunpack.c.0.s8 %v4969
    %v4971 = vlaneseq
    %v4972 = vshrl.u32 %v4971, 7
    %v4973 = vsub.s32 %v4970, %v4972
    %v4974 = vrot.slane %v4960, %v4973
    %v4975 = vcombine.low %v4967, %v4974
    %v4977 = vunpack.c.l.s4 1935823168
    %v4978 = vunpack.c.0.s8 %v4977
    %v4979 = vlaneseq
    %v4980 = vshrl.u32 %v4979, 7
    %v4981 = vsub.s32 %v4978, %v4980
    %v4982 = vrot.slane %v4975, %v4981
    %v4984 = vunpack.c.l.s4 1935823168
    %v4985 = vunpack.c.0.s8 %v4984
    %v4986 = vlaneseq
    %v4987 = vshrl.u32 %v4986, 7
    %v4988 = vsub.s32 %v4985, %v4987
    %v4989 = vrot.slane %v4657, %v4988
    %v4991 = vunpack.c.l.s4 1935823168
    %v4992 = vunpack.c.0.s8 %v4991
    %v4993 = vlaneseq
    %v4994 = vshrl.u32 %v4993, 7
    %v4995 = vsub.s32 %v4992, %v4994
    %v4996 = vrot.slane %v4989, %v4995
    %v4997 = vcombine.low %v4808, %v4810
    %v4998 = vcombine.low %v4809, %v4811
    %v5000 = vunpack.c.l.s4 1935823168
    %v5001 = vunpack.c.0.s8 %v5000
    %v5002 = vlaneseq
    %v5003 = vshrl.u32 %v5002, 7
    %v5004 = vsub.s32 %v5001, %v5003
    %v5005 = vrot.slane %v4997, %v5004
    %v5007 = vunpack.c.l.s4 1935823168
    %v5008 = vunpack.c.0.s8 %v5007
    %v5009 = vlaneseq
    %v5010 = vshrl.u32 %v5009, 7
    %v5011 = vsub.s32 %v5008, %v5010
    %v5012 = vrot.slane %v4998, %v5011
    %v5013 = vcombine.low %v5005, %v5012
    %v5015 = vunpack.c.l.s4 1935823168
    %v5016 = vunpack.c.0.s8 %v5015
    %v5017 = vlaneseq
    %v5018 = vshrl.u32 %v5017, 7
    %v5019 = vsub.s32 %v5016, %v5018
    %v5020 = vrot.slane %v5013, %v5019
    %v5022 = vunpack.c.l.s4 1935823168
    %v5023 = vunpack.c.0.s8 %v5022
    %v5024 = vlaneseq
    %v5025 = vshrl.u32 %v5024, 7
    %v5026 = vsub.s32 %v5023, %v5025
    %v5027 = vrot.slane %v4666, %v5026
    %v5029 = vunpack.c.l.s4 1935823168
    %v5030 = vunpack.c.0.s8 %v5029
    %v5031 = vlaneseq
    %v5032 = vshrl.u32 %v5031, 7
    %v5033 = vsub.s32 %v5030, %v5032
    %v5034 = vrot.slane %v5027, %v5033
    %v5035 = vcombine.low %v4813, %v4815
    %v5036 = vcombine.low %v4814, %v4816
    %v5038 = vunpack.c.l.s4 1935823168
    %v5039 = vunpack.c.0.s8 %v5038
    %v5040 = vlaneseq
    %v5041 = vshrl.u32 %v5040, 7
    %v5042 = vsub.s32 %v5039, %v5041
    %v5043 = vrot.slane %v5035, %v5042
    %v5045 = vunpack.c.l.s4 1935823168
    %v5046 = vunpack.c.0.s8 %v5045
    %v5047 = vlaneseq
    %v5048 = vshrl.u32 %v5047, 7
    %v5049 = vsub.s32 %v5046, %v5048
    %v5050 = vrot.slane %v5036, %v5049
    %v5051 = vcombine.low %v5043, %v5050
    %v5053 = vunpack.c.l.s4 1935823168
    %v5054 = vunpack.c.0.s8 %v5053
    %v5055 = vlaneseq
    %v5056 = vshrl.u32 %v5055, 7
    %v5057 = vsub.s32 %v5054, %v5056
    %v5058 = vrot.slane %v5051, %v5057
    %v5060 = vunpack.c.l.s4 1935823168
    %v5061 = vunpack.c.0.s8 %v5060
    %v5062 = vlaneseq
    %v5063 = vshrl.u32 %v5062, 7
    %v5064 = vsub.s32 %v5061, %v5063
    %v5065 = vrot.slane %v4675, %v5064
    %v5067 = vunpack.c.l.s4 1935823168
    %v5068 = vunpack.c.0.s8 %v5067
    %v5069 = vlaneseq
    %v5070 = vshrl.u32 %v5069, 7
    %v5071 = vsub.s32 %v5068, %v5070
    %v5072 = vrot.slane %v5065, %v5071
    %v5073 = vcombine.low %v4818, %v4820
    %v5074 = vcombine.low %v4819, %v4821
    %v5076 = vunpack.c.l.s4 1935823168
    %v5077 = vunpack.c.0.s8 %v5076
    %v5078 = vlaneseq
    %v5079 = vshrl.u32 %v5078, 7
    %v5080 = vsub.s32 %v5077, %v5079
    %v5081 = vrot.slane %v5073, %v5080
    %v5083 = vunpack.c.l.s4 1935823168
    %v5084 = vunpack.c.0.s8 %v5083
    %v5085 = vlaneseq
    %v5086 = vshrl.u32 %v5085, 7
    %v5087 = vsub.s32 %v5084, %v5086
    %v5088 = vrot.slane %v5074, %v5087
    %v5089 = vcombine.low %v5081, %v5088
    %v5091 = vunpack.c.l.s4 1935823168
    %v5092 = vunpack.c.0.s8 %v5091
    %v5093 = vlaneseq
    %v5094 = vshrl.u32 %v5093, 7
    %v5095 = vsub.s32 %v5092, %v5094
    %v5096 = vrot.slane %v5089, %v5095
    %v5098 = vunpack.c.l.s4 1935823168
    %v5099 = vunpack.c.0.s8 %v5098
    %v5100 = vlaneseq
    %v5101 = vshrl.u32 %v5100, 7
    %v5102 = vsub.s32 %v5099, %v5101
    %v5103 = vrot.slane %v4684, %v5102
    %v5105 = vunpack.c.l.s4 1935823168
    %v5106 = vunpack.c.0.s8 %v5105
    %v5107 = vlaneseq
    %v5108 = vshrl.u32 %v5107, 7
    %v5109 = vsub.s32 %v5106, %v5108
    %v5110 = vrot.slane %v5103, %v5109
    %v5111 = vcombine.low %v4823, %v4825
    %v5112 = vcombine.low %v4824, %v4826
    %v5114 = vunpack.c.l.s4 1935823168
    %v5115 = vunpack.c.0.s8 %v5114
    %v5116 = vlaneseq
    %v5117 = vshrl.u32 %v5116, 7
    %v5118 = vsub.s32 %v5115, %v5117
    %v5119 = vrot.slane %v5111, %v5118
    %v5121 = vunpack.c.l.s4 1935823168
    %v5122 = vunpack.c.0.s8 %v5121
    %v5123 = vlaneseq
    %v5124 = vshrl.u32 %v5123, 7
    %v5125 = vsub.s32 %v5122, %v5124
    %v5126 = vrot.slane %v5112, %v5125
    %v5127 = vcombine.low %v5119, %v5126
    %v5129 = vunpack.c.l.s4 1935823168
    %v5130 = vunpack.c.0.s8 %v5129
    %v5131 = vlaneseq
    %v5132 = vshrl.u32 %v5131, 7
    %v5133 = vsub.s32 %v5130, %v5132
    %v5134 = vrot.slane %v5127, %v5133
    %v5136 = vunpack.c.l.s4 1935823168
    %v5137 = vunpack.c.0.s8 %v5136
    %v5138 = vlaneseq
    %v5139 = vshrl.u32 %v5138, 7
    %v5140 = vsub.s32 %v5137, %v5139
    %v5141 = vrot.slane %v4693, %v5140
    %v5143 = vunpack.c.l.s4 1935823168
    %v5144 = vunpack.c.0.s8 %v5143
    %v5145 = vlaneseq
    %v5146 = vshrl.u32 %v5145, 7
    %v5147 = vsub.s32 %v5144, %v5146
    %v5148 = vrot.slane %v5141, %v5147
    %v5149 = vcombine.low %v4828, %v4830
    %v5150 = vcombine.low %v4829, %v4831
    %v5152 = vunpack.c.l.s4 1935823168
    %v5153 = vunpack.c.0.s8 %v5152
    %v5154 = vlaneseq
    %v5155 = vshrl.u32 %v5154, 7
    %v5156 = vsub.s32 %v5153, %v5155
    %v5157 = vrot.slane %v5149, %v5156
    %v5159 = vunpack.c.l.s4 1935823168
    %v5160 = vunpack.c.0.s8 %v5159
    %v5161 = vlaneseq
    %v5162 = vshrl.u32 %v5161, 7
    %v5163 = vsub.s32 %v5160, %v5162
    %v5164 = vrot.slane %v5150, %v5163
    %v5165 = vcombine.low %v5157, %v5164
    %v5167 = vunpack.c.l.s4 1935823168
    %v5168 = vunpack.c.0.s8 %v5167
    %v5169 = vlaneseq
    %v5170 = vshrl.u32 %v5169, 7
    %v5171 = vsub.s32 %v5168, %v5170
    %v5172 = vrot.slane %v5165, %v5171
    %v5174 = vunpack.c.l.s4 1935823168
    %v5175 = vunpack.c.0.s8 %v5174
    %v5176 = vlaneseq
    %v5177 = vshrl.u32 %v5176, 7
    %v5178 = vsub.s32 %v5175, %v5177
    %v5179 = vrot.slane %v4702, %v5178
    %v5181 = vunpack.c.l.s4 1935823168
    %v5182 = vunpack.c.0.s8 %v5181
    %v5183 = vlaneseq
    %v5184 = vshrl.u32 %v5183, 7
    %v5185 = vsub.s32 %v5182, %v5184
    %v5186 = vrot.slane %v5179, %v5185
    %v5187 = vcombine.low %v4833, %v4835
    %v5188 = vcombine.low %v4834, %v4836
    %v5190 = vunpack.c.l.s4 1935823168
    %v5191 = vunpack.c.0.s8 %v5190
    %v5192 = vlaneseq
    %v5193 = vshrl.u32 %v5192, 7
    %v5194 = vsub.s32 %v5191, %v5193
    %v5195 = vrot.slane %v5187, %v5194
    %v5197 = vunpack.c.l.s4 1935823168
    %v5198 = vunpack.c.0.s8 %v5197
    %v5199 = vlaneseq
    %v5200 = vshrl.u32 %v5199, 7
    %v5201 = vsub.s32 %v5198, %v5200
    %v5202 = vrot.slane %v5188, %v5201
    %v5203 = vcombine.low %v5195, %v5202
    %v5205 = vunpack.c.l.s4 1935823168
    %v5206 = vunpack.c.0.s8 %v5205
    %v5207 = vlaneseq
    %v5208 = vshrl.u32 %v5207, 7
    %v5209 = vsub.s32 %v5206, %v5208
    %v5210 = vrot.slane %v5203, %v5209
    %v5212 = vunpack.c.l.s4 1935823168
    %v5213 = vunpack.c.0.s8 %v5212
    %v5214 = vlaneseq
    %v5215 = vshrl.u32 %v5214, 7
    %v5216 = vsub.s32 %v5213, %v5215
    %v5217 = vrot.slane %v4711, %v5216
    %v5219 = vunpack.c.l.s4 1935823168
    %v5220 = vunpack.c.0.s8 %v5219
    %v5221 = vlaneseq
    %v5222 = vshrl.u32 %v5221, 7
    %v5223 = vsub.s32 %v5220, %v5222
    %v5224 = vrot.slane %v5217, %v5223
    %v5225 = vcombine.low %v4838, %v4840
    %v5226 = vcombine.low %v4839, %v4841
    %v5228 = vunpack.c.l.s4 1935823168
    %v5229 = vunpack.c.0.s8 %v5228
    %v5230 = vlaneseq
    %v5231 = vshrl.u32 %v5230, 7
    %v5232 = vsub.s32 %v5229, %v5231
    %v5233 = vrot.slane %v5225, %v5232
    %v5235 = vunpack.c.l.s4 1935823168
    %v5236 = vunpack.c.0.s8 %v5235
    %v5237 = vlaneseq
    %v5238 = vshrl.u32 %v5237, 7
    %v5239 = vsub.s32 %v5236, %v5238
    %v5240 = vrot.slane %v5226, %v5239
    %v5241 = vcombine.low %v5233, %v5240
    %v5243 = vunpack.c.l.s4 1935823168
    %v5244 = vunpack.c.0.s8 %v5243
    %v5245 = vlaneseq
    %v5246 = vshrl.u32 %v5245, 7
    %v5247 = vsub.s32 %v5244, %v5246
    %v5248 = vrot.slane %v5241, %v5247
    %v5250 = vunpack.c.l.s4 1935823168
    %v5251 = vunpack.c.0.s8 %v5250
    %v5252 = vlaneseq
    %v5253 = vshrl.u32 %v5252, 7
    %v5254 = vsub.s32 %v5251, %v5253
    %v5255 = vrot.slane %v4720, %v5254
    %v5257 = vunpack.c.l.s4 1935823168
    %v5258 = vunpack.c.0.s8 %v5257
    %v5259 = vlaneseq
    %v5260 = vshrl.u32 %v5259, 7
    %v5261 = vsub.s32 %v5258, %v5260
    %v5262 = vrot.slane %v5255, %v5261
    %v5263 = vcombine.low %v4843, %v4845
    %v5264 = vcombine.low %v4844, %v4846
    %v5266 = vunpack.c.l.s4 1935823168
    %v5267 = vunpack.c.0.s8 %v5266
    %v5268 = vlaneseq
    %v5269 = vshrl.u32 %v5268, 7
    %v5270 = vsub.s32 %v5267, %v5269
    %v5271 = vrot.slane %v5263, %v5270
    %v5273 = vunpack.c.l.s4 1935823168
    %v5274 = vunpack.c.0.s8 %v5273
    %v5275 = vlaneseq
    %v5276 = vshrl.u32 %v5275, 7
    %v5277 = vsub.s32 %v5274, %v5276
    %v5278 = vrot.slane %v5264, %v5277
    %v5279 = vcombine.low %v5271, %v5278
    %v5281 = vunpack.c.l.s4 1935823168
    %v5282 = vunpack.c.0.s8 %v5281
    %v5283 = vlaneseq
    %v5284 = vshrl.u32 %v5283, 7
    %v5285 = vsub.s32 %v5282, %v5284
    %v5286 = vrot.slane %v5279, %v5285
    %v5288 = vunpack.c.l.s4 1935823168
    %v5289 = vunpack.c.0.s8 %v5288
    %v5290 = vlaneseq
    %v5291 = vshrl.u32 %v5290, 7
    %v5292 = vsub.s32 %v5289, %v5291
    %v5293 = vrot.slane %v4729, %v5292
    %v5295 = vunpack.c.l.s4 1935823168
    %v5296 = vunpack.c.0.s8 %v5295
    %v5297 = vlaneseq
    %v5298 = vshrl.u32 %v5297, 7
    %v5299 = vsub.s32 %v5296, %v5298
    %v5300 = vrot.slane %v5293, %v5299
    %v5301 = vcombine.low %v4848, %v4850
    %v5302 = vcombine.low %v4849, %v4851
    %v5304 = vunpack.c.l.s4 1935823168
    %v5305 = vunpack.c.0.s8 %v5304
    %v5306 = vlaneseq
    %v5307 = vshrl.u32 %v5306, 7
    %v5308 = vsub.s32 %v5305, %v5307
    %v5309 = vrot.slane %v5301, %v5308
    %v5311 = vunpack.c.l.s4 1935823168
    %v5312 = vunpack.c.0.s8 %v5311
    %v5313 = vlaneseq
    %v5314 = vshrl.u32 %v5313, 7
    %v5315 = vsub.s32 %v5312, %v5314
    %v5316 = vrot.slane %v5302, %v5315
    %v5317 = vcombine.low %v5309, %v5316
    %v5319 = vunpack.c.l.s4 1935823168
    %v5320 = vunpack.c.0.s8 %v5319
    %v5321 = vlaneseq
    %v5322 = vshrl.u32 %v5321, 7
    %v5323 = vsub.s32 %v5320, %v5322
    %v5324 = vrot.slane %v5317, %v5323
    %v5326 = vunpack.c.l.s4 1935823168
    %v5327 = vunpack.c.0.s8 %v5326
    %v5328 = vlaneseq
    %v5329 = vshrl.u32 %v5328, 7
    %v5330 = vsub.s32 %v5327, %v5329
    %v5331 = vrot.slane %v4738, %v5330
    %v5333 = vunpack.c.l.s4 1935823168
    %v5334 = vunpack.c.0.s8 %v5333
    %v5335 = vlaneseq
    %v5336 = vshrl.u32 %v5335, 7
    %v5337 = vsub.s32 %v5334, %v5336
    %v5338 = vrot.slane %v5331, %v5337
    %v5339 = vcombine.low %v4853, %v4855
    %v5340 = vcombine.low %v4854, %v4856
    %v5342 = vunpack.c.l.s4 1935823168
    %v5343 = vunpack.c.0.s8 %v5342
    %v5344 = vlaneseq
    %v5345 = vshrl.u32 %v5344, 7
    %v5346 = vsub.s32 %v5343, %v5345
    %v5347 = vrot.slane %v5339, %v5346
    %v5349 = vunpack.c.l.s4 1935823168
    %v5350 = vunpack.c.0.s8 %v5349
    %v5351 = vlaneseq
    %v5352 = vshrl.u32 %v5351, 7
    %v5353 = vsub.s32 %v5350, %v5352
    %v5354 = vrot.slane %v5340, %v5353
    %v5355 = vcombine.low %v5347, %v5354
    %v5357 = vunpack.c.l.s4 1935823168
    %v5358 = vunpack.c.0.s8 %v5357
    %v5359 = vlaneseq
    %v5360 = vshrl.u32 %v5359, 7
    %v5361 = vsub.s32 %v5358, %v5360
    %v5362 = vrot.slane %v5355, %v5361
    %v5364 = vunpack.c.l.s4 1935823168
    %v5365 = vunpack.c.0.s8 %v5364
    %v5366 = vlaneseq
    %v5367 = vshrl.u32 %v5366, 7
    %v5368 = vsub.s32 %v5365, %v5367
    %v5369 = vrot.slane %v4747, %v5368
    %v5371 = vunpack.c.l.s4 1935823168
    %v5372 = vunpack.c.0.s8 %v5371
    %v5373 = vlaneseq
    %v5374 = vshrl.u32 %v5373, 7
    %v5375 = vsub.s32 %v5372, %v5374
    %v5376 = vrot.slane %v5369, %v5375
    %v5377 = vcombine.low %v4858, %v4860
    %v5378 = vcombine.low %v4859, %v4861
    %v5380 = vunpack.c.l.s4 1935823168
    %v5381 = vunpack.c.0.s8 %v5380
    %v5382 = vlaneseq
    %v5383 = vshrl.u32 %v5382, 7
    %v5384 = vsub.s32 %v5381, %v5383
    %v5385 = vrot.slane %v5377, %v5384
    %v5387 = vunpack.c.l.s4 1935823168
    %v5388 = vunpack.c.0.s8 %v5387
    %v5389 = vlaneseq
    %v5390 = vshrl.u32 %v5389, 7
    %v5391 = vsub.s32 %v5388, %v5390
    %v5392 = vrot.slane %v5378, %v5391
    %v5393 = vcombine.low %v5385, %v5392
    %v5395 = vunpack.c.l.s4 1935823168
    %v5396 = vunpack.c.0.s8 %v5395
    %v5397 = vlaneseq
    %v5398 = vshrl.u32 %v5397, 7
    %v5399 = vsub.s32 %v5396, %v5398
    %v5400 = vrot.slane %v5393, %v5399
    %v5402 = vunpack.c.l.s4 1935823168
    %v5403 = vunpack.c.0.s8 %v5402
    %v5404 = vlaneseq
    %v5405 = vshrl.u32 %v5404, 7
    %v5406 = vsub.s32 %v5403, %v5405
    %v5407 = vrot.slane %v4756, %v5406
    %v5409 = vunpack.c.l.s4 1935823168
    %v5410 = vunpack.c.0.s8 %v5409
    %v5411 = vlaneseq
    %v5412 = vshrl.u32 %v5411, 7
    %v5413 = vsub.s32 %v5410, %v5412
    %v5414 = vrot.slane %v5407, %v5413
    %v5415 = vcombine.low %v4863, %v4865
    %v5416 = vcombine.low %v4864, %v4866
    %v5418 = vunpack.c.l.s4 1935823168
    %v5419 = vunpack.c.0.s8 %v5418
    %v5420 = vlaneseq
    %v5421 = vshrl.u32 %v5420, 7
    %v5422 = vsub.s32 %v5419, %v5421
    %v5423 = vrot.slane %v5415, %v5422
    %v5425 = vunpack.c.l.s4 1935823168
    %v5426 = vunpack.c.0.s8 %v5425
    %v5427 = vlaneseq
    %v5428 = vshrl.u32 %v5427, 7
    %v5429 = vsub.s32 %v5426, %v5428
    %v5430 = vrot.slane %v5416, %v5429
    %v5431 = vcombine.low %v5423, %v5430
    %v5433 = vunpack.c.l.s4 1935823168
    %v5434 = vunpack.c.0.s8 %v5433
    %v5435 = vlaneseq
    %v5436 = vshrl.u32 %v5435, 7
    %v5437 = vsub.s32 %v5434, %v5436
    %v5438 = vrot.slane %v5431, %v5437
    %v5440 = vunpack.c.l.s4 1935823168
    %v5441 = vunpack.c.0.s8 %v5440
    %v5442 = vlaneseq
    %v5443 = vshrl.u32 %v5442, 7
    %v5444 = vsub.s32 %v5441, %v5443
    %v5445 = vrot.slane %v4765, %v5444
    %v5447 = vunpack.c.l.s4 1935823168
    %v5448 = vunpack.c.0.s8 %v5447
    %v5449 = vlaneseq
    %v5450 = vshrl.u32 %v5449, 7
    %v5451 = vsub.s32 %v5448, %v5450
    %v5452 = vrot.slane %v5445, %v5451
    %v5453 = vcombine.low %v4868, %v4870
    %v5454 = vcombine.low %v4869, %v4871
    %v5456 = vunpack.c.l.s4 1935823168
    %v5457 = vunpack.c.0.s8 %v5456
    %v5458 = vlaneseq
    %v5459 = vshrl.u32 %v5458, 7
    %v5460 = vsub.s32 %v5457, %v5459
    %v5461 = vrot.slane %v5453, %v5460
    %v5463 = vunpack.c.l.s4 1935823168
    %v5464 = vunpack.c.0.s8 %v5463
    %v5465 = vlaneseq
    %v5466 = vshrl.u32 %v5465, 7
    %v5467 = vsub.s32 %v5464, %v5466
    %v5468 = vrot.slane %v5454, %v5467
    %v5469 = vcombine.low %v5461, %v5468
    %v5471 = vunpack.c.l.s4 1935823168
    %v5472 = vunpack.c.0.s8 %v5471
    %v5473 = vlaneseq
    %v5474 = vshrl.u32 %v5473, 7
    %v5475 = vsub.s32 %v5472, %v5474
    %v5476 = vrot.slane %v5469, %v5475
    %v5478 = vunpack.c.l.s4 1935823168
    %v5479 = vunpack.c.0.s8 %v5478
    %v5480 = vlaneseq
    %v5481 = vshrl.u32 %v5480, 7
    %v5482 = vsub.s32 %v5479, %v5481
    %v5483 = vrot.slane %v4774, %v5482
    %v5485 = vunpack.c.l.s4 1935823168
    %v5486 = vunpack.c.0.s8 %v5485
    %v5487 = vlaneseq
    %v5488 = vshrl.u32 %v5487, 7
    %v5489 = vsub.s32 %v5486, %v5488
    %v5490 = vrot.slane %v5483, %v5489
    %v5491 = vcombine.low %v4873, %v4875
    %v5492 = vcombine.low %v4874, %v4876
    %v5494 = vunpack.c.l.s4 1935823168
    %v5495 = vunpack.c.0.s8 %v5494
    %v5496 = vlaneseq
    %v5497 = vshrl.u32 %v5496, 7
    %v5498 = vsub.s32 %v5495, %v5497
    %v5499 = vrot.slane %v5491, %v5498
    %v5501 = vunpack.c.l.s4 1935823168
    %v5502 = vunpack.c.0.s8 %v5501
    %v5503 = vlaneseq
    %v5504 = vshrl.u32 %v5503, 7
    %v5505 = vsub.s32 %v5502, %v5504
    %v5506 = vrot.slane %v5492, %v5505
    %v5507 = vcombine.low %v5499, %v5506
    %v5509 = vunpack.c.l.s4 1935823168
    %v5510 = vunpack.c.0.s8 %v5509
    %v5511 = vlaneseq
    %v5512 = vshrl.u32 %v5511, 7
    %v5513 = vsub.s32 %v5510, %v5512
    %v5514 = vrot.slane %v5507, %v5513
    %v5516 = vunpack.c.l.s4 1935823168
    %v5517 = vunpack.c.0.s8 %v5516
    %v5518 = vlaneseq
    %v5519 = vshrl.u32 %v5518, 7
    %v5520 = vsub.s32 %v5517, %v5519
    %v5521 = vrot.slane %v4783, %v5520
    %v5523 = vunpack.c.l.s4 1935823168
    %v5524 = vunpack.c.0.s8 %v5523
    %v5525 = vlaneseq
    %v5526 = vshrl.u32 %v5525, 7
    %v5527 = vsub.s32 %v5524, %v5526
    %v5528 = vrot.slane %v5521, %v5527
    %v5529 = vcombine.low %v4878, %v4880
    %v5530 = vcombine.low %v4879, %v4881
    %v5532 = vunpack.c.l.s4 1935823168
    %v5533 = vunpack.c.0.s8 %v5532
    %v5534 = vlaneseq
    %v5535 = vshrl.u32 %v5534, 7
    %v5536 = vsub.s32 %v5533, %v5535
    %v5537 = vrot.slane %v5529, %v5536
    %v5539 = vunpack.c.l.s4 1935823168
    %v5540 = vunpack.c.0.s8 %v5539
    %v5541 = vlaneseq
    %v5542 = vshrl.u32 %v5541, 7
    %v5543 = vsub.s32 %v5540, %v5542
    %v5544 = vrot.slane %v5530, %v5543
    %v5545 = vcombine.low %v5537, %v5544
    %v5547 = vunpack.c.l.s4 1935823168
    %v5548 = vunpack.c.0.s8 %v5547
    %v5549 = vlaneseq
    %v5550 = vshrl.u32 %v5549, 7
    %v5551 = vsub.s32 %v5548, %v5550
    %v5552 = vrot.slane %v5545, %v5551
    %v5554 = vunpack.c.l.s4 1935823168
    %v5555 = vunpack.c.0.s8 %v5554
    %v5556 = vlaneseq
    %v5557 = vshrl.u32 %v5556, 7
    %v5558 = vsub.s32 %v5555, %v5557
    %v5559 = vrot.slane %v4792, %v5558
    %v5561 = vunpack.c.l.s4 1935823168
    %v5562 = vunpack.c.0.s8 %v5561
    %v5563 = vlaneseq
    %v5564 = vshrl.u32 %v5563, 7
    %v5565 = vsub.s32 %v5562, %v5564
    %v5566 = vrot.slane %v5559, %v5565
    %vm5603 = vcmask 125952
    %5604 = vst.msk [vmem:[#allocation5] sm:$0xf] %vm5603, %v4906
    %vm5605 = vcmask 122880
    %vm5606 = vmand %vm5605, %vm250
    %v5607 = vld [vmem:[#allocation5 + $0x4] sm:$0x1]
    %v5608 = vsel %vm5606, %v4920, %v5607
    %5609 = vst [vmem:[#allocation5 + $0x4] sm:$0x1] %v5608
    %5610 = vst.msk [vmem:[#allocation5 + $0x8] sm:$0xf] %vm5603, %v4944
    %v5611 = vld [vmem:[#allocation5 + $0xc] sm:$0x1]
    %v5612 = vsel %vm5606, %v4958, %v5611
    %5613 = vst [vmem:[#allocation5 + $0xc] sm:$0x1] %v5612
    %5614 = vst.msk [vmem:[#allocation5 + $0x10] sm:$0xf] %vm5603, %v4982
    %v5615 = vld [vmem:[#allocation5 + $0x14] sm:$0x1]
    %v5616 = vsel %vm5606, %v4996, %v5615
    %5617 = vst [vmem:[#allocation5 + $0x14] sm:$0x1] %v5616
    %5618 = vst.msk [vmem:[#allocation5 + $0x18] sm:$0xf] %vm5603, %v5020
    %v5619 = vld [vmem:[#allocation5 + $0x1c] sm:$0x1]
    %v5620 = vsel %vm5606, %v5034, %v5619
    %5621 = vst [vmem:[#allocation5 + $0x1c] sm:$0x1] %v5620
    %5622 = vst.msk [vmem:[#allocation5 + $0x20] sm:$0xf] %vm5603, %v5058
    %v5623 = vld [vmem:[#allocation5 + $0x24] sm:$0x1]
    %v5624 = vsel %vm5606, %v5072, %v5623
    %5625 = vst [vmem:[#allocation5 + $0x24] sm:$0x1] %v5624
    %5626 = vst.msk [vmem:[#allocation5 + $0x28] sm:$0xf] %vm5603, %v5096
    %v5627 = vld [vmem:[#allocation5 + $0x2c] sm:$0x1]
    %v5628 = vsel %vm5606, %v5110, %v5627
    %5629 = vst [vmem:[#allocation5 + $0x2c] sm:$0x1] %v5628
    %5630 = vst.msk [vmem:[#allocation5 + $0x30] sm:$0xf] %vm5603, %v5134
    %v5631 = vld [vmem:[#allocation5 + $0x34] sm:$0x1]
    %v5632 = vsel %vm5606, %v5148, %v5631
    %5633 = vst [vmem:[#allocation5 + $0x34] sm:$0x1] %v5632
    %5634 = vst.msk [vmem:[#allocation5 + $0x38] sm:$0xf] %vm5603, %v5172
    %v5635 = vld [vmem:[#allocation5 + $0x3c] sm:$0x1]
    %v5636 = vsel %vm5606, %v5186, %v5635
    %5637 = vst [vmem:[#allocation5 + $0x3c] sm:$0x1] %v5636
    %5638 = vst.msk [vmem:[#allocation5 + $0x40] sm:$0xf] %vm5603, %v5210
    %v5639 = vld [vmem:[#allocation5 + $0x44] sm:$0x1]
    %v5640 = vsel %vm5606, %v5224, %v5639
    %5641 = vst [vmem:[#allocation5 + $0x44] sm:$0x1] %v5640
    %5642 = vst.msk [vmem:[#allocation5 + $0x48] sm:$0xf] %vm5603, %v5248
    %v5643 = vld [vmem:[#allocation5 + $0x4c] sm:$0x1]
    %v5644 = vsel %vm5606, %v5262, %v5643
    %5645 = vst [vmem:[#allocation5 + $0x4c] sm:$0x1] %v5644
    %5646 = vst.msk [vmem:[#allocation5 + $0x50] sm:$0xf] %vm5603, %v5286
    %v5647 = vld [vmem:[#allocation5 + $0x54] sm:$0x1]
    %v5648 = vsel %vm5606, %v5300, %v5647
    %5649 = vst [vmem:[#allocation5 + $0x54] sm:$0x1] %v5648
    %5650 = vst.msk [vmem:[#allocation5 + $0x58] sm:$0xf] %vm5603, %v5324
    %v5651 = vld [vmem:[#allocation5 + $0x5c] sm:$0x1]
    %v5652 = vsel %vm5606, %v5338, %v5651
    %5653 = vst [vmem:[#allocation5 + $0x5c] sm:$0x1] %v5652
    %5654 = vst.msk [vmem:[#allocation5 + $0x60] sm:$0xf] %vm5603, %v5362
    %v5655 = vld [vmem:[#allocation5 + $0x64] sm:$0x1]
    %v5656 = vsel %vm5606, %v5376, %v5655
    %5657 = vst [vmem:[#allocation5 + $0x64] sm:$0x1] %v5656
    %5658 = vst.msk [vmem:[#allocation5 + $0x68] sm:$0xf] %vm5603, %v5400
    %v5659 = vld [vmem:[#allocation5 + $0x6c] sm:$0x1]
    %v5660 = vsel %vm5606, %v5414, %v5659
    %5661 = vst [vmem:[#allocation5 + $0x6c] sm:$0x1] %v5660
    %5662 = vst.msk [vmem:[#allocation5 + $0x70] sm:$0xf] %vm5603, %v5438
    %v5663 = vld [vmem:[#allocation5 + $0x74] sm:$0x1]
    %v5664 = vsel %vm5606, %v5452, %v5663
    %5665 = vst [vmem:[#allocation5 + $0x74] sm:$0x1] %v5664
    %5666 = vst.msk [vmem:[#allocation5 + $0x78] sm:$0xf] %vm5603, %v5476
    %v5667 = vld [vmem:[#allocation5 + $0x7c] sm:$0x1]
    %v5668 = vsel %vm5606, %v5490, %v5667
    %5669 = vst [vmem:[#allocation5 + $0x7c] sm:$0x1] %v5668
    %5670 = vst.msk [vmem:[#allocation5 + $0x80] sm:$0xf] %vm5603, %v5514
    %v5671 = vld [vmem:[#allocation5 + $0x84] sm:$0x1]
    %v5672 = vsel %vm5606, %v5528, %v5671
    %5673 = vst [vmem:[#allocation5 + $0x84] sm:$0x1] %v5672
    %5674 = vst.msk [vmem:[#allocation5 + $0x88] sm:$0xf] %vm5603, %v5552
    %v5675 = vld [vmem:[#allocation5 + $0x8c] sm:$0x1]
    %v5676 = vsel %vm5606, %v5566, %v5675
    %5677 = vst [vmem:[#allocation5 + $0x8c] sm:$0x1] %v5676
    %v5678 = vld [vmem:[#allocation5] sm:$0x7]
    %v5679 = vld [vmem:[#allocation5 + $0x8] sm:$0x7]
    %v5680 = vld [vmem:[#allocation5 + $0x10] sm:$0x7]
    %v5681 = vld [vmem:[#allocation5 + $0x18] sm:$0x7]
    %v5682 = vld [vmem:[#allocation5 + $0x20] sm:$0x7]
    %v5683 = vld [vmem:[#allocation5 + $0x28] sm:$0x7]
    %v5684 = vld [vmem:[#allocation5 + $0x48] sm:$0x7]
    %v5685 = vld [vmem:[#allocation5 + $0x50] sm:$0x7]
    %v5686 = vld [vmem:[#allocation5 + $0x58] sm:$0x7]
    %v5687 = vld [vmem:[#allocation5 + $0x60] sm:$0x7]
    %v5688 = vld [vmem:[#allocation5 + $0x68] sm:$0x7]
    %v5689 = vld [vmem:[#allocation5 + $0x70] sm:$0x7]
    %v5690 = vld [vmem:[#allocation5] sm:$0xf]
    %v5691 = vld [vmem:[#allocation5 + $0x8] sm:$0xf]
    %v5692 = vld [vmem:[#allocation5 + $0x10] sm:$0xf]
    %v5693 = vld [vmem:[#allocation5 + $0x18] sm:$0xf]
    %v5694 = vld [vmem:[#allocation5 + $0x20] sm:$0xf]
    %v5695 = vld [vmem:[#allocation5 + $0x28] sm:$0xf]
    %v5696 = vld [vmem:[#allocation5 + $0x48] sm:$0xf]
    %v5697 = vld [vmem:[#allocation5 + $0x50] sm:$0xf]
    %v5698 = vld [vmem:[#allocation5 + $0x58] sm:$0xf]
    %v5699 = vld [vmem:[#allocation5 + $0x60] sm:$0xf]
    %v5700 = vld [vmem:[#allocation5 + $0x68] sm:$0xf]
    %v5701 = vld [vmem:[#allocation5 + $0x70] sm:$0xf]
    %v5702 = vld [vmem:[#allocation5] sm:$0xe]
    %v5703 = vld [vmem:[#allocation5 + $0x8] sm:$0xe]
    %v5704 = vld [vmem:[#allocation5 + $0x10] sm:$0xe]
    %v5705 = vld [vmem:[#allocation5 + $0x18] sm:$0xe]
    %v5706 = vld [vmem:[#allocation5 + $0x20] sm:$0xe]
    %v5707 = vld [vmem:[#allocation5 + $0x28] sm:$0xe]
    %v5708 = vld [vmem:[#allocation5 + $0x48] sm:$0xe]
    %v5709 = vld [vmem:[#allocation5 + $0x50] sm:$0xe]
    %v5710 = vld [vmem:[#allocation5 + $0x58] sm:$0xe]
    %v5711 = vld [vmem:[#allocation5 + $0x60] sm:$0xe]
    %v5712 = vld [vmem:[#allocation5 + $0x68] sm:$0xe]
    %v5713 = vld [vmem:[#allocation5 + $0x70] sm:$0xe]
    %v5714 = vld [vmem:[#allocation5 + $0x4] sm:$0x1]
    %v5715 = vld [vmem:[#allocation5 + $0xc] sm:$0x1]
    %v5716 = vld [vmem:[#allocation5 + $0x14] sm:$0x1]
    %v5717 = vld [vmem:[#allocation5 + $0x1c] sm:$0x1]
    %v5718 = vld [vmem:[#allocation5 + $0x24] sm:$0x1]
    %v5719 = vld [vmem:[#allocation5 + $0x2c] sm:$0x1]
    %v5720 = vld [vmem:[#allocation5 + $0x4c] sm:$0x1]
    %v5721 = vld [vmem:[#allocation5 + $0x54] sm:$0x1]
    %v5722 = vld [vmem:[#allocation5 + $0x5c] sm:$0x1]
    %v5723 = vld [vmem:[#allocation5 + $0x64] sm:$0x1]
    %v5724 = vld [vmem:[#allocation5 + $0x6c] sm:$0x1]
    %v5725 = vld [vmem:[#allocation5 + $0x74] sm:$0x1]
    %s5726 = scalar_lea.vmem [#allocation5], 8
    %v5727 = vld [vmem:[%s5726] sm:$0x7]
    %v5728 = vld [vmem:[%s5726 + $0x8] sm:$0x7]
    %v5729 = vld [vmem:[%s5726 + $0x10] sm:$0x7]
    %v5730 = vld [vmem:[%s5726 + $0x18] sm:$0x7]
    %v5731 = vld [vmem:[%s5726 + $0x20] sm:$0x7]
    %v5732 = vld [vmem:[%s5726 + $0x28] sm:$0x7]
    %v5733 = vld [vmem:[%s5726 + $0x48] sm:$0x7]
    %v5734 = vld [vmem:[%s5726 + $0x50] sm:$0x7]
    %v5735 = vld [vmem:[%s5726 + $0x58] sm:$0x7]
    %v5736 = vld [vmem:[%s5726 + $0x60] sm:$0x7]
    %v5737 = vld [vmem:[%s5726 + $0x68] sm:$0x7]
    %v5738 = vld [vmem:[%s5726 + $0x70] sm:$0x7]
    %v5739 = vld [vmem:[%s5726] sm:$0xf]
    %v5740 = vld [vmem:[%s5726 + $0x8] sm:$0xf]
    %v5741 = vld [vmem:[%s5726 + $0x10] sm:$0xf]
    %v5742 = vld [vmem:[%s5726 + $0x18] sm:$0xf]
    %v5743 = vld [vmem:[%s5726 + $0x20] sm:$0xf]
    %v5744 = vld [vmem:[%s5726 + $0x28] sm:$0xf]
    %v5745 = vld [vmem:[%s5726 + $0x48] sm:$0xf]
    %v5746 = vld [vmem:[%s5726 + $0x50] sm:$0xf]
    %v5747 = vld [vmem:[%s5726 + $0x58] sm:$0xf]
    %v5748 = vld [vmem:[%s5726 + $0x60] sm:$0xf]
    %v5749 = vld [vmem:[%s5726 + $0x68] sm:$0xf]
    %v5750 = vld [vmem:[%s5726 + $0x70] sm:$0xf]
    %v5751 = vld [vmem:[%s5726] sm:$0xe]
    %v5752 = vld [vmem:[%s5726 + $0x8] sm:$0xe]
    %v5753 = vld [vmem:[%s5726 + $0x10] sm:$0xe]
    %v5754 = vld [vmem:[%s5726 + $0x18] sm:$0xe]
    %v5755 = vld [vmem:[%s5726 + $0x20] sm:$0xe]
    %v5756 = vld [vmem:[%s5726 + $0x28] sm:$0xe]
    %v5757 = vld [vmem:[%s5726 + $0x48] sm:$0xe]
    %v5758 = vld [vmem:[%s5726 + $0x50] sm:$0xe]
    %v5759 = vld [vmem:[%s5726 + $0x58] sm:$0xe]
    %v5760 = vld [vmem:[%s5726 + $0x60] sm:$0xe]
    %v5761 = vld [vmem:[%s5726 + $0x68] sm:$0xe]
    %v5762 = vld [vmem:[%s5726 + $0x70] sm:$0xe]
    %v5763 = vld [vmem:[%s5726 + $0x4] sm:$0x1]
    %v5764 = vld [vmem:[%s5726 + $0xc] sm:$0x1]
    %v5765 = vld [vmem:[%s5726 + $0x14] sm:$0x1]
    %v5766 = vld [vmem:[%s5726 + $0x1c] sm:$0x1]
    %v5767 = vld [vmem:[%s5726 + $0x24] sm:$0x1]
    %v5768 = vld [vmem:[%s5726 + $0x2c] sm:$0x1]
    %v5769 = vld [vmem:[%s5726 + $0x4c] sm:$0x1]
    %v5770 = vld [vmem:[%s5726 + $0x54] sm:$0x1]
    %v5771 = vld [vmem:[%s5726 + $0x5c] sm:$0x1]
    %v5772 = vld [vmem:[%s5726 + $0x64] sm:$0x1]
    %v5773 = vld [vmem:[%s5726 + $0x6c] sm:$0x1]
    %v5774 = vld [vmem:[%s5726 + $0x74] sm:$0x1]
    %v5787 = vunpack.c.l.b16 %v5690
    %v5788 = vunpack.c.l.b16 %v5691
    %v5789 = vunpack.c.l.b16 %v5692
    %v5790 = vunpack.c.l.b16 %v5693
    %v5791 = vunpack.c.l.b16 %v5694
    %v5792 = vunpack.c.l.b16 %v5695
    %v5793 = vunpack.c.l.b16 %v5696
    %v5794 = vunpack.c.l.b16 %v5697
    %v5795 = vunpack.c.l.b16 %v5698
    %v5796 = vunpack.c.l.b16 %v5699
    %v5797 = vunpack.c.l.b16 %v5700
    %v5798 = vunpack.c.l.b16 %v5701
    %v5799 = vpack.c.b16 %v5787, %v5787
    %v5800 = vpack.c.b16 %v5788, %v5788
    %v5801 = vpack.c.b16 %v5789, %v5789
    %v5802 = vpack.c.b16 %v5790, %v5790
    %v5803 = vpack.c.b16 %v5791, %v5791
    %v5804 = vpack.c.b16 %v5792, %v5792
    %v5805 = vpack.c.b16 %v5793, %v5793
    %v5806 = vpack.c.b16 %v5794, %v5794
    %v5807 = vpack.c.b16 %v5795, %v5795
    %v5808 = vpack.c.b16 %v5796, %v5796
    %v5809 = vpack.c.b16 %v5797, %v5797
    %v5810 = vpack.c.b16 %v5798, %v5798
    %v5812 = vshrl.u32 %v5799, 16
    %v5814 = vshll.u32 %v5799, 16
    %v5816 = vrot.slane %v5814, 1
    %v5817 = vor.u32 %v5812, %v5816
    %v5819 = vshrl.u32 %v5800, 16
    %v5821 = vshll.u32 %v5800, 16
    %v5823 = vrot.slane %v5821, 1
    %v5824 = vor.u32 %v5819, %v5823
    %v5826 = vshrl.u32 %v5801, 16
    %v5828 = vshll.u32 %v5801, 16
    %v5830 = vrot.slane %v5828, 1
    %v5831 = vor.u32 %v5826, %v5830
    %v5833 = vshrl.u32 %v5802, 16
    %v5835 = vshll.u32 %v5802, 16
    %v5837 = vrot.slane %v5835, 1
    %v5838 = vor.u32 %v5833, %v5837
    %v5840 = vshrl.u32 %v5803, 16
    %v5842 = vshll.u32 %v5803, 16
    %v5844 = vrot.slane %v5842, 1
    %v5845 = vor.u32 %v5840, %v5844
    %v5847 = vshrl.u32 %v5804, 16
    %v5849 = vshll.u32 %v5804, 16
    %v5851 = vrot.slane %v5849, 1
    %v5852 = vor.u32 %v5847, %v5851
    %v5854 = vshrl.u32 %v5805, 16
    %v5856 = vshll.u32 %v5805, 16
    %v5858 = vrot.slane %v5856, 1
    %v5859 = vor.u32 %v5854, %v5858
    %v5861 = vshrl.u32 %v5806, 16
    %v5863 = vshll.u32 %v5806, 16
    %v5865 = vrot.slane %v5863, 1
    %v5866 = vor.u32 %v5861, %v5865
    %v5868 = vshrl.u32 %v5807, 16
    %v5870 = vshll.u32 %v5807, 16
    %v5872 = vrot.slane %v5870, 1
    %v5873 = vor.u32 %v5868, %v5872
    %v5875 = vshrl.u32 %v5808, 16
    %v5877 = vshll.u32 %v5808, 16
    %v5879 = vrot.slane %v5877, 1
    %v5880 = vor.u32 %v5875, %v5879
    %v5882 = vshrl.u32 %v5809, 16
    %v5884 = vshll.u32 %v5809, 16
    %v5886 = vrot.slane %v5884, 1
    %v5887 = vor.u32 %v5882, %v5886
    %v5889 = vshrl.u32 %v5810, 16
    %v5891 = vshll.u32 %v5810, 16
    %v5893 = vrot.slane %v5891, 1
    %v5894 = vor.u32 %v5889, %v5893
    %5895 = vrot.lane.b32.xlu0 %v5817, 16
    %v5896 = vpop.permute.xlu0 %5895
    %5897 = vrot.lane.b32.xlu0 %v5824, 16
    %v5898 = vpop.permute.xlu0 %5897
    %5899 = vrot.lane.b32.xlu0 %v5831, 16
    %v5900 = vpop.permute.xlu0 %5899
    %5901 = vrot.lane.b32.xlu0 %v5838, 16
    %v5902 = vpop.permute.xlu0 %5901
    %5903 = vrot.lane.b32.xlu0 %v5845, 16
    %v5904 = vpop.permute.xlu0 %5903
    %5905 = vrot.lane.b32.xlu0 %v5852, 16
    %v5906 = vpop.permute.xlu0 %5905
    %5907 = vrot.lane.b32.xlu0 %v5859, 16
    %v5908 = vpop.permute.xlu0 %5907
    %5909 = vrot.lane.b32.xlu0 %v5866, 16
    %v5910 = vpop.permute.xlu0 %5909
    %5911 = vrot.lane.b32.xlu0 %v5873, 16
    %v5912 = vpop.permute.xlu0 %5911
    %5913 = vrot.lane.b32.xlu0 %v5880, 16
    %v5914 = vpop.permute.xlu0 %5913
    %5915 = vrot.lane.b32.xlu0 %v5887, 16
    %v5916 = vpop.permute.xlu0 %5915
    %5917 = vrot.lane.b32.xlu0 %v5894, 16
    %v5918 = vpop.permute.xlu0 %5917
    %v5931 = vunpack.c.l.b16 %v5702
    %v5932 = vunpack.c.l.b16 %v5703
    %v5933 = vunpack.c.l.b16 %v5704
    %v5934 = vunpack.c.l.b16 %v5705
    %v5935 = vunpack.c.l.b16 %v5706
    %v5936 = vunpack.c.l.b16 %v5707
    %v5937 = vunpack.c.l.b16 %v5708
    %v5938 = vunpack.c.l.b16 %v5709
    %v5939 = vunpack.c.l.b16 %v5710
    %v5940 = vunpack.c.l.b16 %v5711
    %v5941 = vunpack.c.l.b16 %v5712
    %v5942 = vunpack.c.l.b16 %v5713
    %v5943 = vpack.c.b16 %v5931, %v5931
    %v5944 = vpack.c.b16 %v5932, %v5932
    %v5945 = vpack.c.b16 %v5933, %v5933
    %v5946 = vpack.c.b16 %v5934, %v5934
    %v5947 = vpack.c.b16 %v5935, %v5935
    %v5948 = vpack.c.b16 %v5936, %v5936
    %v5949 = vpack.c.b16 %v5937, %v5937
    %v5950 = vpack.c.b16 %v5938, %v5938
    %v5951 = vpack.c.b16 %v5939, %v5939
    %v5952 = vpack.c.b16 %v5940, %v5940
    %v5953 = vpack.c.b16 %v5941, %v5941
    %v5954 = vpack.c.b16 %v5942, %v5942
    %v5955 = vrot.slane %v5943, 1
    %v5956 = vrot.slane %v5944, 1
    %v5957 = vrot.slane %v5945, 1
    %v5958 = vrot.slane %v5946, 1
    %v5959 = vrot.slane %v5947, 1
    %v5960 = vrot.slane %v5948, 1
    %v5961 = vrot.slane %v5949, 1
    %v5962 = vrot.slane %v5950, 1
    %v5963 = vrot.slane %v5951, 1
    %v5964 = vrot.slane %v5952, 1
    %v5965 = vrot.slane %v5953, 1
    %v5966 = vrot.slane %v5954, 1
    %5967 = vrot.lane.b32.xlu0 %v5955, 32
    %v5968 = vpop.permute.xlu0 %5967
    %5969 = vrot.lane.b32.xlu0 %v5956, 32
    %v5970 = vpop.permute.xlu0 %5969
    %5971 = vrot.lane.b32.xlu0 %v5957, 32
    %v5972 = vpop.permute.xlu0 %5971
    %5973 = vrot.lane.b32.xlu0 %v5958, 32
    %v5974 = vpop.permute.xlu0 %5973
    %5975 = vrot.lane.b32.xlu0 %v5959, 32
    %v5976 = vpop.permute.xlu0 %5975
    %5977 = vrot.lane.b32.xlu0 %v5960, 32
    %v5978 = vpop.permute.xlu0 %5977
    %5979 = vrot.lane.b32.xlu0 %v5961, 32
    %v5980 = vpop.permute.xlu0 %5979
    %5981 = vrot.lane.b32.xlu0 %v5962, 32
    %v5982 = vpop.permute.xlu0 %5981
    %5983 = vrot.lane.b32.xlu0 %v5963, 32
    %v5984 = vpop.permute.xlu0 %5983
    %5985 = vrot.lane.b32.xlu0 %v5964, 32
    %v5986 = vpop.permute.xlu0 %5985
    %5987 = vrot.lane.b32.xlu0 %v5965, 32
    %v5988 = vpop.permute.xlu0 %5987
    %5989 = vrot.lane.b32.xlu0 %v5966, 32
    %v5990 = vpop.permute.xlu0 %5989
    %v6003 = vunpack.c.l.b16 %v5714
    %v6004 = vunpack.c.l.b16 %v5715
    %v6005 = vunpack.c.l.b16 %v5716
    %v6006 = vunpack.c.l.b16 %v5717
    %v6007 = vunpack.c.l.b16 %v5718
    %v6008 = vunpack.c.l.b16 %v5719
    %v6009 = vunpack.c.l.b16 %v5720
    %v6010 = vunpack.c.l.b16 %v5721
    %v6011 = vunpack.c.l.b16 %v5722
    %v6012 = vunpack.c.l.b16 %v5723
    %v6013 = vunpack.c.l.b16 %v5724
    %v6014 = vunpack.c.l.b16 %v5725
    %v6015 = vpack.c.b16 %v6003, %v5931
    %v6016 = vpack.c.b16 %v6004, %v5932
    %v6017 = vpack.c.b16 %v6005, %v5933
    %v6018 = vpack.c.b16 %v6006, %v5934
    %v6019 = vpack.c.b16 %v6007, %v5935
    %v6020 = vpack.c.b16 %v6008, %v5936
    %v6021 = vpack.c.b16 %v6009, %v5937
    %v6022 = vpack.c.b16 %v6010, %v5938
    %v6023 = vpack.c.b16 %v6011, %v5939
    %v6024 = vpack.c.b16 %v6012, %v5940
    %v6025 = vpack.c.b16 %v6013, %v5941
    %v6026 = vpack.c.b16 %v6014, %v5942
    %v6028 = vshrl.u32 %v6015, 16
    %v6030 = vrot.slane %v6028, 1
    %v6031 = vshll.u32 %v6015, 16
    %v6033 = vrot.slane %v6031, 2
    %v6034 = vor.u32 %v6030, %v6033
    %v6036 = vshrl.u32 %v6016, 16
    %v6038 = vrot.slane %v6036, 1
    %v6039 = vshll.u32 %v6016, 16
    %v6041 = vrot.slane %v6039, 2
    %v6042 = vor.u32 %v6038, %v6041
    %v6044 = vshrl.u32 %v6017, 16
    %v6046 = vrot.slane %v6044, 1
    %v6047 = vshll.u32 %v6017, 16
    %v6049 = vrot.slane %v6047, 2
    %v6050 = vor.u32 %v6046, %v6049
    %v6052 = vshrl.u32 %v6018, 16
    %v6054 = vrot.slane %v6052, 1
    %v6055 = vshll.u32 %v6018, 16
    %v6057 = vrot.slane %v6055, 2
    %v6058 = vor.u32 %v6054, %v6057
    %v6060 = vshrl.u32 %v6019, 16
    %v6062 = vrot.slane %v6060, 1
    %v6063 = vshll.u32 %v6019, 16
    %v6065 = vrot.slane %v6063, 2
    %v6066 = vor.u32 %v6062, %v6065
    %v6068 = vshrl.u32 %v6020, 16
    %v6070 = vrot.slane %v6068, 1
    %v6071 = vshll.u32 %v6020, 16
    %v6073 = vrot.slane %v6071, 2
    %v6074 = vor.u32 %v6070, %v6073
    %v6076 = vshrl.u32 %v6021, 16
    %v6078 = vrot.slane %v6076, 1
    %v6079 = vshll.u32 %v6021, 16
    %v6081 = vrot.slane %v6079, 2
    %v6082 = vor.u32 %v6078, %v6081
    %v6084 = vshrl.u32 %v6022, 16
    %v6086 = vrot.slane %v6084, 1
    %v6087 = vshll.u32 %v6022, 16
    %v6089 = vrot.slane %v6087, 2
    %v6090 = vor.u32 %v6086, %v6089
    %v6092 = vshrl.u32 %v6023, 16
    %v6094 = vrot.slane %v6092, 1
    %v6095 = vshll.u32 %v6023, 16
    %v6097 = vrot.slane %v6095, 2
    %v6098 = vor.u32 %v6094, %v6097
    %v6100 = vshrl.u32 %v6024, 16
    %v6102 = vrot.slane %v6100, 1
    %v6103 = vshll.u32 %v6024, 16
    %v6105 = vrot.slane %v6103, 2
    %v6106 = vor.u32 %v6102, %v6105
    %v6108 = vshrl.u32 %v6025, 16
    %v6110 = vrot.slane %v6108, 1
    %v6111 = vshll.u32 %v6025, 16
    %v6113 = vrot.slane %v6111, 2
    %v6114 = vor.u32 %v6110, %v6113
    %v6116 = vshrl.u32 %v6026, 16
    %v6118 = vrot.slane %v6116, 1
    %v6119 = vshll.u32 %v6026, 16
    %v6121 = vrot.slane %v6119, 2
    %v6122 = vor.u32 %v6118, %v6121
    %6123 = vrot.lane.b32.xlu0 %v6034, 48
    %v6124 = vpop.permute.xlu0 %6123
    %6125 = vrot.lane.b32.xlu0 %v6042, 48
    %v6126 = vpop.permute.xlu0 %6125
    %6127 = vrot.lane.b32.xlu0 %v6050, 48
    %v6128 = vpop.permute.xlu0 %6127
    %6129 = vrot.lane.b32.xlu0 %v6058, 48
    %v6130 = vpop.permute.xlu0 %6129
    %6131 = vrot.lane.b32.xlu0 %v6066, 48
    %v6132 = vpop.permute.xlu0 %6131
    %6133 = vrot.lane.b32.xlu0 %v6074, 48
    %v6134 = vpop.permute.xlu0 %6133
    %6135 = vrot.lane.b32.xlu0 %v6082, 48
    %v6136 = vpop.permute.xlu0 %6135
    %6137 = vrot.lane.b32.xlu0 %v6090, 48
    %v6138 = vpop.permute.xlu0 %6137
    %6139 = vrot.lane.b32.xlu0 %v6098, 48
    %v6140 = vpop.permute.xlu0 %6139
    %6141 = vrot.lane.b32.xlu0 %v6106, 48
    %v6142 = vpop.permute.xlu0 %6141
    %6143 = vrot.lane.b32.xlu0 %v6114, 48
    %v6144 = vpop.permute.xlu0 %6143
    %6145 = vrot.lane.b32.xlu0 %v6122, 48
    %v6146 = vpop.permute.xlu0 %6145
    %v6159 = vunpack.c.l.b16 %v5727
    %v6160 = vunpack.c.l.b16 %v5728
    %v6161 = vunpack.c.l.b16 %v5729
    %v6162 = vunpack.c.l.b16 %v5730
    %v6163 = vunpack.c.l.b16 %v5731
    %v6164 = vunpack.c.l.b16 %v5732
    %v6165 = vunpack.c.l.b16 %v5733
    %v6166 = vunpack.c.l.b16 %v5734
    %v6167 = vunpack.c.l.b16 %v5735
    %v6168 = vunpack.c.l.b16 %v5736
    %v6169 = vunpack.c.l.b16 %v5737
    %v6170 = vunpack.c.l.b16 %v5738
    %v6171 = vpack.c.b16 %v6159, %v6159
    %v6172 = vpack.c.b16 %v6160, %v6160
    %v6173 = vpack.c.b16 %v6161, %v6161
    %v6174 = vpack.c.b16 %v6162, %v6162
    %v6175 = vpack.c.b16 %v6163, %v6163
    %v6176 = vpack.c.b16 %v6164, %v6164
    %v6177 = vpack.c.b16 %v6165, %v6165
    %v6178 = vpack.c.b16 %v6166, %v6166
    %v6179 = vpack.c.b16 %v6167, %v6167
    %v6180 = vpack.c.b16 %v6168, %v6168
    %v6181 = vpack.c.b16 %v6169, %v6169
    %v6182 = vpack.c.b16 %v6170, %v6170
    %6183 = vrot.lane.b32.xlu0 %v6171, 64
    %v6184 = vpop.permute.xlu0 %6183
    %6185 = vrot.lane.b32.xlu0 %v6172, 64
    %v6186 = vpop.permute.xlu0 %6185
    %6187 = vrot.lane.b32.xlu0 %v6173, 64
    %v6188 = vpop.permute.xlu0 %6187
    %6189 = vrot.lane.b32.xlu0 %v6174, 64
    %v6190 = vpop.permute.xlu0 %6189
    %6191 = vrot.lane.b32.xlu0 %v6175, 64
    %v6192 = vpop.permute.xlu0 %6191
    %6193 = vrot.lane.b32.xlu0 %v6176, 64
    %v6194 = vpop.permute.xlu0 %6193
    %6195 = vrot.lane.b32.xlu0 %v6177, 64
    %v6196 = vpop.permute.xlu0 %6195
    %6197 = vrot.lane.b32.xlu0 %v6178, 64
    %v6198 = vpop.permute.xlu0 %6197
    %6199 = vrot.lane.b32.xlu0 %v6179, 64
    %v6200 = vpop.permute.xlu0 %6199
    %6201 = vrot.lane.b32.xlu0 %v6180, 64
    %v6202 = vpop.permute.xlu0 %6201
    %6203 = vrot.lane.b32.xlu0 %v6181, 64
    %v6204 = vpop.permute.xlu0 %6203
    %6205 = vrot.lane.b32.xlu0 %v6182, 64
    %v6206 = vpop.permute.xlu0 %6205
    %v6219 = vunpack.c.l.b16 %v5739
    %v6220 = vunpack.c.l.b16 %v5740
    %v6221 = vunpack.c.l.b16 %v5741
    %v6222 = vunpack.c.l.b16 %v5742
    %v6223 = vunpack.c.l.b16 %v5743
    %v6224 = vunpack.c.l.b16 %v5744
    %v6225 = vunpack.c.l.b16 %v5745
    %v6226 = vunpack.c.l.b16 %v5746
    %v6227 = vunpack.c.l.b16 %v5747
    %v6228 = vunpack.c.l.b16 %v5748
    %v6229 = vunpack.c.l.b16 %v5749
    %v6230 = vunpack.c.l.b16 %v5750
    %v6231 = vpack.c.b16 %v6219, %v6219
    %v6232 = vpack.c.b16 %v6220, %v6220
    %v6233 = vpack.c.b16 %v6221, %v6221
    %v6234 = vpack.c.b16 %v6222, %v6222
    %v6235 = vpack.c.b16 %v6223, %v6223
    %v6236 = vpack.c.b16 %v6224, %v6224
    %v6237 = vpack.c.b16 %v6225, %v6225
    %v6238 = vpack.c.b16 %v6226, %v6226
    %v6239 = vpack.c.b16 %v6227, %v6227
    %v6240 = vpack.c.b16 %v6228, %v6228
    %v6241 = vpack.c.b16 %v6229, %v6229
    %v6242 = vpack.c.b16 %v6230, %v6230
    %v6244 = vshrl.u32 %v6231, 16
    %v6246 = vshll.u32 %v6231, 16
    %v6248 = vrot.slane %v6246, 1
    %v6249 = vor.u32 %v6244, %v6248
    %v6251 = vshrl.u32 %v6232, 16
    %v6253 = vshll.u32 %v6232, 16
    %v6255 = vrot.slane %v6253, 1
    %v6256 = vor.u32 %v6251, %v6255
    %v6258 = vshrl.u32 %v6233, 16
    %v6260 = vshll.u32 %v6233, 16
    %v6262 = vrot.slane %v6260, 1
    %v6263 = vor.u32 %v6258, %v6262
    %v6265 = vshrl.u32 %v6234, 16
    %v6267 = vshll.u32 %v6234, 16
    %v6269 = vrot.slane %v6267, 1
    %v6270 = vor.u32 %v6265, %v6269
    %v6272 = vshrl.u32 %v6235, 16
    %v6274 = vshll.u32 %v6235, 16
    %v6276 = vrot.slane %v6274, 1
    %v6277 = vor.u32 %v6272, %v6276
    %v6279 = vshrl.u32 %v6236, 16
    %v6281 = vshll.u32 %v6236, 16
    %v6283 = vrot.slane %v6281, 1
    %v6284 = vor.u32 %v6279, %v6283
    %v6286 = vshrl.u32 %v6237, 16
    %v6288 = vshll.u32 %v6237, 16
    %v6290 = vrot.slane %v6288, 1
    %v6291 = vor.u32 %v6286, %v6290
    %v6293 = vshrl.u32 %v6238, 16
    %v6295 = vshll.u32 %v6238, 16
    %v6297 = vrot.slane %v6295, 1
    %v6298 = vor.u32 %v6293, %v6297
    %v6300 = vshrl.u32 %v6239, 16
    %v6302 = vshll.u32 %v6239, 16
    %v6304 = vrot.slane %v6302, 1
    %v6305 = vor.u32 %v6300, %v6304
    %v6307 = vshrl.u32 %v6240, 16
    %v6309 = vshll.u32 %v6240, 16
    %v6311 = vrot.slane %v6309, 1
    %v6312 = vor.u32 %v6307, %v6311
    %v6314 = vshrl.u32 %v6241, 16
    %v6316 = vshll.u32 %v6241, 16
    %v6318 = vrot.slane %v6316, 1
    %v6319 = vor.u32 %v6314, %v6318
    %v6321 = vshrl.u32 %v6242, 16
    %v6323 = vshll.u32 %v6242, 16
    %v6325 = vrot.slane %v6323, 1
    %v6326 = vor.u32 %v6321, %v6325
    %6327 = vrot.lane.b32.xlu0 %v6249, 80
    %v6328 = vpop.permute.xlu0 %6327
    %6329 = vrot.lane.b32.xlu0 %v6256, 80
    %v6330 = vpop.permute.xlu0 %6329
    %6331 = vrot.lane.b32.xlu0 %v6263, 80
    %v6332 = vpop.permute.xlu0 %6331
    %6333 = vrot.lane.b32.xlu0 %v6270, 80
    %v6334 = vpop.permute.xlu0 %6333
    %6335 = vrot.lane.b32.xlu0 %v6277, 80
    %v6336 = vpop.permute.xlu0 %6335
    %6337 = vrot.lane.b32.xlu0 %v6284, 80
    %v6338 = vpop.permute.xlu0 %6337
    %6339 = vrot.lane.b32.xlu0 %v6291, 80
    %v6340 = vpop.permute.xlu0 %6339
    %6341 = vrot.lane.b32.xlu0 %v6298, 80
    %v6342 = vpop.permute.xlu0 %6341
    %6343 = vrot.lane.b32.xlu0 %v6305, 80
    %v6344 = vpop.permute.xlu0 %6343
    %6345 = vrot.lane.b32.xlu0 %v6312, 80
    %v6346 = vpop.permute.xlu0 %6345
    %6347 = vrot.lane.b32.xlu0 %v6319, 80
    %v6348 = vpop.permute.xlu0 %6347
    %6349 = vrot.lane.b32.xlu0 %v6326, 80
    %v6350 = vpop.permute.xlu0 %6349
    %v6363 = vunpack.c.l.b16 %v5751
    %v6364 = vunpack.c.l.b16 %v5752
    %v6365 = vunpack.c.l.b16 %v5753
    %v6366 = vunpack.c.l.b16 %v5754
    %v6367 = vunpack.c.l.b16 %v5755
    %v6368 = vunpack.c.l.b16 %v5756
    %v6369 = vunpack.c.l.b16 %v5757
    %v6370 = vunpack.c.l.b16 %v5758
    %v6371 = vunpack.c.l.b16 %v5759
    %v6372 = vunpack.c.l.b16 %v5760
    %v6373 = vunpack.c.l.b16 %v5761
    %v6374 = vunpack.c.l.b16 %v5762
    %v6375 = vpack.c.b16 %v6363, %v6363
    %v6376 = vpack.c.b16 %v6364, %v6364
    %v6377 = vpack.c.b16 %v6365, %v6365
    %v6378 = vpack.c.b16 %v6366, %v6366
    %v6379 = vpack.c.b16 %v6367, %v6367
    %v6380 = vpack.c.b16 %v6368, %v6368
    %v6381 = vpack.c.b16 %v6369, %v6369
    %v6382 = vpack.c.b16 %v6370, %v6370
    %v6383 = vpack.c.b16 %v6371, %v6371
    %v6384 = vpack.c.b16 %v6372, %v6372
    %v6385 = vpack.c.b16 %v6373, %v6373
    %v6386 = vpack.c.b16 %v6374, %v6374
    %v6387 = vrot.slane %v6375, 1
    %v6388 = vrot.slane %v6376, 1
    %v6389 = vrot.slane %v6377, 1
    %v6390 = vrot.slane %v6378, 1
    %v6391 = vrot.slane %v6379, 1
    %v6392 = vrot.slane %v6380, 1
    %v6393 = vrot.slane %v6381, 1
    %v6394 = vrot.slane %v6382, 1
    %v6395 = vrot.slane %v6383, 1
    %v6396 = vrot.slane %v6384, 1
    %v6397 = vrot.slane %v6385, 1
    %v6398 = vrot.slane %v6386, 1
    %6399 = vrot.lane.b32.xlu0 %v6387, 96
    %v6400 = vpop.permute.xlu0 %6399
    %6401 = vrot.lane.b32.xlu0 %v6388, 96
    %v6402 = vpop.permute.xlu0 %6401
    %6403 = vrot.lane.b32.xlu0 %v6389, 96
    %v6404 = vpop.permute.xlu0 %6403
    %6405 = vrot.lane.b32.xlu0 %v6390, 96
    %v6406 = vpop.permute.xlu0 %6405
    %6407 = vrot.lane.b32.xlu0 %v6391, 96
    %v6408 = vpop.permute.xlu0 %6407
    %6409 = vrot.lane.b32.xlu0 %v6392, 96
    %v6410 = vpop.permute.xlu0 %6409
    %6411 = vrot.lane.b32.xlu0 %v6393, 96
    %v6412 = vpop.permute.xlu0 %6411
    %6413 = vrot.lane.b32.xlu0 %v6394, 96
    %v6414 = vpop.permute.xlu0 %6413
    %6415 = vrot.lane.b32.xlu0 %v6395, 96
    %v6416 = vpop.permute.xlu0 %6415
    %6417 = vrot.lane.b32.xlu0 %v6396, 96
    %v6418 = vpop.permute.xlu0 %6417
    %6419 = vrot.lane.b32.xlu0 %v6397, 96
    %v6420 = vpop.permute.xlu0 %6419
    %6421 = vrot.lane.b32.xlu0 %v6398, 96
    %v6422 = vpop.permute.xlu0 %6421
    %v6435 = vunpack.c.l.b16 %v5763
    %v6436 = vunpack.c.l.b16 %v5764
    %v6437 = vunpack.c.l.b16 %v5765
    %v6438 = vunpack.c.l.b16 %v5766
    %v6439 = vunpack.c.l.b16 %v5767
    %v6440 = vunpack.c.l.b16 %v5768
    %v6441 = vunpack.c.l.b16 %v5769
    %v6442 = vunpack.c.l.b16 %v5770
    %v6443 = vunpack.c.l.b16 %v5771
    %v6444 = vunpack.c.l.b16 %v5772
    %v6445 = vunpack.c.l.b16 %v5773
    %v6446 = vunpack.c.l.b16 %v5774
    %v6447 = vpack.c.b16 %v6435, %v6363
    %v6448 = vpack.c.b16 %v6436, %v6364
    %v6449 = vpack.c.b16 %v6437, %v6365
    %v6450 = vpack.c.b16 %v6438, %v6366
    %v6451 = vpack.c.b16 %v6439, %v6367
    %v6452 = vpack.c.b16 %v6440, %v6368
    %v6453 = vpack.c.b16 %v6441, %v6369
    %v6454 = vpack.c.b16 %v6442, %v6370
    %v6455 = vpack.c.b16 %v6443, %v6371
    %v6456 = vpack.c.b16 %v6444, %v6372
    %v6457 = vpack.c.b16 %v6445, %v6373
    %v6458 = vpack.c.b16 %v6446, %v6374
    %v6460 = vshrl.u32 %v6447, 16
    %v6462 = vrot.slane %v6460, 1
    %v6463 = vshll.u32 %v6447, 16
    %v6465 = vrot.slane %v6463, 2
    %v6466 = vor.u32 %v6462, %v6465
    %v6468 = vshrl.u32 %v6448, 16
    %v6470 = vrot.slane %v6468, 1
    %v6471 = vshll.u32 %v6448, 16
    %v6473 = vrot.slane %v6471, 2
    %v6474 = vor.u32 %v6470, %v6473
    %v6476 = vshrl.u32 %v6449, 16
    %v6478 = vrot.slane %v6476, 1
    %v6479 = vshll.u32 %v6449, 16
    %v6481 = vrot.slane %v6479, 2
    %v6482 = vor.u32 %v6478, %v6481
    %v6484 = vshrl.u32 %v6450, 16
    %v6486 = vrot.slane %v6484, 1
    %v6487 = vshll.u32 %v6450, 16
    %v6489 = vrot.slane %v6487, 2
    %v6490 = vor.u32 %v6486, %v6489
    %v6492 = vshrl.u32 %v6451, 16
    %v6494 = vrot.slane %v6492, 1
    %v6495 = vshll.u32 %v6451, 16
    %v6497 = vrot.slane %v6495, 2
    %v6498 = vor.u32 %v6494, %v6497
    %v6500 = vshrl.u32 %v6452, 16
    %v6502 = vrot.slane %v6500, 1
    %v6503 = vshll.u32 %v6452, 16
    %v6505 = vrot.slane %v6503, 2
    %v6506 = vor.u32 %v6502, %v6505
    %v6508 = vshrl.u32 %v6453, 16
    %v6510 = vrot.slane %v6508, 1
    %v6511 = vshll.u32 %v6453, 16
    %v6513 = vrot.slane %v6511, 2
    %v6514 = vor.u32 %v6510, %v6513
    %v6516 = vshrl.u32 %v6454, 16
    %v6518 = vrot.slane %v6516, 1
    %v6519 = vshll.u32 %v6454, 16
    %v6521 = vrot.slane %v6519, 2
    %v6522 = vor.u32 %v6518, %v6521
    %v6524 = vshrl.u32 %v6455, 16
    %v6526 = vrot.slane %v6524, 1
    %v6527 = vshll.u32 %v6455, 16
    %v6529 = vrot.slane %v6527, 2
    %v6530 = vor.u32 %v6526, %v6529
    %v6532 = vshrl.u32 %v6456, 16
    %v6534 = vrot.slane %v6532, 1
    %v6535 = vshll.u32 %v6456, 16
    %v6537 = vrot.slane %v6535, 2
    %v6538 = vor.u32 %v6534, %v6537
    %v6540 = vshrl.u32 %v6457, 16
    %v6542 = vrot.slane %v6540, 1
    %v6543 = vshll.u32 %v6457, 16
    %v6545 = vrot.slane %v6543, 2
    %v6546 = vor.u32 %v6542, %v6545
    %v6548 = vshrl.u32 %v6458, 16
    %v6550 = vrot.slane %v6548, 1
    %v6551 = vshll.u32 %v6458, 16
    %v6553 = vrot.slane %v6551, 2
    %v6554 = vor.u32 %v6550, %v6553
    %6555 = vrot.lane.b32.xlu0 %v6466, 112
    %v6556 = vpop.permute.xlu0 %6555
    %6557 = vrot.lane.b32.xlu0 %v6474, 112
    %v6558 = vpop.permute.xlu0 %6557
    %6559 = vrot.lane.b32.xlu0 %v6482, 112
    %v6560 = vpop.permute.xlu0 %6559
    %6561 = vrot.lane.b32.xlu0 %v6490, 112
    %v6562 = vpop.permute.xlu0 %6561
    %6563 = vrot.lane.b32.xlu0 %v6498, 112
    %v6564 = vpop.permute.xlu0 %6563
    %6565 = vrot.lane.b32.xlu0 %v6506, 112
    %v6566 = vpop.permute.xlu0 %6565
    %6567 = vrot.lane.b32.xlu0 %v6514, 112
    %v6568 = vpop.permute.xlu0 %6567
    %6569 = vrot.lane.b32.xlu0 %v6522, 112
    %v6570 = vpop.permute.xlu0 %6569
    %6571 = vrot.lane.b32.xlu0 %v6530, 112
    %v6572 = vpop.permute.xlu0 %6571
    %6573 = vrot.lane.b32.xlu0 %v6538, 112
    %v6574 = vpop.permute.xlu0 %6573
    %6575 = vrot.lane.b32.xlu0 %v6546, 112
    %v6576 = vpop.permute.xlu0 %6575
    %6577 = vrot.lane.b32.xlu0 %v6554, 112
    %v6578 = vpop.permute.xlu0 %6577
    %vm6579 = vcmask 130048
    %v6582 = vsel %vm6579, %v5678, %v5896
    %v6585 = vsel %vm6579, %v5679, %v5898
    %v6588 = vsel %vm6579, %v5680, %v5900
    %v6591 = vsel %vm6579, %v5681, %v5902
    %v6594 = vsel %vm6579, %v5682, %v5904
    %v6597 = vsel %vm6579, %v5683, %v5906
    %v6600 = vsel %vm6579, %v5684, %v5908
    %v6603 = vsel %vm6579, %v5685, %v5910
    %v6606 = vsel %vm6579, %v5686, %v5912
    %v6609 = vsel %vm6579, %v5687, %v5914
    %v6612 = vsel %vm6579, %v5688, %v5916
    %v6615 = vsel %vm6579, %v5689, %v5918
    %v6617 = vsel %vm199, %v6582, %v5968
    %v6619 = vsel %vm199, %v6585, %v5970
    %v6621 = vsel %vm199, %v6588, %v5972
    %v6623 = vsel %vm199, %v6591, %v5974
    %v6625 = vsel %vm199, %v6594, %v5976
    %v6627 = vsel %vm199, %v6597, %v5978
    %v6629 = vsel %vm199, %v6600, %v5980
    %v6631 = vsel %vm199, %v6603, %v5982
    %v6633 = vsel %vm199, %v6606, %v5984
    %v6635 = vsel %vm199, %v6609, %v5986
    %v6637 = vsel %vm199, %v6612, %v5988
    %v6639 = vsel %vm199, %v6615, %v5990
    %vm6640 = vcmask 392192
    %v6642 = vsel %vm6640, %v6617, %v6124
    %v6644 = vsel %vm6640, %v6619, %v6126
    %v6646 = vsel %vm6640, %v6621, %v6128
    %v6648 = vsel %vm6640, %v6623, %v6130
    %v6650 = vsel %vm6640, %v6625, %v6132
    %v6652 = vsel %vm6640, %v6627, %v6134
    %v6654 = vsel %vm6640, %v6629, %v6136
    %v6656 = vsel %vm6640, %v6631, %v6138
    %v6658 = vsel %vm6640, %v6633, %v6140
    %v6660 = vsel %vm6640, %v6635, %v6142
    %v6662 = vsel %vm6640, %v6637, %v6144
    %v6664 = vsel %vm6640, %v6639, %v6146
    %v6666 = vsel %vm204, %v6642, %v6184
    %v6668 = vsel %vm204, %v6644, %v6186
    %v6670 = vsel %vm204, %v6646, %v6188
    %v6672 = vsel %vm204, %v6648, %v6190
    %v6674 = vsel %vm204, %v6650, %v6192
    %v6676 = vsel %vm204, %v6652, %v6194
    %v6678 = vsel %vm204, %v6654, %v6196
    %v6680 = vsel %vm204, %v6656, %v6198
    %v6682 = vsel %vm204, %v6658, %v6200
    %v6684 = vsel %vm204, %v6660, %v6202
    %v6686 = vsel %vm204, %v6662, %v6204
    %v6688 = vsel %vm204, %v6664, %v6206
    %vm6689 = vcmask 654336
    %v6691 = vsel %vm6689, %v6666, %v6328
    %v6693 = vsel %vm6689, %v6668, %v6330
    %v6695 = vsel %vm6689, %v6670, %v6332
    %v6697 = vsel %vm6689, %v6672, %v6334
    %v6699 = vsel %vm6689, %v6674, %v6336
    %v6701 = vsel %vm6689, %v6676, %v6338
    %v6703 = vsel %vm6689, %v6678, %v6340
    %v6705 = vsel %vm6689, %v6680, %v6342
    %v6707 = vsel %vm6689, %v6682, %v6344
    %v6709 = vsel %vm6689, %v6684, %v6346
    %v6711 = vsel %vm6689, %v6686, %v6348
    %v6713 = vsel %vm6689, %v6688, %v6350
    %v6715 = vsel %vm209, %v6691, %v6400
    %v6717 = vsel %vm209, %v6693, %v6402
    %v6719 = vsel %vm209, %v6695, %v6404
    %v6721 = vsel %vm209, %v6697, %v6406
    %v6723 = vsel %vm209, %v6699, %v6408
    %v6725 = vsel %vm209, %v6701, %v6410
    %v6727 = vsel %vm209, %v6703, %v6412
    %v6729 = vsel %vm209, %v6705, %v6414
    %v6731 = vsel %vm209, %v6707, %v6416
    %v6733 = vsel %vm209, %v6709, %v6418
    %v6735 = vsel %vm209, %v6711, %v6420
    %v6737 = vsel %vm209, %v6713, %v6422
    %vm6738 = vcmask 916480
    %v6740 = vsel %vm6738, %v6715, %v6556
    %v6742 = vsel %vm6738, %v6717, %v6558
    %v6744 = vsel %vm6738, %v6719, %v6560
    %v6746 = vsel %vm6738, %v6721, %v6562
    %v6748 = vsel %vm6738, %v6723, %v6564
    %v6750 = vsel %vm6738, %v6725, %v6566
    %v6752 = vsel %vm6738, %v6727, %v6568
    %v6754 = vsel %vm6738, %v6729, %v6570
    %v6756 = vsel %vm6738, %v6731, %v6572
    %v6758 = vsel %vm6738, %v6733, %v6574
    %v6760 = vsel %vm6738, %v6735, %v6576
    %v6762 = vsel %vm6738, %v6737, %v6578
    %v6776 = vunpack.c.l.s4 1966171168
    %v6777 = vunpack.c.0.s8 %v6776
    %v6778 = vlaneseq
    %v6779 = vshrl.u32 %v6778, 7
    %v6780 = vsub.s32 %v6777, %v6779
    %v6781 = vrot.slane %v6740, %v6780
    %v6782 = vcombine.high %v6781, %v6781
    %v6784 = vunpack.c.l.s4 1966171168
    %v6785 = vunpack.c.0.s8 %v6784
    %v6786 = vlaneseq
    %v6787 = vshrl.u32 %v6786, 7
    %v6788 = vsub.s32 %v6785, %v6787
    %v6789 = vrot.slane %v6781, %v6788
    %v6791 = vunpack.c.l.s4 1966171168
    %v6792 = vunpack.c.0.s8 %v6791
    %v6793 = vlaneseq
    %v6794 = vshrl.u32 %v6793, 7
    %v6795 = vsub.s32 %v6792, %v6794
    %v6796 = vrot.slane %v6782, %v6795
    %v6797 = vcombine.high %v6789, %v6789
    %v6799 = vunpack.c.l.s4 1966171168
    %v6800 = vunpack.c.0.s8 %v6799
    %v6801 = vlaneseq
    %v6802 = vshrl.u32 %v6801, 7
    %v6803 = vsub.s32 %v6800, %v6802
    %v6804 = vrot.slane %v6742, %v6803
    %v6805 = vcombine.high %v6804, %v6804
    %v6807 = vunpack.c.l.s4 1966171168
    %v6808 = vunpack.c.0.s8 %v6807
    %v6809 = vlaneseq
    %v6810 = vshrl.u32 %v6809, 7
    %v6811 = vsub.s32 %v6808, %v6810
    %v6812 = vrot.slane %v6804, %v6811
    %v6814 = vunpack.c.l.s4 1966171168
    %v6815 = vunpack.c.0.s8 %v6814
    %v6816 = vlaneseq
    %v6817 = vshrl.u32 %v6816, 7
    %v6818 = vsub.s32 %v6815, %v6817
    %v6819 = vrot.slane %v6805, %v6818
    %v6820 = vcombine.high %v6812, %v6812
    %v6822 = vunpack.c.l.s4 1966171168
    %v6823 = vunpack.c.0.s8 %v6822
    %v6824 = vlaneseq
    %v6825 = vshrl.u32 %v6824, 7
    %v6826 = vsub.s32 %v6823, %v6825
    %v6827 = vrot.slane %v6744, %v6826
    %v6828 = vcombine.high %v6827, %v6827
    %v6830 = vunpack.c.l.s4 1966171168
    %v6831 = vunpack.c.0.s8 %v6830
    %v6832 = vlaneseq
    %v6833 = vshrl.u32 %v6832, 7
    %v6834 = vsub.s32 %v6831, %v6833
    %v6835 = vrot.slane %v6827, %v6834
    %v6837 = vunpack.c.l.s4 1966171168
    %v6838 = vunpack.c.0.s8 %v6837
    %v6839 = vlaneseq
    %v6840 = vshrl.u32 %v6839, 7
    %v6841 = vsub.s32 %v6838, %v6840
    %v6842 = vrot.slane %v6828, %v6841
    %v6843 = vcombine.high %v6835, %v6835
    %v6845 = vunpack.c.l.s4 1966171168
    %v6846 = vunpack.c.0.s8 %v6845
    %v6847 = vlaneseq
    %v6848 = vshrl.u32 %v6847, 7
    %v6849 = vsub.s32 %v6846, %v6848
    %v6850 = vrot.slane %v6746, %v6849
    %v6851 = vcombine.high %v6850, %v6850
    %v6853 = vunpack.c.l.s4 1966171168
    %v6854 = vunpack.c.0.s8 %v6853
    %v6855 = vlaneseq
    %v6856 = vshrl.u32 %v6855, 7
    %v6857 = vsub.s32 %v6854, %v6856
    %v6858 = vrot.slane %v6850, %v6857
    %v6860 = vunpack.c.l.s4 1966171168
    %v6861 = vunpack.c.0.s8 %v6860
    %v6862 = vlaneseq
    %v6863 = vshrl.u32 %v6862, 7
    %v6864 = vsub.s32 %v6861, %v6863
    %v6865 = vrot.slane %v6851, %v6864
    %v6866 = vcombine.high %v6858, %v6858
    %v6868 = vunpack.c.l.s4 1966171168
    %v6869 = vunpack.c.0.s8 %v6868
    %v6870 = vlaneseq
    %v6871 = vshrl.u32 %v6870, 7
    %v6872 = vsub.s32 %v6869, %v6871
    %v6873 = vrot.slane %v6748, %v6872
    %v6874 = vcombine.high %v6873, %v6873
    %v6876 = vunpack.c.l.s4 1966171168
    %v6877 = vunpack.c.0.s8 %v6876
    %v6878 = vlaneseq
    %v6879 = vshrl.u32 %v6878, 7
    %v6880 = vsub.s32 %v6877, %v6879
    %v6881 = vrot.slane %v6873, %v6880
    %v6883 = vunpack.c.l.s4 1966171168
    %v6884 = vunpack.c.0.s8 %v6883
    %v6885 = vlaneseq
    %v6886 = vshrl.u32 %v6885, 7
    %v6887 = vsub.s32 %v6884, %v6886
    %v6888 = vrot.slane %v6874, %v6887
    %v6889 = vcombine.high %v6881, %v6881
    %v6891 = vunpack.c.l.s4 1966171168
    %v6892 = vunpack.c.0.s8 %v6891
    %v6893 = vlaneseq
    %v6894 = vshrl.u32 %v6893, 7
    %v6895 = vsub.s32 %v6892, %v6894
    %v6896 = vrot.slane %v6750, %v6895
    %v6897 = vcombine.high %v6896, %v6896
    %v6899 = vunpack.c.l.s4 1966171168
    %v6900 = vunpack.c.0.s8 %v6899
    %v6901 = vlaneseq
    %v6902 = vshrl.u32 %v6901, 7
    %v6903 = vsub.s32 %v6900, %v6902
    %v6904 = vrot.slane %v6896, %v6903
    %v6906 = vunpack.c.l.s4 1966171168
    %v6907 = vunpack.c.0.s8 %v6906
    %v6908 = vlaneseq
    %v6909 = vshrl.u32 %v6908, 7
    %v6910 = vsub.s32 %v6907, %v6909
    %v6911 = vrot.slane %v6897, %v6910
    %v6912 = vcombine.high %v6904, %v6904
    %v6914 = vunpack.c.l.s4 1966171168
    %v6915 = vunpack.c.0.s8 %v6914
    %v6916 = vlaneseq
    %v6917 = vshrl.u32 %v6916, 7
    %v6918 = vsub.s32 %v6915, %v6917
    %v6919 = vrot.slane %v6752, %v6918
    %v6920 = vcombine.high %v6919, %v6919
    %v6922 = vunpack.c.l.s4 1966171168
    %v6923 = vunpack.c.0.s8 %v6922
    %v6924 = vlaneseq
    %v6925 = vshrl.u32 %v6924, 7
    %v6926 = vsub.s32 %v6923, %v6925
    %v6927 = vrot.slane %v6919, %v6926
    %v6929 = vunpack.c.l.s4 1966171168
    %v6930 = vunpack.c.0.s8 %v6929
    %v6931 = vlaneseq
    %v6932 = vshrl.u32 %v6931, 7
    %v6933 = vsub.s32 %v6930, %v6932
    %v6934 = vrot.slane %v6920, %v6933
    %v6935 = vcombine.high %v6927, %v6927
    %v6937 = vunpack.c.l.s4 1966171168
    %v6938 = vunpack.c.0.s8 %v6937
    %v6939 = vlaneseq
    %v6940 = vshrl.u32 %v6939, 7
    %v6941 = vsub.s32 %v6938, %v6940
    %v6942 = vrot.slane %v6754, %v6941
    %v6943 = vcombine.high %v6942, %v6942
    %v6945 = vunpack.c.l.s4 1966171168
    %v6946 = vunpack.c.0.s8 %v6945
    %v6947 = vlaneseq
    %v6948 = vshrl.u32 %v6947, 7
    %v6949 = vsub.s32 %v6946, %v6948
    %v6950 = vrot.slane %v6942, %v6949
    %v6952 = vunpack.c.l.s4 1966171168
    %v6953 = vunpack.c.0.s8 %v6952
    %v6954 = vlaneseq
    %v6955 = vshrl.u32 %v6954, 7
    %v6956 = vsub.s32 %v6953, %v6955
    %v6957 = vrot.slane %v6943, %v6956
    %v6958 = vcombine.high %v6950, %v6950
    %v6960 = vunpack.c.l.s4 1966171168
    %v6961 = vunpack.c.0.s8 %v6960
    %v6962 = vlaneseq
    %v6963 = vshrl.u32 %v6962, 7
    %v6964 = vsub.s32 %v6961, %v6963
    %v6965 = vrot.slane %v6756, %v6964
    %v6966 = vcombine.high %v6965, %v6965
    %v6968 = vunpack.c.l.s4 1966171168
    %v6969 = vunpack.c.0.s8 %v6968
    %v6970 = vlaneseq
    %v6971 = vshrl.u32 %v6970, 7
    %v6972 = vsub.s32 %v6969, %v6971
    %v6973 = vrot.slane %v6965, %v6972
    %v6975 = vunpack.c.l.s4 1966171168
    %v6976 = vunpack.c.0.s8 %v6975
    %v6977 = vlaneseq
    %v6978 = vshrl.u32 %v6977, 7
    %v6979 = vsub.s32 %v6976, %v6978
    %v6980 = vrot.slane %v6966, %v6979
    %v6981 = vcombine.high %v6973, %v6973
    %v6983 = vunpack.c.l.s4 1966171168
    %v6984 = vunpack.c.0.s8 %v6983
    %v6985 = vlaneseq
    %v6986 = vshrl.u32 %v6985, 7
    %v6987 = vsub.s32 %v6984, %v6986
    %v6988 = vrot.slane %v6758, %v6987
    %v6989 = vcombine.high %v6988, %v6988
    %v6991 = vunpack.c.l.s4 1966171168
    %v6992 = vunpack.c.0.s8 %v6991
    %v6993 = vlaneseq
    %v6994 = vshrl.u32 %v6993, 7
    %v6995 = vsub.s32 %v6992, %v6994
    %v6996 = vrot.slane %v6988, %v6995
    %v6998 = vunpack.c.l.s4 1966171168
    %v6999 = vunpack.c.0.s8 %v6998
    %v7000 = vlaneseq
    %v7001 = vshrl.u32 %v7000, 7
    %v7002 = vsub.s32 %v6999, %v7001
    %v7003 = vrot.slane %v6989, %v7002
    %v7004 = vcombine.high %v6996, %v6996
    %v7006 = vunpack.c.l.s4 1966171168
    %v7007 = vunpack.c.0.s8 %v7006
    %v7008 = vlaneseq
    %v7009 = vshrl.u32 %v7008, 7
    %v7010 = vsub.s32 %v7007, %v7009
    %v7011 = vrot.slane %v6760, %v7010
    %v7012 = vcombine.high %v7011, %v7011
    %v7014 = vunpack.c.l.s4 1966171168
    %v7015 = vunpack.c.0.s8 %v7014
    %v7016 = vlaneseq
    %v7017 = vshrl.u32 %v7016, 7
    %v7018 = vsub.s32 %v7015, %v7017
    %v7019 = vrot.slane %v7011, %v7018
    %v7021 = vunpack.c.l.s4 1966171168
    %v7022 = vunpack.c.0.s8 %v7021
    %v7023 = vlaneseq
    %v7024 = vshrl.u32 %v7023, 7
    %v7025 = vsub.s32 %v7022, %v7024
    %v7026 = vrot.slane %v7012, %v7025
    %v7027 = vcombine.high %v7019, %v7019
    %v7029 = vunpack.c.l.s4 1966171168
    %v7030 = vunpack.c.0.s8 %v7029
    %v7031 = vlaneseq
    %v7032 = vshrl.u32 %v7031, 7
    %v7033 = vsub.s32 %v7030, %v7032
    %v7034 = vrot.slane %v6762, %v7033
    %v7035 = vcombine.high %v7034, %v7034
    %v7037 = vunpack.c.l.s4 1966171168
    %v7038 = vunpack.c.0.s8 %v7037
    %v7039 = vlaneseq
    %v7040 = vshrl.u32 %v7039, 7
    %v7041 = vsub.s32 %v7038, %v7040
    %v7042 = vrot.slane %v7034, %v7041
    %v7044 = vunpack.c.l.s4 1966171168
    %v7045 = vunpack.c.0.s8 %v7044
    %v7046 = vlaneseq
    %v7047 = vshrl.u32 %v7046, 7
    %v7048 = vsub.s32 %v7045, %v7047
    %v7049 = vrot.slane %v7035, %v7048
    %v7050 = vcombine.high %v7042, %v7042
    %v7051 = vcombine.low %v6789, %v6797
    %v7052 = vcombine.low %v6796, %v6812
    %v7054 = vunpack.c.l.s4 1935823168
    %v7055 = vunpack.c.0.s8 %v7054
    %v7056 = vlaneseq
    %v7057 = vshrl.u32 %v7056, 7
    %v7058 = vsub.s32 %v7055, %v7057
    %v7059 = vrot.slane %v7051, %v7058
    %v7061 = vunpack.c.l.s4 1935823168
    %v7062 = vunpack.c.0.s8 %v7061
    %v7063 = vlaneseq
    %v7064 = vshrl.u32 %v7063, 7
    %v7065 = vsub.s32 %v7062, %v7064
    %v7066 = vrot.slane %v7052, %v7065
    %v7067 = vcombine.low %v7059, %v7066
    %v7069 = vunpack.c.l.s4 1935823168
    %v7070 = vunpack.c.0.s8 %v7069
    %v7071 = vlaneseq
    %v7072 = vshrl.u32 %v7071, 7
    %v7073 = vsub.s32 %v7070, %v7072
    %v7074 = vrot.slane %v7067, %v7073
    %v7075 = vcombine.low %v6819, %v6835
    %v7076 = vcombine.low %v6820, %v6842
    %v7078 = vunpack.c.l.s4 1935823168
    %v7079 = vunpack.c.0.s8 %v7078
    %v7080 = vlaneseq
    %v7081 = vshrl.u32 %v7080, 7
    %v7082 = vsub.s32 %v7079, %v7081
    %v7083 = vrot.slane %v7075, %v7082
    %v7085 = vunpack.c.l.s4 1935823168
    %v7086 = vunpack.c.0.s8 %v7085
    %v7087 = vlaneseq
    %v7088 = vshrl.u32 %v7087, 7
    %v7089 = vsub.s32 %v7086, %v7088
    %v7090 = vrot.slane %v7076, %v7089
    %v7091 = vcombine.low %v7083, %v7090
    %v7093 = vunpack.c.l.s4 1935823168
    %v7094 = vunpack.c.0.s8 %v7093
    %v7095 = vlaneseq
    %v7096 = vshrl.u32 %v7095, 7
    %v7097 = vsub.s32 %v7094, %v7096
    %v7098 = vrot.slane %v7091, %v7097
    %v7099 = vcombine.low %v6843, %v6865
    %v7100 = vcombine.low %v6858, %v6866
    %v7102 = vunpack.c.l.s4 1935823168
    %v7103 = vunpack.c.0.s8 %v7102
    %v7104 = vlaneseq
    %v7105 = vshrl.u32 %v7104, 7
    %v7106 = vsub.s32 %v7103, %v7105
    %v7107 = vrot.slane %v7099, %v7106
    %v7109 = vunpack.c.l.s4 1935823168
    %v7110 = vunpack.c.0.s8 %v7109
    %v7111 = vlaneseq
    %v7112 = vshrl.u32 %v7111, 7
    %v7113 = vsub.s32 %v7110, %v7112
    %v7114 = vrot.slane %v7100, %v7113
    %v7115 = vcombine.low %v7107, %v7114
    %v7117 = vunpack.c.l.s4 1935823168
    %v7118 = vunpack.c.0.s8 %v7117
    %v7119 = vlaneseq
    %v7120 = vshrl.u32 %v7119, 7
    %v7121 = vsub.s32 %v7118, %v7120
    %v7122 = vrot.slane %v7115, %v7121
    %v7123 = vcombine.low %v6881, %v6889
    %v7124 = vcombine.low %v6888, %v6904
    %v7126 = vunpack.c.l.s4 1935823168
    %v7127 = vunpack.c.0.s8 %v7126
    %v7128 = vlaneseq
    %v7129 = vshrl.u32 %v7128, 7
    %v7130 = vsub.s32 %v7127, %v7129
    %v7131 = vrot.slane %v7123, %v7130
    %v7133 = vunpack.c.l.s4 1935823168
    %v7134 = vunpack.c.0.s8 %v7133
    %v7135 = vlaneseq
    %v7136 = vshrl.u32 %v7135, 7
    %v7137 = vsub.s32 %v7134, %v7136
    %v7138 = vrot.slane %v7124, %v7137
    %v7139 = vcombine.low %v7131, %v7138
    %v7141 = vunpack.c.l.s4 1935823168
    %v7142 = vunpack.c.0.s8 %v7141
    %v7143 = vlaneseq
    %v7144 = vshrl.u32 %v7143, 7
    %v7145 = vsub.s32 %v7142, %v7144
    %v7146 = vrot.slane %v7139, %v7145
    %v7147 = vcombine.low %v6911, %v6927
    %v7148 = vcombine.low %v6912, %v6934
    %v7150 = vunpack.c.l.s4 1935823168
    %v7151 = vunpack.c.0.s8 %v7150
    %v7152 = vlaneseq
    %v7153 = vshrl.u32 %v7152, 7
    %v7154 = vsub.s32 %v7151, %v7153
    %v7155 = vrot.slane %v7147, %v7154
    %v7157 = vunpack.c.l.s4 1935823168
    %v7158 = vunpack.c.0.s8 %v7157
    %v7159 = vlaneseq
    %v7160 = vshrl.u32 %v7159, 7
    %v7161 = vsub.s32 %v7158, %v7160
    %v7162 = vrot.slane %v7148, %v7161
    %v7163 = vcombine.low %v7155, %v7162
    %v7165 = vunpack.c.l.s4 1935823168
    %v7166 = vunpack.c.0.s8 %v7165
    %v7167 = vlaneseq
    %v7168 = vshrl.u32 %v7167, 7
    %v7169 = vsub.s32 %v7166, %v7168
    %v7170 = vrot.slane %v7163, %v7169
    %v7171 = vcombine.low %v6935, %v6957
    %v7172 = vcombine.low %v6950, %v6958
    %v7174 = vunpack.c.l.s4 1935823168
    %v7175 = vunpack.c.0.s8 %v7174
    %v7176 = vlaneseq
    %v7177 = vshrl.u32 %v7176, 7
    %v7178 = vsub.s32 %v7175, %v7177
    %v7179 = vrot.slane %v7171, %v7178
    %v7181 = vunpack.c.l.s4 1935823168
    %v7182 = vunpack.c.0.s8 %v7181
    %v7183 = vlaneseq
    %v7184 = vshrl.u32 %v7183, 7
    %v7185 = vsub.s32 %v7182, %v7184
    %v7186 = vrot.slane %v7172, %v7185
    %v7187 = vcombine.low %v7179, %v7186
    %v7189 = vunpack.c.l.s4 1935823168
    %v7190 = vunpack.c.0.s8 %v7189
    %v7191 = vlaneseq
    %v7192 = vshrl.u32 %v7191, 7
    %v7193 = vsub.s32 %v7190, %v7192
    %v7194 = vrot.slane %v7187, %v7193
    %v7195 = vcombine.low %v6973, %v6981
    %v7196 = vcombine.low %v6980, %v6996
    %v7198 = vunpack.c.l.s4 1935823168
    %v7199 = vunpack.c.0.s8 %v7198
    %v7200 = vlaneseq
    %v7201 = vshrl.u32 %v7200, 7
    %v7202 = vsub.s32 %v7199, %v7201
    %v7203 = vrot.slane %v7195, %v7202
    %v7205 = vunpack.c.l.s4 1935823168
    %v7206 = vunpack.c.0.s8 %v7205
    %v7207 = vlaneseq
    %v7208 = vshrl.u32 %v7207, 7
    %v7209 = vsub.s32 %v7206, %v7208
    %v7210 = vrot.slane %v7196, %v7209
    %v7211 = vcombine.low %v7203, %v7210
    %v7213 = vunpack.c.l.s4 1935823168
    %v7214 = vunpack.c.0.s8 %v7213
    %v7215 = vlaneseq
    %v7216 = vshrl.u32 %v7215, 7
    %v7217 = vsub.s32 %v7214, %v7216
    %v7218 = vrot.slane %v7211, %v7217
    %v7219 = vcombine.low %v7003, %v7019
    %v7220 = vcombine.low %v7004, %v7026
    %v7222 = vunpack.c.l.s4 1935823168
    %v7223 = vunpack.c.0.s8 %v7222
    %v7224 = vlaneseq
    %v7225 = vshrl.u32 %v7224, 7
    %v7226 = vsub.s32 %v7223, %v7225
    %v7227 = vrot.slane %v7219, %v7226
    %v7229 = vunpack.c.l.s4 1935823168
    %v7230 = vunpack.c.0.s8 %v7229
    %v7231 = vlaneseq
    %v7232 = vshrl.u32 %v7231, 7
    %v7233 = vsub.s32 %v7230, %v7232
    %v7234 = vrot.slane %v7220, %v7233
    %v7235 = vcombine.low %v7227, %v7234
    %v7237 = vunpack.c.l.s4 1935823168
    %v7238 = vunpack.c.0.s8 %v7237
    %v7239 = vlaneseq
    %v7240 = vshrl.u32 %v7239, 7
    %v7241 = vsub.s32 %v7238, %v7240
    %v7242 = vrot.slane %v7235, %v7241
    %v7243 = vcombine.low %v7027, %v7049
    %v7244 = vcombine.low %v7042, %v7050
    %v7246 = vunpack.c.l.s4 1935823168
    %v7247 = vunpack.c.0.s8 %v7246
    %v7248 = vlaneseq
    %v7249 = vshrl.u32 %v7248, 7
    %v7250 = vsub.s32 %v7247, %v7249
    %v7251 = vrot.slane %v7243, %v7250
    %v7253 = vunpack.c.l.s4 1935823168
    %v7254 = vunpack.c.0.s8 %v7253
    %v7255 = vlaneseq
    %v7256 = vshrl.u32 %v7255, 7
    %v7257 = vsub.s32 %v7254, %v7256
    %v7258 = vrot.slane %v7244, %v7257
    %v7259 = vcombine.low %v7251, %v7258
    %v7261 = vunpack.c.l.s4 1935823168
    %v7262 = vunpack.c.0.s8 %v7261
    %v7263 = vlaneseq
    %v7264 = vshrl.u32 %v7263, 7
    %v7265 = vsub.s32 %v7262, %v7264
    %v7266 = vrot.slane %v7259, %v7265
    %7276 = vst [vmem:[#allocation3] sm:$0xf] %v7074
    %7277 = vst [vmem:[#allocation3 + $0x8] sm:$0xf] %v7098
    %7278 = vst [vmem:[#allocation3 + $0x10] sm:$0xf] %v7122
    %7279 = vst [vmem:[#allocation3 + $0x18] sm:$0xf] %v7146
    %7280 = vst [vmem:[#allocation3 + $0x20] sm:$0xf] %v7170
    %7281 = vst [vmem:[#allocation3 + $0x28] sm:$0xf] %v7194
    %7282 = vst [vmem:[#allocation3 + $0x30] sm:$0xf] %v7218
    %7283 = vst [vmem:[#allocation3 + $0x38] sm:$0xf] %v7242
    %7284 = vst [vmem:[#allocation3 + $0x40] sm:$0xf] %v7266
    %s7285 = scalar_lea.vmem [#allocation5], 16
    %v7286 = vld [vmem:[%s7285] sm:$0x7]
    %v7287 = vld [vmem:[%s7285 + $0x8] sm:$0x7]
    %v7288 = vld [vmem:[%s7285 + $0x10] sm:$0x7]
    %v7289 = vld [vmem:[%s7285 + $0x18] sm:$0x7]
    %v7290 = vld [vmem:[%s7285 + $0x20] sm:$0x7]
    %v7291 = vld [vmem:[%s7285 + $0x28] sm:$0x7]
    %v7292 = vld [vmem:[%s7285 + $0x48] sm:$0x7]
    %v7293 = vld [vmem:[%s7285 + $0x50] sm:$0x7]
    %v7294 = vld [vmem:[%s7285 + $0x58] sm:$0x7]
    %v7295 = vld [vmem:[%s7285 + $0x60] sm:$0x7]
    %v7296 = vld [vmem:[%s7285 + $0x68] sm:$0x7]
    %v7297 = vld [vmem:[%s7285 + $0x70] sm:$0x7]
    %v7298 = vld [vmem:[%s7285] sm:$0xf]
    %v7299 = vld [vmem:[%s7285 + $0x8] sm:$0xf]
    %v7300 = vld [vmem:[%s7285 + $0x10] sm:$0xf]
    %v7301 = vld [vmem:[%s7285 + $0x18] sm:$0xf]
    %v7302 = vld [vmem:[%s7285 + $0x20] sm:$0xf]
    %v7303 = vld [vmem:[%s7285 + $0x28] sm:$0xf]
    %v7304 = vld [vmem:[%s7285 + $0x48] sm:$0xf]
    %v7305 = vld [vmem:[%s7285 + $0x50] sm:$0xf]
    %v7306 = vld [vmem:[%s7285 + $0x58] sm:$0xf]
    %v7307 = vld [vmem:[%s7285 + $0x60] sm:$0xf]
    %v7308 = vld [vmem:[%s7285 + $0x68] sm:$0xf]
    %v7309 = vld [vmem:[%s7285 + $0x70] sm:$0xf]
    %v7310 = vld [vmem:[%s7285] sm:$0xe]
    %v7311 = vld [vmem:[%s7285 + $0x8] sm:$0xe]
    %v7312 = vld [vmem:[%s7285 + $0x10] sm:$0xe]
    %v7313 = vld [vmem:[%s7285 + $0x18] sm:$0xe]
    %v7314 = vld [vmem:[%s7285 + $0x20] sm:$0xe]
    %v7315 = vld [vmem:[%s7285 + $0x28] sm:$0xe]
    %v7316 = vld [vmem:[%s7285 + $0x48] sm:$0xe]
    %v7317 = vld [vmem:[%s7285 + $0x50] sm:$0xe]
    %v7318 = vld [vmem:[%s7285 + $0x58] sm:$0xe]
    %v7319 = vld [vmem:[%s7285 + $0x60] sm:$0xe]
    %v7320 = vld [vmem:[%s7285 + $0x68] sm:$0xe]
    %v7321 = vld [vmem:[%s7285 + $0x70] sm:$0xe]
    %v7322 = vld [vmem:[%s7285 + $0x4] sm:$0x1]
    %v7323 = vld [vmem:[%s7285 + $0xc] sm:$0x1]
    %v7324 = vld [vmem:[%s7285 + $0x14] sm:$0x1]
    %v7325 = vld [vmem:[%s7285 + $0x1c] sm:$0x1]
    %v7326 = vld [vmem:[%s7285 + $0x24] sm:$0x1]
    %v7327 = vld [vmem:[%s7285 + $0x2c] sm:$0x1]
    %v7328 = vld [vmem:[%s7285 + $0x4c] sm:$0x1]
    %v7329 = vld [vmem:[%s7285 + $0x54] sm:$0x1]
    %v7330 = vld [vmem:[%s7285 + $0x5c] sm:$0x1]
    %v7331 = vld [vmem:[%s7285 + $0x64] sm:$0x1]
    %v7332 = vld [vmem:[%s7285 + $0x6c] sm:$0x1]
    %v7333 = vld [vmem:[%s7285 + $0x74] sm:$0x1]
    %s7334 = scalar_lea.vmem [#allocation5], 24
    %v7335 = vld [vmem:[%s7334] sm:$0x7]
    %v7336 = vld [vmem:[%s7334 + $0x8] sm:$0x7]
    %v7337 = vld [vmem:[%s7334 + $0x10] sm:$0x7]
    %v7338 = vld [vmem:[%s7334 + $0x18] sm:$0x7]
    %v7339 = vld [vmem:[%s7334 + $0x20] sm:$0x7]
    %v7340 = vld [vmem:[%s7334 + $0x28] sm:$0x7]
    %v7341 = vld [vmem:[%s7334 + $0x48] sm:$0x7]
    %v7342 = vld [vmem:[%s7334 + $0x50] sm:$0x7]
    %v7343 = vld [vmem:[%s7334 + $0x58] sm:$0x7]
    %v7344 = vld [vmem:[%s7334 + $0x60] sm:$0x7]
    %v7345 = vld [vmem:[%s7334 + $0x68] sm:$0x7]
    %v7346 = vld [vmem:[%s7334 + $0x70] sm:$0x7]
    %v7347 = vld [vmem:[%s7334] sm:$0xf]
    %v7348 = vld [vmem:[%s7334 + $0x8] sm:$0xf]
    %v7349 = vld [vmem:[%s7334 + $0x10] sm:$0xf]
    %v7350 = vld [vmem:[%s7334 + $0x18] sm:$0xf]
    %v7351 = vld [vmem:[%s7334 + $0x20] sm:$0xf]
    %v7352 = vld [vmem:[%s7334 + $0x28] sm:$0xf]
    %v7353 = vld [vmem:[%s7334 + $0x48] sm:$0xf]
    %v7354 = vld [vmem:[%s7334 + $0x50] sm:$0xf]
    %v7355 = vld [vmem:[%s7334 + $0x58] sm:$0xf]
    %v7356 = vld [vmem:[%s7334 + $0x60] sm:$0xf]
    %v7357 = vld [vmem:[%s7334 + $0x68] sm:$0xf]
    %v7358 = vld [vmem:[%s7334 + $0x70] sm:$0xf]
    %v7359 = vld [vmem:[%s7334] sm:$0xe]
    %v7360 = vld [vmem:[%s7334 + $0x8] sm:$0xe]
    %v7361 = vld [vmem:[%s7334 + $0x10] sm:$0xe]
    %v7362 = vld [vmem:[%s7334 + $0x18] sm:$0xe]
    %v7363 = vld [vmem:[%s7334 + $0x20] sm:$0xe]
    %v7364 = vld [vmem:[%s7334 + $0x28] sm:$0xe]
    %v7365 = vld [vmem:[%s7334 + $0x48] sm:$0xe]
    %v7366 = vld [vmem:[%s7334 + $0x50] sm:$0xe]
    %v7367 = vld [vmem:[%s7334 + $0x58] sm:$0xe]
    %v7368 = vld [vmem:[%s7334 + $0x60] sm:$0xe]
    %v7369 = vld [vmem:[%s7334 + $0x68] sm:$0xe]
    %v7370 = vld [vmem:[%s7334 + $0x70] sm:$0xe]
    %v7371 = vld [vmem:[%s7334 + $0x4] sm:$0x1]
    %v7372 = vld [vmem:[%s7334 + $0xc] sm:$0x1]
    %v7373 = vld [vmem:[%s7334 + $0x14] sm:$0x1]
    %v7374 = vld [vmem:[%s7334 + $0x1c] sm:$0x1]
    %v7375 = vld [vmem:[%s7334 + $0x24] sm:$0x1]
    %v7376 = vld [vmem:[%s7334 + $0x2c] sm:$0x1]
    %v7377 = vld [vmem:[%s7334 + $0x4c] sm:$0x1]
    %v7378 = vld [vmem:[%s7334 + $0x54] sm:$0x1]
    %v7379 = vld [vmem:[%s7334 + $0x5c] sm:$0x1]
    %v7380 = vld [vmem:[%s7334 + $0x64] sm:$0x1]
    %v7381 = vld [vmem:[%s7334 + $0x6c] sm:$0x1]
    %v7382 = vld [vmem:[%s7334 + $0x74] sm:$0x1]
    %v7395 = vunpack.c.l.b16 %v7298
    %v7396 = vunpack.c.l.b16 %v7299
    %v7397 = vunpack.c.l.b16 %v7300
    %v7398 = vunpack.c.l.b16 %v7301
    %v7399 = vunpack.c.l.b16 %v7302
    %v7400 = vunpack.c.l.b16 %v7303
    %v7401 = vunpack.c.l.b16 %v7304
    %v7402 = vunpack.c.l.b16 %v7305
    %v7403 = vunpack.c.l.b16 %v7306
    %v7404 = vunpack.c.l.b16 %v7307
    %v7405 = vunpack.c.l.b16 %v7308
    %v7406 = vunpack.c.l.b16 %v7309
    %v7407 = vpack.c.b16 %v7395, %v7395
    %v7408 = vpack.c.b16 %v7396, %v7396
    %v7409 = vpack.c.b16 %v7397, %v7397
    %v7410 = vpack.c.b16 %v7398, %v7398
    %v7411 = vpack.c.b16 %v7399, %v7399
    %v7412 = vpack.c.b16 %v7400, %v7400
    %v7413 = vpack.c.b16 %v7401, %v7401
    %v7414 = vpack.c.b16 %v7402, %v7402
    %v7415 = vpack.c.b16 %v7403, %v7403
    %v7416 = vpack.c.b16 %v7404, %v7404
    %v7417 = vpack.c.b16 %v7405, %v7405
    %v7418 = vpack.c.b16 %v7406, %v7406
    %v7420 = vshrl.u32 %v7407, 16
    %v7422 = vshll.u32 %v7407, 16
    %v7424 = vrot.slane %v7422, 1
    %v7425 = vor.u32 %v7420, %v7424
    %v7427 = vshrl.u32 %v7408, 16
    %v7429 = vshll.u32 %v7408, 16
    %v7431 = vrot.slane %v7429, 1
    %v7432 = vor.u32 %v7427, %v7431
    %v7434 = vshrl.u32 %v7409, 16
    %v7436 = vshll.u32 %v7409, 16
    %v7438 = vrot.slane %v7436, 1
    %v7439 = vor.u32 %v7434, %v7438
    %v7441 = vshrl.u32 %v7410, 16
    %v7443 = vshll.u32 %v7410, 16
    %v7445 = vrot.slane %v7443, 1
    %v7446 = vor.u32 %v7441, %v7445
    %v7448 = vshrl.u32 %v7411, 16
    %v7450 = vshll.u32 %v7411, 16
    %v7452 = vrot.slane %v7450, 1
    %v7453 = vor.u32 %v7448, %v7452
    %v7455 = vshrl.u32 %v7412, 16
    %v7457 = vshll.u32 %v7412, 16
    %v7459 = vrot.slane %v7457, 1
    %v7460 = vor.u32 %v7455, %v7459
    %v7462 = vshrl.u32 %v7413, 16
    %v7464 = vshll.u32 %v7413, 16
    %v7466 = vrot.slane %v7464, 1
    %v7467 = vor.u32 %v7462, %v7466
    %v7469 = vshrl.u32 %v7414, 16
    %v7471 = vshll.u32 %v7414, 16
    %v7473 = vrot.slane %v7471, 1
    %v7474 = vor.u32 %v7469, %v7473
    %v7476 = vshrl.u32 %v7415, 16
    %v7478 = vshll.u32 %v7415, 16
    %v7480 = vrot.slane %v7478, 1
    %v7481 = vor.u32 %v7476, %v7480
    %v7483 = vshrl.u32 %v7416, 16
    %v7485 = vshll.u32 %v7416, 16
    %v7487 = vrot.slane %v7485, 1
    %v7488 = vor.u32 %v7483, %v7487
    %v7490 = vshrl.u32 %v7417, 16
    %v7492 = vshll.u32 %v7417, 16
    %v7494 = vrot.slane %v7492, 1
    %v7495 = vor.u32 %v7490, %v7494
    %v7497 = vshrl.u32 %v7418, 16
    %v7499 = vshll.u32 %v7418, 16
    %v7501 = vrot.slane %v7499, 1
    %v7502 = vor.u32 %v7497, %v7501
    %7503 = vrot.lane.b32.xlu0 %v7425, 16
    %v7504 = vpop.permute.xlu0 %7503
    %7505 = vrot.lane.b32.xlu0 %v7432, 16
    %v7506 = vpop.permute.xlu0 %7505
    %7507 = vrot.lane.b32.xlu0 %v7439, 16
    %v7508 = vpop.permute.xlu0 %7507
    %7509 = vrot.lane.b32.xlu0 %v7446, 16
    %v7510 = vpop.permute.xlu0 %7509
    %7511 = vrot.lane.b32.xlu0 %v7453, 16
    %v7512 = vpop.permute.xlu0 %7511
    %7513 = vrot.lane.b32.xlu0 %v7460, 16
    %v7514 = vpop.permute.xlu0 %7513
    %7515 = vrot.lane.b32.xlu0 %v7467, 16
    %v7516 = vpop.permute.xlu0 %7515
    %7517 = vrot.lane.b32.xlu0 %v7474, 16
    %v7518 = vpop.permute.xlu0 %7517
    %7519 = vrot.lane.b32.xlu0 %v7481, 16
    %v7520 = vpop.permute.xlu0 %7519
    %7521 = vrot.lane.b32.xlu0 %v7488, 16
    %v7522 = vpop.permute.xlu0 %7521
    %7523 = vrot.lane.b32.xlu0 %v7495, 16
    %v7524 = vpop.permute.xlu0 %7523
    %7525 = vrot.lane.b32.xlu0 %v7502, 16
    %v7526 = vpop.permute.xlu0 %7525
    %v7539 = vunpack.c.l.b16 %v7310
    %v7540 = vunpack.c.l.b16 %v7311
    %v7541 = vunpack.c.l.b16 %v7312
    %v7542 = vunpack.c.l.b16 %v7313
    %v7543 = vunpack.c.l.b16 %v7314
    %v7544 = vunpack.c.l.b16 %v7315
    %v7545 = vunpack.c.l.b16 %v7316
    %v7546 = vunpack.c.l.b16 %v7317
    %v7547 = vunpack.c.l.b16 %v7318
    %v7548 = vunpack.c.l.b16 %v7319
    %v7549 = vunpack.c.l.b16 %v7320
    %v7550 = vunpack.c.l.b16 %v7321
    %v7551 = vpack.c.b16 %v7539, %v7539
    %v7552 = vpack.c.b16 %v7540, %v7540
    %v7553 = vpack.c.b16 %v7541, %v7541
    %v7554 = vpack.c.b16 %v7542, %v7542
    %v7555 = vpack.c.b16 %v7543, %v7543
    %v7556 = vpack.c.b16 %v7544, %v7544
    %v7557 = vpack.c.b16 %v7545, %v7545
    %v7558 = vpack.c.b16 %v7546, %v7546
    %v7559 = vpack.c.b16 %v7547, %v7547
    %v7560 = vpack.c.b16 %v7548, %v7548
    %v7561 = vpack.c.b16 %v7549, %v7549
    %v7562 = vpack.c.b16 %v7550, %v7550
    %v7563 = vrot.slane %v7551, 1
    %v7564 = vrot.slane %v7552, 1
    %v7565 = vrot.slane %v7553, 1
    %v7566 = vrot.slane %v7554, 1
    %v7567 = vrot.slane %v7555, 1
    %v7568 = vrot.slane %v7556, 1
    %v7569 = vrot.slane %v7557, 1
    %v7570 = vrot.slane %v7558, 1
    %v7571 = vrot.slane %v7559, 1
    %v7572 = vrot.slane %v7560, 1
    %v7573 = vrot.slane %v7561, 1
    %v7574 = vrot.slane %v7562, 1
    %7575 = vrot.lane.b32.xlu0 %v7563, 32
    %v7576 = vpop.permute.xlu0 %7575
    %7577 = vrot.lane.b32.xlu0 %v7564, 32
    %v7578 = vpop.permute.xlu0 %7577
    %7579 = vrot.lane.b32.xlu0 %v7565, 32
    %v7580 = vpop.permute.xlu0 %7579
    %7581 = vrot.lane.b32.xlu0 %v7566, 32
    %v7582 = vpop.permute.xlu0 %7581
    %7583 = vrot.lane.b32.xlu0 %v7567, 32
    %v7584 = vpop.permute.xlu0 %7583
    %7585 = vrot.lane.b32.xlu0 %v7568, 32
    %v7586 = vpop.permute.xlu0 %7585
    %7587 = vrot.lane.b32.xlu0 %v7569, 32
    %v7588 = vpop.permute.xlu0 %7587
    %7589 = vrot.lane.b32.xlu0 %v7570, 32
    %v7590 = vpop.permute.xlu0 %7589
    %7591 = vrot.lane.b32.xlu0 %v7571, 32
    %v7592 = vpop.permute.xlu0 %7591
    %7593 = vrot.lane.b32.xlu0 %v7572, 32
    %v7594 = vpop.permute.xlu0 %7593
    %7595 = vrot.lane.b32.xlu0 %v7573, 32
    %v7596 = vpop.permute.xlu0 %7595
    %7597 = vrot.lane.b32.xlu0 %v7574, 32
    %v7598 = vpop.permute.xlu0 %7597
    %v7611 = vunpack.c.l.b16 %v7322
    %v7612 = vunpack.c.l.b16 %v7323
    %v7613 = vunpack.c.l.b16 %v7324
    %v7614 = vunpack.c.l.b16 %v7325
    %v7615 = vunpack.c.l.b16 %v7326
    %v7616 = vunpack.c.l.b16 %v7327
    %v7617 = vunpack.c.l.b16 %v7328
    %v7618 = vunpack.c.l.b16 %v7329
    %v7619 = vunpack.c.l.b16 %v7330
    %v7620 = vunpack.c.l.b16 %v7331
    %v7621 = vunpack.c.l.b16 %v7332
    %v7622 = vunpack.c.l.b16 %v7333
    %v7623 = vpack.c.b16 %v7611, %v7539
    %v7624 = vpack.c.b16 %v7612, %v7540
    %v7625 = vpack.c.b16 %v7613, %v7541
    %v7626 = vpack.c.b16 %v7614, %v7542
    %v7627 = vpack.c.b16 %v7615, %v7543
    %v7628 = vpack.c.b16 %v7616, %v7544
    %v7629 = vpack.c.b16 %v7617, %v7545
    %v7630 = vpack.c.b16 %v7618, %v7546
    %v7631 = vpack.c.b16 %v7619, %v7547
    %v7632 = vpack.c.b16 %v7620, %v7548
    %v7633 = vpack.c.b16 %v7621, %v7549
    %v7634 = vpack.c.b16 %v7622, %v7550
    %v7636 = vshrl.u32 %v7623, 16
    %v7638 = vrot.slane %v7636, 1
    %v7639 = vshll.u32 %v7623, 16
    %v7641 = vrot.slane %v7639, 2
    %v7642 = vor.u32 %v7638, %v7641
    %v7644 = vshrl.u32 %v7624, 16
    %v7646 = vrot.slane %v7644, 1
    %v7647 = vshll.u32 %v7624, 16
    %v7649 = vrot.slane %v7647, 2
    %v7650 = vor.u32 %v7646, %v7649
    %v7652 = vshrl.u32 %v7625, 16
    %v7654 = vrot.slane %v7652, 1
    %v7655 = vshll.u32 %v7625, 16
    %v7657 = vrot.slane %v7655, 2
    %v7658 = vor.u32 %v7654, %v7657
    %v7660 = vshrl.u32 %v7626, 16
    %v7662 = vrot.slane %v7660, 1
    %v7663 = vshll.u32 %v7626, 16
    %v7665 = vrot.slane %v7663, 2
    %v7666 = vor.u32 %v7662, %v7665
    %v7668 = vshrl.u32 %v7627, 16
    %v7670 = vrot.slane %v7668, 1
    %v7671 = vshll.u32 %v7627, 16
    %v7673 = vrot.slane %v7671, 2
    %v7674 = vor.u32 %v7670, %v7673
    %v7676 = vshrl.u32 %v7628, 16
    %v7678 = vrot.slane %v7676, 1
    %v7679 = vshll.u32 %v7628, 16
    %v7681 = vrot.slane %v7679, 2
    %v7682 = vor.u32 %v7678, %v7681
    %v7684 = vshrl.u32 %v7629, 16
    %v7686 = vrot.slane %v7684, 1
    %v7687 = vshll.u32 %v7629, 16
    %v7689 = vrot.slane %v7687, 2
    %v7690 = vor.u32 %v7686, %v7689
    %v7692 = vshrl.u32 %v7630, 16
    %v7694 = vrot.slane %v7692, 1
    %v7695 = vshll.u32 %v7630, 16
    %v7697 = vrot.slane %v7695, 2
    %v7698 = vor.u32 %v7694, %v7697
    %v7700 = vshrl.u32 %v7631, 16
    %v7702 = vrot.slane %v7700, 1
    %v7703 = vshll.u32 %v7631, 16
    %v7705 = vrot.slane %v7703, 2
    %v7706 = vor.u32 %v7702, %v7705
    %v7708 = vshrl.u32 %v7632, 16
    %v7710 = vrot.slane %v7708, 1
    %v7711 = vshll.u32 %v7632, 16
    %v7713 = vrot.slane %v7711, 2
    %v7714 = vor.u32 %v7710, %v7713
    %v7716 = vshrl.u32 %v7633, 16
    %v7718 = vrot.slane %v7716, 1
    %v7719 = vshll.u32 %v7633, 16
    %v7721 = vrot.slane %v7719, 2
    %v7722 = vor.u32 %v7718, %v7721
    %v7724 = vshrl.u32 %v7634, 16
    %v7726 = vrot.slane %v7724, 1
    %v7727 = vshll.u32 %v7634, 16
    %v7729 = vrot.slane %v7727, 2
    %v7730 = vor.u32 %v7726, %v7729
    %7731 = vrot.lane.b32.xlu0 %v7642, 48
    %v7732 = vpop.permute.xlu0 %7731
    %7733 = vrot.lane.b32.xlu0 %v7650, 48
    %v7734 = vpop.permute.xlu0 %7733
    %7735 = vrot.lane.b32.xlu0 %v7658, 48
    %v7736 = vpop.permute.xlu0 %7735
    %7737 = vrot.lane.b32.xlu0 %v7666, 48
    %v7738 = vpop.permute.xlu0 %7737
    %7739 = vrot.lane.b32.xlu0 %v7674, 48
    %v7740 = vpop.permute.xlu0 %7739
    %7741 = vrot.lane.b32.xlu0 %v7682, 48
    %v7742 = vpop.permute.xlu0 %7741
    %7743 = vrot.lane.b32.xlu0 %v7690, 48
    %v7744 = vpop.permute.xlu0 %7743
    %7745 = vrot.lane.b32.xlu0 %v7698, 48
    %v7746 = vpop.permute.xlu0 %7745
    %7747 = vrot.lane.b32.xlu0 %v7706, 48
    %v7748 = vpop.permute.xlu0 %7747
    %7749 = vrot.lane.b32.xlu0 %v7714, 48
    %v7750 = vpop.permute.xlu0 %7749
    %7751 = vrot.lane.b32.xlu0 %v7722, 48
    %v7752 = vpop.permute.xlu0 %7751
    %7753 = vrot.lane.b32.xlu0 %v7730, 48
    %v7754 = vpop.permute.xlu0 %7753
    %v7767 = vunpack.c.l.b16 %v7335
    %v7768 = vunpack.c.l.b16 %v7336
    %v7769 = vunpack.c.l.b16 %v7337
    %v7770 = vunpack.c.l.b16 %v7338
    %v7771 = vunpack.c.l.b16 %v7339
    %v7772 = vunpack.c.l.b16 %v7340
    %v7773 = vunpack.c.l.b16 %v7341
    %v7774 = vunpack.c.l.b16 %v7342
    %v7775 = vunpack.c.l.b16 %v7343
    %v7776 = vunpack.c.l.b16 %v7344
    %v7777 = vunpack.c.l.b16 %v7345
    %v7778 = vunpack.c.l.b16 %v7346
    %v7779 = vpack.c.b16 %v7767, %v7767
    %v7780 = vpack.c.b16 %v7768, %v7768
    %v7781 = vpack.c.b16 %v7769, %v7769
    %v7782 = vpack.c.b16 %v7770, %v7770
    %v7783 = vpack.c.b16 %v7771, %v7771
    %v7784 = vpack.c.b16 %v7772, %v7772
    %v7785 = vpack.c.b16 %v7773, %v7773
    %v7786 = vpack.c.b16 %v7774, %v7774
    %v7787 = vpack.c.b16 %v7775, %v7775
    %v7788 = vpack.c.b16 %v7776, %v7776
    %v7789 = vpack.c.b16 %v7777, %v7777
    %v7790 = vpack.c.b16 %v7778, %v7778
    %7791 = vrot.lane.b32.xlu0 %v7779, 64
    %v7792 = vpop.permute.xlu0 %7791
    %7793 = vrot.lane.b32.xlu0 %v7780, 64
    %v7794 = vpop.permute.xlu0 %7793
    %7795 = vrot.lane.b32.xlu0 %v7781, 64
    %v7796 = vpop.permute.xlu0 %7795
    %7797 = vrot.lane.b32.xlu0 %v7782, 64
    %v7798 = vpop.permute.xlu0 %7797
    %7799 = vrot.lane.b32.xlu0 %v7783, 64
    %v7800 = vpop.permute.xlu0 %7799
    %7801 = vrot.lane.b32.xlu0 %v7784, 64
    %v7802 = vpop.permute.xlu0 %7801
    %7803 = vrot.lane.b32.xlu0 %v7785, 64
    %v7804 = vpop.permute.xlu0 %7803
    %7805 = vrot.lane.b32.xlu0 %v7786, 64
    %v7806 = vpop.permute.xlu0 %7805
    %7807 = vrot.lane.b32.xlu0 %v7787, 64
    %v7808 = vpop.permute.xlu0 %7807
    %7809 = vrot.lane.b32.xlu0 %v7788, 64
    %v7810 = vpop.permute.xlu0 %7809
    %7811 = vrot.lane.b32.xlu0 %v7789, 64
    %v7812 = vpop.permute.xlu0 %7811
    %7813 = vrot.lane.b32.xlu0 %v7790, 64
    %v7814 = vpop.permute.xlu0 %7813
    %v7827 = vunpack.c.l.b16 %v7347
    %v7828 = vunpack.c.l.b16 %v7348
    %v7829 = vunpack.c.l.b16 %v7349
    %v7830 = vunpack.c.l.b16 %v7350
    %v7831 = vunpack.c.l.b16 %v7351
    %v7832 = vunpack.c.l.b16 %v7352
    %v7833 = vunpack.c.l.b16 %v7353
    %v7834 = vunpack.c.l.b16 %v7354
    %v7835 = vunpack.c.l.b16 %v7355
    %v7836 = vunpack.c.l.b16 %v7356
    %v7837 = vunpack.c.l.b16 %v7357
    %v7838 = vunpack.c.l.b16 %v7358
    %v7839 = vpack.c.b16 %v7827, %v7827
    %v7840 = vpack.c.b16 %v7828, %v7828
    %v7841 = vpack.c.b16 %v7829, %v7829
    %v7842 = vpack.c.b16 %v7830, %v7830
    %v7843 = vpack.c.b16 %v7831, %v7831
    %v7844 = vpack.c.b16 %v7832, %v7832
    %v7845 = vpack.c.b16 %v7833, %v7833
    %v7846 = vpack.c.b16 %v7834, %v7834
    %v7847 = vpack.c.b16 %v7835, %v7835
    %v7848 = vpack.c.b16 %v7836, %v7836
    %v7849 = vpack.c.b16 %v7837, %v7837
    %v7850 = vpack.c.b16 %v7838, %v7838
    %v7852 = vshrl.u32 %v7839, 16
    %v7854 = vshll.u32 %v7839, 16
    %v7856 = vrot.slane %v7854, 1
    %v7857 = vor.u32 %v7852, %v7856
    %v7859 = vshrl.u32 %v7840, 16
    %v7861 = vshll.u32 %v7840, 16
    %v7863 = vrot.slane %v7861, 1
    %v7864 = vor.u32 %v7859, %v7863
    %v7866 = vshrl.u32 %v7841, 16
    %v7868 = vshll.u32 %v7841, 16
    %v7870 = vrot.slane %v7868, 1
    %v7871 = vor.u32 %v7866, %v7870
    %v7873 = vshrl.u32 %v7842, 16
    %v7875 = vshll.u32 %v7842, 16
    %v7877 = vrot.slane %v7875, 1
    %v7878 = vor.u32 %v7873, %v7877
    %v7880 = vshrl.u32 %v7843, 16
    %v7882 = vshll.u32 %v7843, 16
    %v7884 = vrot.slane %v7882, 1
    %v7885 = vor.u32 %v7880, %v7884
    %v7887 = vshrl.u32 %v7844, 16
    %v7889 = vshll.u32 %v7844, 16
    %v7891 = vrot.slane %v7889, 1
    %v7892 = vor.u32 %v7887, %v7891
    %v7894 = vshrl.u32 %v7845, 16
    %v7896 = vshll.u32 %v7845, 16
    %v7898 = vrot.slane %v7896, 1
    %v7899 = vor.u32 %v7894, %v7898
    %v7901 = vshrl.u32 %v7846, 16
    %v7903 = vshll.u32 %v7846, 16
    %v7905 = vrot.slane %v7903, 1
    %v7906 = vor.u32 %v7901, %v7905
    %v7908 = vshrl.u32 %v7847, 16
    %v7910 = vshll.u32 %v7847, 16
    %v7912 = vrot.slane %v7910, 1
    %v7913 = vor.u32 %v7908, %v7912
    %v7915 = vshrl.u32 %v7848, 16
    %v7917 = vshll.u32 %v7848, 16
    %v7919 = vrot.slane %v7917, 1
    %v7920 = vor.u32 %v7915, %v7919
    %v7922 = vshrl.u32 %v7849, 16
    %v7924 = vshll.u32 %v7849, 16
    %v7926 = vrot.slane %v7924, 1
    %v7927 = vor.u32 %v7922, %v7926
    %v7929 = vshrl.u32 %v7850, 16
    %v7931 = vshll.u32 %v7850, 16
    %v7933 = vrot.slane %v7931, 1
    %v7934 = vor.u32 %v7929, %v7933
    %7935 = vrot.lane.b32.xlu0 %v7857, 80
    %v7936 = vpop.permute.xlu0 %7935
    %7937 = vrot.lane.b32.xlu0 %v7864, 80
    %v7938 = vpop.permute.xlu0 %7937
    %7939 = vrot.lane.b32.xlu0 %v7871, 80
    %v7940 = vpop.permute.xlu0 %7939
    %7941 = vrot.lane.b32.xlu0 %v7878, 80
    %v7942 = vpop.permute.xlu0 %7941
    %7943 = vrot.lane.b32.xlu0 %v7885, 80
    %v7944 = vpop.permute.xlu0 %7943
    %7945 = vrot.lane.b32.xlu0 %v7892, 80
    %v7946 = vpop.permute.xlu0 %7945
    %7947 = vrot.lane.b32.xlu0 %v7899, 80
    %v7948 = vpop.permute.xlu0 %7947
    %7949 = vrot.lane.b32.xlu0 %v7906, 80
    %v7950 = vpop.permute.xlu0 %7949
    %7951 = vrot.lane.b32.xlu0 %v7913, 80
    %v7952 = vpop.permute.xlu0 %7951
    %7953 = vrot.lane.b32.xlu0 %v7920, 80
    %v7954 = vpop.permute.xlu0 %7953
    %7955 = vrot.lane.b32.xlu0 %v7927, 80
    %v7956 = vpop.permute.xlu0 %7955
    %7957 = vrot.lane.b32.xlu0 %v7934, 80
    %v7958 = vpop.permute.xlu0 %7957
    %v7971 = vunpack.c.l.b16 %v7359
    %v7972 = vunpack.c.l.b16 %v7360
    %v7973 = vunpack.c.l.b16 %v7361
    %v7974 = vunpack.c.l.b16 %v7362
    %v7975 = vunpack.c.l.b16 %v7363
    %v7976 = vunpack.c.l.b16 %v7364
    %v7977 = vunpack.c.l.b16 %v7365
    %v7978 = vunpack.c.l.b16 %v7366
    %v7979 = vunpack.c.l.b16 %v7367
    %v7980 = vunpack.c.l.b16 %v7368
    %v7981 = vunpack.c.l.b16 %v7369
    %v7982 = vunpack.c.l.b16 %v7370
    %v7983 = vpack.c.b16 %v7971, %v7971
    %v7984 = vpack.c.b16 %v7972, %v7972
    %v7985 = vpack.c.b16 %v7973, %v7973
    %v7986 = vpack.c.b16 %v7974, %v7974
    %v7987 = vpack.c.b16 %v7975, %v7975
    %v7988 = vpack.c.b16 %v7976, %v7976
    %v7989 = vpack.c.b16 %v7977, %v7977
    %v7990 = vpack.c.b16 %v7978, %v7978
    %v7991 = vpack.c.b16 %v7979, %v7979
    %v7992 = vpack.c.b16 %v7980, %v7980
    %v7993 = vpack.c.b16 %v7981, %v7981
    %v7994 = vpack.c.b16 %v7982, %v7982
    %v7995 = vrot.slane %v7983, 1
    %v7996 = vrot.slane %v7984, 1
    %v7997 = vrot.slane %v7985, 1
    %v7998 = vrot.slane %v7986, 1
    %v7999 = vrot.slane %v7987, 1
    %v8000 = vrot.slane %v7988, 1
    %v8001 = vrot.slane %v7989, 1
    %v8002 = vrot.slane %v7990, 1
    %v8003 = vrot.slane %v7991, 1
    %v8004 = vrot.slane %v7992, 1
    %v8005 = vrot.slane %v7993, 1
    %v8006 = vrot.slane %v7994, 1
    %8007 = vrot.lane.b32.xlu0 %v7995, 96
    %v8008 = vpop.permute.xlu0 %8007
    %8009 = vrot.lane.b32.xlu0 %v7996, 96
    %v8010 = vpop.permute.xlu0 %8009
    %8011 = vrot.lane.b32.xlu0 %v7997, 96
    %v8012 = vpop.permute.xlu0 %8011
    %8013 = vrot.lane.b32.xlu0 %v7998, 96
    %v8014 = vpop.permute.xlu0 %8013
    %8015 = vrot.lane.b32.xlu0 %v7999, 96
    %v8016 = vpop.permute.xlu0 %8015
    %8017 = vrot.lane.b32.xlu0 %v8000, 96
    %v8018 = vpop.permute.xlu0 %8017
    %8019 = vrot.lane.b32.xlu0 %v8001, 96
    %v8020 = vpop.permute.xlu0 %8019
    %8021 = vrot.lane.b32.xlu0 %v8002, 96
    %v8022 = vpop.permute.xlu0 %8021
    %8023 = vrot.lane.b32.xlu0 %v8003, 96
    %v8024 = vpop.permute.xlu0 %8023
    %8025 = vrot.lane.b32.xlu0 %v8004, 96
    %v8026 = vpop.permute.xlu0 %8025
    %8027 = vrot.lane.b32.xlu0 %v8005, 96
    %v8028 = vpop.permute.xlu0 %8027
    %8029 = vrot.lane.b32.xlu0 %v8006, 96
    %v8030 = vpop.permute.xlu0 %8029
    %v8043 = vunpack.c.l.b16 %v7371
    %v8044 = vunpack.c.l.b16 %v7372
    %v8045 = vunpack.c.l.b16 %v7373
    %v8046 = vunpack.c.l.b16 %v7374
    %v8047 = vunpack.c.l.b16 %v7375
    %v8048 = vunpack.c.l.b16 %v7376
    %v8049 = vunpack.c.l.b16 %v7377
    %v8050 = vunpack.c.l.b16 %v7378
    %v8051 = vunpack.c.l.b16 %v7379
    %v8052 = vunpack.c.l.b16 %v7380
    %v8053 = vunpack.c.l.b16 %v7381
    %v8054 = vunpack.c.l.b16 %v7382
    %v8055 = vpack.c.b16 %v8043, %v7971
    %v8056 = vpack.c.b16 %v8044, %v7972
    %v8057 = vpack.c.b16 %v8045, %v7973
    %v8058 = vpack.c.b16 %v8046, %v7974
    %v8059 = vpack.c.b16 %v8047, %v7975
    %v8060 = vpack.c.b16 %v8048, %v7976
    %v8061 = vpack.c.b16 %v8049, %v7977
    %v8062 = vpack.c.b16 %v8050, %v7978
    %v8063 = vpack.c.b16 %v8051, %v7979
    %v8064 = vpack.c.b16 %v8052, %v7980
    %v8065 = vpack.c.b16 %v8053, %v7981
    %v8066 = vpack.c.b16 %v8054, %v7982
    %v8068 = vshrl.u32 %v8055, 16
    %v8070 = vrot.slane %v8068, 1
    %v8071 = vshll.u32 %v8055, 16
    %v8073 = vrot.slane %v8071, 2
    %v8074 = vor.u32 %v8070, %v8073
    %v8076 = vshrl.u32 %v8056, 16
    %v8078 = vrot.slane %v8076, 1
    %v8079 = vshll.u32 %v8056, 16
    %v8081 = vrot.slane %v8079, 2
    %v8082 = vor.u32 %v8078, %v8081
    %v8084 = vshrl.u32 %v8057, 16
    %v8086 = vrot.slane %v8084, 1
    %v8087 = vshll.u32 %v8057, 16
    %v8089 = vrot.slane %v8087, 2
    %v8090 = vor.u32 %v8086, %v8089
    %v8092 = vshrl.u32 %v8058, 16
    %v8094 = vrot.slane %v8092, 1
    %v8095 = vshll.u32 %v8058, 16
    %v8097 = vrot.slane %v8095, 2
    %v8098 = vor.u32 %v8094, %v8097
    %v8100 = vshrl.u32 %v8059, 16
    %v8102 = vrot.slane %v8100, 1
    %v8103 = vshll.u32 %v8059, 16
    %v8105 = vrot.slane %v8103, 2
    %v8106 = vor.u32 %v8102, %v8105
    %v8108 = vshrl.u32 %v8060, 16
    %v8110 = vrot.slane %v8108, 1
    %v8111 = vshll.u32 %v8060, 16
    %v8113 = vrot.slane %v8111, 2
    %v8114 = vor.u32 %v8110, %v8113
    %v8116 = vshrl.u32 %v8061, 16
    %v8118 = vrot.slane %v8116, 1
    %v8119 = vshll.u32 %v8061, 16
    %v8121 = vrot.slane %v8119, 2
    %v8122 = vor.u32 %v8118, %v8121
    %v8124 = vshrl.u32 %v8062, 16
    %v8126 = vrot.slane %v8124, 1
    %v8127 = vshll.u32 %v8062, 16
    %v8129 = vrot.slane %v8127, 2
    %v8130 = vor.u32 %v8126, %v8129
    %v8132 = vshrl.u32 %v8063, 16
    %v8134 = vrot.slane %v8132, 1
    %v8135 = vshll.u32 %v8063, 16
    %v8137 = vrot.slane %v8135, 2
    %v8138 = vor.u32 %v8134, %v8137
    %v8140 = vshrl.u32 %v8064, 16
    %v8142 = vrot.slane %v8140, 1
    %v8143 = vshll.u32 %v8064, 16
    %v8145 = vrot.slane %v8143, 2
    %v8146 = vor.u32 %v8142, %v8145
    %v8148 = vshrl.u32 %v8065, 16
    %v8150 = vrot.slane %v8148, 1
    %v8151 = vshll.u32 %v8065, 16
    %v8153 = vrot.slane %v8151, 2
    %v8154 = vor.u32 %v8150, %v8153
    %v8156 = vshrl.u32 %v8066, 16
    %v8158 = vrot.slane %v8156, 1
    %v8159 = vshll.u32 %v8066, 16
    %v8161 = vrot.slane %v8159, 2
    %v8162 = vor.u32 %v8158, %v8161
    %8163 = vrot.lane.b32.xlu0 %v8074, 112
    %v8164 = vpop.permute.xlu0 %8163
    %8165 = vrot.lane.b32.xlu0 %v8082, 112
    %v8166 = vpop.permute.xlu0 %8165
    %8167 = vrot.lane.b32.xlu0 %v8090, 112
    %v8168 = vpop.permute.xlu0 %8167
    %8169 = vrot.lane.b32.xlu0 %v8098, 112
    %v8170 = vpop.permute.xlu0 %8169
    %8171 = vrot.lane.b32.xlu0 %v8106, 112
    %v8172 = vpop.permute.xlu0 %8171
    %8173 = vrot.lane.b32.xlu0 %v8114, 112
    %v8174 = vpop.permute.xlu0 %8173
    %8175 = vrot.lane.b32.xlu0 %v8122, 112
    %v8176 = vpop.permute.xlu0 %8175
    %8177 = vrot.lane.b32.xlu0 %v8130, 112
    %v8178 = vpop.permute.xlu0 %8177
    %8179 = vrot.lane.b32.xlu0 %v8138, 112
    %v8180 = vpop.permute.xlu0 %8179
    %8181 = vrot.lane.b32.xlu0 %v8146, 112
    %v8182 = vpop.permute.xlu0 %8181
    %8183 = vrot.lane.b32.xlu0 %v8154, 112
    %v8184 = vpop.permute.xlu0 %8183
    %8185 = vrot.lane.b32.xlu0 %v8162, 112
    %v8186 = vpop.permute.xlu0 %8185
    %v8189 = vsel %vm6579, %v7286, %v7504
    %v8192 = vsel %vm6579, %v7287, %v7506
    %v8195 = vsel %vm6579, %v7288, %v7508
    %v8198 = vsel %vm6579, %v7289, %v7510
    %v8201 = vsel %vm6579, %v7290, %v7512
    %v8204 = vsel %vm6579, %v7291, %v7514
    %v8207 = vsel %vm6579, %v7292, %v7516
    %v8210 = vsel %vm6579, %v7293, %v7518
    %v8213 = vsel %vm6579, %v7294, %v7520
    %v8216 = vsel %vm6579, %v7295, %v7522
    %v8219 = vsel %vm6579, %v7296, %v7524
    %v8222 = vsel %vm6579, %v7297, %v7526
    %v8224 = vsel %vm199, %v8189, %v7576
    %v8226 = vsel %vm199, %v8192, %v7578
    %v8228 = vsel %vm199, %v8195, %v7580
    %v8230 = vsel %vm199, %v8198, %v7582
    %v8232 = vsel %vm199, %v8201, %v7584
    %v8234 = vsel %vm199, %v8204, %v7586
    %v8236 = vsel %vm199, %v8207, %v7588
    %v8238 = vsel %vm199, %v8210, %v7590
    %v8240 = vsel %vm199, %v8213, %v7592
    %v8242 = vsel %vm199, %v8216, %v7594
    %v8244 = vsel %vm199, %v8219, %v7596
    %v8246 = vsel %vm199, %v8222, %v7598
    %v8248 = vsel %vm6640, %v8224, %v7732
    %v8250 = vsel %vm6640, %v8226, %v7734
    %v8252 = vsel %vm6640, %v8228, %v7736
    %v8254 = vsel %vm6640, %v8230, %v7738
    %v8256 = vsel %vm6640, %v8232, %v7740
    %v8258 = vsel %vm6640, %v8234, %v7742
    %v8260 = vsel %vm6640, %v8236, %v7744
    %v8262 = vsel %vm6640, %v8238, %v7746
    %v8264 = vsel %vm6640, %v8240, %v7748
    %v8266 = vsel %vm6640, %v8242, %v7750
    %v8268 = vsel %vm6640, %v8244, %v7752
    %v8270 = vsel %vm6640, %v8246, %v7754
    %v8272 = vsel %vm204, %v8248, %v7792
    %v8274 = vsel %vm204, %v8250, %v7794
    %v8276 = vsel %vm204, %v8252, %v7796
    %v8278 = vsel %vm204, %v8254, %v7798
    %v8280 = vsel %vm204, %v8256, %v7800
    %v8282 = vsel %vm204, %v8258, %v7802
    %v8284 = vsel %vm204, %v8260, %v7804
    %v8286 = vsel %vm204, %v8262, %v7806
    %v8288 = vsel %vm204, %v8264, %v7808
    %v8290 = vsel %vm204, %v8266, %v7810
    %v8292 = vsel %vm204, %v8268, %v7812
    %v8294 = vsel %vm204, %v8270, %v7814
    %v8296 = vsel %vm6689, %v8272, %v7936
    %v8298 = vsel %vm6689, %v8274, %v7938
    %v8300 = vsel %vm6689, %v8276, %v7940
    %v8302 = vsel %vm6689, %v8278, %v7942
    %v8304 = vsel %vm6689, %v8280, %v7944
    %v8306 = vsel %vm6689, %v8282, %v7946
    %v8308 = vsel %vm6689, %v8284, %v7948
    %v8310 = vsel %vm6689, %v8286, %v7950
    %v8312 = vsel %vm6689, %v8288, %v7952
    %v8314 = vsel %vm6689, %v8290, %v7954
    %v8316 = vsel %vm6689, %v8292, %v7956
    %v8318 = vsel %vm6689, %v8294, %v7958
    %v8320 = vsel %vm209, %v8296, %v8008
    %v8322 = vsel %vm209, %v8298, %v8010
    %v8324 = vsel %vm209, %v8300, %v8012
    %v8326 = vsel %vm209, %v8302, %v8014
    %v8328 = vsel %vm209, %v8304, %v8016
    %v8330 = vsel %vm209, %v8306, %v8018
    %v8332 = vsel %vm209, %v8308, %v8020
    %v8334 = vsel %vm209, %v8310, %v8022
    %v8336 = vsel %vm209, %v8312, %v8024
    %v8338 = vsel %vm209, %v8314, %v8026
    %v8340 = vsel %vm209, %v8316, %v8028
    %v8342 = vsel %vm209, %v8318, %v8030
    %v8344 = vsel %vm6738, %v8320, %v8164
    %v8346 = vsel %vm6738, %v8322, %v8166
    %v8348 = vsel %vm6738, %v8324, %v8168
    %v8350 = vsel %vm6738, %v8326, %v8170
    %v8352 = vsel %vm6738, %v8328, %v8172
    %v8354 = vsel %vm6738, %v8330, %v8174
    %v8356 = vsel %vm6738, %v8332, %v8176
    %v8358 = vsel %vm6738, %v8334, %v8178
    %v8360 = vsel %vm6738, %v8336, %v8180
    %v8362 = vsel %vm6738, %v8338, %v8182
    %v8364 = vsel %vm6738, %v8340, %v8184
    %v8366 = vsel %vm6738, %v8342, %v8186
    %v8380 = vunpack.c.l.s4 1966171168
    %v8381 = vunpack.c.0.s8 %v8380
    %v8382 = vlaneseq
    %v8383 = vshrl.u32 %v8382, 7
    %v8384 = vsub.s32 %v8381, %v8383
    %v8385 = vrot.slane %v8344, %v8384
    %v8386 = vcombine.high %v8385, %v8385
    %v8388 = vunpack.c.l.s4 1966171168
    %v8389 = vunpack.c.0.s8 %v8388
    %v8390 = vlaneseq
    %v8391 = vshrl.u32 %v8390, 7
    %v8392 = vsub.s32 %v8389, %v8391
    %v8393 = vrot.slane %v8385, %v8392
    %v8395 = vunpack.c.l.s4 1966171168
    %v8396 = vunpack.c.0.s8 %v8395
    %v8397 = vlaneseq
    %v8398 = vshrl.u32 %v8397, 7
    %v8399 = vsub.s32 %v8396, %v8398
    %v8400 = vrot.slane %v8386, %v8399
    %v8401 = vcombine.high %v8393, %v8393
    %v8403 = vunpack.c.l.s4 1966171168
    %v8404 = vunpack.c.0.s8 %v8403
    %v8405 = vlaneseq
    %v8406 = vshrl.u32 %v8405, 7
    %v8407 = vsub.s32 %v8404, %v8406
    %v8408 = vrot.slane %v8346, %v8407
    %v8409 = vcombine.high %v8408, %v8408
    %v8411 = vunpack.c.l.s4 1966171168
    %v8412 = vunpack.c.0.s8 %v8411
    %v8413 = vlaneseq
    %v8414 = vshrl.u32 %v8413, 7
    %v8415 = vsub.s32 %v8412, %v8414
    %v8416 = vrot.slane %v8408, %v8415
    %v8418 = vunpack.c.l.s4 1966171168
    %v8419 = vunpack.c.0.s8 %v8418
    %v8420 = vlaneseq
    %v8421 = vshrl.u32 %v8420, 7
    %v8422 = vsub.s32 %v8419, %v8421
    %v8423 = vrot.slane %v8409, %v8422
    %v8424 = vcombine.high %v8416, %v8416
    %v8426 = vunpack.c.l.s4 1966171168
    %v8427 = vunpack.c.0.s8 %v8426
    %v8428 = vlaneseq
    %v8429 = vshrl.u32 %v8428, 7
    %v8430 = vsub.s32 %v8427, %v8429
    %v8431 = vrot.slane %v8348, %v8430
    %v8432 = vcombine.high %v8431, %v8431
    %v8434 = vunpack.c.l.s4 1966171168
    %v8435 = vunpack.c.0.s8 %v8434
    %v8436 = vlaneseq
    %v8437 = vshrl.u32 %v8436, 7
    %v8438 = vsub.s32 %v8435, %v8437
    %v8439 = vrot.slane %v8431, %v8438
    %v8441 = vunpack.c.l.s4 1966171168
    %v8442 = vunpack.c.0.s8 %v8441
    %v8443 = vlaneseq
    %v8444 = vshrl.u32 %v8443, 7
    %v8445 = vsub.s32 %v8442, %v8444
    %v8446 = vrot.slane %v8432, %v8445
    %v8447 = vcombine.high %v8439, %v8439
    %v8449 = vunpack.c.l.s4 1966171168
    %v8450 = vunpack.c.0.s8 %v8449
    %v8451 = vlaneseq
    %v8452 = vshrl.u32 %v8451, 7
    %v8453 = vsub.s32 %v8450, %v8452
    %v8454 = vrot.slane %v8350, %v8453
    %v8455 = vcombine.high %v8454, %v8454
    %v8457 = vunpack.c.l.s4 1966171168
    %v8458 = vunpack.c.0.s8 %v8457
    %v8459 = vlaneseq
    %v8460 = vshrl.u32 %v8459, 7
    %v8461 = vsub.s32 %v8458, %v8460
    %v8462 = vrot.slane %v8454, %v8461
    %v8464 = vunpack.c.l.s4 1966171168
    %v8465 = vunpack.c.0.s8 %v8464
    %v8466 = vlaneseq
    %v8467 = vshrl.u32 %v8466, 7
    %v8468 = vsub.s32 %v8465, %v8467
    %v8469 = vrot.slane %v8455, %v8468
    %v8470 = vcombine.high %v8462, %v8462
    %v8472 = vunpack.c.l.s4 1966171168
    %v8473 = vunpack.c.0.s8 %v8472
    %v8474 = vlaneseq
    %v8475 = vshrl.u32 %v8474, 7
    %v8476 = vsub.s32 %v8473, %v8475
    %v8477 = vrot.slane %v8352, %v8476
    %v8478 = vcombine.high %v8477, %v8477
    %v8480 = vunpack.c.l.s4 1966171168
    %v8481 = vunpack.c.0.s8 %v8480
    %v8482 = vlaneseq
    %v8483 = vshrl.u32 %v8482, 7
    %v8484 = vsub.s32 %v8481, %v8483
    %v8485 = vrot.slane %v8477, %v8484
    %v8487 = vunpack.c.l.s4 1966171168
    %v8488 = vunpack.c.0.s8 %v8487
    %v8489 = vlaneseq
    %v8490 = vshrl.u32 %v8489, 7
    %v8491 = vsub.s32 %v8488, %v8490
    %v8492 = vrot.slane %v8478, %v8491
    %v8493 = vcombine.high %v8485, %v8485
    %v8495 = vunpack.c.l.s4 1966171168
    %v8496 = vunpack.c.0.s8 %v8495
    %v8497 = vlaneseq
    %v8498 = vshrl.u32 %v8497, 7
    %v8499 = vsub.s32 %v8496, %v8498
    %v8500 = vrot.slane %v8354, %v8499
    %v8501 = vcombine.high %v8500, %v8500
    %v8503 = vunpack.c.l.s4 1966171168
    %v8504 = vunpack.c.0.s8 %v8503
    %v8505 = vlaneseq
    %v8506 = vshrl.u32 %v8505, 7
    %v8507 = vsub.s32 %v8504, %v8506
    %v8508 = vrot.slane %v8500, %v8507
    %v8510 = vunpack.c.l.s4 1966171168
    %v8511 = vunpack.c.0.s8 %v8510
    %v8512 = vlaneseq
    %v8513 = vshrl.u32 %v8512, 7
    %v8514 = vsub.s32 %v8511, %v8513
    %v8515 = vrot.slane %v8501, %v8514
    %v8516 = vcombine.high %v8508, %v8508
    %v8518 = vunpack.c.l.s4 1966171168
    %v8519 = vunpack.c.0.s8 %v8518
    %v8520 = vlaneseq
    %v8521 = vshrl.u32 %v8520, 7
    %v8522 = vsub.s32 %v8519, %v8521
    %v8523 = vrot.slane %v8356, %v8522
    %v8524 = vcombine.high %v8523, %v8523
    %v8526 = vunpack.c.l.s4 1966171168
    %v8527 = vunpack.c.0.s8 %v8526
    %v8528 = vlaneseq
    %v8529 = vshrl.u32 %v8528, 7
    %v8530 = vsub.s32 %v8527, %v8529
    %v8531 = vrot.slane %v8523, %v8530
    %v8533 = vunpack.c.l.s4 1966171168
    %v8534 = vunpack.c.0.s8 %v8533
    %v8535 = vlaneseq
    %v8536 = vshrl.u32 %v8535, 7
    %v8537 = vsub.s32 %v8534, %v8536
    %v8538 = vrot.slane %v8524, %v8537
    %v8539 = vcombine.high %v8531, %v8531
    %v8541 = vunpack.c.l.s4 1966171168
    %v8542 = vunpack.c.0.s8 %v8541
    %v8543 = vlaneseq
    %v8544 = vshrl.u32 %v8543, 7
    %v8545 = vsub.s32 %v8542, %v8544
    %v8546 = vrot.slane %v8358, %v8545
    %v8547 = vcombine.high %v8546, %v8546
    %v8549 = vunpack.c.l.s4 1966171168
    %v8550 = vunpack.c.0.s8 %v8549
    %v8551 = vlaneseq
    %v8552 = vshrl.u32 %v8551, 7
    %v8553 = vsub.s32 %v8550, %v8552
    %v8554 = vrot.slane %v8546, %v8553
    %v8556 = vunpack.c.l.s4 1966171168
    %v8557 = vunpack.c.0.s8 %v8556
    %v8558 = vlaneseq
    %v8559 = vshrl.u32 %v8558, 7
    %v8560 = vsub.s32 %v8557, %v8559
    %v8561 = vrot.slane %v8547, %v8560
    %v8562 = vcombine.high %v8554, %v8554
    %v8564 = vunpack.c.l.s4 1966171168
    %v8565 = vunpack.c.0.s8 %v8564
    %v8566 = vlaneseq
    %v8567 = vshrl.u32 %v8566, 7
    %v8568 = vsub.s32 %v8565, %v8567
    %v8569 = vrot.slane %v8360, %v8568
    %v8570 = vcombine.high %v8569, %v8569
    %v8572 = vunpack.c.l.s4 1966171168
    %v8573 = vunpack.c.0.s8 %v8572
    %v8574 = vlaneseq
    %v8575 = vshrl.u32 %v8574, 7
    %v8576 = vsub.s32 %v8573, %v8575
    %v8577 = vrot.slane %v8569, %v8576
    %v8579 = vunpack.c.l.s4 1966171168
    %v8580 = vunpack.c.0.s8 %v8579
    %v8581 = vlaneseq
    %v8582 = vshrl.u32 %v8581, 7
    %v8583 = vsub.s32 %v8580, %v8582
    %v8584 = vrot.slane %v8570, %v8583
    %v8585 = vcombine.high %v8577, %v8577
    %v8587 = vunpack.c.l.s4 1966171168
    %v8588 = vunpack.c.0.s8 %v8587
    %v8589 = vlaneseq
    %v8590 = vshrl.u32 %v8589, 7
    %v8591 = vsub.s32 %v8588, %v8590
    %v8592 = vrot.slane %v8362, %v8591
    %v8593 = vcombine.high %v8592, %v8592
    %v8595 = vunpack.c.l.s4 1966171168
    %v8596 = vunpack.c.0.s8 %v8595
    %v8597 = vlaneseq
    %v8598 = vshrl.u32 %v8597, 7
    %v8599 = vsub.s32 %v8596, %v8598
    %v8600 = vrot.slane %v8592, %v8599
    %v8602 = vunpack.c.l.s4 1966171168
    %v8603 = vunpack.c.0.s8 %v8602
    %v8604 = vlaneseq
    %v8605 = vshrl.u32 %v8604, 7
    %v8606 = vsub.s32 %v8603, %v8605
    %v8607 = vrot.slane %v8593, %v8606
    %v8608 = vcombine.high %v8600, %v8600
    %v8610 = vunpack.c.l.s4 1966171168
    %v8611 = vunpack.c.0.s8 %v8610
    %v8612 = vlaneseq
    %v8613 = vshrl.u32 %v8612, 7
    %v8614 = vsub.s32 %v8611, %v8613
    %v8615 = vrot.slane %v8364, %v8614
    %v8616 = vcombine.high %v8615, %v8615
    %v8618 = vunpack.c.l.s4 1966171168
    %v8619 = vunpack.c.0.s8 %v8618
    %v8620 = vlaneseq
    %v8621 = vshrl.u32 %v8620, 7
    %v8622 = vsub.s32 %v8619, %v8621
    %v8623 = vrot.slane %v8615, %v8622
    %v8625 = vunpack.c.l.s4 1966171168
    %v8626 = vunpack.c.0.s8 %v8625
    %v8627 = vlaneseq
    %v8628 = vshrl.u32 %v8627, 7
    %v8629 = vsub.s32 %v8626, %v8628
    %v8630 = vrot.slane %v8616, %v8629
    %v8631 = vcombine.high %v8623, %v8623
    %v8633 = vunpack.c.l.s4 1966171168
    %v8634 = vunpack.c.0.s8 %v8633
    %v8635 = vlaneseq
    %v8636 = vshrl.u32 %v8635, 7
    %v8637 = vsub.s32 %v8634, %v8636
    %v8638 = vrot.slane %v8366, %v8637
    %v8639 = vcombine.high %v8638, %v8638
    %v8641 = vunpack.c.l.s4 1966171168
    %v8642 = vunpack.c.0.s8 %v8641
    %v8643 = vlaneseq
    %v8644 = vshrl.u32 %v8643, 7
    %v8645 = vsub.s32 %v8642, %v8644
    %v8646 = vrot.slane %v8638, %v8645
    %v8648 = vunpack.c.l.s4 1966171168
    %v8649 = vunpack.c.0.s8 %v8648
    %v8650 = vlaneseq
    %v8651 = vshrl.u32 %v8650, 7
    %v8652 = vsub.s32 %v8649, %v8651
    %v8653 = vrot.slane %v8639, %v8652
    %v8654 = vcombine.high %v8646, %v8646
    %v8655 = vcombine.low %v8393, %v8401
    %v8656 = vcombine.low %v8400, %v8416
    %v8658 = vunpack.c.l.s4 1935823168
    %v8659 = vunpack.c.0.s8 %v8658
    %v8660 = vlaneseq
    %v8661 = vshrl.u32 %v8660, 7
    %v8662 = vsub.s32 %v8659, %v8661
    %v8663 = vrot.slane %v8655, %v8662
    %v8665 = vunpack.c.l.s4 1935823168
    %v8666 = vunpack.c.0.s8 %v8665
    %v8667 = vlaneseq
    %v8668 = vshrl.u32 %v8667, 7
    %v8669 = vsub.s32 %v8666, %v8668
    %v8670 = vrot.slane %v8656, %v8669
    %v8671 = vcombine.low %v8663, %v8670
    %v8673 = vunpack.c.l.s4 1935823168
    %v8674 = vunpack.c.0.s8 %v8673
    %v8675 = vlaneseq
    %v8676 = vshrl.u32 %v8675, 7
    %v8677 = vsub.s32 %v8674, %v8676
    %v8678 = vrot.slane %v8671, %v8677
    %v8679 = vcombine.low %v8423, %v8439
    %v8680 = vcombine.low %v8424, %v8446
    %v8682 = vunpack.c.l.s4 1935823168
    %v8683 = vunpack.c.0.s8 %v8682
    %v8684 = vlaneseq
    %v8685 = vshrl.u32 %v8684, 7
    %v8686 = vsub.s32 %v8683, %v8685
    %v8687 = vrot.slane %v8679, %v8686
    %v8689 = vunpack.c.l.s4 1935823168
    %v8690 = vunpack.c.0.s8 %v8689
    %v8691 = vlaneseq
    %v8692 = vshrl.u32 %v8691, 7
    %v8693 = vsub.s32 %v8690, %v8692
    %v8694 = vrot.slane %v8680, %v8693
    %v8695 = vcombine.low %v8687, %v8694
    %v8697 = vunpack.c.l.s4 1935823168
    %v8698 = vunpack.c.0.s8 %v8697
    %v8699 = vlaneseq
    %v8700 = vshrl.u32 %v8699, 7
    %v8701 = vsub.s32 %v8698, %v8700
    %v8702 = vrot.slane %v8695, %v8701
    %v8703 = vcombine.low %v8447, %v8469
    %v8704 = vcombine.low %v8462, %v8470
    %v8706 = vunpack.c.l.s4 1935823168
    %v8707 = vunpack.c.0.s8 %v8706
    %v8708 = vlaneseq
    %v8709 = vshrl.u32 %v8708, 7
    %v8710 = vsub.s32 %v8707, %v8709
    %v8711 = vrot.slane %v8703, %v8710
    %v8713 = vunpack.c.l.s4 1935823168
    %v8714 = vunpack.c.0.s8 %v8713
    %v8715 = vlaneseq
    %v8716 = vshrl.u32 %v8715, 7
    %v8717 = vsub.s32 %v8714, %v8716
    %v8718 = vrot.slane %v8704, %v8717
    %v8719 = vcombine.low %v8711, %v8718
    %v8721 = vunpack.c.l.s4 1935823168
    %v8722 = vunpack.c.0.s8 %v8721
    %v8723 = vlaneseq
    %v8724 = vshrl.u32 %v8723, 7
    %v8725 = vsub.s32 %v8722, %v8724
    %v8726 = vrot.slane %v8719, %v8725
    %v8727 = vcombine.low %v8485, %v8493
    %v8728 = vcombine.low %v8492, %v8508
    %v8730 = vunpack.c.l.s4 1935823168
    %v8731 = vunpack.c.0.s8 %v8730
    %v8732 = vlaneseq
    %v8733 = vshrl.u32 %v8732, 7
    %v8734 = vsub.s32 %v8731, %v8733
    %v8735 = vrot.slane %v8727, %v8734
    %v8737 = vunpack.c.l.s4 1935823168
    %v8738 = vunpack.c.0.s8 %v8737
    %v8739 = vlaneseq
    %v8740 = vshrl.u32 %v8739, 7
    %v8741 = vsub.s32 %v8738, %v8740
    %v8742 = vrot.slane %v8728, %v8741
    %v8743 = vcombine.low %v8735, %v8742
    %v8745 = vunpack.c.l.s4 1935823168
    %v8746 = vunpack.c.0.s8 %v8745
    %v8747 = vlaneseq
    %v8748 = vshrl.u32 %v8747, 7
    %v8749 = vsub.s32 %v8746, %v8748
    %v8750 = vrot.slane %v8743, %v8749
    %v8751 = vcombine.low %v8515, %v8531
    %v8752 = vcombine.low %v8516, %v8538
    %v8754 = vunpack.c.l.s4 1935823168
    %v8755 = vunpack.c.0.s8 %v8754
    %v8756 = vlaneseq
    %v8757 = vshrl.u32 %v8756, 7
    %v8758 = vsub.s32 %v8755, %v8757
    %v8759 = vrot.slane %v8751, %v8758
    %v8761 = vunpack.c.l.s4 1935823168
    %v8762 = vunpack.c.0.s8 %v8761
    %v8763 = vlaneseq
    %v8764 = vshrl.u32 %v8763, 7
    %v8765 = vsub.s32 %v8762, %v8764
    %v8766 = vrot.slane %v8752, %v8765
    %v8767 = vcombine.low %v8759, %v8766
    %v8769 = vunpack.c.l.s4 1935823168
    %v8770 = vunpack.c.0.s8 %v8769
    %v8771 = vlaneseq
    %v8772 = vshrl.u32 %v8771, 7
    %v8773 = vsub.s32 %v8770, %v8772
    %v8774 = vrot.slane %v8767, %v8773
    %v8775 = vcombine.low %v8539, %v8561
    %v8776 = vcombine.low %v8554, %v8562
    %v8778 = vunpack.c.l.s4 1935823168
    %v8779 = vunpack.c.0.s8 %v8778
    %v8780 = vlaneseq
    %v8781 = vshrl.u32 %v8780, 7
    %v8782 = vsub.s32 %v8779, %v8781
    %v8783 = vrot.slane %v8775, %v8782
    %v8785 = vunpack.c.l.s4 1935823168
    %v8786 = vunpack.c.0.s8 %v8785
    %v8787 = vlaneseq
    %v8788 = vshrl.u32 %v8787, 7
    %v8789 = vsub.s32 %v8786, %v8788
    %v8790 = vrot.slane %v8776, %v8789
    %v8791 = vcombine.low %v8783, %v8790
    %v8793 = vunpack.c.l.s4 1935823168
    %v8794 = vunpack.c.0.s8 %v8793
    %v8795 = vlaneseq
    %v8796 = vshrl.u32 %v8795, 7
    %v8797 = vsub.s32 %v8794, %v8796
    %v8798 = vrot.slane %v8791, %v8797
    %v8799 = vcombine.low %v8577, %v8585
    %v8800 = vcombine.low %v8584, %v8600
    %v8802 = vunpack.c.l.s4 1935823168
    %v8803 = vunpack.c.0.s8 %v8802
    %v8804 = vlaneseq
    %v8805 = vshrl.u32 %v8804, 7
    %v8806 = vsub.s32 %v8803, %v8805
    %v8807 = vrot.slane %v8799, %v8806
    %v8809 = vunpack.c.l.s4 1935823168
    %v8810 = vunpack.c.0.s8 %v8809
    %v8811 = vlaneseq
    %v8812 = vshrl.u32 %v8811, 7
    %v8813 = vsub.s32 %v8810, %v8812
    %v8814 = vrot.slane %v8800, %v8813
    %v8815 = vcombine.low %v8807, %v8814
    %v8817 = vunpack.c.l.s4 1935823168
    %v8818 = vunpack.c.0.s8 %v8817
    %v8819 = vlaneseq
    %v8820 = vshrl.u32 %v8819, 7
    %v8821 = vsub.s32 %v8818, %v8820
    %v8822 = vrot.slane %v8815, %v8821
    %v8823 = vcombine.low %v8607, %v8623
    %v8824 = vcombine.low %v8608, %v8630
    %v8826 = vunpack.c.l.s4 1935823168
    %v8827 = vunpack.c.0.s8 %v8826
    %v8828 = vlaneseq
    %v8829 = vshrl.u32 %v8828, 7
    %v8830 = vsub.s32 %v8827, %v8829
    %v8831 = vrot.slane %v8823, %v8830
    %v8833 = vunpack.c.l.s4 1935823168
    %v8834 = vunpack.c.0.s8 %v8833
    %v8835 = vlaneseq
    %v8836 = vshrl.u32 %v8835, 7
    %v8837 = vsub.s32 %v8834, %v8836
    %v8838 = vrot.slane %v8824, %v8837
    %v8839 = vcombine.low %v8831, %v8838
    %v8841 = vunpack.c.l.s4 1935823168
    %v8842 = vunpack.c.0.s8 %v8841
    %v8843 = vlaneseq
    %v8844 = vshrl.u32 %v8843, 7
    %v8845 = vsub.s32 %v8842, %v8844
    %v8846 = vrot.slane %v8839, %v8845
    %v8847 = vcombine.low %v8631, %v8653
    %v8848 = vcombine.low %v8646, %v8654
    %v8850 = vunpack.c.l.s4 1935823168
    %v8851 = vunpack.c.0.s8 %v8850
    %v8852 = vlaneseq
    %v8853 = vshrl.u32 %v8852, 7
    %v8854 = vsub.s32 %v8851, %v8853
    %v8855 = vrot.slane %v8847, %v8854
    %v8857 = vunpack.c.l.s4 1935823168
    %v8858 = vunpack.c.0.s8 %v8857
    %v8859 = vlaneseq
    %v8860 = vshrl.u32 %v8859, 7
    %v8861 = vsub.s32 %v8858, %v8860
    %v8862 = vrot.slane %v8848, %v8861
    %v8863 = vcombine.low %v8855, %v8862
    %v8865 = vunpack.c.l.s4 1935823168
    %v8866 = vunpack.c.0.s8 %v8865
    %v8867 = vlaneseq
    %v8868 = vshrl.u32 %v8867, 7
    %v8869 = vsub.s32 %v8866, %v8868
    %v8870 = vrot.slane %v8863, %v8869
    %8880 = vst [vmem:[#allocation3 + $0x4] sm:$0xf] %v8678
    %8881 = vst [vmem:[#allocation3 + $0xc] sm:$0xf] %v8702
    %8882 = vst [vmem:[#allocation3 + $0x14] sm:$0xf] %v8726
    %8883 = vst [vmem:[#allocation3 + $0x1c] sm:$0xf] %v8750
    %8884 = vst [vmem:[#allocation3 + $0x24] sm:$0xf] %v8774
    %8885 = vst [vmem:[#allocation3 + $0x2c] sm:$0xf] %v8798
    %8886 = vst [vmem:[#allocation3 + $0x34] sm:$0xf] %v8822
    %8887 = vst [vmem:[#allocation3 + $0x3c] sm:$0xf] %v8846
    %8888 = vst [vmem:[#allocation3 + $0x44] sm:$0xf] %v8870
    %v8889 = vld [vmem:[#allocation3] sm:$0xff]
    %v8890 = vld [vmem:[#allocation3 + $0x8] sm:$0xff]
    %v8891 = vld [vmem:[#allocation3 + $0x10] sm:$0xff]
    %v8892 = vld [vmem:[#allocation3 + $0x18] sm:$0xff]
    %v8893 = vld [vmem:[#allocation3 + $0x20] sm:$0xff]
    %v8894 = vld [vmem:[#allocation3 + $0x28] sm:$0xff]
    %v8895 = vld [vmem:[#allocation3 + $0x30] sm:$0xff]
    %v8896 = vld [vmem:[#allocation3 + $0x38] sm:$0xff]
    %v8897 = vld [vmem:[#allocation3 + $0x40] sm:$0xff]
    %v8898 = vld [vmem:[%s4] sm:$0xf]
    %v8899 = vld [vmem:[%s4 + $0x4] sm:$0xf]
    %v8900 = vld [vmem:[%s4 + $0x8] sm:$0xf]
    %v8901 = vld [vmem:[%s4 + $0xc] sm:$0xf]
    %v8902 = vld [vmem:[%s4 + $0x10] sm:$0xf]
    %v8903 = vld [vmem:[%s4 + $0x14] sm:$0xf]
    %v8904 = vld [vmem:[%s4 + $0x18] sm:$0xf]
    %v8905 = vld [vmem:[%s4 + $0x1c] sm:$0xf]
    %v8906 = vld [vmem:[%s4 + $0x20] sm:$0xf]
    %v8907 = vld [vmem:[%s4 + $0x24] sm:$0xf]
    %v8908 = vld [vmem:[%s4 + $0x28] sm:$0xf]
    %v8909 = vld [vmem:[%s4 + $0x2c] sm:$0xf]
    %v8910 = vld [vmem:[%s4 + $0x30] sm:$0xf]
    %v8911 = vld [vmem:[%s4 + $0x34] sm:$0xf]
    %v8912 = vld [vmem:[%s4 + $0x38] sm:$0xf]
    %v8913 = vld [vmem:[%s4 + $0x3c] sm:$0xf]
    %v8914 = vld [vmem:[%s4 + $0x40] sm:$0xf]
    %v8915 = vld [vmem:[%s4 + $0x44] sm:$0xf]
    %v8916 = vld [vmem:[%s4 + $0x48] sm:$0xf]
    %v8917 = vld [vmem:[%s4 + $0x4c] sm:$0xf]
    %v8918 = vld [vmem:[%s4 + $0x50] sm:$0xf]
    %v8919 = vld [vmem:[%s4 + $0x54] sm:$0xf]
    %v8920 = vld [vmem:[%s4 + $0x58] sm:$0xf]
    %v8921 = vld [vmem:[%s4 + $0x5c] sm:$0xf]
    %v8922 = vld [vmem:[%s4 + $0x60] sm:$0xf]
    %v8923 = vld [vmem:[%s4 + $0x64] sm:$0xf]
    %v8924 = vld [vmem:[%s4 + $0x68] sm:$0xf]
    %v8925 = vld [vmem:[%s4 + $0x6c] sm:$0xf]
    %v8926 = vld [vmem:[%s4 + $0x70] sm:$0xf]
    %v8927 = vld [vmem:[%s4 + $0x74] sm:$0xf]
    %v8928 = vld [vmem:[%s4 + $0x78] sm:$0xf]
    %v8929 = vld [vmem:[%s4 + $0x7c] sm:$0xf]
    %v8930 = vld [vmem:[%s5] sm:$0x1]
    %v8932 = vlaneseq
    %v8933 = vshrl.u32 %v8932, 7
    %v8934 = vsub.s32 0, %v8933
    %v8935 = vrot.slane %v8930, %v8934
    %v8946 = vunpack.c.l.b16 %v8889
    %v8947 = vunpack.c.h.b16 %v8889
    %v8948 = vunpack.c.l.b16 %v8890
    %v8949 = vunpack.c.h.b16 %v8890
    %v8950 = vunpack.c.l.b16 %v8891
    %v8951 = vunpack.c.h.b16 %v8891
    %v8952 = vunpack.c.l.b16 %v8892
    %v8953 = vunpack.c.h.b16 %v8892
    %v8954 = vunpack.c.l.b16 %v8893
    %v8955 = vunpack.c.h.b16 %v8893
    %v8956 = vunpack.c.l.b16 %v8894
    %v8957 = vunpack.c.h.b16 %v8894
    %v8958 = vunpack.c.l.b16 %v8895
    %v8959 = vunpack.c.h.b16 %v8895
    %v8960 = vunpack.c.l.b16 %v8896
    %v8961 = vunpack.c.h.b16 %v8896
    %v8962 = vunpack.c.l.b16 %v8897
    %v8963 = vunpack.c.h.b16 %v8897
    %v8964 = vpack.c.b16 %v8948, %v8946
    %v8965 = vpack.c.b16 %v8949, %v8947
    %v8966 = vpack.c.b16 %v8952, %v8950
    %v8967 = vpack.c.b16 %v8953, %v8951
    %v8968 = vpack.c.b16 %v8956, %v8954
    %v8969 = vpack.c.b16 %v8957, %v8955
    %v8970 = vpack.c.b16 %v8960, %v8958
    %v8971 = vpack.c.b16 %v8961, %v8959
    %v8972 = vpack.c.b16 %v8962, %v8962
    %v8973 = vpack.c.b16 %v8963, %v8963
    %v9016 = vunpack.c.l.b16 %v8898
    %v9017 = vunpack.c.l.b16 %v8899
    %v9018 = vunpack.c.l.b16 %v8900
    %v9019 = vunpack.c.l.b16 %v8901
    %v9020 = vunpack.c.l.b16 %v8902
    %v9021 = vunpack.c.l.b16 %v8903
    %v9022 = vunpack.c.l.b16 %v8904
    %v9023 = vunpack.c.l.b16 %v8905
    %v9024 = vunpack.c.l.b16 %v8906
    %v9025 = vunpack.c.l.b16 %v8907
    %v9026 = vunpack.c.l.b16 %v8908
    %v9027 = vunpack.c.l.b16 %v8909
    %v9028 = vunpack.c.l.b16 %v8910
    %v9029 = vunpack.c.l.b16 %v8911
    %v9030 = vunpack.c.l.b16 %v8912
    %v9031 = vunpack.c.l.b16 %v8913
    %v9032 = vunpack.c.l.b16 %v8914
    %v9033 = vunpack.c.l.b16 %v8915
    %v9034 = vunpack.c.l.b16 %v8916
    %v9035 = vunpack.c.l.b16 %v8917
    %v9036 = vunpack.c.l.b16 %v8918
    %v9037 = vunpack.c.l.b16 %v8919
    %v9038 = vunpack.c.l.b16 %v8920
    %v9039 = vunpack.c.l.b16 %v8921
    %v9040 = vunpack.c.l.b16 %v8922
    %v9041 = vunpack.c.l.b16 %v8923
    %v9042 = vunpack.c.l.b16 %v8924
    %v9043 = vunpack.c.l.b16 %v8925
    %v9044 = vunpack.c.l.b16 %v8926
    %v9045 = vunpack.c.l.b16 %v8927
    %v9046 = vunpack.c.l.b16 %v8928
    %v9047 = vunpack.c.l.b16 %v8929
    %v9048 = vpack.c.b16 %v9017, %v9016
    %v9049 = vpack.c.b16 %v9019, %v9018
    %v9050 = vpack.c.b16 %v9021, %v9020
    %v9051 = vpack.c.b16 %v9023, %v9022
    %v9052 = vpack.c.b16 %v9025, %v9024
    %v9053 = vpack.c.b16 %v9027, %v9026
    %v9054 = vpack.c.b16 %v9029, %v9028
    %v9055 = vpack.c.b16 %v9031, %v9030
    %v9056 = vpack.c.b16 %v9033, %v9032
    %v9057 = vpack.c.b16 %v9035, %v9034
    %v9058 = vpack.c.b16 %v9037, %v9036
    %v9059 = vpack.c.b16 %v9039, %v9038
    %v9060 = vpack.c.b16 %v9041, %v9040
    %v9061 = vpack.c.b16 %v9043, %v9042
    %v9062 = vpack.c.b16 %v9045, %v9044
    %v9063 = vpack.c.b16 %v9047, %v9046
    %9080 = vmatprep.subr.bf16.mxu0 0
    %9081 = vmatpush1.bf16.msra.mxu0 %v9048
    %9082 = vmatprep.subr.bf16.mxu0 0
    %9083 = vmatpush1.bf16.msra.mxu0 %v9049
    %9084 = vmatprep.subr.bf16.mxu0 0
    %9085 = vmatpush1.bf16.msra.mxu0 %v9050
    %9086 = vmatprep.subr.bf16.mxu0 0
    %9087 = vmatpush1.bf16.msra.mxu0 %v9051
    %9088 = vmatprep.subr.bf16.mxu0 0
    %9089 = vmatpush1.bf16.msra.mxu0 %v9052
    %9090 = vmatprep.subr.bf16.mxu0 0
    %9091 = vmatpush1.bf16.msra.mxu0 %v9053
    %9092 = vmatprep.subr.bf16.mxu0 0
    %9093 = vmatpush1.bf16.msra.mxu0 %v9054
    %9094 = vmatprep.subr.bf16.mxu0 0
    %9095 = vmatpush1.bf16.msra.mxu0 %v9055
    %9096 = vmatprep.subr.bf16.mxu0 0
    %9097 = vmatpush1.bf16.msra.mxu0 %v9056
    %9098 = vmatprep.subr.bf16.mxu0 0
    %9099 = vmatpush1.bf16.msra.mxu0 %v9057
    %9100 = vmatprep.subr.bf16.mxu0 0
    %9101 = vmatpush1.bf16.msra.mxu0 %v9058
    %9102 = vmatprep.subr.bf16.mxu0 0
    %9103 = vmatpush1.bf16.msra.mxu0 %v9059
    %9104 = vmatprep.subr.bf16.mxu0 0
    %9105 = vmatpush1.bf16.msra.mxu0 %v9060
    %9106 = vmatprep.subr.bf16.mxu0 0
    %9107 = vmatpush1.bf16.msra.mxu0 %v9061
    %9108 = vmatprep.subr.bf16.mxu0 0
    %9109 = vmatpush1.bf16.msra.mxu0 %v9062
    %9110 = vmatprep.subr.bf16.mxu0 0
    %9111 = vmatpush1.bf16.msra.mxu0 %v9063
    %9112 = vmatprep.mubr.bf16.mxu0 %v8965
    %9113 = vmatmul.mubr.bf16.gmra.mrb[0].mxu0 %v8964
    %v9114 = vpop.f32.mrb[0].mxu0
    %v9115 = vadd.f32 %v8935, %v9114
    %v9116 = vpop.f32.mrb[0].mxu0
    %v9117 = vpop.f32.mrb[0].mxu0
    %v9118 = vadd.f32 %v8935, %v9117
    %v9119 = vpop.f32.mrb[0].mxu0
    %9120 = vmatprep.mubr.bf16.mxu0 %v8967
    %9121 = vmatmul.mubr.bf16.gmra.mrb[0].mxu0 %v8966
    %v9122 = vpop.f32.mrb[0].mxu0
    %v9123 = vadd.f32 %v8935, %v9122
    %v9124 = vpop.f32.mrb[0].mxu0
    %v9125 = vpop.f32.mrb[0].mxu0
    %v9126 = vadd.f32 %v8935, %v9125
    %v9127 = vpop.f32.mrb[0].mxu0
    %9128 = vmatprep.mubr.bf16.mxu0 %v8969
    %9129 = vmatmul.mubr.bf16.gmra.mrb[0].mxu0 %v8968
    %v9130 = vpop.f32.mrb[0].mxu0
    %v9131 = vadd.f32 %v8935, %v9130
    %v9132 = vpop.f32.mrb[0].mxu0
    %v9133 = vpop.f32.mrb[0].mxu0
    %v9134 = vadd.f32 %v8935, %v9133
    %v9135 = vpop.f32.mrb[0].mxu0
    %9136 = vmatprep.mubr.bf16.mxu0 %v8971
    %9137 = vmatmul.mubr.bf16.gmra.mrb[0].mxu0 %v8970
    %v9138 = vpop.f32.mrb[0].mxu0
    %v9139 = vadd.f32 %v8935, %v9138
    %v9140 = vpop.f32.mrb[0].mxu0
    %v9141 = vpop.f32.mrb[0].mxu0
    %v9142 = vadd.f32 %v8935, %v9141
    %v9143 = vpop.f32.mrb[0].mxu0
    %9144 = vmatprep.mubr.bf16.mxu0 %v8973
    %9145 = vmatmul.mubr.bf16.gmra.mrb[0].mxu0 %v8972
    %v9146 = vpop.f32.mrb[0].mxu0
    %v9147 = vadd.f32 %v8935, %v9146
    %v9148 = vpop.f32.mrb[0].mxu0
    %v9149 = vpop.f32.mrb[0].mxu0
    %v9150 = vpop.f32.mrb[0].mxu0
    %9151 = vdwg.mxu0
    %v9152 = vmul.f32 %v9115, 1.442695
    %v9153 = vpow.pop %v9152
    %v9154 = vmul.f32 %v9118, 1.442695
    %v9155 = vpow.pop %v9154
    %v9156 = vmul.f32 %v9123, 1.442695
    %v9157 = vpow.pop %v9156
    %v9158 = vmul.f32 %v9126, 1.442695
    %v9159 = vpow.pop %v9158
    %v9160 = vmul.f32 %v9131, 1.442695
    %v9161 = vpow.pop %v9160
    %v9162 = vmul.f32 %v9134, 1.442695
    %v9163 = vpow.pop %v9162
    %v9164 = vmul.f32 %v9139, 1.442695
    %v9165 = vpow.pop %v9164
    %v9166 = vmul.f32 %v9142, 1.442695
    %v9167 = vpow.pop %v9166
    %v9168 = vmul.f32 %v9147, 1.442695
    %v9169 = vpow.pop %v9168
    %v9170 = vsub.f32 %v9153, 1.0
    %v9171 = vsub.f32 %v9155, 1.0
    %v9172 = vsub.f32 %v9157, 1.0
    %v9173 = vsub.f32 %v9159, 1.0
    %v9174 = vsub.f32 %v9161, 1.0
    %v9175 = vsub.f32 %v9163, 1.0
    %v9176 = vsub.f32 %v9165, 1.0
    %v9177 = vsub.f32 %v9167, 1.0
    %v9178 = vsub.f32 %v9169, 1.0
    %v9179 = vmul.f32 %v9115, 0.5
    %v9180 = vmul.f32 %v9118, 0.5
    %v9181 = vmul.f32 %v9123, 0.5
    %v9182 = vmul.f32 %v9126, 0.5
    %v9183 = vmul.f32 %v9131, 0.5
    %v9184 = vmul.f32 %v9134, 0.5
    %v9185 = vmul.f32 %v9139, 0.5
    %v9186 = vmul.f32 %v9142, 0.5
    %v9187 = vmul.f32 %v9147, 0.5
    %v9188 = vmul.f32 %v9179, %v9115
    %v9189 = vmul.f32 %v9180, %v9118
    %v9190 = vmul.f32 %v9181, %v9123
    %v9191 = vmul.f32 %v9182, %v9126
    %v9192 = vmul.f32 %v9183, %v9131
    %v9193 = vmul.f32 %v9184, %v9134
    %v9194 = vmul.f32 %v9185, %v9139
    %v9195 = vmul.f32 %v9186, %v9142
    %v9196 = vmul.f32 %v9187, %v9147
    %v9197 = vadd.f32 %v9115, %v9188
    %v9198 = vadd.f32 %v9118, %v9189
    %v9199 = vadd.f32 %v9123, %v9190
    %v9200 = vadd.f32 %v9126, %v9191
    %v9201 = vadd.f32 %v9131, %v9192
    %v9202 = vadd.f32 %v9134, %v9193
    %v9203 = vadd.f32 %v9139, %v9194
    %v9204 = vadd.f32 %v9142, %v9195
    %v9205 = vadd.f32 %v9147, %v9196
    %vm9206 = vcmp.gt.f32.partialorder %v9115, -0.001
    %vm9207 = vcmp.gt.f32.partialorder %v9118, -0.001
    %vm9208 = vcmp.gt.f32.partialorder %v9123, -0.001
    %vm9209 = vcmp.gt.f32.partialorder %v9126, -0.001
    %vm9210 = vcmp.gt.f32.partialorder %v9131, -0.001
    %vm9211 = vcmp.gt.f32.partialorder %v9134, -0.001
    %vm9212 = vcmp.gt.f32.partialorder %v9139, -0.001
    %vm9213 = vcmp.gt.f32.partialorder %v9142, -0.001
    %vm9214 = vcmp.gt.f32.partialorder %v9147, -0.001
    %v9215 = vsel %vm9206, %v9197, %v9170
    %v9216 = vsel %vm9207, %v9198, %v9171
    %v9217 = vsel %vm9208, %v9199, %v9172
    %v9218 = vsel %vm9209, %v9200, %v9173
    %v9219 = vsel %vm9210, %v9201, %v9174
    %v9220 = vsel %vm9211, %v9202, %v9175
    %v9221 = vsel %vm9212, %v9203, %v9176
    %v9222 = vsel %vm9213, %v9204, %v9177
    %v9223 = vsel %vm9214, %v9205, %v9178
    %vm9224 = vcmp.gt.f32.partialorder %v9115, 0.0
    %vm9225 = vcmp.gt.f32.partialorder %v9118, 0.0
    %vm9226 = vcmp.gt.f32.partialorder %v9123, 0.0
    %vm9227 = vcmp.gt.f32.partialorder %v9126, 0.0
    %vm9228 = vcmp.gt.f32.partialorder %v9131, 0.0
    %vm9229 = vcmp.gt.f32.partialorder %v9134, 0.0
    %vm9230 = vcmp.gt.f32.partialorder %v9139, 0.0
    %vm9231 = vcmp.gt.f32.partialorder %v9142, 0.0
    %vm9232 = vcmp.gt.f32.partialorder %v9147, 0.0
    %v9233 = vsel %vm9224, %v9115, %v9215
    %v9234 = vsel %vm9225, %v9118, %v9216
    %v9235 = vsel %vm9226, %v9123, %v9217
    %v9236 = vsel %vm9227, %v9126, %v9218
    %v9237 = vsel %vm9228, %v9131, %v9219
    %v9238 = vsel %vm9229, %v9134, %v9220
    %v9239 = vsel %vm9230, %v9139, %v9221
    %v9240 = vsel %vm9231, %v9142, %v9222
    %v9241 = vsel %vm9232, %v9147, %v9223
    %v9242 = vpack.c.bf16 %v9234, %v9233
    %v9243 = vpack.c.bf16 %v9236, %v9235
    %v9244 = vpack.c.bf16 %v9238, %v9237
    %v9245 = vpack.c.bf16 %v9240, %v9239
    %v9246 = vpack.c.bf16 %v9241, %v9241
    %v9252 = vcombine.high %v9242, %v9242
    %v9254 = vunpack.c.l.s4 1966171168
    %v9255 = vunpack.c.0.s8 %v9254
    %v9256 = vlaneseq
    %v9257 = vshrl.u32 %v9256, 7
    %v9258 = vsub.s32 %v9255, %v9257
    %v9259 = vrot.slane %v9242, %v9258
    %v9261 = vunpack.c.l.s4 1966171168
    %v9262 = vunpack.c.0.s8 %v9261
    %v9263 = vlaneseq
    %v9264 = vshrl.u32 %v9263, 7
    %v9265 = vsub.s32 %v9262, %v9264
    %v9266 = vrot.slane %v9252, %v9265
    %v9267 = vcombine.high %v9259, %v9259
    %v9268 = vcombine.high %v9266, %v9266
    %v9270 = vunpack.c.l.s4 1966171168
    %v9271 = vunpack.c.0.s8 %v9270
    %v9272 = vlaneseq
    %v9273 = vshrl.u32 %v9272, 7
    %v9274 = vsub.s32 %v9271, %v9273
    %v9275 = vrot.slane %v9259, %v9274
    %v9277 = vunpack.c.l.s4 1966171168
    %v9278 = vunpack.c.0.s8 %v9277
    %v9279 = vlaneseq
    %v9280 = vshrl.u32 %v9279, 7
    %v9281 = vsub.s32 %v9278, %v9280
    %v9282 = vrot.slane %v9266, %v9281
    %v9284 = vunpack.c.l.s4 1966171168
    %v9285 = vunpack.c.0.s8 %v9284
    %v9286 = vlaneseq
    %v9287 = vshrl.u32 %v9286, 7
    %v9288 = vsub.s32 %v9285, %v9287
    %v9289 = vrot.slane %v9267, %v9288
    %v9291 = vunpack.c.l.s4 1966171168
    %v9292 = vunpack.c.0.s8 %v9291
    %v9293 = vlaneseq
    %v9294 = vshrl.u32 %v9293, 7
    %v9295 = vsub.s32 %v9292, %v9294
    %v9296 = vrot.slane %v9268, %v9295
    %v9297 = vcombine.high %v9275, %v9275
    %v9298 = vcombine.high %v9282, %v9282
    %v9299 = vcombine.high %v9289, %v9289
    %v9300 = vcombine.high %v9296, %v9296
    %v9301 = vcombine.high %v9243, %v9243
    %v9303 = vunpack.c.l.s4 1966171168
    %v9304 = vunpack.c.0.s8 %v9303
    %v9305 = vlaneseq
    %v9306 = vshrl.u32 %v9305, 7
    %v9307 = vsub.s32 %v9304, %v9306
    %v9308 = vrot.slane %v9243, %v9307
    %v9310 = vunpack.c.l.s4 1966171168
    %v9311 = vunpack.c.0.s8 %v9310
    %v9312 = vlaneseq
    %v9313 = vshrl.u32 %v9312, 7
    %v9314 = vsub.s32 %v9311, %v9313
    %v9315 = vrot.slane %v9301, %v9314
    %v9316 = vcombine.high %v9308, %v9308
    %v9317 = vcombine.high %v9315, %v9315
    %v9319 = vunpack.c.l.s4 1966171168
    %v9320 = vunpack.c.0.s8 %v9319
    %v9321 = vlaneseq
    %v9322 = vshrl.u32 %v9321, 7
    %v9323 = vsub.s32 %v9320, %v9322
    %v9324 = vrot.slane %v9308, %v9323
    %v9326 = vunpack.c.l.s4 1966171168
    %v9327 = vunpack.c.0.s8 %v9326
    %v9328 = vlaneseq
    %v9329 = vshrl.u32 %v9328, 7
    %v9330 = vsub.s32 %v9327, %v9329
    %v9331 = vrot.slane %v9315, %v9330
    %v9333 = vunpack.c.l.s4 1966171168
    %v9334 = vunpack.c.0.s8 %v9333
    %v9335 = vlaneseq
    %v9336 = vshrl.u32 %v9335, 7
    %v9337 = vsub.s32 %v9334, %v9336
    %v9338 = vrot.slane %v9316, %v9337
    %v9340 = vunpack.c.l.s4 1966171168
    %v9341 = vunpack.c.0.s8 %v9340
    %v9342 = vlaneseq
    %v9343 = vshrl.u32 %v9342, 7
    %v9344 = vsub.s32 %v9341, %v9343
    %v9345 = vrot.slane %v9317, %v9344
    %v9346 = vcombine.high %v9324, %v9324
    %v9347 = vcombine.high %v9331, %v9331
    %v9348 = vcombine.high %v9338, %v9338
    %v9349 = vcombine.high %v9345, %v9345
    %v9350 = vcombine.high %v9244, %v9244
    %v9352 = vunpack.c.l.s4 1966171168
    %v9353 = vunpack.c.0.s8 %v9352
    %v9354 = vlaneseq
    %v9355 = vshrl.u32 %v9354, 7
    %v9356 = vsub.s32 %v9353, %v9355
    %v9357 = vrot.slane %v9244, %v9356
    %v9359 = vunpack.c.l.s4 1966171168
    %v9360 = vunpack.c.0.s8 %v9359
    %v9361 = vlaneseq
    %v9362 = vshrl.u32 %v9361, 7
    %v9363 = vsub.s32 %v9360, %v9362
    %v9364 = vrot.slane %v9350, %v9363
    %v9365 = vcombine.high %v9357, %v9357
    %v9366 = vcombine.high %v9364, %v9364
    %v9368 = vunpack.c.l.s4 1966171168
    %v9369 = vunpack.c.0.s8 %v9368
    %v9370 = vlaneseq
    %v9371 = vshrl.u32 %v9370, 7
    %v9372 = vsub.s32 %v9369, %v9371
    %v9373 = vrot.slane %v9357, %v9372
    %v9375 = vunpack.c.l.s4 1966171168
    %v9376 = vunpack.c.0.s8 %v9375
    %v9377 = vlaneseq
    %v9378 = vshrl.u32 %v9377, 7
    %v9379 = vsub.s32 %v9376, %v9378
    %v9380 = vrot.slane %v9364, %v9379
    %v9382 = vunpack.c.l.s4 1966171168
    %v9383 = vunpack.c.0.s8 %v9382
    %v9384 = vlaneseq
    %v9385 = vshrl.u32 %v9384, 7
    %v9386 = vsub.s32 %v9383, %v9385
    %v9387 = vrot.slane %v9365, %v9386
    %v9389 = vunpack.c.l.s4 1966171168
    %v9390 = vunpack.c.0.s8 %v9389
    %v9391 = vlaneseq
    %v9392 = vshrl.u32 %v9391, 7
    %v9393 = vsub.s32 %v9390, %v9392
    %v9394 = vrot.slane %v9366, %v9393
    %v9395 = vcombine.high %v9373, %v9373
    %v9396 = vcombine.high %v9380, %v9380
    %v9397 = vcombine.high %v9387, %v9387
    %v9398 = vcombine.high %v9394, %v9394
    %v9399 = vcombine.high %v9245, %v9245
    %v9401 = vunpack.c.l.s4 1966171168
    %v9402 = vunpack.c.0.s8 %v9401
    %v9403 = vlaneseq
    %v9404 = vshrl.u32 %v9403, 7
    %v9405 = vsub.s32 %v9402, %v9404
    %v9406 = vrot.slane %v9245, %v9405
    %v9408 = vunpack.c.l.s4 1966171168
    %v9409 = vunpack.c.0.s8 %v9408
    %v9410 = vlaneseq
    %v9411 = vshrl.u32 %v9410, 7
    %v9412 = vsub.s32 %v9409, %v9411
    %v9413 = vrot.slane %v9399, %v9412
    %v9414 = vcombine.high %v9406, %v9406
    %v9415 = vcombine.high %v9413, %v9413
    %v9417 = vunpack.c.l.s4 1966171168
    %v9418 = vunpack.c.0.s8 %v9417
    %v9419 = vlaneseq
    %v9420 = vshrl.u32 %v9419, 7
    %v9421 = vsub.s32 %v9418, %v9420
    %v9422 = vrot.slane %v9406, %v9421
    %v9424 = vunpack.c.l.s4 1966171168
    %v9425 = vunpack.c.0.s8 %v9424
    %v9426 = vlaneseq
    %v9427 = vshrl.u32 %v9426, 7
    %v9428 = vsub.s32 %v9425, %v9427
    %v9429 = vrot.slane %v9413, %v9428
    %v9431 = vunpack.c.l.s4 1966171168
    %v9432 = vunpack.c.0.s8 %v9431
    %v9433 = vlaneseq
    %v9434 = vshrl.u32 %v9433, 7
    %v9435 = vsub.s32 %v9432, %v9434
    %v9436 = vrot.slane %v9414, %v9435
    %v9438 = vunpack.c.l.s4 1966171168
    %v9439 = vunpack.c.0.s8 %v9438
    %v9440 = vlaneseq
    %v9441 = vshrl.u32 %v9440, 7
    %v9442 = vsub.s32 %v9439, %v9441
    %v9443 = vrot.slane %v9415, %v9442
    %v9444 = vcombine.high %v9422, %v9422
    %v9445 = vcombine.high %v9429, %v9429
    %v9446 = vcombine.high %v9436, %v9436
    %v9447 = vcombine.high %v9443, %v9443
    %v9449 = vunpack.c.l.s4 1966171168
    %v9450 = vunpack.c.0.s8 %v9449
    %v9451 = vlaneseq
    %v9452 = vshrl.u32 %v9451, 7
    %v9453 = vsub.s32 %v9450, %v9452
    %v9454 = vrot.slane %v9246, %v9453
    %v9455 = vcombine.high %v9454, %v9454
    %v9457 = vunpack.c.l.s4 1966171168
    %v9458 = vunpack.c.0.s8 %v9457
    %v9459 = vlaneseq
    %v9460 = vshrl.u32 %v9459, 7
    %v9461 = vsub.s32 %v9458, %v9460
    %v9462 = vrot.slane %v9454, %v9461
    %v9464 = vunpack.c.l.s4 1966171168
    %v9465 = vunpack.c.0.s8 %v9464
    %v9466 = vlaneseq
    %v9467 = vshrl.u32 %v9466, 7
    %v9468 = vsub.s32 %v9465, %v9467
    %v9469 = vrot.slane %v9455, %v9468
    %v9470 = vcombine.high %v9462, %v9462
    %v9471 = vcombine.high %v9469, %v9469
    %v9472 = vcombine.low %v9275, %v9297
    %v9474 = vunpack.c.l.s4 1935823168
    %v9475 = vunpack.c.0.s8 %v9474
    %v9476 = vlaneseq
    %v9477 = vshrl.u32 %v9476, 7
    %v9478 = vsub.s32 %v9475, %v9477
    %v9479 = vrot.slane %v9472, %v9478
    %v9481 = vunpack.c.l.s4 1935823168
    %v9482 = vunpack.c.0.s8 %v9481
    %v9483 = vlaneseq
    %v9484 = vshrl.u32 %v9483, 7
    %v9485 = vsub.s32 %v9482, %v9484
    %v9486 = vrot.slane %v9289, %v9485
    %v9487 = vcombine.low %v9479, %v9486
    %v9489 = vunpack.c.l.s4 1935823168
    %v9490 = vunpack.c.0.s8 %v9489
    %v9491 = vlaneseq
    %v9492 = vshrl.u32 %v9491, 7
    %v9493 = vsub.s32 %v9490, %v9492
    %v9494 = vrot.slane %v9487, %v9493
    %v9495 = vcombine.low %v9299, %v9296
    %v9497 = vunpack.c.l.s4 1935823168
    %v9498 = vunpack.c.0.s8 %v9497
    %v9499 = vlaneseq
    %v9500 = vshrl.u32 %v9499, 7
    %v9501 = vsub.s32 %v9498, %v9500
    %v9502 = vrot.slane %v9495, %v9501
    %v9504 = vunpack.c.l.s4 1935823168
    %v9505 = vunpack.c.0.s8 %v9504
    %v9506 = vlaneseq
    %v9507 = vshrl.u32 %v9506, 7
    %v9508 = vsub.s32 %v9505, %v9507
    %v9509 = vrot.slane %v9282, %v9508
    %v9510 = vcombine.low %v9502, %v9509
    %v9512 = vunpack.c.l.s4 1935823168
    %v9513 = vunpack.c.0.s8 %v9512
    %v9514 = vlaneseq
    %v9515 = vshrl.u32 %v9514, 7
    %v9516 = vsub.s32 %v9513, %v9515
    %v9517 = vrot.slane %v9510, %v9516
    %v9518 = vcombine.low %v9298, %v9324
    %v9520 = vunpack.c.l.s4 1935823168
    %v9521 = vunpack.c.0.s8 %v9520
    %v9522 = vlaneseq
    %v9523 = vshrl.u32 %v9522, 7
    %v9524 = vsub.s32 %v9521, %v9523
    %v9525 = vrot.slane %v9518, %v9524
    %v9527 = vunpack.c.l.s4 1935823168
    %v9528 = vunpack.c.0.s8 %v9527
    %v9529 = vlaneseq
    %v9530 = vshrl.u32 %v9529, 7
    %v9531 = vsub.s32 %v9528, %v9530
    %v9532 = vrot.slane %v9300, %v9531
    %v9533 = vcombine.low %v9525, %v9532
    %v9535 = vunpack.c.l.s4 1935823168
    %v9536 = vunpack.c.0.s8 %v9535
    %v9537 = vlaneseq
    %v9538 = vshrl.u32 %v9537, 7
    %v9539 = vsub.s32 %v9536, %v9538
    %v9540 = vrot.slane %v9533, %v9539
    %v9541 = vcombine.low %v9338, %v9348
    %v9543 = vunpack.c.l.s4 1935823168
    %v9544 = vunpack.c.0.s8 %v9543
    %v9545 = vlaneseq
    %v9546 = vshrl.u32 %v9545, 7
    %v9547 = vsub.s32 %v9544, %v9546
    %v9548 = vrot.slane %v9541, %v9547
    %v9550 = vunpack.c.l.s4 1935823168
    %v9551 = vunpack.c.0.s8 %v9550
    %v9552 = vlaneseq
    %v9553 = vshrl.u32 %v9552, 7
    %v9554 = vsub.s32 %v9551, %v9553
    %v9555 = vrot.slane %v9346, %v9554
    %v9556 = vcombine.low %v9548, %v9555
    %v9558 = vunpack.c.l.s4 1935823168
    %v9559 = vunpack.c.0.s8 %v9558
    %v9560 = vlaneseq
    %v9561 = vshrl.u32 %v9560, 7
    %v9562 = vsub.s32 %v9559, %v9561
    %v9563 = vrot.slane %v9556, %v9562
    %v9564 = vcombine.low %v9331, %v9347
    %v9566 = vunpack.c.l.s4 1935823168
    %v9567 = vunpack.c.0.s8 %v9566
    %v9568 = vlaneseq
    %v9569 = vshrl.u32 %v9568, 7
    %v9570 = vsub.s32 %v9567, %v9569
    %v9571 = vrot.slane %v9564, %v9570
    %v9573 = vunpack.c.l.s4 1935823168
    %v9574 = vunpack.c.0.s8 %v9573
    %v9575 = vlaneseq
    %v9576 = vshrl.u32 %v9575, 7
    %v9577 = vsub.s32 %v9574, %v9576
    %v9578 = vrot.slane %v9345, %v9577
    %v9579 = vcombine.low %v9571, %v9578
    %v9581 = vunpack.c.l.s4 1935823168
    %v9582 = vunpack.c.0.s8 %v9581
    %v9583 = vlaneseq
    %v9584 = vshrl.u32 %v9583, 7
    %v9585 = vsub.s32 %v9582, %v9584
    %v9586 = vrot.slane %v9579, %v9585
    %v9587 = vcombine.low %v9349, %v9387
    %v9589 = vunpack.c.l.s4 1935823168
    %v9590 = vunpack.c.0.s8 %v9589
    %v9591 = vlaneseq
    %v9592 = vshrl.u32 %v9591, 7
    %v9593 = vsub.s32 %v9590, %v9592
    %v9594 = vrot.slane %v9587, %v9593
    %v9596 = vunpack.c.l.s4 1935823168
    %v9597 = vunpack.c.0.s8 %v9596
    %v9598 = vlaneseq
    %v9599 = vshrl.u32 %v9598, 7
    %v9600 = vsub.s32 %v9597, %v9599
    %v9601 = vrot.slane %v9373, %v9600
    %v9602 = vcombine.low %v9594, %v9601
    %v9604 = vunpack.c.l.s4 1935823168
    %v9605 = vunpack.c.0.s8 %v9604
    %v9606 = vlaneseq
    %v9607 = vshrl.u32 %v9606, 7
    %v9608 = vsub.s32 %v9605, %v9607
    %v9609 = vrot.slane %v9602, %v9608
    %v9610 = vcombine.low %v9395, %v9380
    %v9612 = vunpack.c.l.s4 1935823168
    %v9613 = vunpack.c.0.s8 %v9612
    %v9614 = vlaneseq
    %v9615 = vshrl.u32 %v9614, 7
    %v9616 = vsub.s32 %v9613, %v9615
    %v9617 = vrot.slane %v9610, %v9616
    %v9619 = vunpack.c.l.s4 1935823168
    %v9620 = vunpack.c.0.s8 %v9619
    %v9621 = vlaneseq
    %v9622 = vshrl.u32 %v9621, 7
    %v9623 = vsub.s32 %v9620, %v9622
    %v9624 = vrot.slane %v9397, %v9623
    %v9625 = vcombine.low %v9617, %v9624
    %v9627 = vunpack.c.l.s4 1935823168
    %v9628 = vunpack.c.0.s8 %v9627
    %v9629 = vlaneseq
    %v9630 = vshrl.u32 %v9629, 7
    %v9631 = vsub.s32 %v9628, %v9630
    %v9632 = vrot.slane %v9625, %v9631
    %v9633 = vcombine.low %v9394, %v9398
    %v9635 = vunpack.c.l.s4 1935823168
    %v9636 = vunpack.c.0.s8 %v9635
    %v9637 = vlaneseq
    %v9638 = vshrl.u32 %v9637, 7
    %v9639 = vsub.s32 %v9636, %v9638
    %v9640 = vrot.slane %v9633, %v9639
    %v9642 = vunpack.c.l.s4 1935823168
    %v9643 = vunpack.c.0.s8 %v9642
    %v9644 = vlaneseq
    %v9645 = vshrl.u32 %v9644, 7
    %v9646 = vsub.s32 %v9643, %v9645
    %v9647 = vrot.slane %v9396, %v9646
    %v9648 = vcombine.low %v9640, %v9647
    %v9650 = vunpack.c.l.s4 1935823168
    %v9651 = vunpack.c.0.s8 %v9650
    %v9652 = vlaneseq
    %v9653 = vshrl.u32 %v9652, 7
    %v9654 = vsub.s32 %v9651, %v9653
    %v9655 = vrot.slane %v9648, %v9654
    %v9656 = vcombine.low %v9422, %v9444
    %v9658 = vunpack.c.l.s4 1935823168
    %v9659 = vunpack.c.0.s8 %v9658
    %v9660 = vlaneseq
    %v9661 = vshrl.u32 %v9660, 7
    %v9662 = vsub.s32 %v9659, %v9661
    %v9663 = vrot.slane %v9656, %v9662
    %v9665 = vunpack.c.l.s4 1935823168
    %v9666 = vunpack.c.0.s8 %v9665
    %v9667 = vlaneseq
    %v9668 = vshrl.u32 %v9667, 7
    %v9669 = vsub.s32 %v9666, %v9668
    %v9670 = vrot.slane %v9436, %v9669
    %v9671 = vcombine.low %v9663, %v9670
    %v9673 = vunpack.c.l.s4 1935823168
    %v9674 = vunpack.c.0.s8 %v9673
    %v9675 = vlaneseq
    %v9676 = vshrl.u32 %v9675, 7
    %v9677 = vsub.s32 %v9674, %v9676
    %v9678 = vrot.slane %v9671, %v9677
    %v9679 = vcombine.low %v9446, %v9443
    %v9681 = vunpack.c.l.s4 1935823168
    %v9682 = vunpack.c.0.s8 %v9681
    %v9683 = vlaneseq
    %v9684 = vshrl.u32 %v9683, 7
    %v9685 = vsub.s32 %v9682, %v9684
    %v9686 = vrot.slane %v9679, %v9685
    %v9688 = vunpack.c.l.s4 1935823168
    %v9689 = vunpack.c.0.s8 %v9688
    %v9690 = vlaneseq
    %v9691 = vshrl.u32 %v9690, 7
    %v9692 = vsub.s32 %v9689, %v9691
    %v9693 = vrot.slane %v9429, %v9692
    %v9694 = vcombine.low %v9686, %v9693
    %v9696 = vunpack.c.l.s4 1935823168
    %v9697 = vunpack.c.0.s8 %v9696
    %v9698 = vlaneseq
    %v9699 = vshrl.u32 %v9698, 7
    %v9700 = vsub.s32 %v9697, %v9699
    %v9701 = vrot.slane %v9694, %v9700
    %v9702 = vcombine.low %v9445, %v9462
    %v9704 = vunpack.c.l.s4 1935823168
    %v9705 = vunpack.c.0.s8 %v9704
    %v9706 = vlaneseq
    %v9707 = vshrl.u32 %v9706, 7
    %v9708 = vsub.s32 %v9705, %v9707
    %v9709 = vrot.slane %v9702, %v9708
    %v9711 = vunpack.c.l.s4 1935823168
    %v9712 = vunpack.c.0.s8 %v9711
    %v9713 = vlaneseq
    %v9714 = vshrl.u32 %v9713, 7
    %v9715 = vsub.s32 %v9712, %v9714
    %v9716 = vrot.slane %v9447, %v9715
    %v9717 = vcombine.low %v9709, %v9716
    %v9719 = vunpack.c.l.s4 1935823168
    %v9720 = vunpack.c.0.s8 %v9719
    %v9721 = vlaneseq
    %v9722 = vshrl.u32 %v9721, 7
    %v9723 = vsub.s32 %v9720, %v9722
    %v9724 = vrot.slane %v9717, %v9723
    %v9725 = vcombine.low %v9469, %v9471
    %v9727 = vunpack.c.l.s4 1935823168
    %v9728 = vunpack.c.0.s8 %v9727
    %v9729 = vlaneseq
    %v9730 = vshrl.u32 %v9729, 7
    %v9731 = vsub.s32 %v9728, %v9730
    %v9732 = vrot.slane %v9725, %v9731
    %v9734 = vunpack.c.l.s4 1935823168
    %v9735 = vunpack.c.0.s8 %v9734
    %v9736 = vlaneseq
    %v9737 = vshrl.u32 %v9736, 7
    %v9738 = vsub.s32 %v9735, %v9737
    %v9739 = vrot.slane %v9470, %v9738
    %v9740 = vcombine.low %v9732, %v9739
    %v9742 = vunpack.c.l.s4 1935823168
    %v9743 = vunpack.c.0.s8 %v9742
    %v9744 = vlaneseq
    %v9745 = vshrl.u32 %v9744, 7
    %v9746 = vsub.s32 %v9743, %v9745
    %v9747 = vrot.slane %v9740, %v9746
    %vm9760 = vcmask 256000
    %9761 = vst.msk [vmem:[#allocation6] sm:$0x7] %vm9760, %v9494
    %9762 = vst.msk [vmem:[#allocation6 + $0x4] sm:$0x7] %vm9760, %v9517
    %9763 = vst.msk [vmem:[#allocation6 + $0x8] sm:$0x7] %vm9760, %v9540
    %9764 = vst.msk [vmem:[#allocation6 + $0xc] sm:$0x7] %vm9760, %v9563
    %9765 = vst.msk [vmem:[#allocation6 + $0x10] sm:$0x7] %vm9760, %v9586
    %9766 = vst.msk [vmem:[#allocation6 + $0x14] sm:$0x7] %vm9760, %v9609
    %9767 = vst.msk [vmem:[#allocation6 + $0x18] sm:$0x7] %vm9760, %v9632
    %9768 = vst.msk [vmem:[#allocation6 + $0x1c] sm:$0x7] %vm9760, %v9655
    %9769 = vst.msk [vmem:[#allocation6 + $0x20] sm:$0x7] %vm9760, %v9678
    %9770 = vst.msk [vmem:[#allocation6 + $0x24] sm:$0x7] %vm9760, %v9701
    %9771 = vst.msk [vmem:[#allocation6 + $0x28] sm:$0x7] %vm9760, %v9724
    %9772 = vst.msk [vmem:[#allocation6 + $0x2c] sm:$0x7] %vm9760, %v9747
    %v9773 = vld [vmem:[#allocation6] sm:$0x3]
    %v9774 = vld [vmem:[#allocation6 + $0x4] sm:$0x3]
    %v9775 = vld [vmem:[#allocation6 + $0x8] sm:$0x3]
    %v9776 = vld [vmem:[#allocation6 + $0xc] sm:$0x3]
    %v9777 = vld [vmem:[#allocation6 + $0x18] sm:$0x3]
    %v9778 = vld [vmem:[#allocation6 + $0x1c] sm:$0x3]
    %v9779 = vld [vmem:[#allocation6 + $0x20] sm:$0x3]
    %v9780 = vld [vmem:[#allocation6 + $0x24] sm:$0x3]
    %v9781 = vld [vmem:[#allocation6] sm:$0x7]
    %v9782 = vld [vmem:[#allocation6 + $0x4] sm:$0x7]
    %v9783 = vld [vmem:[#allocation6 + $0x8] sm:$0x7]
    %v9784 = vld [vmem:[#allocation6 + $0xc] sm:$0x7]
    %v9785 = vld [vmem:[#allocation6 + $0x18] sm:$0x7]
    %v9786 = vld [vmem:[#allocation6 + $0x1c] sm:$0x7]
    %v9787 = vld [vmem:[#allocation6 + $0x20] sm:$0x7]
    %v9788 = vld [vmem:[#allocation6 + $0x24] sm:$0x7]
    %v9789 = vld [vmem:[#allocation6] sm:$0x6]
    %v9790 = vld [vmem:[#allocation6 + $0x4] sm:$0x6]
    %v9791 = vld [vmem:[#allocation6 + $0x8] sm:$0x6]
    %v9792 = vld [vmem:[#allocation6 + $0xc] sm:$0x6]
    %v9793 = vld [vmem:[#allocation6 + $0x18] sm:$0x6]
    %v9794 = vld [vmem:[#allocation6 + $0x1c] sm:$0x6]
    %v9795 = vld [vmem:[#allocation6 + $0x20] sm:$0x6]
    %v9796 = vld [vmem:[#allocation6 + $0x24] sm:$0x6]
    %s9797 = scalar_lea.vmem [#allocation6], 4
    %v9798 = vld [vmem:[%s9797] sm:$0x3]
    %v9799 = vld [vmem:[%s9797 + $0x4] sm:$0x3]
    %v9800 = vld [vmem:[%s9797 + $0x8] sm:$0x3]
    %v9801 = vld [vmem:[%s9797 + $0xc] sm:$0x3]
    %v9802 = vld [vmem:[%s9797 + $0x18] sm:$0x3]
    %v9803 = vld [vmem:[%s9797 + $0x1c] sm:$0x3]
    %v9804 = vld [vmem:[%s9797 + $0x20] sm:$0x3]
    %v9805 = vld [vmem:[%s9797 + $0x24] sm:$0x3]
    %v9814 = vunpack.c.l.b16 %v9781
    %v9815 = vunpack.c.l.b16 %v9782
    %v9816 = vunpack.c.l.b16 %v9783
    %v9817 = vunpack.c.l.b16 %v9784
    %v9818 = vunpack.c.l.b16 %v9785
    %v9819 = vunpack.c.l.b16 %v9786
    %v9820 = vunpack.c.l.b16 %v9787
    %v9821 = vunpack.c.l.b16 %v9788
    %v9822 = vpack.c.b16 %v9814, %v9814
    %v9823 = vpack.c.b16 %v9815, %v9815
    %v9824 = vpack.c.b16 %v9816, %v9816
    %v9825 = vpack.c.b16 %v9817, %v9817
    %v9826 = vpack.c.b16 %v9818, %v9818
    %v9827 = vpack.c.b16 %v9819, %v9819
    %v9828 = vpack.c.b16 %v9820, %v9820
    %v9829 = vpack.c.b16 %v9821, %v9821
    %v9831 = vshrl.u32 %v9822, 16
    %v9833 = vshll.u32 %v9822, 16
    %v9835 = vrot.slane %v9833, 1
    %v9836 = vor.u32 %v9831, %v9835
    %v9838 = vshrl.u32 %v9823, 16
    %v9840 = vshll.u32 %v9823, 16
    %v9842 = vrot.slane %v9840, 1
    %v9843 = vor.u32 %v9838, %v9842
    %v9845 = vshrl.u32 %v9824, 16
    %v9847 = vshll.u32 %v9824, 16
    %v9849 = vrot.slane %v9847, 1
    %v9850 = vor.u32 %v9845, %v9849
    %v9852 = vshrl.u32 %v9825, 16
    %v9854 = vshll.u32 %v9825, 16
    %v9856 = vrot.slane %v9854, 1
    %v9857 = vor.u32 %v9852, %v9856
    %v9859 = vshrl.u32 %v9826, 16
    %v9861 = vshll.u32 %v9826, 16
    %v9863 = vrot.slane %v9861, 1
    %v9864 = vor.u32 %v9859, %v9863
    %v9866 = vshrl.u32 %v9827, 16
    %v9868 = vshll.u32 %v9827, 16
    %v9870 = vrot.slane %v9868, 1
    %v9871 = vor.u32 %v9866, %v9870
    %v9873 = vshrl.u32 %v9828, 16
    %v9875 = vshll.u32 %v9828, 16
    %v9877 = vrot.slane %v9875, 1
    %v9878 = vor.u32 %v9873, %v9877
    %v9880 = vshrl.u32 %v9829, 16
    %v9882 = vshll.u32 %v9829, 16
    %v9884 = vrot.slane %v9882, 1
    %v9885 = vor.u32 %v9880, %v9884
    %9886 = vrot.lane.b32.xlu0 %v9836, 32
    %v9887 = vpop.permute.xlu0 %9886
    %9888 = vrot.lane.b32.xlu0 %v9843, 32
    %v9889 = vpop.permute.xlu0 %9888
    %9890 = vrot.lane.b32.xlu0 %v9850, 32
    %v9891 = vpop.permute.xlu0 %9890
    %9892 = vrot.lane.b32.xlu0 %v9857, 32
    %v9893 = vpop.permute.xlu0 %9892
    %9894 = vrot.lane.b32.xlu0 %v9864, 32
    %v9895 = vpop.permute.xlu0 %9894
    %9896 = vrot.lane.b32.xlu0 %v9871, 32
    %v9897 = vpop.permute.xlu0 %9896
    %9898 = vrot.lane.b32.xlu0 %v9878, 32
    %v9899 = vpop.permute.xlu0 %9898
    %9900 = vrot.lane.b32.xlu0 %v9885, 32
    %v9901 = vpop.permute.xlu0 %9900
    %v9910 = vunpack.c.l.b16 %v9789
    %v9911 = vunpack.c.l.b16 %v9790
    %v9912 = vunpack.c.l.b16 %v9791
    %v9913 = vunpack.c.l.b16 %v9792
    %v9914 = vunpack.c.l.b16 %v9793
    %v9915 = vunpack.c.l.b16 %v9794
    %v9916 = vunpack.c.l.b16 %v9795
    %v9917 = vunpack.c.l.b16 %v9796
    %v9918 = vpack.c.b16 %v9910, %v9910
    %v9919 = vpack.c.b16 %v9911, %v9911
    %v9920 = vpack.c.b16 %v9912, %v9912
    %v9921 = vpack.c.b16 %v9913, %v9913
    %v9922 = vpack.c.b16 %v9914, %v9914
    %v9923 = vpack.c.b16 %v9915, %v9915
    %v9924 = vpack.c.b16 %v9916, %v9916
    %v9925 = vpack.c.b16 %v9917, %v9917
    %v9926 = vrot.slane %v9918, 1
    %v9927 = vrot.slane %v9919, 1
    %v9928 = vrot.slane %v9920, 1
    %v9929 = vrot.slane %v9921, 1
    %v9930 = vrot.slane %v9922, 1
    %v9931 = vrot.slane %v9923, 1
    %v9932 = vrot.slane %v9924, 1
    %v9933 = vrot.slane %v9925, 1
    %9934 = vrot.lane.b32.xlu0 %v9926, 64
    %v9935 = vpop.permute.xlu0 %9934
    %9936 = vrot.lane.b32.xlu0 %v9927, 64
    %v9937 = vpop.permute.xlu0 %9936
    %9938 = vrot.lane.b32.xlu0 %v9928, 64
    %v9939 = vpop.permute.xlu0 %9938
    %9940 = vrot.lane.b32.xlu0 %v9929, 64
    %v9941 = vpop.permute.xlu0 %9940
    %9942 = vrot.lane.b32.xlu0 %v9930, 64
    %v9943 = vpop.permute.xlu0 %9942
    %9944 = vrot.lane.b32.xlu0 %v9931, 64
    %v9945 = vpop.permute.xlu0 %9944
    %9946 = vrot.lane.b32.xlu0 %v9932, 64
    %v9947 = vpop.permute.xlu0 %9946
    %9948 = vrot.lane.b32.xlu0 %v9933, 64
    %v9949 = vpop.permute.xlu0 %9948
    %v9958 = vunpack.c.l.b16 %v9798
    %v9959 = vunpack.c.l.b16 %v9799
    %v9960 = vunpack.c.l.b16 %v9800
    %v9961 = vunpack.c.l.b16 %v9801
    %v9962 = vunpack.c.l.b16 %v9802
    %v9963 = vunpack.c.l.b16 %v9803
    %v9964 = vunpack.c.l.b16 %v9804
    %v9965 = vunpack.c.l.b16 %v9805
    %v9966 = vpack.c.b16 %v9958, %v9958
    %v9967 = vpack.c.b16 %v9959, %v9959
    %v9968 = vpack.c.b16 %v9960, %v9960
    %v9969 = vpack.c.b16 %v9961, %v9961
    %v9970 = vpack.c.b16 %v9962, %v9962
    %v9971 = vpack.c.b16 %v9963, %v9963
    %v9972 = vpack.c.b16 %v9964, %v9964
    %v9973 = vpack.c.b16 %v9965, %v9965
    %9974 = vrot.lane.b32.xlu0 %v9966, 96
    %v9975 = vpop.permute.xlu0 %9974
    %9976 = vrot.lane.b32.xlu0 %v9967, 96
    %v9977 = vpop.permute.xlu0 %9976
    %9978 = vrot.lane.b32.xlu0 %v9968, 96
    %v9979 = vpop.permute.xlu0 %9978
    %9980 = vrot.lane.b32.xlu0 %v9969, 96
    %v9981 = vpop.permute.xlu0 %9980
    %9982 = vrot.lane.b32.xlu0 %v9970, 96
    %v9983 = vpop.permute.xlu0 %9982
    %9984 = vrot.lane.b32.xlu0 %v9971, 96
    %v9985 = vpop.permute.xlu0 %9984
    %9986 = vrot.lane.b32.xlu0 %v9972, 96
    %v9987 = vpop.permute.xlu0 %9986
    %9988 = vrot.lane.b32.xlu0 %v9973, 96
    %v9989 = vpop.permute.xlu0 %9988
    %v9992 = vsel %vm199, %v9773, %v9887
    %v9995 = vsel %vm199, %v9774, %v9889
    %v9998 = vsel %vm199, %v9775, %v9891
    %v10001 = vsel %vm199, %v9776, %v9893
    %v10004 = vsel %vm199, %v9777, %v9895
    %v10007 = vsel %vm199, %v9778, %v9897
    %v10010 = vsel %vm199, %v9779, %v9899
    %v10013 = vsel %vm199, %v9780, %v9901
    %v10015 = vsel %vm204, %v9992, %v9935
    %v10017 = vsel %vm204, %v9995, %v9937
    %v10019 = vsel %vm204, %v9998, %v9939
    %v10021 = vsel %vm204, %v10001, %v9941
    %v10023 = vsel %vm204, %v10004, %v9943
    %v10025 = vsel %vm204, %v10007, %v9945
    %v10027 = vsel %vm204, %v10010, %v9947
    %v10029 = vsel %vm204, %v10013, %v9949
    %v10031 = vsel %vm209, %v10015, %v9975
    %v10033 = vsel %vm209, %v10017, %v9977
    %v10035 = vsel %vm209, %v10019, %v9979
    %v10037 = vsel %vm209, %v10021, %v9981
    %v10039 = vsel %vm209, %v10023, %v9983
    %v10041 = vsel %vm209, %v10025, %v9985
    %v10043 = vsel %vm209, %v10027, %v9987
    %v10045 = vsel %vm209, %v10029, %v9989
    %v10054 = vcombine.low %v10031, %v10033
    %v10055 = vcombine.low %v10035, %v10037
    %v10057 = vunpack.c.l.s4 1983009808
    %v10058 = vunpack.c.0.s8 %v10057
    %v10059 = vlaneseq
    %v10060 = vshrl.u32 %v10059, 7
    %v10061 = vsub.s32 %v10058, %v10060
    %v10062 = vrot.slane %v10054, %v10061
    %v10064 = vunpack.c.l.s4 1983009808
    %v10065 = vunpack.c.0.s8 %v10064
    %v10066 = vlaneseq
    %v10067 = vshrl.u32 %v10066, 7
    %v10068 = vsub.s32 %v10065, %v10067
    %v10069 = vrot.slane %v10055, %v10068
    %v10070 = vcombine.low %v10062, %v10069
    %v10071 = vcombine.low %v10039, %v10041
    %v10072 = vcombine.low %v10043, %v10045
    %v10074 = vunpack.c.l.s4 1983009808
    %v10075 = vunpack.c.0.s8 %v10074
    %v10076 = vlaneseq
    %v10077 = vshrl.u32 %v10076, 7
    %v10078 = vsub.s32 %v10075, %v10077
    %v10079 = vrot.slane %v10071, %v10078
    %v10081 = vunpack.c.l.s4 1983009808
    %v10082 = vunpack.c.0.s8 %v10081
    %v10083 = vlaneseq
    %v10084 = vshrl.u32 %v10083, 7
    %v10085 = vsub.s32 %v10082, %v10084
    %v10086 = vrot.slane %v10072, %v10085
    %v10087 = vcombine.low %v10079, %v10086
    %10090 = vst [vmem:[#allocation4] sm:$0xff] %v10070
    %10091 = vst [vmem:[#allocation4 + $0x18] sm:$0xff] %v10087
    %v10092 = vld [vmem:[%s9797] sm:$0x7]
    %v10093 = vld [vmem:[%s9797 + $0x4] sm:$0x7]
    %v10094 = vld [vmem:[%s9797 + $0x8] sm:$0x7]
    %v10095 = vld [vmem:[%s9797 + $0xc] sm:$0x7]
    %v10096 = vld [vmem:[%s9797 + $0x18] sm:$0x7]
    %v10097 = vld [vmem:[%s9797 + $0x1c] sm:$0x7]
    %v10098 = vld [vmem:[%s9797 + $0x20] sm:$0x7]
    %v10099 = vld [vmem:[%s9797 + $0x24] sm:$0x7]
    %v10100 = vld [vmem:[%s9797] sm:$0x6]
    %v10101 = vld [vmem:[%s9797 + $0x4] sm:$0x6]
    %v10102 = vld [vmem:[%s9797 + $0x8] sm:$0x6]
    %v10103 = vld [vmem:[%s9797 + $0xc] sm:$0x6]
    %v10104 = vld [vmem:[%s9797 + $0x18] sm:$0x6]
    %v10105 = vld [vmem:[%s9797 + $0x1c] sm:$0x6]
    %v10106 = vld [vmem:[%s9797 + $0x20] sm:$0x6]
    %v10107 = vld [vmem:[%s9797 + $0x24] sm:$0x6]
    %s10108 = scalar_lea.vmem [#allocation6], 8
    %v10109 = vld [vmem:[%s10108] sm:$0x3]
    %v10110 = vld [vmem:[%s10108 + $0x4] sm:$0x3]
    %v10111 = vld [vmem:[%s10108 + $0x8] sm:$0x3]
    %v10112 = vld [vmem:[%s10108 + $0xc] sm:$0x3]
    %v10113 = vld [vmem:[%s10108 + $0x18] sm:$0x3]
    %v10114 = vld [vmem:[%s10108 + $0x1c] sm:$0x3]
    %v10115 = vld [vmem:[%s10108 + $0x20] sm:$0x3]
    %v10116 = vld [vmem:[%s10108 + $0x24] sm:$0x3]
    %v10117 = vld [vmem:[%s10108] sm:$0x7]
    %v10118 = vld [vmem:[%s10108 + $0x4] sm:$0x7]
    %v10119 = vld [vmem:[%s10108 + $0x8] sm:$0x7]
    %v10120 = vld [vmem:[%s10108 + $0xc] sm:$0x7]
    %v10121 = vld [vmem:[%s10108 + $0x18] sm:$0x7]
    %v10122 = vld [vmem:[%s10108 + $0x1c] sm:$0x7]
    %v10123 = vld [vmem:[%s10108 + $0x20] sm:$0x7]
    %v10124 = vld [vmem:[%s10108 + $0x24] sm:$0x7]
    %v10133 = vunpack.c.l.b16 %v10100
    %v10134 = vunpack.c.l.b16 %v10101
    %v10135 = vunpack.c.l.b16 %v10102
    %v10136 = vunpack.c.l.b16 %v10103
    %v10137 = vunpack.c.l.b16 %v10104
    %v10138 = vunpack.c.l.b16 %v10105
    %v10139 = vunpack.c.l.b16 %v10106
    %v10140 = vunpack.c.l.b16 %v10107
    %v10141 = vpack.c.b16 %v10133, %v10133
    %v10142 = vpack.c.b16 %v10134, %v10134
    %v10143 = vpack.c.b16 %v10135, %v10135
    %v10144 = vpack.c.b16 %v10136, %v10136
    %v10145 = vpack.c.b16 %v10137, %v10137
    %v10146 = vpack.c.b16 %v10138, %v10138
    %v10147 = vpack.c.b16 %v10139, %v10139
    %v10148 = vpack.c.b16 %v10140, %v10140
    %v10150 = vshrl.u32 %v10141, 16
    %v10152 = vshll.u32 %v10141, 16
    %v10154 = vrot.slane %v10152, 1
    %v10155 = vor.u32 %v10150, %v10154
    %v10157 = vshrl.u32 %v10142, 16
    %v10159 = vshll.u32 %v10142, 16
    %v10161 = vrot.slane %v10159, 1
    %v10162 = vor.u32 %v10157, %v10161
    %v10164 = vshrl.u32 %v10143, 16
    %v10166 = vshll.u32 %v10143, 16
    %v10168 = vrot.slane %v10166, 1
    %v10169 = vor.u32 %v10164, %v10168
    %v10171 = vshrl.u32 %v10144, 16
    %v10173 = vshll.u32 %v10144, 16
    %v10175 = vrot.slane %v10173, 1
    %v10176 = vor.u32 %v10171, %v10175
    %v10178 = vshrl.u32 %v10145, 16
    %v10180 = vshll.u32 %v10145, 16
    %v10182 = vrot.slane %v10180, 1
    %v10183 = vor.u32 %v10178, %v10182
    %v10185 = vshrl.u32 %v10146, 16
    %v10187 = vshll.u32 %v10146, 16
    %v10189 = vrot.slane %v10187, 1
    %v10190 = vor.u32 %v10185, %v10189
    %v10192 = vshrl.u32 %v10147, 16
    %v10194 = vshll.u32 %v10147, 16
    %v10196 = vrot.slane %v10194, 1
    %v10197 = vor.u32 %v10192, %v10196
    %v10199 = vshrl.u32 %v10148, 16
    %v10201 = vshll.u32 %v10148, 16
    %v10203 = vrot.slane %v10201, 1
    %v10204 = vor.u32 %v10199, %v10203
    %10205 = vrot.lane.b32.xlu0 %v10155, 32
    %v10206 = vpop.permute.xlu0 %10205
    %10207 = vrot.lane.b32.xlu0 %v10162, 32
    %v10208 = vpop.permute.xlu0 %10207
    %10209 = vrot.lane.b32.xlu0 %v10169, 32
    %v10210 = vpop.permute.xlu0 %10209
    %10211 = vrot.lane.b32.xlu0 %v10176, 32
    %v10212 = vpop.permute.xlu0 %10211
    %10213 = vrot.lane.b32.xlu0 %v10183, 32
    %v10214 = vpop.permute.xlu0 %10213
    %10215 = vrot.lane.b32.xlu0 %v10190, 32
    %v10216 = vpop.permute.xlu0 %10215
    %10217 = vrot.lane.b32.xlu0 %v10197, 32
    %v10218 = vpop.permute.xlu0 %10217
    %10219 = vrot.lane.b32.xlu0 %v10204, 32
    %v10220 = vpop.permute.xlu0 %10219
    %v10229 = vunpack.c.l.b16 %v10109
    %v10230 = vunpack.c.l.b16 %v10110
    %v10231 = vunpack.c.l.b16 %v10111
    %v10232 = vunpack.c.l.b16 %v10112
    %v10233 = vunpack.c.l.b16 %v10113
    %v10234 = vunpack.c.l.b16 %v10114
    %v10235 = vunpack.c.l.b16 %v10115
    %v10236 = vunpack.c.l.b16 %v10116
    %v10237 = vpack.c.b16 %v10229, %v10229
    %v10238 = vpack.c.b16 %v10230, %v10230
    %v10239 = vpack.c.b16 %v10231, %v10231
    %v10240 = vpack.c.b16 %v10232, %v10232
    %v10241 = vpack.c.b16 %v10233, %v10233
    %v10242 = vpack.c.b16 %v10234, %v10234
    %v10243 = vpack.c.b16 %v10235, %v10235
    %v10244 = vpack.c.b16 %v10236, %v10236
    %v10246 = vshrl.u32 %v10237, 16
    %v10248 = vrot.slane %v10246, 7
    %v10249 = vshll.u32 %v10237, 16
    %v10251 = vor.u32 %v10248, %v10249
    %v10253 = vshrl.u32 %v10238, 16
    %v10255 = vrot.slane %v10253, 7
    %v10256 = vshll.u32 %v10238, 16
    %v10258 = vor.u32 %v10255, %v10256
    %v10260 = vshrl.u32 %v10239, 16
    %v10262 = vrot.slane %v10260, 7
    %v10263 = vshll.u32 %v10239, 16
    %v10265 = vor.u32 %v10262, %v10263
    %v10267 = vshrl.u32 %v10240, 16
    %v10269 = vrot.slane %v10267, 7
    %v10270 = vshll.u32 %v10240, 16
    %v10272 = vor.u32 %v10269, %v10270
    %v10274 = vshrl.u32 %v10241, 16
    %v10276 = vrot.slane %v10274, 7
    %v10277 = vshll.u32 %v10241, 16
    %v10279 = vor.u32 %v10276, %v10277
    %v10281 = vshrl.u32 %v10242, 16
    %v10283 = vrot.slane %v10281, 7
    %v10284 = vshll.u32 %v10242, 16
    %v10286 = vor.u32 %v10283, %v10284
    %v10288 = vshrl.u32 %v10243, 16
    %v10290 = vrot.slane %v10288, 7
    %v10291 = vshll.u32 %v10243, 16
    %v10293 = vor.u32 %v10290, %v10291
    %v10295 = vshrl.u32 %v10244, 16
    %v10297 = vrot.slane %v10295, 7
    %v10298 = vshll.u32 %v10244, 16
    %v10300 = vor.u32 %v10297, %v10298
    %10301 = vrot.lane.b32.xlu0 %v10251, 64
    %v10302 = vpop.permute.xlu0 %10301
    %10303 = vrot.lane.b32.xlu0 %v10258, 64
    %v10304 = vpop.permute.xlu0 %10303
    %10305 = vrot.lane.b32.xlu0 %v10265, 64
    %v10306 = vpop.permute.xlu0 %10305
    %10307 = vrot.lane.b32.xlu0 %v10272, 64
    %v10308 = vpop.permute.xlu0 %10307
    %10309 = vrot.lane.b32.xlu0 %v10279, 64
    %v10310 = vpop.permute.xlu0 %10309
    %10311 = vrot.lane.b32.xlu0 %v10286, 64
    %v10312 = vpop.permute.xlu0 %10311
    %10313 = vrot.lane.b32.xlu0 %v10293, 64
    %v10314 = vpop.permute.xlu0 %10313
    %10315 = vrot.lane.b32.xlu0 %v10300, 64
    %v10316 = vpop.permute.xlu0 %10315
    %v10325 = vunpack.c.l.b16 %v10117
    %v10326 = vunpack.c.l.b16 %v10118
    %v10327 = vunpack.c.l.b16 %v10119
    %v10328 = vunpack.c.l.b16 %v10120
    %v10329 = vunpack.c.l.b16 %v10121
    %v10330 = vunpack.c.l.b16 %v10122
    %v10331 = vunpack.c.l.b16 %v10123
    %v10332 = vunpack.c.l.b16 %v10124
    %v10333 = vpack.c.b16 %v10325, %v10325
    %v10334 = vpack.c.b16 %v10326, %v10326
    %v10335 = vpack.c.b16 %v10327, %v10327
    %v10336 = vpack.c.b16 %v10328, %v10328
    %v10337 = vpack.c.b16 %v10329, %v10329
    %v10338 = vpack.c.b16 %v10330, %v10330
    %v10339 = vpack.c.b16 %v10331, %v10331
    %v10340 = vpack.c.b16 %v10332, %v10332
    %10341 = vrot.lane.b32.xlu0 %v10333, 96
    %v10342 = vpop.permute.xlu0 %10341
    %10343 = vrot.lane.b32.xlu0 %v10334, 96
    %v10344 = vpop.permute.xlu0 %10343
    %10345 = vrot.lane.b32.xlu0 %v10335, 96
    %v10346 = vpop.permute.xlu0 %10345
    %10347 = vrot.lane.b32.xlu0 %v10336, 96
    %v10348 = vpop.permute.xlu0 %10347
    %10349 = vrot.lane.b32.xlu0 %v10337, 96
    %v10350 = vpop.permute.xlu0 %10349
    %10351 = vrot.lane.b32.xlu0 %v10338, 96
    %v10352 = vpop.permute.xlu0 %10351
    %10353 = vrot.lane.b32.xlu0 %v10339, 96
    %v10354 = vpop.permute.xlu0 %10353
    %10355 = vrot.lane.b32.xlu0 %v10340, 96
    %v10356 = vpop.permute.xlu0 %10355
    %v10359 = vsel %vm199, %v10092, %v10206
    %v10362 = vsel %vm199, %v10093, %v10208
    %v10365 = vsel %vm199, %v10094, %v10210
    %v10368 = vsel %vm199, %v10095, %v10212
    %v10371 = vsel %vm199, %v10096, %v10214
    %v10374 = vsel %vm199, %v10097, %v10216
    %v10377 = vsel %vm199, %v10098, %v10218
    %v10380 = vsel %vm199, %v10099, %v10220
    %v10382 = vsel %vm204, %v10359, %v10302
    %v10384 = vsel %vm204, %v10362, %v10304
    %v10386 = vsel %vm204, %v10365, %v10306
    %v10388 = vsel %vm204, %v10368, %v10308
    %v10390 = vsel %vm204, %v10371, %v10310
    %v10392 = vsel %vm204, %v10374, %v10312
    %v10394 = vsel %vm204, %v10377, %v10314
    %v10396 = vsel %vm204, %v10380, %v10316
    %v10398 = vsel %vm209, %v10382, %v10342
    %v10400 = vsel %vm209, %v10384, %v10344
    %v10402 = vsel %vm209, %v10386, %v10346
    %v10404 = vsel %vm209, %v10388, %v10348
    %v10406 = vsel %vm209, %v10390, %v10350
    %v10408 = vsel %vm209, %v10392, %v10352
    %v10410 = vsel %vm209, %v10394, %v10354
    %v10412 = vsel %vm209, %v10396, %v10356
    %v10422 = vunpack.c.l.s4 1983009808
    %v10423 = vunpack.c.0.s8 %v10422
    %v10424 = vlaneseq
    %v10425 = vshrl.u32 %v10424, 7
    %v10426 = vsub.s32 %v10423, %v10425
    %v10427 = vrot.slane %v10398, %v10426
    %v10428 = vcombine.high %v10427, %v10427
    %v10430 = vunpack.c.l.s4 1983009808
    %v10431 = vunpack.c.0.s8 %v10430
    %v10432 = vlaneseq
    %v10433 = vshrl.u32 %v10432, 7
    %v10434 = vsub.s32 %v10431, %v10433
    %v10435 = vrot.slane %v10400, %v10434
    %v10436 = vcombine.high %v10435, %v10435
    %v10438 = vunpack.c.l.s4 1983009808
    %v10439 = vunpack.c.0.s8 %v10438
    %v10440 = vlaneseq
    %v10441 = vshrl.u32 %v10440, 7
    %v10442 = vsub.s32 %v10439, %v10441
    %v10443 = vrot.slane %v10402, %v10442
    %v10444 = vcombine.high %v10443, %v10443
    %v10446 = vunpack.c.l.s4 1983009808
    %v10447 = vunpack.c.0.s8 %v10446
    %v10448 = vlaneseq
    %v10449 = vshrl.u32 %v10448, 7
    %v10450 = vsub.s32 %v10447, %v10449
    %v10451 = vrot.slane %v10404, %v10450
    %v10452 = vcombine.high %v10451, %v10451
    %v10454 = vunpack.c.l.s4 1983009808
    %v10455 = vunpack.c.0.s8 %v10454
    %v10456 = vlaneseq
    %v10457 = vshrl.u32 %v10456, 7
    %v10458 = vsub.s32 %v10455, %v10457
    %v10459 = vrot.slane %v10406, %v10458
    %v10460 = vcombine.high %v10459, %v10459
    %v10462 = vunpack.c.l.s4 1983009808
    %v10463 = vunpack.c.0.s8 %v10462
    %v10464 = vlaneseq
    %v10465 = vshrl.u32 %v10464, 7
    %v10466 = vsub.s32 %v10463, %v10465
    %v10467 = vrot.slane %v10408, %v10466
    %v10468 = vcombine.high %v10467, %v10467
    %v10470 = vunpack.c.l.s4 1983009808
    %v10471 = vunpack.c.0.s8 %v10470
    %v10472 = vlaneseq
    %v10473 = vshrl.u32 %v10472, 7
    %v10474 = vsub.s32 %v10471, %v10473
    %v10475 = vrot.slane %v10410, %v10474
    %v10476 = vcombine.high %v10475, %v10475
    %v10478 = vunpack.c.l.s4 1983009808
    %v10479 = vunpack.c.0.s8 %v10478
    %v10480 = vlaneseq
    %v10481 = vshrl.u32 %v10480, 7
    %v10482 = vsub.s32 %v10479, %v10481
    %v10483 = vrot.slane %v10412, %v10482
    %v10484 = vcombine.high %v10483, %v10483
    %vm10485 = vsmask.f32 3336
    %vm10486 = vmor %vm723, %vm10485
    %vm10487 = vmor %vm10486, %vm936
    %vm10488 = vsmask.f32 7448
    %vm10489 = vmor %vm10487, %vm10488
    %v10491 = vshrl.u32 %v10427, 16
    %v10493 = vrot.slane %v10491, 6
    %v10494 = vshll.u32 %v10427, 16
    %v10496 = vrot.slane %v10494, 7
    %v10497 = vor.u32 %v10493, %v10496
    %v10498 = vrot.slane %v10497, 2
    %v10500 = vshll.u32 %v10428, 16
    %v10502 = vrot.slane %v10500, 7
    %v10503 = vsel %vm10489, %v10498, %v10502
    %v10505 = vshrl.u32 %v10435, 16
    %v10507 = vrot.slane %v10505, 6
    %v10508 = vshll.u32 %v10435, 16
    %v10510 = vrot.slane %v10508, 7
    %v10511 = vor.u32 %v10507, %v10510
    %v10512 = vrot.slane %v10511, 2
    %v10514 = vshll.u32 %v10436, 16
    %v10516 = vrot.slane %v10514, 7
    %v10517 = vsel %vm10489, %v10512, %v10516
    %v10519 = vshrl.u32 %v10443, 16
    %v10521 = vrot.slane %v10519, 6
    %v10522 = vshll.u32 %v10443, 16
    %v10524 = vrot.slane %v10522, 7
    %v10525 = vor.u32 %v10521, %v10524
    %v10526 = vrot.slane %v10525, 2
    %v10528 = vshll.u32 %v10444, 16
    %v10530 = vrot.slane %v10528, 7
    %v10531 = vsel %vm10489, %v10526, %v10530
    %v10533 = vshrl.u32 %v10451, 16
    %v10535 = vrot.slane %v10533, 6
    %v10536 = vshll.u32 %v10451, 16
    %v10538 = vrot.slane %v10536, 7
    %v10539 = vor.u32 %v10535, %v10538
    %v10540 = vrot.slane %v10539, 2
    %v10542 = vshll.u32 %v10452, 16
    %v10544 = vrot.slane %v10542, 7
    %v10545 = vsel %vm10489, %v10540, %v10544
    %v10547 = vshrl.u32 %v10459, 16
    %v10549 = vrot.slane %v10547, 6
    %v10550 = vshll.u32 %v10459, 16
    %v10552 = vrot.slane %v10550, 7
    %v10553 = vor.u32 %v10549, %v10552
    %v10554 = vrot.slane %v10553, 2
    %v10556 = vshll.u32 %v10460, 16
    %v10558 = vrot.slane %v10556, 7
    %v10559 = vsel %vm10489, %v10554, %v10558
    %v10561 = vshrl.u32 %v10467, 16
    %v10563 = vrot.slane %v10561, 6
    %v10564 = vshll.u32 %v10467, 16
    %v10566 = vrot.slane %v10564, 7
    %v10567 = vor.u32 %v10563, %v10566
    %v10568 = vrot.slane %v10567, 2
    %v10570 = vshll.u32 %v10468, 16
    %v10572 = vrot.slane %v10570, 7
    %v10573 = vsel %vm10489, %v10568, %v10572
    %v10575 = vshrl.u32 %v10475, 16
    %v10577 = vrot.slane %v10575, 6
    %v10578 = vshll.u32 %v10475, 16
    %v10580 = vrot.slane %v10578, 7
    %v10581 = vor.u32 %v10577, %v10580
    %v10582 = vrot.slane %v10581, 2
    %v10584 = vshll.u32 %v10476, 16
    %v10586 = vrot.slane %v10584, 7
    %v10587 = vsel %vm10489, %v10582, %v10586
    %v10589 = vshrl.u32 %v10483, 16
    %v10591 = vrot.slane %v10589, 6
    %v10592 = vshll.u32 %v10483, 16
    %v10594 = vrot.slane %v10592, 7
    %v10595 = vor.u32 %v10591, %v10594
    %v10596 = vrot.slane %v10595, 2
    %v10598 = vshll.u32 %v10484, 16
    %v10600 = vrot.slane %v10598, 7
    %v10601 = vsel %vm10489, %v10596, %v10600
    %v10602 = vcombine.low %v10503, %v10517
    %v10603 = vcombine.low %v10531, %v10545
    %v10605 = vunpack.c.l.s4 1983009808
    %v10606 = vunpack.c.0.s8 %v10605
    %v10607 = vlaneseq
    %v10608 = vshrl.u32 %v10607, 7
    %v10609 = vsub.s32 %v10606, %v10608
    %v10610 = vrot.slane %v10602, %v10609
    %v10612 = vunpack.c.l.s4 1983009808
    %v10613 = vunpack.c.0.s8 %v10612
    %v10614 = vlaneseq
    %v10615 = vshrl.u32 %v10614, 7
    %v10616 = vsub.s32 %v10613, %v10615
    %v10617 = vrot.slane %v10603, %v10616
    %v10618 = vcombine.low %v10610, %v10617
    %v10619 = vcombine.low %v10559, %v10573
    %v10620 = vcombine.low %v10587, %v10601
    %v10622 = vunpack.c.l.s4 1983009808
    %v10623 = vunpack.c.0.s8 %v10622
    %v10624 = vlaneseq
    %v10625 = vshrl.u32 %v10624, 7
    %v10626 = vsub.s32 %v10623, %v10625
    %v10627 = vrot.slane %v10619, %v10626
    %v10629 = vunpack.c.l.s4 1983009808
    %v10630 = vunpack.c.0.s8 %v10629
    %v10631 = vlaneseq
    %v10632 = vshrl.u32 %v10631, 7
    %v10633 = vsub.s32 %v10630, %v10632
    %v10634 = vrot.slane %v10620, %v10633
    %v10635 = vcombine.low %v10627, %v10634
    %10638 = vst [vmem:[#allocation4 + $0x8] sm:$0xff] %v10618
    %10639 = vst [vmem:[#allocation4 + $0x20] sm:$0xff] %v10635
    %v10640 = vld [vmem:[%s10108] sm:$0x6]
    %v10641 = vld [vmem:[%s10108 + $0x4] sm:$0x6]
    %v10642 = vld [vmem:[%s10108 + $0x8] sm:$0x6]
    %v10643 = vld [vmem:[%s10108 + $0xc] sm:$0x6]
    %v10644 = vld [vmem:[%s10108 + $0x18] sm:$0x6]
    %v10645 = vld [vmem:[%s10108 + $0x1c] sm:$0x6]
    %v10646 = vld [vmem:[%s10108 + $0x20] sm:$0x6]
    %v10647 = vld [vmem:[%s10108 + $0x24] sm:$0x6]
    %v10657 = vunpack.c.l.s4 1983009808
    %v10658 = vunpack.c.0.s8 %v10657
    %v10659 = vlaneseq
    %v10660 = vshrl.u32 %v10659, 7
    %v10661 = vsub.s32 %v10658, %v10660
    %v10662 = vrot.slane %v10640, %v10661
    %v10663 = vcombine.high %v10662, %v10662
    %v10665 = vunpack.c.l.s4 1983009808
    %v10666 = vunpack.c.0.s8 %v10665
    %v10667 = vlaneseq
    %v10668 = vshrl.u32 %v10667, 7
    %v10669 = vsub.s32 %v10666, %v10668
    %v10670 = vrot.slane %v10641, %v10669
    %v10671 = vcombine.high %v10670, %v10670
    %v10673 = vunpack.c.l.s4 1983009808
    %v10674 = vunpack.c.0.s8 %v10673
    %v10675 = vlaneseq
    %v10676 = vshrl.u32 %v10675, 7
    %v10677 = vsub.s32 %v10674, %v10676
    %v10678 = vrot.slane %v10642, %v10677
    %v10679 = vcombine.high %v10678, %v10678
    %v10681 = vunpack.c.l.s4 1983009808
    %v10682 = vunpack.c.0.s8 %v10681
    %v10683 = vlaneseq
    %v10684 = vshrl.u32 %v10683, 7
    %v10685 = vsub.s32 %v10682, %v10684
    %v10686 = vrot.slane %v10643, %v10685
    %v10687 = vcombine.high %v10686, %v10686
    %v10689 = vunpack.c.l.s4 1983009808
    %v10690 = vunpack.c.0.s8 %v10689
    %v10691 = vlaneseq
    %v10692 = vshrl.u32 %v10691, 7
    %v10693 = vsub.s32 %v10690, %v10692
    %v10694 = vrot.slane %v10644, %v10693
    %v10695 = vcombine.high %v10694, %v10694
    %v10697 = vunpack.c.l.s4 1983009808
    %v10698 = vunpack.c.0.s8 %v10697
    %v10699 = vlaneseq
    %v10700 = vshrl.u32 %v10699, 7
    %v10701 = vsub.s32 %v10698, %v10700
    %v10702 = vrot.slane %v10645, %v10701
    %v10703 = vcombine.high %v10702, %v10702
    %v10705 = vunpack.c.l.s4 1983009808
    %v10706 = vunpack.c.0.s8 %v10705
    %v10707 = vlaneseq
    %v10708 = vshrl.u32 %v10707, 7
    %v10709 = vsub.s32 %v10706, %v10708
    %v10710 = vrot.slane %v10646, %v10709
    %v10711 = vcombine.high %v10710, %v10710
    %v10713 = vunpack.c.l.s4 1983009808
    %v10714 = vunpack.c.0.s8 %v10713
    %v10715 = vlaneseq
    %v10716 = vshrl.u32 %v10715, 7
    %v10717 = vsub.s32 %v10714, %v10716
    %v10718 = vrot.slane %v10647, %v10717
    %v10719 = vcombine.high %v10718, %v10718
    %vm10720 = vcmask 1042434
    %vm10721 = vmor %vm249, %vm10720
    %vm10722 = vmor %vm10721, %vm252
    %vm10723 = vcmask 1046534
    %vm10724 = vmor %vm10722, %vm10723
    %v10725 = vrot.slane %v10662, 7
    %v10726 = vrot.slane %v10725, 2
    %v10727 = vrot.slane %v10663, 7
    %v10728 = vsel %vm10724, %v10726, %v10727
    %v10729 = vrot.slane %v10670, 7
    %v10730 = vrot.slane %v10729, 2
    %v10731 = vrot.slane %v10671, 7
    %v10732 = vsel %vm10724, %v10730, %v10731
    %v10733 = vrot.slane %v10678, 7
    %v10734 = vrot.slane %v10733, 2
    %v10735 = vrot.slane %v10679, 7
    %v10736 = vsel %vm10724, %v10734, %v10735
    %v10737 = vrot.slane %v10686, 7
    %v10738 = vrot.slane %v10737, 2
    %v10739 = vrot.slane %v10687, 7
    %v10740 = vsel %vm10724, %v10738, %v10739
    %v10741 = vrot.slane %v10694, 7
    %v10742 = vrot.slane %v10741, 2
    %v10743 = vrot.slane %v10695, 7
    %v10744 = vsel %vm10724, %v10742, %v10743
    %v10745 = vrot.slane %v10702, 7
    %v10746 = vrot.slane %v10745, 2
    %v10747 = vrot.slane %v10703, 7
    %v10748 = vsel %vm10724, %v10746, %v10747
    %v10749 = vrot.slane %v10710, 7
    %v10750 = vrot.slane %v10749, 2
    %v10751 = vrot.slane %v10711, 7
    %v10752 = vsel %vm10724, %v10750, %v10751
    %v10753 = vrot.slane %v10718, 7
    %v10754 = vrot.slane %v10753, 2
    %v10755 = vrot.slane %v10719, 7
    %v10756 = vsel %vm10724, %v10754, %v10755
    %v10757 = vcombine.low %v10728, %v10732
    %v10758 = vcombine.low %v10736, %v10740
    %v10760 = vunpack.c.l.s4 1983009808
    %v10761 = vunpack.c.0.s8 %v10760
    %v10762 = vlaneseq
    %v10763 = vshrl.u32 %v10762, 7
    %v10764 = vsub.s32 %v10761, %v10763
    %v10765 = vrot.slane %v10757, %v10764
    %v10767 = vunpack.c.l.s4 1983009808
    %v10768 = vunpack.c.0.s8 %v10767
    %v10769 = vlaneseq
    %v10770 = vshrl.u32 %v10769, 7
    %v10771 = vsub.s32 %v10768, %v10770
    %v10772 = vrot.slane %v10758, %v10771
    %v10773 = vcombine.low %v10765, %v10772
    %v10774 = vcombine.low %v10744, %v10748
    %v10775 = vcombine.low %v10752, %v10756
    %v10777 = vunpack.c.l.s4 1983009808
    %v10778 = vunpack.c.0.s8 %v10777
    %v10779 = vlaneseq
    %v10780 = vshrl.u32 %v10779, 7
    %v10781 = vsub.s32 %v10778, %v10780
    %v10782 = vrot.slane %v10774, %v10781
    %v10784 = vunpack.c.l.s4 1983009808
    %v10785 = vunpack.c.0.s8 %v10784
    %v10786 = vlaneseq
    %v10787 = vshrl.u32 %v10786, 7
    %v10788 = vsub.s32 %v10785, %v10787
    %v10789 = vrot.slane %v10775, %v10788
    %v10790 = vcombine.low %v10782, %v10789
    %10793 = vst.msk [vmem:[#allocation4 + $0x10] sm:$0xff] %vm199, %v10773
    %10794 = vst.msk [vmem:[#allocation4 + $0x28] sm:$0xff] %vm199, %v10790
    %v10795 = vld [vmem:[#allocation4] sm:$0xff]
    %v10796 = vld [vmem:[#allocation4 + $0x8] sm:$0xff]
    %v10797 = vld [vmem:[#allocation4 + $0x10] sm:$0xff]
    %v10798 = vld [vmem:[#allocation4 + $0x18] sm:$0xff]
    %v10799 = vld [vmem:[#allocation4 + $0x20] sm:$0xff]
    %v10800 = vld [vmem:[#allocation4 + $0x28] sm:$0xff]
    %v10801 = vld [vmem:[%s6] sm:$0xf]
    %v10802 = vld [vmem:[%s6 + $0x4] sm:$0xf]
    %v10803 = vld [vmem:[%s6 + $0x8] sm:$0xf]
    %v10804 = vld [vmem:[%s6 + $0xc] sm:$0xf]
    %v10805 = vld [vmem:[%s6 + $0x10] sm:$0xf]
    %v10806 = vld [vmem:[%s6 + $0x14] sm:$0xf]
    %v10807 = vld [vmem:[%s6 + $0x18] sm:$0xf]
    %v10808 = vld [vmem:[%s6 + $0x1c] sm:$0xf]
    %v10809 = vld [vmem:[%s6 + $0x20] sm:$0xf]
    %v10810 = vld [vmem:[%s6 + $0x24] sm:$0xf]
    %v10811 = vld [vmem:[%s6 + $0x28] sm:$0xf]
    %v10812 = vld [vmem:[%s6 + $0x2c] sm:$0xf]
    %v10813 = vld [vmem:[%s6 + $0x30] sm:$0xf]
    %v10814 = vld [vmem:[%s6 + $0x34] sm:$0xf]
    %v10815 = vld [vmem:[%s6 + $0x38] sm:$0xf]
    %v10816 = vld [vmem:[%s6 + $0x3c] sm:$0xf]
    %v10817 = vld [vmem:[%s6 + $0x40] sm:$0xf]
    %v10818 = vld [vmem:[%s6 + $0x44] sm:$0xf]
    %v10819 = vld [vmem:[%s6 + $0x48] sm:$0xf]
    %v10820 = vld [vmem:[%s6 + $0x4c] sm:$0xf]
    %v10821 = vld [vmem:[%s6 + $0x50] sm:$0xf]
    %v10822 = vld [vmem:[%s6 + $0x54] sm:$0xf]
    %v10823 = vld [vmem:[%s6 + $0x58] sm:$0xf]
    %v10824 = vld [vmem:[%s6 + $0x5c] sm:$0xf]
    %v10825 = vld [vmem:[%s6 + $0x60] sm:$0xf]
    %v10826 = vld [vmem:[%s6 + $0x64] sm:$0xf]
    %v10827 = vld [vmem:[%s6 + $0x68] sm:$0xf]
    %v10828 = vld [vmem:[%s6 + $0x6c] sm:$0xf]
    %v10829 = vld [vmem:[%s6 + $0x70] sm:$0xf]
    %v10830 = vld [vmem:[%s6 + $0x74] sm:$0xf]
    %v10831 = vld [vmem:[%s6 + $0x78] sm:$0xf]
    %v10832 = vld [vmem:[%s6 + $0x7c] sm:$0xf]
    %v10833 = vld [vmem:[%s6 + $0x80] sm:$0xf]
    %v10834 = vld [vmem:[%s6 + $0x84] sm:$0xf]
    %v10835 = vld [vmem:[%s6 + $0x88] sm:$0xf]
    %v10836 = vld [vmem:[%s6 + $0x8c] sm:$0xf]
    %v10837 = vld [vmem:[%s7] sm:$0x1]
    %v10839 = vlaneseq
    %v10840 = vshrl.u32 %v10839, 7
    %v10841 = vsub.s32 0, %v10840
    %v10842 = vrot.slane %v10837, %v10841
    %v10880 = vunpack.c.l.b16 %v10801
    %v10881 = vunpack.c.l.b16 %v10802
    %v10882 = vunpack.c.l.b16 %v10803
    %v10883 = vunpack.c.l.b16 %v10804
    %v10884 = vunpack.c.l.b16 %v10805
    %v10885 = vunpack.c.l.b16 %v10806
    %v10886 = vunpack.c.l.b16 %v10807
    %v10887 = vunpack.c.l.b16 %v10808
    %v10888 = vunpack.c.l.b16 %v10809
    %v10889 = vunpack.c.l.b16 %v10810
    %v10890 = vunpack.c.l.b16 %v10811
    %v10891 = vunpack.c.l.b16 %v10812
    %v10892 = vunpack.c.l.b16 %v10813
    %v10893 = vunpack.c.l.b16 %v10814
    %v10894 = vunpack.c.l.b16 %v10815
    %v10895 = vunpack.c.l.b16 %v10816
    %v10896 = vunpack.c.l.b16 %v10817
    %v10897 = vunpack.c.l.b16 %v10818
    %v10898 = vunpack.c.l.b16 %v10819
    %v10899 = vunpack.c.l.b16 %v10820
    %v10900 = vunpack.c.l.b16 %v10821
    %v10901 = vunpack.c.l.b16 %v10822
    %v10902 = vunpack.c.l.b16 %v10823
    %v10903 = vunpack.c.l.b16 %v10824
    %v10904 = vunpack.c.l.b16 %v10825
    %v10905 = vunpack.c.l.b16 %v10826
    %v10906 = vunpack.c.l.b16 %v10827
    %v10907 = vunpack.c.l.b16 %v10828
    %v10908 = vunpack.c.l.b16 %v10829
    %v10909 = vunpack.c.l.b16 %v10830
    %v10910 = vunpack.c.l.b16 %v10831
    %v10911 = vunpack.c.l.b16 %v10832
    %v10912 = vunpack.c.l.b16 %v10833
    %v10913 = vunpack.c.l.b16 %v10834
    %v10914 = vunpack.c.l.b16 %v10835
    %v10915 = vunpack.c.l.b16 %v10836
    %v10916 = vpack.c.b16 %v10881, %v10880
    %v10917 = vpack.c.b16 %v10883, %v10882
    %v10918 = vpack.c.b16 %v10885, %v10884
    %v10919 = vpack.c.b16 %v10887, %v10886
    %v10920 = vpack.c.b16 %v10889, %v10888
    %v10921 = vpack.c.b16 %v10891, %v10890
    %v10922 = vpack.c.b16 %v10893, %v10892
    %v10923 = vpack.c.b16 %v10895, %v10894
    %v10924 = vpack.c.b16 %v10897, %v10896
    %v10925 = vpack.c.b16 %v10899, %v10898
    %v10926 = vpack.c.b16 %v10901, %v10900
    %v10927 = vpack.c.b16 %v10903, %v10902
    %v10928 = vpack.c.b16 %v10905, %v10904
    %v10929 = vpack.c.b16 %v10907, %v10906
    %v10930 = vpack.c.b16 %v10909, %v10908
    %v10931 = vpack.c.b16 %v10911, %v10910
    %v10932 = vpack.c.b16 %v10913, %v10912
    %v10933 = vpack.c.b16 %v10915, %v10914
    %v10953 = vsel %vm199, %v10797, 0
    %v10956 = vsel %vm199, %v10800, 0
    %10958 = vmatprep.subr.bf16.mxu0 0
    %10959 = vmatpush1.bf16.msra.mxu0 %v10916
    %10960 = vmatprep.subr.bf16.mxu0 0
    %10961 = vmatpush1.bf16.msra.mxu0 %v10917
    %10962 = vmatprep.subr.bf16.mxu0 0
    %10963 = vmatpush1.bf16.msra.mxu0 %v10918
    %10964 = vmatprep.subr.bf16.mxu0 0
    %10965 = vmatpush1.bf16.msra.mxu0 %v10919
    %10966 = vmatprep.subr.bf16.mxu0 0
    %10967 = vmatpush1.bf16.msra.mxu0 %v10920
    %10968 = vmatprep.subr.bf16.mxu0 0
    %10969 = vmatpush1.bf16.msra.mxu0 %v10921
    %10970 = vmatprep.subr.bf16.mxu0 0
    %10971 = vmatpush1.bf16.msra.mxu0 %v10922
    %10972 = vmatprep.subr.bf16.mxu0 0
    %10973 = vmatpush1.bf16.msra.mxu0 %v10923
    %10974 = vmatprep.subr.bf16.mxu0 0
    %10975 = vmatpush1.bf16.msra.mxu0 %v10924
    %10976 = vmatprep.subr.bf16.mxu0 0
    %10977 = vmatpush1.bf16.msra.mxu0 %v10925
    %10978 = vmatprep.subr.bf16.mxu0 0
    %10979 = vmatpush1.bf16.msra.mxu0 %v10926
    %10980 = vmatprep.subr.bf16.mxu0 0
    %10981 = vmatpush1.bf16.msra.mxu0 %v10927
    %10982 = vmatprep.subr.bf16.mxu0 0
    %10983 = vmatpush1.bf16.msra.mxu0 %v10928
    %10984 = vmatprep.subr.bf16.mxu0 0
    %10985 = vmatpush1.bf16.msra.mxu0 %v10929
    %10986 = vmatprep.subr.bf16.mxu0 0
    %10987 = vmatpush1.bf16.msra.mxu0 %v10930
    %10988 = vmatprep.subr.bf16.mxu0 0
    %10989 = vmatpush1.bf16.msra.mxu0 %v10931
    %10990 = vmatprep.mubr.bf16.mxu0 %v10796
    %10991 = vmatmul.mubr.bf16.gmra.mrb[0].mxu0 %v10795
    %v10992 = vpop.f32.mrb[0].mxu0
    %v10993 = vadd.f32 %v10842, %v10992
    %v10994 = vpop.f32.mrb[0].mxu0
    %v10995 = vpop.f32.mrb[0].mxu0
    %v10996 = vadd.f32 %v10842, %v10995
    %v10997 = vpop.f32.mrb[0].mxu0
    %10998 = vmatprep.mubr.bf16.mxu0 %v10799
    %10999 = vmatmul.mubr.bf16.gmra.mrb[0].mxu0 %v10798
    %v11000 = vpop.f32.mrb[0].mxu0
    %v11001 = vadd.f32 %v10842, %v11000
    %v11002 = vpop.f32.mrb[0].mxu0
    %v11003 = vpop.f32.mrb[0].mxu0
    %v11004 = vadd.f32 %v10842, %v11003
    %v11005 = vpop.f32.mrb[0].mxu0
    %11006 = vdwg.mxu0
    %11007 = vmatprep.subr.bf16.mxu0 0
    %11008 = vmatpush1.bf16.msra.mxu0 %v10932
    %11009 = vmatprep.subr.bf16.mxu0 0
    %11010 = vmatpush1.bf16.msra.mxu0 %v10933
    %11011 = vmatprep.subr.bf16.mxu0 0
    %11012 = vmatpush1.bf16.msra.mxu0 0
    %11013 = vmatprep.subr.bf16.mxu0 0
    %11014 = vmatpush1.bf16.msra.mxu0 0
    %11015 = vmatprep.subr.bf16.mxu0 0
    %11016 = vmatpush1.bf16.msra.mxu0 0
    %11017 = vmatprep.subr.bf16.mxu0 0
    %11018 = vmatpush1.bf16.msra.mxu0 0
    %11019 = vmatprep.subr.bf16.mxu0 0
    %11020 = vmatpush1.bf16.msra.mxu0 0
    %11021 = vmatprep.subr.bf16.mxu0 0
    %11022 = vmatpush1.bf16.msra.mxu0 0
    %11023 = vmatprep.subr.bf16.mxu0 0
    %11024 = vmatpush1.bf16.msra.mxu0 0
    %11025 = vmatprep.subr.bf16.mxu0 0
    %11026 = vmatpush1.bf16.msra.mxu0 0
    %11027 = vmatprep.subr.bf16.mxu0 0
    %11028 = vmatpush1.bf16.msra.mxu0 0
    %11029 = vmatprep.subr.bf16.mxu0 0
    %11030 = vmatpush1.bf16.msra.mxu0 0
    %11031 = vmatprep.subr.bf16.mxu0 0
    %11032 = vmatpush1.bf16.msra.mxu0 0
    %11033 = vmatprep.subr.bf16.mxu0 0
    %11034 = vmatpush1.bf16.msra.mxu0 0
    %11035 = vmatprep.subr.bf16.mxu0 0
    %11036 = vmatpush1.bf16.msra.mxu0 0
    %11037 = vmatprep.subr.bf16.mxu0 0
    %11038 = vmatpush1.bf16.msra.mxu0 0
    %11039 = vmatprep.mubr.bf16.mxu0 0
    %11040 = vmatmul.mubr.bf16.gmra.mrb[0].mxu0 %v10953
    %v11041 = vpop.f32.mrb[0].mxu0
    %v11042 = vadd.f32 %v10993, %v11041
    %v11043 = vpop.f32.mrb[0].mxu0
    %v11044 = vpop.f32.mrb[0].mxu0
    %v11045 = vadd.f32 %v10996, %v11044
    %v11046 = vpop.f32.mrb[0].mxu0
    %11047 = vmatprep.mubr.bf16.mxu0 0
    %11048 = vmatmul.mubr.bf16.gmra.mrb[0].mxu0 %v10956
    %v11049 = vpop.f32.mrb[0].mxu0
    %v11050 = vadd.f32 %v11001, %v11049
    %v11051 = vpop.f32.mrb[0].mxu0
    %v11052 = vpop.f32.mrb[0].mxu0
    %v11053 = vadd.f32 %v11004, %v11052
    %v11054 = vpop.f32.mrb[0].mxu0
    %11055 = vdwg.mxu0
    %v11056 = vmax.f32 %v11042, 0.0
    %v11057 = vmax.f32 %v11045, 0.0
    %v11058 = vmax.f32 %v11050, 0.0
    %v11059 = vmax.f32 %v11053, 0.0
    %v11060 = vpack.c.bf16 %v11057, %v11056
    %v11061 = vpack.c.bf16 %v11059, %v11058
    %v11062 = vld [vmem:[%s1] sm:$0x1]
    %v11065 = vunpack.c.l.b16 %v11060
    %v11066 = vunpack.c.l.b16 %v11061
    %v11067 = vrot.slane %v11066, 7
    %vm11068 = vcmask 1041409
    %v11069 = vsel %vm11068, %v11067, %v11065
    %v11070 = vpack.c.b16 %v11069, %v11069
    %v11071 = vrot.slane %v11065, 1
    %v11072 = vsel %vm11068, %v11066, %v11071
    %v11073 = vpack.c.b16 %v11072, %v11072
    %11074 = vrot.lane.b32.xlu0 %v11073, 64
    %v11075 = vpop.permute.xlu0 %11074
    %v11076 = vrot.slane %v11065, 2
    %v11077 = vrot.slane %v11066, 1
    %v11078 = vsel %vm11068, %v11077, %v11076
    %v11079 = vpack.c.b16 %v11078, %v11078
    %v11080 = vrot.slane %v11065, 3
    %v11081 = vrot.slane %v11066, 2
    %v11082 = vsel %vm11068, %v11081, %v11080
    %v11083 = vpack.c.b16 %v11082, %v11082
    %11084 = vrot.lane.b32.xlu0 %v11083, 64
    %v11085 = vpop.permute.xlu0 %11084
    %v11086 = vrot.slane %v11065, 4
    %v11087 = vrot.slane %v11066, 3
    %v11088 = vsel %vm11068, %v11087, %v11086
    %v11089 = vpack.c.b16 %v11088, %v11088
    %v11090 = vrot.slane %v11065, 5
    %v11091 = vrot.slane %v11066, 4
    %v11092 = vsel %vm11068, %v11091, %v11090
    %v11093 = vpack.c.b16 %v11092, %v11092
    %11094 = vrot.lane.b32.xlu0 %v11093, 64
    %v11095 = vpop.permute.xlu0 %11094
    %v11096 = vrot.slane %v11065, 6
    %v11097 = vrot.slane %v11066, 5
    %v11098 = vsel %vm11068, %v11097, %v11096
    %v11099 = vpack.c.b16 %v11098, %v11098
    %v11100 = vrot.slane %v11065, 7
    %v11101 = vrot.slane %v11066, 6
    %v11102 = vsel %vm11068, %v11101, %v11100
    %v11103 = vpack.c.b16 %v11102, %v11102
    %11104 = vrot.lane.b32.xlu0 %v11103, 64
    %v11105 = vpop.permute.xlu0 %11104
    %v11106 = vunpack.c.h.b16 %v11060
    %v11107 = vunpack.c.h.b16 %v11061
    %v11108 = vrot.slane %v11107, 7
    %v11109 = vsel %vm11068, %v11108, %v11106
    %v11110 = vpack.c.b16 %v11109, %v11109
    %v11111 = vrot.slane %v11106, 1
    %v11112 = vsel %vm11068, %v11107, %v11111
    %v11113 = vpack.c.b16 %v11112, %v11112
    %11114 = vrot.lane.b32.xlu0 %v11113, 64
    %v11115 = vpop.permute.xlu0 %11114
    %v11116 = vrot.slane %v11106, 2
    %v11117 = vrot.slane %v11107, 1
    %v11118 = vsel %vm11068, %v11117, %v11116
    %v11119 = vpack.c.b16 %v11118, %v11118
    %v11120 = vrot.slane %v11106, 3
    %v11121 = vrot.slane %v11107, 2
    %v11122 = vsel %vm11068, %v11121, %v11120
    %v11123 = vpack.c.b16 %v11122, %v11122
    %11124 = vrot.lane.b32.xlu0 %v11123, 64
    %v11125 = vpop.permute.xlu0 %11124
    %v11126 = vrot.slane %v11106, 4
    %v11127 = vrot.slane %v11107, 3
    %v11128 = vsel %vm11068, %v11127, %v11126
    %v11129 = vpack.c.b16 %v11128, %v11128
    %v11130 = vrot.slane %v11106, 5
    %v11131 = vrot.slane %v11107, 4
    %v11132 = vsel %vm11068, %v11131, %v11130
    %v11133 = vpack.c.b16 %v11132, %v11132
    %11134 = vrot.lane.b32.xlu0 %v11133, 64
    %v11135 = vpop.permute.xlu0 %11134
    %v11136 = vrot.slane %v11106, 6
    %v11137 = vrot.slane %v11107, 5
    %v11138 = vsel %vm11068, %v11137, %v11136
    %v11139 = vpack.c.b16 %v11138, %v11138
    %v11140 = vrot.slane %v11106, 7
    %v11141 = vrot.slane %v11107, 6
    %v11142 = vsel %vm11068, %v11141, %v11140
    %v11143 = vpack.c.b16 %v11142, %v11142
    %11144 = vrot.lane.b32.xlu0 %v11143, 64
    %v11145 = vpop.permute.xlu0 %11144
    %v11148 = vsel %vm204, %v11070, %v11075
    %v11152 = vsel %vm204, %v11079, %v11085
    %v11156 = vsel %vm204, %v11089, %v11095
    %v11160 = vsel %vm204, %v11099, %v11105
    %v11164 = vsel %vm204, %v11110, %v11115
    %v11168 = vsel %vm204, %v11119, %v11125
    %v11172 = vsel %vm204, %v11129, %v11135
    %v11176 = vsel %vm204, %v11139, %v11145
    %v11178 = vld [vmem:[#allocation7] sm:$0xff]
    %v11179 = vld [vmem:[#allocation7 + $0x8] sm:$0xff]
    %v11180 = vld [vmem:[#allocation7 + $0x10] sm:$0xff]
    %v11181 = vld [vmem:[#allocation7 + $0x18] sm:$0xff]
    %v11182 = vld [vmem:[#allocation7 + $0x20] sm:$0xff]
    %v11183 = vld [vmem:[#allocation7 + $0x28] sm:$0xff]
    %v11184 = vld [vmem:[#allocation7 + $0x30] sm:$0xff]
    %v11185 = vld [vmem:[#allocation7 + $0x38] sm:$0xff]
    %v11186 = vld [vmem:[#allocation7 + $0x40] sm:$0xff]
    %v11187 = vld [vmem:[#allocation7 + $0x48] sm:$0xff]
    %v11188 = vld [vmem:[#allocation7 + $0x50] sm:$0xff]
    %v11189 = vld [vmem:[#allocation7 + $0x58] sm:$0xff]
    %v11190 = vld [vmem:[#allocation7 + $0x60] sm:$0xff]
    %v11191 = vld [vmem:[#allocation7 + $0x68] sm:$0xff]
    %v11192 = vld [vmem:[#allocation7 + $0x70] sm:$0xff]
    %v11193 = vld [vmem:[#allocation7 + $0x78] sm:$0xff]
    %v11194 = vld [vmem:[#allocation7 + $0x80] sm:$0xff]
    %v11195 = vld [vmem:[#allocation7 + $0x88] sm:$0xff]
    %v11196 = vld [vmem:[#allocation7 + $0x90] sm:$0xff]
    %v11197 = vld [vmem:[#allocation7 + $0x98] sm:$0xff]
    %v11198 = vld [vmem:[#allocation7 + $0xa0] sm:$0xff]
    %v11199 = vld [vmem:[#allocation7 + $0xa8] sm:$0xff]
    %v11200 = vld [vmem:[#allocation7 + $0xb0] sm:$0xff]
    %v11201 = vld [vmem:[#allocation7 + $0xb8] sm:$0xff]
    %v11202 = vld [vmem:[#allocation7 + $0xc0] sm:$0xff]
    %v11203 = vld [vmem:[#allocation7 + $0xc8] sm:$0xff]
    %v11204 = vld [vmem:[#allocation7 + $0xd0] sm:$0xff]
    %v11205 = vld [vmem:[#allocation7 + $0xd8] sm:$0xff]
    %v11206 = vld [vmem:[#allocation7 + $0xe0] sm:$0xff]
    %v11207 = vld [vmem:[#allocation7 + $0xe8] sm:$0xff]
    %v11208 = vld [vmem:[#allocation7 + $0xf0] sm:$0xff]
    %v11209 = vld [vmem:[#allocation7 + $0xf8] sm:$0xff]
    %v11210 = vld [vmem:[#allocation7 + $0x100] sm:$0xff]
    %v11211 = vld [vmem:[#allocation7 + $0x108] sm:$0xff]
    %v11212 = vld [vmem:[#allocation7 + $0x110] sm:$0xff]
    %v11213 = vld [vmem:[#allocation7 + $0x118] sm:$0xff]
    %v11214 = vld [vmem:[#allocation7 + $0x120] sm:$0xff]
    %v11215 = vld [vmem:[#allocation7 + $0x128] sm:$0xff]
    %v11216 = vld [vmem:[#allocation7 + $0x130] sm:$0xff]
    %v11217 = vld [vmem:[#allocation7 + $0x138] sm:$0xff]
    %v11218 = vld [vmem:[#allocation7 + $0x140] sm:$0xff]
    %v11219 = vld [vmem:[#allocation7 + $0x148] sm:$0xff]
    %v11220 = vld [vmem:[#allocation7 + $0x150] sm:$0xff]
    %v11221 = vld [vmem:[#allocation7 + $0x158] sm:$0xff]
    %v11222 = vld [vmem:[#allocation7 + $0x160] sm:$0xff]
    %v11223 = vld [vmem:[#allocation7 + $0x168] sm:$0xff]
    %v11224 = vld [vmem:[#allocation7 + $0x170] sm:$0xff]
    %v11225 = vld [vmem:[#allocation7 + $0x178] sm:$0xff]
    %v11226 = vld [vmem:[#allocation7 + $0x180] sm:$0xff]
    %v11227 = vld [vmem:[#allocation7 + $0x188] sm:$0xff]
    %v11228 = vld [vmem:[#allocation7 + $0x190] sm:$0xff]
    %v11229 = vld [vmem:[#allocation7 + $0x198] sm:$0xff]
    %v11230 = vld [vmem:[#allocation7 + $0x1a0] sm:$0xff]
    %v11231 = vld [vmem:[#allocation7 + $0x1a8] sm:$0xff]
    %v11232 = vld [vmem:[#allocation7 + $0x1b0] sm:$0xff]
    %v11233 = vld [vmem:[#allocation7 + $0x1b8] sm:$0xff]
    %v11234 = vld [vmem:[#allocation7 + $0x1c0] sm:$0xff]
    %v11235 = vld [vmem:[#allocation7 + $0x1c8] sm:$0xff]
    %v11236 = vld [vmem:[#allocation7 + $0x1d0] sm:$0xff]
    %v11237 = vld [vmem:[#allocation7 + $0x1d8] sm:$0xff]
    %v11238 = vld [vmem:[#allocation7 + $0x1e0] sm:$0xff]
    %v11239 = vld [vmem:[#allocation7 + $0x1e8] sm:$0xff]
    %v11240 = vld [vmem:[#allocation7 + $0x1f0] sm:$0xff]
    %v11241 = vld [vmem:[#allocation7 + $0x1f8] sm:$0xff]
    %v11242 = vld [vmem:[#allocation7 + $0x200] sm:$0xff]
    %v11243 = vld [vmem:[#allocation7 + $0x208] sm:$0xff]
    %v11244 = vld [vmem:[#allocation7 + $0x210] sm:$0xff]
    %v11245 = vld [vmem:[#allocation7 + $0x218] sm:$0xff]
    %v11246 = vld [vmem:[#allocation7 + $0x220] sm:$0xff]
    %v11247 = vld [vmem:[#allocation7 + $0x228] sm:$0xff]
    %v11248 = vld [vmem:[#allocation7 + $0x230] sm:$0xff]
    %v11249 = vld [vmem:[#allocation7 + $0x238] sm:$0xff]
    %v11250 = vld [vmem:[#allocation7 + $0x240] sm:$0xff]
    %v11251 = vld [vmem:[#allocation7 + $0x248] sm:$0xff]
    %v11252 = vld [vmem:[#allocation7 + $0x250] sm:$0xff]
    %v11253 = vld [vmem:[#allocation7 + $0x258] sm:$0xff]
    %v11254 = vld [vmem:[#allocation7 + $0x260] sm:$0xff]
    %v11255 = vld [vmem:[#allocation7 + $0x268] sm:$0xff]
    %v11256 = vld [vmem:[#allocation7 + $0x270] sm:$0xff]
    %v11257 = vld [vmem:[#allocation7 + $0x278] sm:$0xff]
    %v11258 = vld [vmem:[#allocation7 + $0x280] sm:$0xff]
    %v11259 = vld [vmem:[#allocation7 + $0x288] sm:$0xff]
    %v11260 = vld [vmem:[#allocation7 + $0x290] sm:$0xff]
    %v11261 = vld [vmem:[#allocation7 + $0x298] sm:$0xff]
    %v11262 = vld [vmem:[#allocation7 + $0x2a0] sm:$0xff]
    %v11263 = vld [vmem:[#allocation7 + $0x2a8] sm:$0xff]
    %v11264 = vld [vmem:[#allocation7 + $0x2b0] sm:$0xff]
    %v11265 = vld [vmem:[#allocation7 + $0x2b8] sm:$0xff]
    %v11266 = vld [vmem:[#allocation7 + $0x2c0] sm:$0xff]
    %v11267 = vld [vmem:[#allocation7 + $0x2c8] sm:$0xff]
    %v11268 = vld [vmem:[#allocation7 + $0x2d0] sm:$0xff]
    %v11269 = vld [vmem:[#allocation7 + $0x2d8] sm:$0xff]
    %v11270 = vld [vmem:[#allocation7 + $0x2e0] sm:$0xff]
    %v11271 = vld [vmem:[#allocation7 + $0x2e8] sm:$0xff]
    %v11272 = vld [vmem:[#allocation7 + $0x2f0] sm:$0xff]
    %v11273 = vld [vmem:[#allocation7 + $0x2f8] sm:$0xff]
    %v11274 = vld [vmem:[#allocation7 + $0x300] sm:$0xff]
    %v11275 = vld [vmem:[#allocation7 + $0x308] sm:$0xff]
    %v11276 = vld [vmem:[#allocation7 + $0x310] sm:$0xff]
    %v11277 = vld [vmem:[#allocation7 + $0x318] sm:$0xff]
    %v11278 = vld [vmem:[#allocation7 + $0x320] sm:$0xff]
    %v11279 = vld [vmem:[#allocation7 + $0x328] sm:$0xff]
    %v11280 = vld [vmem:[#allocation7 + $0x330] sm:$0xff]
    %v11281 = vld [vmem:[#allocation7 + $0x338] sm:$0xff]
    %v11282 = vld [vmem:[#allocation7 + $0x340] sm:$0xff]
    %v11283 = vld [vmem:[#allocation7 + $0x348] sm:$0xff]
    %v11284 = vld [vmem:[#allocation7 + $0x350] sm:$0xff]
    %v11285 = vld [vmem:[#allocation7 + $0x358] sm:$0xff]
    %v11286 = vld [vmem:[#allocation7 + $0x360] sm:$0xff]
    %v11287 = vld [vmem:[#allocation7 + $0x368] sm:$0xff]
    %v11288 = vld [vmem:[#allocation7 + $0x370] sm:$0xff]
    %v11289 = vld [vmem:[#allocation7 + $0x378] sm:$0xff]
    %v11290 = vld [vmem:[#allocation7 + $0x380] sm:$0xff]
    %v11291 = vld [vmem:[#allocation7 + $0x388] sm:$0xff]
    %v11292 = vld [vmem:[#allocation7 + $0x390] sm:$0xff]
    %v11293 = vld [vmem:[#allocation7 + $0x398] sm:$0xff]
    %v11294 = vld [vmem:[#allocation7 + $0x3a0] sm:$0xff]
    %v11295 = vld [vmem:[#allocation7 + $0x3a8] sm:$0xff]
    %v11296 = vld [vmem:[#allocation7 + $0x3b0] sm:$0xff]
    %v11297 = vld [vmem:[#allocation7 + $0x3b8] sm:$0xff]
    %v11298 = vld [vmem:[#allocation7 + $0x3c0] sm:$0xff]
    %v11299 = vld [vmem:[#allocation7 + $0x3c8] sm:$0xff]
    %v11300 = vld [vmem:[#allocation7 + $0x3d0] sm:$0xff]
    %v11301 = vld [vmem:[#allocation7 + $0x3d8] sm:$0xff]
    %v11302 = vld [vmem:[#allocation7 + $0x3e0] sm:$0xff]
    %v11303 = vld [vmem:[#allocation7 + $0x3e8] sm:$0xff]
    %v11304 = vld [vmem:[#allocation7 + $0x3f0] sm:$0xff]
    %v11305 = vld [vmem:[#allocation7 + $0x3f8] sm:$0xff]
    %v11306 = vld [vmem:[#allocation7 + $0x400] sm:$0xff]
    %v11307 = vld [vmem:[#allocation7 + $0x408] sm:$0xff]
    %v11308 = vld [vmem:[#allocation7 + $0x410] sm:$0xff]
    %v11309 = vld [vmem:[#allocation7 + $0x418] sm:$0xff]
    %v11310 = vld [vmem:[#allocation7 + $0x420] sm:$0xff]
    %v11311 = vld [vmem:[#allocation7 + $0x428] sm:$0xff]
    %v11312 = vld [vmem:[#allocation7 + $0x430] sm:$0xff]
    %v11313 = vld [vmem:[#allocation7 + $0x438] sm:$0xff]
    %v11314 = vld [vmem:[#allocation7 + $0x440] sm:$0xff]
    %v11315 = vld [vmem:[#allocation7 + $0x448] sm:$0xff]
    %v11316 = vld [vmem:[#allocation7 + $0x450] sm:$0xff]
    %v11317 = vld [vmem:[#allocation7 + $0x458] sm:$0xff]
    %v11318 = vld [vmem:[#allocation7 + $0x460] sm:$0xff]
    %v11319 = vld [vmem:[#allocation7 + $0x468] sm:$0xff]
    %v11320 = vld [vmem:[#allocation7 + $0x470] sm:$0xff]
    %v11321 = vld [vmem:[#allocation7 + $0x478] sm:$0xff]
    %v11322 = vld [vmem:[%s9] sm:$0x3]
    %v11324 = vlaneseq
    %v11325 = vshrl.u32 %v11324, 7
    %v11326 = vsub.s32 0, %v11325
    %v11327 = vrot.slane %v11322, %v11326
    %v11328 = vlaneseq
    %v11329 = vshrl.u32 %v11328, 7
    %v11330 = vsub.s32 1, %v11329
    %v11331 = vrot.slane %v11322, %v11330
    %v11478 = vunpack.c.l.b16 %v11178
    %v11479 = vunpack.c.h.b16 %v11178
    %v11480 = vunpack.c.l.b16 %v11179
    %v11481 = vunpack.c.h.b16 %v11179
    %v11482 = vunpack.c.l.b16 %v11180
    %v11483 = vunpack.c.h.b16 %v11180
    %v11484 = vunpack.c.l.b16 %v11181
    %v11485 = vunpack.c.h.b16 %v11181
    %v11486 = vunpack.c.l.b16 %v11182
    %v11487 = vunpack.c.h.b16 %v11182
    %v11488 = vunpack.c.l.b16 %v11183
    %v11489 = vunpack.c.h.b16 %v11183
    %v11490 = vunpack.c.l.b16 %v11184
    %v11491 = vunpack.c.h.b16 %v11184
    %v11492 = vunpack.c.l.b16 %v11185
    %v11493 = vunpack.c.h.b16 %v11185
    %v11494 = vunpack.c.l.b16 %v11186
    %v11495 = vunpack.c.h.b16 %v11186
    %v11496 = vunpack.c.l.b16 %v11187
    %v11497 = vunpack.c.h.b16 %v11187
    %v11498 = vunpack.c.l.b16 %v11188
    %v11499 = vunpack.c.h.b16 %v11188
    %v11500 = vunpack.c.l.b16 %v11189
    %v11501 = vunpack.c.h.b16 %v11189
    %v11502 = vunpack.c.l.b16 %v11190
    %v11503 = vunpack.c.h.b16 %v11190
    %v11504 = vunpack.c.l.b16 %v11191
    %v11505 = vunpack.c.h.b16 %v11191
    %v11506 = vunpack.c.l.b16 %v11192
    %v11507 = vunpack.c.h.b16 %v11192
    %v11508 = vunpack.c.l.b16 %v11193
    %v11509 = vunpack.c.h.b16 %v11193
    %v11510 = vunpack.c.l.b16 %v11194
    %v11511 = vunpack.c.h.b16 %v11194
    %v11512 = vunpack.c.l.b16 %v11195
    %v11513 = vunpack.c.h.b16 %v11195
    %v11514 = vunpack.c.l.b16 %v11196
    %v11515 = vunpack.c.h.b16 %v11196
    %v11516 = vunpack.c.l.b16 %v11197
    %v11517 = vunpack.c.h.b16 %v11197
    %v11518 = vunpack.c.l.b16 %v11198
    %v11519 = vunpack.c.h.b16 %v11198
    %v11520 = vunpack.c.l.b16 %v11199
    %v11521 = vunpack.c.h.b16 %v11199
    %v11522 = vunpack.c.l.b16 %v11200
    %v11523 = vunpack.c.h.b16 %v11200
    %v11524 = vunpack.c.l.b16 %v11201
    %v11525 = vunpack.c.h.b16 %v11201
    %v11526 = vunpack.c.l.b16 %v11202
    %v11527 = vunpack.c.h.b16 %v11202
    %v11528 = vunpack.c.l.b16 %v11203
    %v11529 = vunpack.c.h.b16 %v11203
    %v11530 = vunpack.c.l.b16 %v11204
    %v11531 = vunpack.c.h.b16 %v11204
    %v11532 = vunpack.c.l.b16 %v11205
    %v11533 = vunpack.c.h.b16 %v11205
    %v11534 = vunpack.c.l.b16 %v11206
    %v11535 = vunpack.c.h.b16 %v11206
    %v11536 = vunpack.c.l.b16 %v11207
    %v11537 = vunpack.c.h.b16 %v11207
    %v11538 = vunpack.c.l.b16 %v11208
    %v11539 = vunpack.c.h.b16 %v11208
    %v11540 = vunpack.c.l.b16 %v11209
    %v11541 = vunpack.c.h.b16 %v11209
    %v11542 = vunpack.c.l.b16 %v11210
    %v11543 = vunpack.c.h.b16 %v11210
    %v11544 = vunpack.c.l.b16 %v11211
    %v11545 = vunpack.c.h.b16 %v11211
    %v11546 = vunpack.c.l.b16 %v11212
    %v11547 = vunpack.c.h.b16 %v11212
    %v11548 = vunpack.c.l.b16 %v11213
    %v11549 = vunpack.c.h.b16 %v11213
    %v11550 = vunpack.c.l.b16 %v11214
    %v11551 = vunpack.c.h.b16 %v11214
    %v11552 = vunpack.c.l.b16 %v11215
    %v11553 = vunpack.c.h.b16 %v11215
    %v11554 = vunpack.c.l.b16 %v11216
    %v11555 = vunpack.c.h.b16 %v11216
    %v11556 = vunpack.c.l.b16 %v11217
    %v11557 = vunpack.c.h.b16 %v11217
    %v11558 = vunpack.c.l.b16 %v11218
    %v11559 = vunpack.c.h.b16 %v11218
    %v11560 = vunpack.c.l.b16 %v11219
    %v11561 = vunpack.c.h.b16 %v11219
    %v11562 = vunpack.c.l.b16 %v11220
    %v11563 = vunpack.c.h.b16 %v11220
    %v11564 = vunpack.c.l.b16 %v11221
    %v11565 = vunpack.c.h.b16 %v11221
    %v11566 = vunpack.c.l.b16 %v11222
    %v11567 = vunpack.c.h.b16 %v11222
    %v11568 = vunpack.c.l.b16 %v11223
    %v11569 = vunpack.c.h.b16 %v11223
    %v11570 = vunpack.c.l.b16 %v11224
    %v11571 = vunpack.c.h.b16 %v11224
    %v11572 = vunpack.c.l.b16 %v11225
    %v11573 = vunpack.c.h.b16 %v11225
    %v11574 = vunpack.c.l.b16 %v11226
    %v11575 = vunpack.c.h.b16 %v11226
    %v11576 = vunpack.c.l.b16 %v11227
    %v11577 = vunpack.c.h.b16 %v11227
    %v11578 = vunpack.c.l.b16 %v11228
    %v11579 = vunpack.c.h.b16 %v11228
    %v11580 = vunpack.c.l.b16 %v11229
    %v11581 = vunpack.c.h.b16 %v11229
    %v11582 = vunpack.c.l.b16 %v11230
    %v11583 = vunpack.c.h.b16 %v11230
    %v11584 = vunpack.c.l.b16 %v11231
    %v11585 = vunpack.c.h.b16 %v11231
    %v11586 = vunpack.c.l.b16 %v11232
    %v11587 = vunpack.c.h.b16 %v11232
    %v11588 = vunpack.c.l.b16 %v11233
    %v11589 = vunpack.c.h.b16 %v11233
    %v11590 = vunpack.c.l.b16 %v11234
    %v11591 = vunpack.c.h.b16 %v11234
    %v11592 = vunpack.c.l.b16 %v11235
    %v11593 = vunpack.c.h.b16 %v11235
    %v11594 = vunpack.c.l.b16 %v11236
    %v11595 = vunpack.c.h.b16 %v11236
    %v11596 = vunpack.c.l.b16 %v11237
    %v11597 = vunpack.c.h.b16 %v11237
    %v11598 = vunpack.c.l.b16 %v11238
    %v11599 = vunpack.c.h.b16 %v11238
    %v11600 = vunpack.c.l.b16 %v11239
    %v11601 = vunpack.c.h.b16 %v11239
    %v11602 = vunpack.c.l.b16 %v11240
    %v11603 = vunpack.c.h.b16 %v11240
    %v11604 = vunpack.c.l.b16 %v11241
    %v11605 = vunpack.c.h.b16 %v11241
    %v11606 = vunpack.c.l.b16 %v11242
    %v11607 = vunpack.c.h.b16 %v11242
    %v11608 = vunpack.c.l.b16 %v11243
    %v11609 = vunpack.c.h.b16 %v11243
    %v11610 = vunpack.c.l.b16 %v11244
    %v11611 = vunpack.c.h.b16 %v11244
    %v11612 = vunpack.c.l.b16 %v11245
    %v11613 = vunpack.c.h.b16 %v11245
    %v11614 = vunpack.c.l.b16 %v11246
    %v11615 = vunpack.c.h.b16 %v11246
    %v11616 = vunpack.c.l.b16 %v11247
    %v11617 = vunpack.c.h.b16 %v11247
    %v11618 = vunpack.c.l.b16 %v11248
    %v11619 = vunpack.c.h.b16 %v11248
    %v11620 = vunpack.c.l.b16 %v11249
    %v11621 = vunpack.c.h.b16 %v11249
    %v11622 = vunpack.c.l.b16 %v11250
    %v11623 = vunpack.c.h.b16 %v11250
    %v11624 = vunpack.c.l.b16 %v11251
    %v11625 = vunpack.c.h.b16 %v11251
    %v11626 = vunpack.c.l.b16 %v11252
    %v11627 = vunpack.c.h.b16 %v11252
    %v11628 = vunpack.c.l.b16 %v11253
    %v11629 = vunpack.c.h.b16 %v11253
    %v11630 = vunpack.c.l.b16 %v11254
    %v11631 = vunpack.c.h.b16 %v11254
    %v11632 = vunpack.c.l.b16 %v11255
    %v11633 = vunpack.c.h.b16 %v11255
    %v11634 = vunpack.c.l.b16 %v11256
    %v11635 = vunpack.c.h.b16 %v11256
    %v11636 = vunpack.c.l.b16 %v11257
    %v11637 = vunpack.c.h.b16 %v11257
    %v11638 = vunpack.c.l.b16 %v11258
    %v11639 = vunpack.c.h.b16 %v11258
    %v11640 = vunpack.c.l.b16 %v11259
    %v11641 = vunpack.c.h.b16 %v11259
    %v11642 = vunpack.c.l.b16 %v11260
    %v11643 = vunpack.c.h.b16 %v11260
    %v11644 = vunpack.c.l.b16 %v11261
    %v11645 = vunpack.c.h.b16 %v11261
    %v11646 = vunpack.c.l.b16 %v11262
    %v11647 = vunpack.c.h.b16 %v11262
    %v11648 = vunpack.c.l.b16 %v11263
    %v11649 = vunpack.c.h.b16 %v11263
    %v11650 = vunpack.c.l.b16 %v11264
    %v11651 = vunpack.c.h.b16 %v11264
    %v11652 = vunpack.c.l.b16 %v11265
    %v11653 = vunpack.c.h.b16 %v11265
    %v11654 = vunpack.c.l.b16 %v11266
    %v11655 = vunpack.c.h.b16 %v11266
    %v11656 = vunpack.c.l.b16 %v11267
    %v11657 = vunpack.c.h.b16 %v11267
    %v11658 = vunpack.c.l.b16 %v11268
    %v11659 = vunpack.c.h.b16 %v11268
    %v11660 = vunpack.c.l.b16 %v11269
    %v11661 = vunpack.c.h.b16 %v11269
    %v11662 = vunpack.c.l.b16 %v11270
    %v11663 = vunpack.c.h.b16 %v11270
    %v11664 = vunpack.c.l.b16 %v11271
    %v11665 = vunpack.c.h.b16 %v11271
    %v11666 = vunpack.c.l.b16 %v11272
    %v11667 = vunpack.c.h.b16 %v11272
    %v11668 = vunpack.c.l.b16 %v11273
    %v11669 = vunpack.c.h.b16 %v11273
    %v11670 = vunpack.c.l.b16 %v11274
    %v11671 = vunpack.c.h.b16 %v11274
    %v11672 = vunpack.c.l.b16 %v11275
    %v11673 = vunpack.c.h.b16 %v11275
    %v11674 = vunpack.c.l.b16 %v11276
    %v11675 = vunpack.c.h.b16 %v11276
    %v11676 = vunpack.c.l.b16 %v11277
    %v11677 = vunpack.c.h.b16 %v11277
    %v11678 = vunpack.c.l.b16 %v11278
    %v11679 = vunpack.c.h.b16 %v11278
    %v11680 = vunpack.c.l.b16 %v11279
    %v11681 = vunpack.c.h.b16 %v11279
    %v11682 = vunpack.c.l.b16 %v11280
    %v11683 = vunpack.c.h.b16 %v11280
    %v11684 = vunpack.c.l.b16 %v11281
    %v11685 = vunpack.c.h.b16 %v11281
    %v11686 = vunpack.c.l.b16 %v11282
    %v11687 = vunpack.c.h.b16 %v11282
    %v11688 = vunpack.c.l.b16 %v11283
    %v11689 = vunpack.c.h.b16 %v11283
    %v11690 = vunpack.c.l.b16 %v11284
    %v11691 = vunpack.c.h.b16 %v11284
    %v11692 = vunpack.c.l.b16 %v11285
    %v11693 = vunpack.c.h.b16 %v11285
    %v11694 = vunpack.c.l.b16 %v11286
    %v11695 = vunpack.c.h.b16 %v11286
    %v11696 = vunpack.c.l.b16 %v11287
    %v11697 = vunpack.c.h.b16 %v11287
    %v11698 = vunpack.c.l.b16 %v11288
    %v11699 = vunpack.c.h.b16 %v11288
    %v11700 = vunpack.c.l.b16 %v11289
    %v11701 = vunpack.c.h.b16 %v11289
    %v11702 = vunpack.c.l.b16 %v11290
    %v11703 = vunpack.c.h.b16 %v11290
    %v11704 = vunpack.c.l.b16 %v11291
    %v11705 = vunpack.c.h.b16 %v11291
    %v11706 = vunpack.c.l.b16 %v11292
    %v11707 = vunpack.c.h.b16 %v11292
    %v11708 = vunpack.c.l.b16 %v11293
    %v11709 = vunpack.c.h.b16 %v11293
    %v11710 = vunpack.c.l.b16 %v11294
    %v11711 = vunpack.c.h.b16 %v11294
    %v11712 = vunpack.c.l.b16 %v11295
    %v11713 = vunpack.c.h.b16 %v11295
    %v11714 = vunpack.c.l.b16 %v11296
    %v11715 = vunpack.c.h.b16 %v11296
    %v11716 = vunpack.c.l.b16 %v11297
    %v11717 = vunpack.c.h.b16 %v11297
    %v11718 = vunpack.c.l.b16 %v11298
    %v11719 = vunpack.c.h.b16 %v11298
    %v11720 = vunpack.c.l.b16 %v11299
    %v11721 = vunpack.c.h.b16 %v11299
    %v11722 = vunpack.c.l.b16 %v11300
    %v11723 = vunpack.c.h.b16 %v11300
    %v11724 = vunpack.c.l.b16 %v11301
    %v11725 = vunpack.c.h.b16 %v11301
    %v11726 = vunpack.c.l.b16 %v11302
    %v11727 = vunpack.c.h.b16 %v11302
    %v11728 = vunpack.c.l.b16 %v11303
    %v11729 = vunpack.c.h.b16 %v11303
    %v11730 = vunpack.c.l.b16 %v11304
    %v11731 = vunpack.c.h.b16 %v11304
    %v11732 = vunpack.c.l.b16 %v11305
    %v11733 = vunpack.c.h.b16 %v11305
    %v11734 = vunpack.c.l.b16 %v11306
    %v11735 = vunpack.c.h.b16 %v11306
    %v11736 = vunpack.c.l.b16 %v11307
    %v11737 = vunpack.c.h.b16 %v11307
    %v11738 = vunpack.c.l.b16 %v11308
    %v11739 = vunpack.c.h.b16 %v11308
    %v11740 = vunpack.c.l.b16 %v11309
    %v11741 = vunpack.c.h.b16 %v11309
    %v11742 = vunpack.c.l.b16 %v11310
    %v11743 = vunpack.c.h.b16 %v11310
    %v11744 = vunpack.c.l.b16 %v11311
    %v11745 = vunpack.c.h.b16 %v11311
    %v11746 = vunpack.c.l.b16 %v11312
    %v11747 = vunpack.c.h.b16 %v11312
    %v11748 = vunpack.c.l.b16 %v11313
    %v11749 = vunpack.c.h.b16 %v11313
    %v11750 = vunpack.c.l.b16 %v11314
    %v11751 = vunpack.c.h.b16 %v11314
    %v11752 = vunpack.c.l.b16 %v11315
    %v11753 = vunpack.c.h.b16 %v11315
    %v11754 = vunpack.c.l.b16 %v11316
    %v11755 = vunpack.c.h.b16 %v11316
    %v11756 = vunpack.c.l.b16 %v11317
    %v11757 = vunpack.c.h.b16 %v11317
    %v11758 = vunpack.c.l.b16 %v11318
    %v11759 = vunpack.c.h.b16 %v11318
    %v11760 = vunpack.c.l.b16 %v11319
    %v11761 = vunpack.c.h.b16 %v11319
    %v11762 = vunpack.c.l.b16 %v11320
    %v11763 = vunpack.c.h.b16 %v11320
    %v11764 = vunpack.c.l.b16 %v11321
    %v11765 = vunpack.c.h.b16 %v11321
    %v11766 = vpack.c.b16 %v11480, %v11478
    %v11767 = vpack.c.b16 %v11481, %v11479
    %v11768 = vpack.c.b16 %v11484, %v11482
    %v11769 = vpack.c.b16 %v11485, %v11483
    %v11770 = vpack.c.b16 %v11488, %v11486
    %v11771 = vpack.c.b16 %v11489, %v11487
    %v11772 = vpack.c.b16 %v11492, %v11490
    %v11773 = vpack.c.b16 %v11493, %v11491
    %v11774 = vpack.c.b16 %v11496, %v11494
    %v11775 = vpack.c.b16 %v11497, %v11495
    %v11776 = vpack.c.b16 %v11500, %v11498
    %v11777 = vpack.c.b16 %v11501, %v11499
    %v11778 = vpack.c.b16 %v11504, %v11502
    %v11779 = vpack.c.b16 %v11505, %v11503
    %v11780 = vpack.c.b16 %v11508, %v11506
    %v11781 = vpack.c.b16 %v11509, %v11507
    %v11782 = vpack.c.b16 %v11512, %v11510
    %v11783 = vpack.c.b16 %v11513, %v11511
    %v11784 = vpack.c.b16 %v11516, %v11514
    %v11785 = vpack.c.b16 %v11517, %v11515
    %v11786 = vpack.c.b16 %v11520, %v11518
    %v11787 = vpack.c.b16 %v11521, %v11519
    %v11788 = vpack.c.b16 %v11524, %v11522
    %v11789 = vpack.c.b16 %v11525, %v11523
    %v11790 = vpack.c.b16 %v11528, %v11526
    %v11791 = vpack.c.b16 %v11529, %v11527
    %v11792 = vpack.c.b16 %v11532, %v11530
    %v11793 = vpack.c.b16 %v11533, %v11531
    %v11794 = vpack.c.b16 %v11536, %v11534
    %v11795 = vpack.c.b16 %v11537, %v11535
    %v11796 = vpack.c.b16 %v11540, %v11538
    %v11797 = vpack.c.b16 %v11541, %v11539
    %v11798 = vpack.c.b16 %v11544, %v11542
    %v11799 = vpack.c.b16 %v11545, %v11543
    %v11800 = vpack.c.b16 %v11548, %v11546
    %v11801 = vpack.c.b16 %v11549, %v11547
    %v11802 = vpack.c.b16 %v11552, %v11550
    %v11803 = vpack.c.b16 %v11553, %v11551
    %v11804 = vpack.c.b16 %v11556, %v11554
    %v11805 = vpack.c.b16 %v11557, %v11555
    %v11806 = vpack.c.b16 %v11560, %v11558
    %v11807 = vpack.c.b16 %v11561, %v11559
    %v11808 = vpack.c.b16 %v11564, %v11562
    %v11809 = vpack.c.b16 %v11565, %v11563
    %v11810 = vpack.c.b16 %v11568, %v11566
    %v11811 = vpack.c.b16 %v11569, %v11567
    %v11812 = vpack.c.b16 %v11572, %v11570
    %v11813 = vpack.c.b16 %v11573, %v11571
    %v11814 = vpack.c.b16 %v11576, %v11574
    %v11815 = vpack.c.b16 %v11577, %v11575
    %v11816 = vpack.c.b16 %v11580, %v11578
    %v11817 = vpack.c.b16 %v11581, %v11579
    %v11818 = vpack.c.b16 %v11584, %v11582
    %v11819 = vpack.c.b16 %v11585, %v11583
    %v11820 = vpack.c.b16 %v11588, %v11586
    %v11821 = vpack.c.b16 %v11589, %v11587
    %v11822 = vpack.c.b16 %v11592, %v11590
    %v11823 = vpack.c.b16 %v11593, %v11591
    %v11824 = vpack.c.b16 %v11596, %v11594
    %v11825 = vpack.c.b16 %v11597, %v11595
    %v11826 = vpack.c.b16 %v11600, %v11598
    %v11827 = vpack.c.b16 %v11601, %v11599
    %v11828 = vpack.c.b16 %v11604, %v11602
    %v11829 = vpack.c.b16 %v11605, %v11603
    %v11830 = vpack.c.b16 %v11608, %v11606
    %v11831 = vpack.c.b16 %v11609, %v11607
    %v11832 = vpack.c.b16 %v11612, %v11610
    %v11833 = vpack.c.b16 %v11613, %v11611
    %v11834 = vpack.c.b16 %v11616, %v11614
    %v11835 = vpack.c.b16 %v11617, %v11615
    %v11836 = vpack.c.b16 %v11620, %v11618
    %v11837 = vpack.c.b16 %v11621, %v11619
    %v11838 = vpack.c.b16 %v11624, %v11622
    %v11839 = vpack.c.b16 %v11625, %v11623
    %v11840 = vpack.c.b16 %v11628, %v11626
    %v11841 = vpack.c.b16 %v11629, %v11627
    %v11842 = vpack.c.b16 %v11632, %v11630
    %v11843 = vpack.c.b16 %v11633, %v11631
    %v11844 = vpack.c.b16 %v11636, %v11634
    %v11845 = vpack.c.b16 %v11637, %v11635
    %v11846 = vpack.c.b16 %v11640, %v11638
    %v11847 = vpack.c.b16 %v11641, %v11639
    %v11848 = vpack.c.b16 %v11644, %v11642
    %v11849 = vpack.c.b16 %v11645, %v11643
    %v11850 = vpack.c.b16 %v11648, %v11646
    %v11851 = vpack.c.b16 %v11649, %v11647
    %v11852 = vpack.c.b16 %v11652, %v11650
    %v11853 = vpack.c.b16 %v11653, %v11651
    %v11854 = vpack.c.b16 %v11656, %v11654
    %v11855 = vpack.c.b16 %v11657, %v11655
    %v11856 = vpack.c.b16 %v11660, %v11658
    %v11857 = vpack.c.b16 %v11661, %v11659
    %v11858 = vpack.c.b16 %v11664, %v11662
    %v11859 = vpack.c.b16 %v11665, %v11663
    %v11860 = vpack.c.b16 %v11668, %v11666
    %v11861 = vpack.c.b16 %v11669, %v11667
    %v11862 = vpack.c.b16 %v11672, %v11670
    %v11863 = vpack.c.b16 %v11673, %v11671
    %v11864 = vpack.c.b16 %v11676, %v11674
    %v11865 = vpack.c.b16 %v11677, %v11675
    %v11866 = vpack.c.b16 %v11680, %v11678
    %v11867 = vpack.c.b16 %v11681, %v11679
    %v11868 = vpack.c.b16 %v11684, %v11682
    %v11869 = vpack.c.b16 %v11685, %v11683
    %v11870 = vpack.c.b16 %v11688, %v11686
    %v11871 = vpack.c.b16 %v11689, %v11687
    %v11872 = vpack.c.b16 %v11692, %v11690
    %v11873 = vpack.c.b16 %v11693, %v11691
    %v11874 = vpack.c.b16 %v11696, %v11694
    %v11875 = vpack.c.b16 %v11697, %v11695
    %v11876 = vpack.c.b16 %v11700, %v11698
    %v11877 = vpack.c.b16 %v11701, %v11699
    %v11878 = vpack.c.b16 %v11704, %v11702
    %v11879 = vpack.c.b16 %v11705, %v11703
    %v11880 = vpack.c.b16 %v11708, %v11706
    %v11881 = vpack.c.b16 %v11709, %v11707
    %v11882 = vpack.c.b16 %v11712, %v11710
    %v11883 = vpack.c.b16 %v11713, %v11711
    %v11884 = vpack.c.b16 %v11716, %v11714
    %v11885 = vpack.c.b16 %v11717, %v11715
    %v11886 = vpack.c.b16 %v11720, %v11718
    %v11887 = vpack.c.b16 %v11721, %v11719
    %v11888 = vpack.c.b16 %v11724, %v11722
    %v11889 = vpack.c.b16 %v11725, %v11723
    %v11890 = vpack.c.b16 %v11728, %v11726
    %v11891 = vpack.c.b16 %v11729, %v11727
    %v11892 = vpack.c.b16 %v11732, %v11730
    %v11893 = vpack.c.b16 %v11733, %v11731
    %v11894 = vpack.c.b16 %v11736, %v11734
    %v11895 = vpack.c.b16 %v11737, %v11735
    %v11896 = vpack.c.b16 %v11740, %v11738
    %v11897 = vpack.c.b16 %v11741, %v11739
    %v11898 = vpack.c.b16 %v11744, %v11742
    %v11899 = vpack.c.b16 %v11745, %v11743
    %v11900 = vpack.c.b16 %v11748, %v11746
    %v11901 = vpack.c.b16 %v11749, %v11747
    %v11902 = vpack.c.b16 %v11752, %v11750
    %v11903 = vpack.c.b16 %v11753, %v11751
    %v11904 = vpack.c.b16 %v11756, %v11754
    %v11905 = vpack.c.b16 %v11757, %v11755
    %v11906 = vpack.c.b16 %v11760, %v11758
    %v11907 = vpack.c.b16 %v11761, %v11759
    %v11908 = vpack.c.b16 %v11764, %v11762
    %v11909 = vpack.c.b16 %v11765, %v11763
    %12054 = vmatprep.subr.bf16.mxu0 %v11767
    %12055 = vmatpush1.bf16.msra.mxu0 %v11766
    %12056 = vmatprep.subr.bf16.mxu0 %v11769
    %12057 = vmatpush1.bf16.msra.mxu0 %v11768
    %12058 = vmatprep.subr.bf16.mxu0 %v11771
    %12059 = vmatpush1.bf16.msra.mxu0 %v11770
    %12060 = vmatprep.subr.bf16.mxu0 %v11773
    %12061 = vmatpush1.bf16.msra.mxu0 %v11772
    %12062 = vmatprep.subr.bf16.mxu0 %v11775
    %12063 = vmatpush1.bf16.msra.mxu0 %v11774
    %12064 = vmatprep.subr.bf16.mxu0 %v11777
    %12065 = vmatpush1.bf16.msra.mxu0 %v11776
    %12066 = vmatprep.subr.bf16.mxu0 %v11779
    %12067 = vmatpush1.bf16.msra.mxu0 %v11778
    %12068 = vmatprep.subr.bf16.mxu0 %v11781
    %12069 = vmatpush1.bf16.msra.mxu0 %v11780
    %12070 = vmatprep.subr.bf16.mxu0 %v11783
    %12071 = vmatpush1.bf16.msra.mxu0 %v11782
    %12072 = vmatprep.subr.bf16.mxu0 %v11785
    %12073 = vmatpush1.bf16.msra.mxu0 %v11784
    %12074 = vmatprep.subr.bf16.mxu0 %v11787
    %12075 = vmatpush1.bf16.msra.mxu0 %v11786
    %12076 = vmatprep.subr.bf16.mxu0 %v11789
    %12077 = vmatpush1.bf16.msra.mxu0 %v11788
    %12078 = vmatprep.subr.bf16.mxu0 %v11791
    %12079 = vmatpush1.bf16.msra.mxu0 %v11790
    %12080 = vmatprep.subr.bf16.mxu0 %v11793
    %12081 = vmatpush1.bf16.msra.mxu0 %v11792
    %12082 = vmatprep.subr.bf16.mxu0 %v11795
    %12083 = vmatpush1.bf16.msra.mxu0 %v11794
    %12084 = vmatprep.subr.bf16.mxu0 %v11797
    %12085 = vmatpush1.bf16.msra.mxu0 %v11796
    %12086 = vmatprep.mubr.bf16.mxu0 %v11152
    %12087 = vmatmul.mubr.bf16.gmra.mrb[0].mxu0 %v11148
    %v12088 = vpop.f32.mrb[0].mxu0
    %v12089 = vadd.f32 %v11327, %v12088
    %v12090 = vpop.f32.mrb[0].mxu0
    %v12091 = vadd.f32 %v11331, %v12090
    %v12092 = vpop.f32.mrb[0].mxu0
    %v12093 = vpop.f32.mrb[0].mxu0
    %12094 = vdwg.mxu0
    %12095 = vmatprep.subr.bf16.mxu0 %v11799
    %12096 = vmatpush1.bf16.msra.mxu0 %v11798
    %12097 = vmatprep.subr.bf16.mxu0 %v11801
    %12098 = vmatpush1.bf16.msra.mxu0 %v11800
    %12099 = vmatprep.subr.bf16.mxu0 %v11803
    %12100 = vmatpush1.bf16.msra.mxu0 %v11802
    %12101 = vmatprep.subr.bf16.mxu0 %v11805
    %12102 = vmatpush1.bf16.msra.mxu0 %v11804
    %12103 = vmatprep.subr.bf16.mxu0 %v11807
    %12104 = vmatpush1.bf16.msra.mxu0 %v11806
    %12105 = vmatprep.subr.bf16.mxu0 %v11809
    %12106 = vmatpush1.bf16.msra.mxu0 %v11808
    %12107 = vmatprep.subr.bf16.mxu0 %v11811
    %12108 = vmatpush1.bf16.msra.mxu0 %v11810
    %12109 = vmatprep.subr.bf16.mxu0 %v11813
    %12110 = vmatpush1.bf16.msra.mxu0 %v11812
    %12111 = vmatprep.subr.bf16.mxu0 %v11815
    %12112 = vmatpush1.bf16.msra.mxu0 %v11814
    %12113 = vmatprep.subr.bf16.mxu0 %v11817
    %12114 = vmatpush1.bf16.msra.mxu0 %v11816
    %12115 = vmatprep.subr.bf16.mxu0 %v11819
    %12116 = vmatpush1.bf16.msra.mxu0 %v11818
    %12117 = vmatprep.subr.bf16.mxu0 %v11821
    %12118 = vmatpush1.bf16.msra.mxu0 %v11820
    %12119 = vmatprep.subr.bf16.mxu0 %v11823
    %12120 = vmatpush1.bf16.msra.mxu0 %v11822
    %12121 = vmatprep.subr.bf16.mxu0 %v11825
    %12122 = vmatpush1.bf16.msra.mxu0 %v11824
    %12123 = vmatprep.subr.bf16.mxu0 %v11827
    %12124 = vmatpush1.bf16.msra.mxu0 %v11826
    %12125 = vmatprep.subr.bf16.mxu0 %v11829
    %12126 = vmatpush1.bf16.msra.mxu0 %v11828
    %12127 = vmatprep.mubr.bf16.mxu0 %v11160
    %12128 = vmatmul.mubr.bf16.gmra.mrb[0].mxu0 %v11156
    %v12129 = vpop.f32.mrb[0].mxu0
    %v12130 = vadd.f32 %v12089, %v12129
    %v12131 = vpop.f32.mrb[0].mxu0
    %v12132 = vadd.f32 %v12091, %v12131
    %v12133 = vpop.f32.mrb[0].mxu0
    %v12134 = vpop.f32.mrb[0].mxu0
    %12135 = vdwg.mxu0
    %12136 = vmatprep.subr.bf16.mxu0 %v11831
    %12137 = vmatpush1.bf16.msra.mxu0 %v11830
    %12138 = vmatprep.subr.bf16.mxu0 %v11833
    %12139 = vmatpush1.bf16.msra.mxu0 %v11832
    %12140 = vmatprep.subr.bf16.mxu0 %v11835
    %12141 = vmatpush1.bf16.msra.mxu0 %v11834
    %12142 = vmatprep.subr.bf16.mxu0 %v11837
    %12143 = vmatpush1.bf16.msra.mxu0 %v11836
    %12144 = vmatprep.subr.bf16.mxu0 %v11839
    %12145 = vmatpush1.bf16.msra.mxu0 %v11838
    %12146 = vmatprep.subr.bf16.mxu0 %v11841
    %12147 = vmatpush1.bf16.msra.mxu0 %v11840
    %12148 = vmatprep.subr.bf16.mxu0 %v11843
    %12149 = vmatpush1.bf16.msra.mxu0 %v11842
    %12150 = vmatprep.subr.bf16.mxu0 %v11845
    %12151 = vmatpush1.bf16.msra.mxu0 %v11844
    %12152 = vmatprep.subr.bf16.mxu0 %v11847
    %12153 = vmatpush1.bf16.msra.mxu0 %v11846
    %12154 = vmatprep.subr.bf16.mxu0 %v11849
    %12155 = vmatpush1.bf16.msra.mxu0 %v11848
    %12156 = vmatprep.subr.bf16.mxu0 %v11851
    %12157 = vmatpush1.bf16.msra.mxu0 %v11850
    %12158 = vmatprep.subr.bf16.mxu0 %v11853
    %12159 = vmatpush1.bf16.msra.mxu0 %v11852
    %12160 = vmatprep.subr.bf16.mxu0 %v11855
    %12161 = vmatpush1.bf16.msra.mxu0 %v11854
    %12162 = vmatprep.subr.bf16.mxu0 %v11857
    %12163 = vmatpush1.bf16.msra.mxu0 %v11856
    %12164 = vmatprep.subr.bf16.mxu0 %v11859
    %12165 = vmatpush1.bf16.msra.mxu0 %v11858
    %12166 = vmatprep.subr.bf16.mxu0 %v11861
    %12167 = vmatpush1.bf16.msra.mxu0 %v11860
    %12168 = vmatprep.mubr.bf16.mxu0 %v11168
    %12169 = vmatmul.mubr.bf16.gmra.mrb[0].mxu0 %v11164
    %v12170 = vpop.f32.mrb[0].mxu0
    %v12171 = vadd.f32 %v12130, %v12170
    %v12172 = vpop.f32.mrb[0].mxu0
    %v12173 = vadd.f32 %v12132, %v12172
    %v12174 = vpop.f32.mrb[0].mxu0
    %v12175 = vpop.f32.mrb[0].mxu0
    %12176 = vdwg.mxu0
    %12177 = vmatprep.subr.bf16.mxu0 %v11863
    %12178 = vmatpush1.bf16.msra.mxu0 %v11862
    %12179 = vmatprep.subr.bf16.mxu0 %v11865
    %12180 = vmatpush1.bf16.msra.mxu0 %v11864
    %12181 = vmatprep.subr.bf16.mxu0 %v11867
    %12182 = vmatpush1.bf16.msra.mxu0 %v11866
    %12183 = vmatprep.subr.bf16.mxu0 %v11869
    %12184 = vmatpush1.bf16.msra.mxu0 %v11868
    %12185 = vmatprep.subr.bf16.mxu0 %v11871
    %12186 = vmatpush1.bf16.msra.mxu0 %v11870
    %12187 = vmatprep.subr.bf16.mxu0 %v11873
    %12188 = vmatpush1.bf16.msra.mxu0 %v11872
    %12189 = vmatprep.subr.bf16.mxu0 %v11875
    %12190 = vmatpush1.bf16.msra.mxu0 %v11874
    %12191 = vmatprep.subr.bf16.mxu0 %v11877
    %12192 = vmatpush1.bf16.msra.mxu0 %v11876
    %12193 = vmatprep.subr.bf16.mxu0 %v11879
    %12194 = vmatpush1.bf16.msra.mxu0 %v11878
    %12195 = vmatprep.subr.bf16.mxu0 %v11881
    %12196 = vmatpush1.bf16.msra.mxu0 %v11880
    %12197 = vmatprep.subr.bf16.mxu0 %v11883
    %12198 = vmatpush1.bf16.msra.mxu0 %v11882
    %12199 = vmatprep.subr.bf16.mxu0 %v11885
    %12200 = vmatpush1.bf16.msra.mxu0 %v11884
    %12201 = vmatprep.subr.bf16.mxu0 %v11887
    %12202 = vmatpush1.bf16.msra.mxu0 %v11886
    %12203 = vmatprep.subr.bf16.mxu0 %v11889
    %12204 = vmatpush1.bf16.msra.mxu0 %v11888
    %12205 = vmatprep.subr.bf16.mxu0 %v11891
    %12206 = vmatpush1.bf16.msra.mxu0 %v11890
    %12207 = vmatprep.subr.bf16.mxu0 %v11893
    %12208 = vmatpush1.bf16.msra.mxu0 %v11892
    %12209 = vmatprep.mubr.bf16.mxu0 %v11176
    %12210 = vmatmul.mubr.bf16.gmra.mrb[0].mxu0 %v11172
    %v12211 = vpop.f32.mrb[0].mxu0
    %v12212 = vadd.f32 %v12171, %v12211
    %v12213 = vpop.f32.mrb[0].mxu0
    %v12214 = vadd.f32 %v12173, %v12213
    %v12215 = vpop.f32.mrb[0].mxu0
    %v12216 = vpop.f32.mrb[0].mxu0
    %12217 = vdwg.mxu0
    %12218 = vmatprep.subr.bf16.mxu0 %v11895
    %12219 = vmatpush1.bf16.msra.mxu0 %v11894
    %12220 = vmatprep.subr.bf16.mxu0 %v11897
    %12221 = vmatpush1.bf16.msra.mxu0 %v11896
    %12222 = vmatprep.subr.bf16.mxu0 %v11899
    %12223 = vmatpush1.bf16.msra.mxu0 %v11898
    %12224 = vmatprep.subr.bf16.mxu0 %v11901
    %12225 = vmatpush1.bf16.msra.mxu0 %v11900
    %12226 = vmatprep.subr.bf16.mxu0 %v11903
    %12227 = vmatpush1.bf16.msra.mxu0 %v11902
    %12228 = vmatprep.subr.bf16.mxu0 %v11905
    %12229 = vmatpush1.bf16.msra.mxu0 %v11904
    %12230 = vmatprep.subr.bf16.mxu0 %v11907
    %12231 = vmatpush1.bf16.msra.mxu0 %v11906
    %12232 = vmatprep.subr.bf16.mxu0 %v11909
    %12233 = vmatpush1.bf16.msra.mxu0 %v11908
    %12234 = vmatprep.subr.bf16.mxu0 0
    %12235 = vmatpush1.bf16.msra.mxu0 0
    %12236 = vmatprep.subr.bf16.mxu0 0
    %12237 = vmatpush1.bf16.msra.mxu0 0
    %12238 = vmatprep.subr.bf16.mxu0 0
    %12239 = vmatpush1.bf16.msra.mxu0 0
    %12240 = vmatprep.subr.bf16.mxu0 0
    %12241 = vmatpush1.bf16.msra.mxu0 0
    %12242 = vmatprep.subr.bf16.mxu0 0
    %12243 = vmatpush1.bf16.msra.mxu0 0
    %12244 = vmatprep.subr.bf16.mxu0 0
    %12245 = vmatpush1.bf16.msra.mxu0 0
    %12246 = vmatprep.subr.bf16.mxu0 0
    %12247 = vmatpush1.bf16.msra.mxu0 0
    %12248 = vmatprep.subr.bf16.mxu0 0
    %12249 = vmatpush1.bf16.msra.mxu0 0
    %12250 = vmatprep.mubr.bf16.mxu0 0
    %12251 = vmatmul.mubr.bf16.gmra.mrb[0].mxu0 %v11062
    %v12252 = vpop.f32.mrb[0].mxu0
    %v12253 = vadd.f32 %v12212, %v12252
    %v12254 = vpop.f32.mrb[0].mxu0
    %v12255 = vadd.f32 %v12214, %v12254
    %v12256 = vpop.f32.mrb[0].mxu0
    %v12257 = vpop.f32.mrb[0].mxu0
    %12258 = vdwg.mxu0
    %v12259 = vmax.f32 %v12253, 0.0
    %v12260 = vmax.f32 %v12255, 0.0
    %v12263 = vcombine.low %v12259, %v12260
    %v12265 = vunpack.c.l.s4 1983009808
    %v12266 = vunpack.c.0.s8 %v12265
    %v12267 = vlaneseq
    %v12268 = vshrl.u32 %v12267, 7
    %v12269 = vsub.s32 %v12266, %v12268
    %v12270 = vrot.slane %v12263, %v12269
    %12272 = vst [vmem:[#allocation10] sm:$0xf] %v12270
    // Predicated region
    $region46: #{forward.1} parent=1 // pred_check
      _
    $region47: #{forward.1} parent=1 // pred_check_branch
      %12274 = sbr.rel (0) target = $region49
    $region48: #{forward.1} parent=1 // pred_region
      %s12276 = ssub.s32 64, 64
      %12277 = vsyncadd [#allocation9], %s12276
      %s12279 = sshll.u32 [#allocation10], 4
      %s12280 = int_to_ptr.vmem [resolvable:$true] %s12279
      %12282 = dma.vmem_to_hbm [thread:$0]  %s12280, 64, %s10, [#allocation9]
    $region49: #{forward.1} parent=1 // pred_fallthru
      _
    // Predicated region
    $region50: #{forward.1} parent=1 // pred_check
      _
    $region51: #{forward.1} parent=1 // pred_check_branch
      %12284 = sbr.rel (0) target = $region53
    $region52: #{forward.1} parent=1 // pred_region
      %12285 = dma.done [#allocation9], 64
    $region53: #{forward.1} parent=1 // pred_fallthru
      _
    %12286 = vsyncpa [#allocation8], 1
    %12287 = vsyncpa [#allocation9], 1

</llo_original>
